<compile_context>
chip_gen: v7x
topology: tpu7x:2x2x1
jax: 0.10.0
libtpu: 0.0.40
codegen_flags: <defaults>
</compile_context>

<pallas_src>
import functools
import math

import jax
import jax.numpy as jnp
from jax.experimental import pallas as pl
from jax.experimental.pallas import tpu as pltpu

ACT_NONE, ACT_RELU = 0, 1


def _round_up(v, m):
    return ((v + m - 1) // m) * m


# ---------------------------------------------------------------------------
# Pallas kernel: fused 3x3 conv (+ folded BN / bias + optional ReLU)
# ---------------------------------------------------------------------------
def _conv3_kernel(x_ref, w_ref, b_ref, o_ref, *, wr, l_out, act):
    """One batch image.

    x_ref: (1, (H+2)*Wr, 3*Cin)  bf16  width-expanded, zero-padded, flattened
    w_ref: (3, 3*Cin, Cout)      bf16  row-tap weights (BN scale pre-folded)
    b_ref: (1, Cout)             f32   shift (BN beta / conv bias)
    o_ref: (1, H*Wr, Cout)       f32
    """
    # Row tap 0 starts the accumulator (no zeros init + add), taps 1,2 add in.
    acc = jnp.dot(x_ref[0, 0:l_out, :], w_ref[0],
                  preferred_element_type=jnp.float32)
    for di in (1, 2):                        # static 16-aligned sublane offsets
        off = di * wr
        acc = acc + jnp.dot(x_ref[0, off:off + l_out, :], w_ref[di],
                            preferred_element_type=jnp.float32)
    y = acc + b_ref[...]
    if act == ACT_RELU:
        y = jnp.maximum(y, 0.0)
    o_ref[0, :, :] = y.astype(o_ref.dtype)


def conv3x3(x, w, shift, act):
    """3x3 / stride-1 / pad-1 conv on an NHWC f32 input. Returns NHWC f32.

    w:     (3, 3*Cin, Cout) bf16, BN scale already folded in.
    shift: (1, Cout) f32.
    """
    B, H, W, cin = x.shape
    cout = w.shape[-1]
    wr = _round_up(W, 16)        # keep in-kernel sublane offsets tile-aligned
    xp = jnp.pad(x.astype(jnp.bfloat16), ((0, 0), (1, 1), (1, 1), (0, 0)))
    # 3x width-tap expansion (channel blocks are dj = 0, 1, 2) — vs 9x im2col.
    x3 = jnp.concatenate([xp[:, :, 0:W, :], xp[:, :, 1:W + 1, :],
                          xp[:, :, 2:W + 2, :]], axis=-1)      # (B, H+2, W, 3Cin)
    if wr != W:
        x3 = jnp.pad(x3, ((0, 0), (0, 0), (0, wr - W), (0, 0)))
    l_pad = (H + 2) * wr
    l_out = H * wr
    x3f = x3.reshape(B, l_pad, 3 * cin)

    out = pl.pallas_call(
        functools.partial(_conv3_kernel, wr=wr, l_out=l_out, act=act),
        out_shape=jax.ShapeDtypeStruct((B, l_out, cout), jnp.float32),
        grid_spec=pltpu.PrefetchScalarGridSpec(
            num_scalar_prefetch=0,
            grid=(B,),
            in_specs=[
                pl.BlockSpec((1, l_pad, 3 * cin), lambda b: (b, 0, 0)),
                pl.BlockSpec((3, 3 * cin, cout), lambda b: (0, 0, 0)),
                pl.BlockSpec((1, cout), lambda b: (0, 0)),
            ],
            out_specs=pl.BlockSpec((1, l_out, cout), lambda b: (b, 0, 0)),
        ),
        compiler_params=pltpu.CompilerParams(
            dimension_semantics=("parallel",)),
    )(x3f, w, shift)

    y = out.reshape(B, H, wr, cout)
    if wr != W:
        y = y[:, :, :W, :]
    return y


def basic_conv(x, p):        # BasicConv2d: conv (bias=False) + folded BN + ReLU
    return conv3x3(x, p["w"], p["b"], ACT_RELU)


def plain_conv(x, p):        # nn.Conv2d with bias, no activation (self.conv2)
    return conv3x3(x, p["w"], p["b"], ACT_NONE)


def avg_pool3(x, fuse_sigmoid=False):
    """AvgPool2d((3,3), stride=1, padding=1), count_include_pad=True (÷9)."""
    B, H, W, C = x.shape
    xp = jnp.pad(x, ((0, 0), (1, 1), (1, 1), (0, 0)))
    acc = xp[:, 0:H, 0:W, :]
    for di in range(3):
        for dj in range(3):
            if di == 0 and dj == 0:
                continue
            acc = acc + xp[:, di:di + H, dj:dj + W, :]
    y = acc * (1.0 / 9.0)
    return jax.nn.sigmoid(y) if fuse_sigmoid else y


# ---------------------------------------------------------------------------
# Parameters (deterministic stand-ins for trained weights)
# ---------------------------------------------------------------------------
class PG:
    def __init__(self, seed=0):
        self._key = jax.random.PRNGKey(seed)

    def _next(self):
        self._key, k = jax.random.split(self._key)
        return k

    def conv_w(self, cout, cin, k):
        fan_in = cin * k * k
        return (jax.random.normal(self._next(), (cout, cin, k, k), jnp.float32)
                / math.sqrt(fan_in))

    def bias(self, cout):
        return jax.random.normal(self._next(), (cout,), jnp.float32) * 0.01


def _pack_conv(w_oihw, shift):
    """Torch (Cout,Cin,3,3) -> kernel layout (3, 3*Cin, Cout) bf16 + (1,Cout) f32."""
    cout, cin = w_oihw.shape[0], w_oihw.shape[1]
    w = jnp.transpose(w_oihw, (2, 3, 1, 0))            # (di, dj, Cin, Cout)
    w = w.reshape(3, 3 * cin, cout).astype(jnp.bfloat16)
    return dict(w=w, b=shift.reshape(1, cout).astype(jnp.float32))


def make_basic_conv(pg, cin, cout):
    """Conv(bias=False) + eval-mode BatchNorm (gamma=1, beta=0, mean=0, var=1)."""
    w = pg.conv_w(cout, cin, 3)
    gamma = jnp.ones((cout,), jnp.float32)
    beta = jnp.zeros((cout,), jnp.float32)
    mean = jnp.zeros((cout,), jnp.float32)
    var = jnp.ones((cout,), jnp.float32)
    scale = gamma / jnp.sqrt(var + 1e-5)
    shift = beta - mean * scale
    w = w * scale[:, None, None, None]                 # fold BN scale into weights
    return _pack_conv(w, shift)


def make_conv2(pg, c):
    return _pack_conv(pg.conv_w(c, c, 3), pg.bias(c))


def make_asi(pg, c):
    return dict(conv1=make_basic_conv(pg, c, c),
                conv2=make_conv2(pg, c),
                conv_cat=make_basic_conv(pg, 2 * c, c),
                conv_cat_2=make_basic_conv(pg, 3 * c, c))


# ---------------------------------------------------------------------------
# ASI forward
# ---------------------------------------------------------------------------
def _up2_nearest(x):
    # TODO(synk): cus_sample is not defined in the reference code; a nearest 2x
    #             upsample is assumed for the shape-mismatch branch (unused here).
    return jnp.repeat(jnp.repeat(x, 2, axis=1), 2, axis=2)


@jax.jit
def asi_forward(params, left_nchw, right_nchw):
    left = jnp.transpose(left_nchw, (0, 2, 3, 1))      # NHWC end-to-end
    right = jnp.transpose(right_nchw, (0, 2, 3, 1))
    if right.shape != left.shape:
        right = _up2_nearest(right)
    B = left.shape[0]

    right = basic_conv(right, params["conv1"])
    out = basic_conv(jnp.concatenate([left, right], axis=-1), params["conv_cat"])

    # Three identical-weight conv2 applications -> one Pallas call (stack on batch).
    c = plain_conv(jnp.concatenate([out, right, left], axis=0), params["conv2"])
    c_out, c_right, c_left = c[:B], c[B:2 * B], c[2 * B:]

    out_g = avg_pool3(c_out, fuse_sigmoid=True)
    right = c_right * out_g
    left = c_left * out_g

    out2 = basic_conv(jnp.concatenate([left, right, out], axis=-1),
                      params["conv_cat_2"])

    # Two more conv2 applications -> one Pallas call.
    c2 = plain_conv(jnp.concatenate([out2 - avg_pool3(out2), out2], axis=0),
                    params["conv2"])
    y = c2[B:] * jax.nn.sigmoid(c2[:B])
    return jnp.transpose(y, (0, 3, 1, 2))              # back to NCHW


# ---------------------------------------------------------------------------
# Plain-JAX reference (same bf16-in / f32-accumulate precision) for validation
# ---------------------------------------------------------------------------
def _conv3_ref(x, p, act):
    cout = p["w"].shape[-1]
    cin = p["w"].shape[1] // 3
    w = p["w"].reshape(3, 3, cin, cout)                # HWIO, bf16, BN folded
    y = jax.lax.conv_general_dilated(
        x.astype(jnp.bfloat16), w, window_strides=(1, 1),
        padding=((1, 1), (1, 1)),
        dimension_numbers=("NHWC", "HWIO", "NHWC"),
        preferred_element_type=jnp.float32)
    y = y + p["b"]
    if act == ACT_RELU:
        y = jnp.maximum(y, 0.0)
    return y


@jax.jit
def asi_reference(params, left_nchw, right_nchw):
    left = jnp.transpose(left_nchw, (0, 2, 3, 1))
    right = jnp.transpose(right_nchw, (0, 2, 3, 1))
    if right.shape != left.shape:
        right = _up2_nearest(right)
    right = _conv3_ref(right, params["conv1"], ACT_RELU)
    out = _conv3_ref(jnp.concatenate([left, right], axis=-1),
                     params["conv_cat"], ACT_RELU)
    out_g = avg_pool3(_conv3_ref(out, params["conv2"], ACT_NONE),
                      fuse_sigmoid=True)
    right = _conv3_ref(right, params["conv2"], ACT_NONE) * out_g
    left = _conv3_ref(left, params["conv2"], ACT_NONE) * out_g
    out2 = _conv3_ref(jnp.concatenate([left, right, out], axis=-1),
                      params["conv_cat_2"], ACT_RELU)
    out_g2 = jax.nn.sigmoid(
        _conv3_ref(out2 - avg_pool3(out2), params["conv2"], ACT_NONE))
    y = _conv3_ref(out2, params["conv2"], ACT_NONE) * out_g2
    return jnp.transpose(y, (0, 3, 1, 2))


if __name__ == "__main__":
    B, C, H, W = 2, 32, 16, 16
    pg = PG(seed=0)
    params = make_asi(pg, C)
    k1, k2 = jax.random.split(jax.random.PRNGKey(0))
    left = jax.random.normal(k1, (B, C, H, W), jnp.float32)
    right = jax.random.normal(k2, (B, C, H, W), jnp.float32)

    y = jax.block_until_ready(asi_forward(params, left, right))
    assert y.shape == (B, C, H, W), y.shape
    assert bool(jnp.all(jnp.isfinite(y)))

    y_ref = jax.block_until_ready(asi_reference(params, left, right))
    err = float(jnp.max(jnp.abs(y - y_ref)))
    tol = 1e-2 + 1e-2 * float(jnp.max(jnp.abs(y_ref)))
    assert err < tol, f"max abs error vs reference: {err} (tol {tol})"

    print("KERNEL_OK")
</pallas_src>

<mosaic_0001>
module attributes {stable_mosaic.version = 11 : i64} {
  func.func @_conv3_kernel(%arg0: i32, %arg1: memref<1x288x96xbf16, #tpu.memory_space<vmem>>, %arg2: memref<3x96x32xbf16, #tpu.memory_space<vmem>>, %arg3: memref<1x32xf32, #tpu.memory_space<vmem>>, %arg4: memref<1x256x32xf32, #tpu.memory_space<vmem>>) attributes {dimension_semantics = [#tpu.dimension_semantics<parallel>], iteration_bounds = array<i64: 2>, scalar_prefetch = 0 : i64, scratch_operands = 0 : i64, tpu.core_type = #tpu.core_type<tc>, window_params = [{transform_indices = @transform_0, window_bounds = array<i64: 1, 288, 96>}, {pipeline_mode = #tpu.pipeline_mode<synchronous>, transform_indices = @transform_1, window_bounds = array<i64: 3, 96, 32>}, {pipeline_mode = #tpu.pipeline_mode<synchronous>, transform_indices = @transform_2, window_bounds = array<i64: 1, 32>}, {transform_indices = @transform_3, window_bounds = array<i64: 1, 256, 32>}]} {
    %c0 = arith.constant 0 : index
    %c0_0 = arith.constant 0 : index
    %c0_1 = arith.constant 0 : index
    %0 = vector.load %arg1[%c0, %c0_0, %c0_1] : memref<1x288x96xbf16, #tpu.memory_space<vmem>>, vector<1x256x96xbf16>
    %1 = vector.shape_cast %0 : vector<1x256x96xbf16> to vector<256x96xbf16>
    %c0_2 = arith.constant 0 : index
    %c0_3 = arith.constant 0 : index
    %c0_4 = arith.constant 0 : index
    %2 = vector.load %arg2[%c0_2, %c0_3, %c0_4] : memref<3x96x32xbf16, #tpu.memory_space<vmem>>, vector<1x96x32xbf16>
    %3 = vector.shape_cast %2 : vector<1x96x32xbf16> to vector<96x32xbf16>
    %cst = arith.constant dense<0.000000e+00> : vector<256x32xf32>
    %4 = tpu.matmul %1, %3, %cst {dimension_numbers = #tpu.dot_dimension_numbers<[1], [0], [0], [1], [0, 0, 1, 1], [], []>} : vector<256x96xbf16>, vector<96x32xbf16>, vector<256x32xf32> -> vector<256x32xf32>
    %c0_5 = arith.constant 0 : index
    %c16 = arith.constant 16 : index
    %c0_6 = arith.constant 0 : index
    %5 = vector.load %arg1[%c0_5, %c16, %c0_6] : memref<1x288x96xbf16, #tpu.memory_space<vmem>>, vector<1x256x96xbf16>
    %6 = vector.shape_cast %5 : vector<1x256x96xbf16> to vector<256x96xbf16>
    %c1 = arith.constant 1 : index
    %c0_7 = arith.constant 0 : index
    %c0_8 = arith.constant 0 : index
    %7 = vector.load %arg2[%c1, %c0_7, %c0_8] : memref<3x96x32xbf16, #tpu.memory_space<vmem>>, vector<1x96x32xbf16>
    %8 = vector.shape_cast %7 : vector<1x96x32xbf16> to vector<96x32xbf16>
    %cst_9 = arith.constant dense<0.000000e+00> : vector<256x32xf32>
    %9 = tpu.matmul %6, %8, %cst_9 {dimension_numbers = #tpu.dot_dimension_numbers<[1], [0], [0], [1], [0, 0, 1, 1], [], []>} : vector<256x96xbf16>, vector<96x32xbf16>, vector<256x32xf32> -> vector<256x32xf32>
    %10 = arith.addf %4, %9 : vector<256x32xf32>
    %c0_10 = arith.constant 0 : index
    %c32 = arith.constant 32 : index
    %c0_11 = arith.constant 0 : index
    %11 = vector.load %arg1[%c0_10, %c32, %c0_11] : memref<1x288x96xbf16, #tpu.memory_space<vmem>>, vector<1x256x96xbf16>
    %12 = vector.shape_cast %11 : vector<1x256x96xbf16> to vector<256x96xbf16>
    %c2 = arith.constant 2 : index
    %c0_12 = arith.constant 0 : index
    %c0_13 = arith.constant 0 : index
    %13 = vector.load %arg2[%c2, %c0_12, %c0_13] : memref<3x96x32xbf16, #tpu.memory_space<vmem>>, vector<1x96x32xbf16>
    %14 = vector.shape_cast %13 : vector<1x96x32xbf16> to vector<96x32xbf16>
    %cst_14 = arith.constant dense<0.000000e+00> : vector<256x32xf32>
    %15 = tpu.matmul %12, %14, %cst_14 {dimension_numbers = #tpu.dot_dimension_numbers<[1], [0], [0], [1], [0, 0, 1, 1], [], []>} : vector<256x96xbf16>, vector<96x32xbf16>, vector<256x32xf32> -> vector<256x32xf32>
    %16 = arith.addf %10, %15 : vector<256x32xf32>
    %c0_15 = arith.constant 0 : index
    %c0_16 = arith.constant 0 : index
    %17 = vector.load %arg3[%c0_15, %c0_16] : memref<1x32xf32, #tpu.memory_space<vmem>>, vector<1x32xf32>
    %18 = vector.broadcast %17 : vector<1x32xf32> to vector<256x32xf32>
    %19 = arith.addf %16, %18 : vector<256x32xf32>
    %cst_17 = arith.constant 0.000000e+00 : f32
    %20 = vector.broadcast %cst_17 : f32 to vector<256x32xf32>
    %21 = arith.maximumf %19, %20 : vector<256x32xf32>
    %c0_18 = arith.constant 0 : index
    %c0_19 = arith.constant 0 : index
    %c0_20 = arith.constant 0 : index
    %22 = vector.load %arg4[%c0_18, %c0_19, %c0_20] : memref<1x256x32xf32, #tpu.memory_space<vmem>>, vector<1x256x32xf32>
    %23 = vector.shape_cast %22 : vector<1x256x32xf32> to vector<256x32xf32>
    %24 = vector.shape_cast %21 : vector<256x32xf32> to vector<1x256x32xf32>
    tpu.vector_store %arg4[%c0_18, %c0_19, %c0_20], %24 {strides = array<i32>} : memref<1x256x32xf32, #tpu.memory_space<vmem>>, vector<1x256x32xf32>,
    return
  }
  func.func @transform_0(%arg0: i32) -> (i32, i32, i32) {
    %c0_i32 = arith.constant 0 : i32
    %c0_i32_0 = arith.constant 0 : i32
    %c0_i32_1 = arith.constant 0 : i32
    return %arg0, %c0_i32, %c0_i32_0 : i32, i32, i32
  }
  func.func @transform_1(%arg0: i32) -> (i32, i32, i32) {
    %c0_i32 = arith.constant 0 : i32
    %c0_i32_0 = arith.constant 0 : i32
    %c0_i32_1 = arith.constant 0 : i32
    %c0_i32_2 = arith.constant 0 : i32
    return %c0_i32, %c0_i32_0, %c0_i32_1 : i32, i32, i32
  }
  func.func @transform_2(%arg0: i32) -> (i32, i32) {
    %c0_i32 = arith.constant 0 : i32
    %c0_i32_0 = arith.constant 0 : i32
    %c0_i32_1 = arith.constant 0 : i32
    return %c0_i32, %c0_i32_0 : i32, i32
  }
  func.func @transform_3(%arg0: i32) -> (i32, i32, i32) {
    %c0_i32 = arith.constant 0 : i32
    %c0_i32_0 = arith.constant 0 : i32
    %c0_i32_1 = arith.constant 0 : i32
    return %arg0, %c0_i32, %c0_i32_0 : i32, i32, i32
  }
}

module attributes {stable_mosaic.version = 11 : i64} {
  func.func @_conv3_kernel(%arg0: i32, %arg1: memref<1x288x192xbf16, #tpu.memory_space<vmem>>, %arg2: memref<3x192x32xbf16, #tpu.memory_space<vmem>>, %arg3: memref<1x32xf32, #tpu.memory_space<vmem>>, %arg4: memref<1x256x32xf32, #tpu.memory_space<vmem>>) attributes {dimension_semantics = [#tpu.dimension_semantics<parallel>], iteration_bounds = array<i64: 2>, scalar_prefetch = 0 : i64, scratch_operands = 0 : i64, tpu.core_type = #tpu.core_type<tc>, window_params = [{transform_indices = @transform_0, window_bounds = array<i64: 1, 288, 192>}, {pipeline_mode = #tpu.pipeline_mode<synchronous>, transform_indices = @transform_1, window_bounds = array<i64: 3, 192, 32>}, {pipeline_mode = #tpu.pipeline_mode<synchronous>, transform_indices = @transform_2, window_bounds = array<i64: 1, 32>}, {transform_indices = @transform_3, window_bounds = array<i64: 1, 256, 32>}]} {
    %c0 = arith.constant 0 : index
    %c0_0 = arith.constant 0 : index
    %c0_1 = arith.constant 0 : index
    %0 = vector.load %arg1[%c0, %c0_0, %c0_1] : memref<1x288x192xbf16, #tpu.memory_space<vmem>>, vector<1x256x192xbf16>
    %1 = vector.shape_cast %0 : vector<1x256x192xbf16> to vector<256x192xbf16>
    %c0_2 = arith.constant 0 : index
    %c0_3 = arith.constant 0 : index
    %c0_4 = arith.constant 0 : index
    %2 = vector.load %arg2[%c0_2, %c0_3, %c0_4] : memref<3x192x32xbf16, #tpu.memory_space<vmem>>, vector<1x192x32xbf16>
    %3 = vector.shape_cast %2 : vector<1x192x32xbf16> to vector<192x32xbf16>
    %cst = arith.constant dense<0.000000e+00> : vector<256x32xf32>
    %4 = tpu.matmul %1, %3, %cst {dimension_numbers = #tpu.dot_dimension_numbers<[1], [0], [0], [1], [0, 0, 1, 1], [], []>} : vector<256x192xbf16>, vector<192x32xbf16>, vector<256x32xf32> -> vector<256x32xf32>
    %c0_5 = arith.constant 0 : index
    %c16 = arith.constant 16 : index
    %c0_6 = arith.constant 0 : index
    %5 = vector.load %arg1[%c0_5, %c16, %c0_6] : memref<1x288x192xbf16, #tpu.memory_space<vmem>>, vector<1x256x192xbf16>
    %6 = vector.shape_cast %5 : vector<1x256x192xbf16> to vector<256x192xbf16>
    %c1 = arith.constant 1 : index
    %c0_7 = arith.constant 0 : index
    %c0_8 = arith.constant 0 : index
    %7 = vector.load %arg2[%c1, %c0_7, %c0_8] : memref<3x192x32xbf16, #tpu.memory_space<vmem>>, vector<1x192x32xbf16>
    %8 = vector.shape_cast %7 : vector<1x192x32xbf16> to vector<192x32xbf16>
    %cst_9 = arith.constant dense<0.000000e+00> : vector<256x32xf32>
    %9 = tpu.matmul %6, %8, %cst_9 {dimension_numbers = #tpu.dot_dimension_numbers<[1], [0], [0], [1], [0, 0, 1, 1], [], []>} : vector<256x192xbf16>, vector<192x32xbf16>, vector<256x32xf32> -> vector<256x32xf32>
    %10 = arith.addf %4, %9 : vector<256x32xf32>
    %c0_10 = arith.constant 0 : index
    %c32 = arith.constant 32 : index
    %c0_11 = arith.constant 0 : index
    %11 = vector.load %arg1[%c0_10, %c32, %c0_11] : memref<1x288x192xbf16, #tpu.memory_space<vmem>>, vector<1x256x192xbf16>
    %12 = vector.shape_cast %11 : vector<1x256x192xbf16> to vector<256x192xbf16>
    %c2 = arith.constant 2 : index
    %c0_12 = arith.constant 0 : index
    %c0_13 = arith.constant 0 : index
    %13 = vector.load %arg2[%c2, %c0_12, %c0_13] : memref<3x192x32xbf16, #tpu.memory_space<vmem>>, vector<1x192x32xbf16>
    %14 = vector.shape_cast %13 : vector<1x192x32xbf16> to vector<192x32xbf16>
    %cst_14 = arith.constant dense<0.000000e+00> : vector<256x32xf32>
    %15 = tpu.matmul %12, %14, %cst_14 {dimension_numbers = #tpu.dot_dimension_numbers<[1], [0], [0], [1], [0, 0, 1, 1], [], []>} : vector<256x192xbf16>, vector<192x32xbf16>, vector<256x32xf32> -> vector<256x32xf32>
    %16 = arith.addf %10, %15 : vector<256x32xf32>
    %c0_15 = arith.constant 0 : index
    %c0_16 = arith.constant 0 : index
    %17 = vector.load %arg3[%c0_15, %c0_16] : memref<1x32xf32, #tpu.memory_space<vmem>>, vector<1x32xf32>
    %18 = vector.broadcast %17 : vector<1x32xf32> to vector<256x32xf32>
    %19 = arith.addf %16, %18 : vector<256x32xf32>
    %cst_17 = arith.constant 0.000000e+00 : f32
    %20 = vector.broadcast %cst_17 : f32 to vector<256x32xf32>
    %21 = arith.maximumf %19, %20 : vector<256x32xf32>
    %c0_18 = arith.constant 0 : index
    %c0_19 = arith.constant 0 : index
    %c0_20 = arith.constant 0 : index
    %22 = vector.load %arg4[%c0_18, %c0_19, %c0_20] : memref<1x256x32xf32, #tpu.memory_space<vmem>>, vector<1x256x32xf32>
    %23 = vector.shape_cast %22 : vector<1x256x32xf32> to vector<256x32xf32>
    %24 = vector.shape_cast %21 : vector<256x32xf32> to vector<1x256x32xf32>
    tpu.vector_store %arg4[%c0_18, %c0_19, %c0_20], %24 {strides = array<i32>} : memref<1x256x32xf32, #tpu.memory_space<vmem>>, vector<1x256x32xf32>,
    return
  }
  func.func @transform_0(%arg0: i32) -> (i32, i32, i32) {
    %c0_i32 = arith.constant 0 : i32
    %c0_i32_0 = arith.constant 0 : i32
    %c0_i32_1 = arith.constant 0 : i32
    return %arg0, %c0_i32, %c0_i32_0 : i32, i32, i32
  }
  func.func @transform_1(%arg0: i32) -> (i32, i32, i32) {
    %c0_i32 = arith.constant 0 : i32
    %c0_i32_0 = arith.constant 0 : i32
    %c0_i32_1 = arith.constant 0 : i32
    %c0_i32_2 = arith.constant 0 : i32
    return %c0_i32, %c0_i32_0, %c0_i32_1 : i32, i32, i32
  }
  func.func @transform_2(%arg0: i32) -> (i32, i32) {
    %c0_i32 = arith.constant 0 : i32
    %c0_i32_0 = arith.constant 0 : i32
    %c0_i32_1 = arith.constant 0 : i32
    return %c0_i32, %c0_i32_0 : i32, i32
  }
  func.func @transform_3(%arg0: i32) -> (i32, i32, i32) {
    %c0_i32 = arith.constant 0 : i32
    %c0_i32_0 = arith.constant 0 : i32
    %c0_i32_1 = arith.constant 0 : i32
    return %arg0, %c0_i32, %c0_i32_0 : i32, i32, i32
  }
}

module attributes {stable_mosaic.version = 11 : i64} {
  func.func @_conv3_kernel(%arg0: i32, %arg1: memref<1x288x96xbf16, #tpu.memory_space<vmem>>, %arg2: memref<3x96x32xbf16, #tpu.memory_space<vmem>>, %arg3: memref<1x32xf32, #tpu.memory_space<vmem>>, %arg4: memref<1x256x32xf32, #tpu.memory_space<vmem>>) attributes {dimension_semantics = [#tpu.dimension_semantics<parallel>], iteration_bounds = array<i64: 6>, scalar_prefetch = 0 : i64, scratch_operands = 0 : i64, tpu.core_type = #tpu.core_type<tc>, window_params = [{transform_indices = @transform_0, window_bounds = array<i64: 1, 288, 96>}, {pipeline_mode = #tpu.pipeline_mode<synchronous>, transform_indices = @transform_1, window_bounds = array<i64: 3, 96, 32>}, {pipeline_mode = #tpu.pipeline_mode<synchronous>, transform_indices = @transform_2, window_bounds = array<i64: 1, 32>}, {transform_indices = @transform_3, window_bounds = array<i64: 1, 256, 32>}]} {
    %c0 = arith.constant 0 : index
    %c0_0 = arith.constant 0 : index
    %c0_1 = arith.constant 0 : index
    %0 = vector.load %arg1[%c0, %c0_0, %c0_1] : memref<1x288x96xbf16, #tpu.memory_space<vmem>>, vector<1x256x96xbf16>
    %1 = vector.shape_cast %0 : vector<1x256x96xbf16> to vector<256x96xbf16>
    %c0_2 = arith.constant 0 : index
    %c0_3 = arith.constant 0 : index
    %c0_4 = arith.constant 0 : index
    %2 = vector.load %arg2[%c0_2, %c0_3, %c0_4] : memref<3x96x32xbf16, #tpu.memory_space<vmem>>, vector<1x96x32xbf16>
    %3 = vector.shape_cast %2 : vector<1x96x32xbf16> to vector<96x32xbf16>
    %cst = arith.constant dense<0.000000e+00> : vector<256x32xf32>
    %4 = tpu.matmul %1, %3, %cst {dimension_numbers = #tpu.dot_dimension_numbers<[1], [0], [0], [1], [0, 0, 1, 1], [], []>} : vector<256x96xbf16>, vector<96x32xbf16>, vector<256x32xf32> -> vector<256x32xf32>
    %c0_5 = arith.constant 0 : index
    %c16 = arith.constant 16 : index
    %c0_6 = arith.constant 0 : index
    %5 = vector.load %arg1[%c0_5, %c16, %c0_6] : memref<1x288x96xbf16, #tpu.memory_space<vmem>>, vector<1x256x96xbf16>
    %6 = vector.shape_cast %5 : vector<1x256x96xbf16> to vector<256x96xbf16>
    %c1 = arith.constant 1 : index
    %c0_7 = arith.constant 0 : index
    %c0_8 = arith.constant 0 : index
    %7 = vector.load %arg2[%c1, %c0_7, %c0_8] : memref<3x96x32xbf16, #tpu.memory_space<vmem>>, vector<1x96x32xbf16>
    %8 = vector.shape_cast %7 : vector<1x96x32xbf16> to vector<96x32xbf16>
    %cst_9 = arith.constant dense<0.000000e+00> : vector<256x32xf32>
    %9 = tpu.matmul %6, %8, %cst_9 {dimension_numbers = #tpu.dot_dimension_numbers<[1], [0], [0], [1], [0, 0, 1, 1], [], []>} : vector<256x96xbf16>, vector<96x32xbf16>, vector<256x32xf32> -> vector<256x32xf32>
    %10 = arith.addf %4, %9 : vector<256x32xf32>
    %c0_10 = arith.constant 0 : index
    %c32 = arith.constant 32 : index
    %c0_11 = arith.constant 0 : index
    %11 = vector.load %arg1[%c0_10, %c32, %c0_11] : memref<1x288x96xbf16, #tpu.memory_space<vmem>>, vector<1x256x96xbf16>
    %12 = vector.shape_cast %11 : vector<1x256x96xbf16> to vector<256x96xbf16>
    %c2 = arith.constant 2 : index
    %c0_12 = arith.constant 0 : index
    %c0_13 = arith.constant 0 : index
    %13 = vector.load %arg2[%c2, %c0_12, %c0_13] : memref<3x96x32xbf16, #tpu.memory_space<vmem>>, vector<1x96x32xbf16>
    %14 = vector.shape_cast %13 : vector<1x96x32xbf16> to vector<96x32xbf16>
    %cst_14 = arith.constant dense<0.000000e+00> : vector<256x32xf32>
    %15 = tpu.matmul %12, %14, %cst_14 {dimension_numbers = #tpu.dot_dimension_numbers<[1], [0], [0], [1], [0, 0, 1, 1], [], []>} : vector<256x96xbf16>, vector<96x32xbf16>, vector<256x32xf32> -> vector<256x32xf32>
    %16 = arith.addf %10, %15 : vector<256x32xf32>
    %c0_15 = arith.constant 0 : index
    %c0_16 = arith.constant 0 : index
    %17 = vector.load %arg3[%c0_15, %c0_16] : memref<1x32xf32, #tpu.memory_space<vmem>>, vector<1x32xf32>
    %18 = vector.broadcast %17 : vector<1x32xf32> to vector<256x32xf32>
    %19 = arith.addf %16, %18 : vector<256x32xf32>
    %c0_17 = arith.constant 0 : index
    %c0_18 = arith.constant 0 : index
    %c0_19 = arith.constant 0 : index
    %20 = vector.load %arg4[%c0_17, %c0_18, %c0_19] : memref<1x256x32xf32, #tpu.memory_space<vmem>>, vector<1x256x32xf32>
    %21 = vector.shape_cast %20 : vector<1x256x32xf32> to vector<256x32xf32>
    %22 = vector.shape_cast %19 : vector<256x32xf32> to vector<1x256x32xf32>
    tpu.vector_store %arg4[%c0_17, %c0_18, %c0_19], %22 {strides = array<i32>} : memref<1x256x32xf32, #tpu.memory_space<vmem>>, vector<1x256x32xf32>,
    return
  }
  func.func @transform_0(%arg0: i32) -> (i32, i32, i32) {
    %c0_i32 = arith.constant 0 : i32
    %c0_i32_0 = arith.constant 0 : i32
    %c0_i32_1 = arith.constant 0 : i32
    return %arg0, %c0_i32, %c0_i32_0 : i32, i32, i32
  }
  func.func @transform_1(%arg0: i32) -> (i32, i32, i32) {
    %c0_i32 = arith.constant 0 : i32
    %c0_i32_0 = arith.constant 0 : i32
    %c0_i32_1 = arith.constant 0 : i32
    %c0_i32_2 = arith.constant 0 : i32
    return %c0_i32, %c0_i32_0, %c0_i32_1 : i32, i32, i32
  }
  func.func @transform_2(%arg0: i32) -> (i32, i32) {
    %c0_i32 = arith.constant 0 : i32
    %c0_i32_0 = arith.constant 0 : i32
    %c0_i32_1 = arith.constant 0 : i32
    return %c0_i32, %c0_i32_0 : i32, i32
  }
  func.func @transform_3(%arg0: i32) -> (i32, i32, i32) {
    %c0_i32 = arith.constant 0 : i32
    %c0_i32_0 = arith.constant 0 : i32
    %c0_i32_1 = arith.constant 0 : i32
    return %arg0, %c0_i32, %c0_i32_0 : i32, i32, i32
  }
}

module attributes {stable_mosaic.version = 11 : i64} {
  func.func @_conv3_kernel(%arg0: i32, %arg1: memref<1x288x288xbf16, #tpu.memory_space<vmem>>, %arg2: memref<3x288x32xbf16, #tpu.memory_space<vmem>>, %arg3: memref<1x32xf32, #tpu.memory_space<vmem>>, %arg4: memref<1x256x32xf32, #tpu.memory_space<vmem>>) attributes {dimension_semantics = [#tpu.dimension_semantics<parallel>], iteration_bounds = array<i64: 2>, scalar_prefetch = 0 : i64, scratch_operands = 0 : i64, tpu.core_type = #tpu.core_type<tc>, window_params = [{transform_indices = @transform_0, window_bounds = array<i64: 1, 288, 288>}, {pipeline_mode = #tpu.pipeline_mode<synchronous>, transform_indices = @transform_1, window_bounds = array<i64: 3, 288, 32>}, {pipeline_mode = #tpu.pipeline_mode<synchronous>, transform_indices = @transform_2, window_bounds = array<i64: 1, 32>}, {transform_indices = @transform_3, window_bounds = array<i64: 1, 256, 32>}]} {
    %c0 = arith.constant 0 : index
    %c0_0 = arith.constant 0 : index
    %c0_1 = arith.constant 0 : index
    %0 = vector.load %arg1[%c0, %c0_0, %c0_1] : memref<1x288x288xbf16, #tpu.memory_space<vmem>>, vector<1x256x288xbf16>
    %1 = vector.shape_cast %0 : vector<1x256x288xbf16> to vector<256x288xbf16>
    %c0_2 = arith.constant 0 : index
    %c0_3 = arith.constant 0 : index
    %c0_4 = arith.constant 0 : index
    %2 = vector.load %arg2[%c0_2, %c0_3, %c0_4] : memref<3x288x32xbf16, #tpu.memory_space<vmem>>, vector<1x288x32xbf16>
    %3 = vector.shape_cast %2 : vector<1x288x32xbf16> to vector<288x32xbf16>
    %cst = arith.constant dense<0.000000e+00> : vector<256x32xf32>
    %4 = tpu.matmul %1, %3, %cst {dimension_numbers = #tpu.dot_dimension_numbers<[1], [0], [0], [1], [0, 0, 1, 1], [], []>} : vector<256x288xbf16>, vector<288x32xbf16>, vector<256x32xf32> -> vector<256x32xf32>
    %c0_5 = arith.constant 0 : index
    %c16 = arith.constant 16 : index
    %c0_6 = arith.constant 0 : index
    %5 = vector.load %arg1[%c0_5, %c16, %c0_6] : memref<1x288x288xbf16, #tpu.memory_space<vmem>>, vector<1x256x288xbf16>
    %6 = vector.shape_cast %5 : vector<1x256x288xbf16> to vector<256x288xbf16>
    %c1 = arith.constant 1 : index
    %c0_7 = arith.constant 0 : index
    %c0_8 = arith.constant 0 : index
    %7 = vector.load %arg2[%c1, %c0_7, %c0_8] : memref<3x288x32xbf16, #tpu.memory_space<vmem>>, vector<1x288x32xbf16>
    %8 = vector.shape_cast %7 : vector<1x288x32xbf16> to vector<288x32xbf16>
    %cst_9 = arith.constant dense<0.000000e+00> : vector<256x32xf32>
    %9 = tpu.matmul %6, %8, %cst_9 {dimension_numbers = #tpu.dot_dimension_numbers<[1], [0], [0], [1], [0, 0, 1, 1], [], []>} : vector<256x288xbf16>, vector<288x32xbf16>, vector<256x32xf32> -> vector<256x32xf32>
    %10 = arith.addf %4, %9 : vector<256x32xf32>
    %c0_10 = arith.constant 0 : index
    %c32 = arith.constant 32 : index
    %c0_11 = arith.constant 0 : index
    %11 = vector.load %arg1[%c0_10, %c32, %c0_11] : memref<1x288x288xbf16, #tpu.memory_space<vmem>>, vector<1x256x288xbf16>
    %12 = vector.shape_cast %11 : vector<1x256x288xbf16> to vector<256x288xbf16>
    %c2 = arith.constant 2 : index
    %c0_12 = arith.constant 0 : index
    %c0_13 = arith.constant 0 : index
    %13 = vector.load %arg2[%c2, %c0_12, %c0_13] : memref<3x288x32xbf16, #tpu.memory_space<vmem>>, vector<1x288x32xbf16>
    %14 = vector.shape_cast %13 : vector<1x288x32xbf16> to vector<288x32xbf16>
    %cst_14 = arith.constant dense<0.000000e+00> : vector<256x32xf32>
    %15 = tpu.matmul %12, %14, %cst_14 {dimension_numbers = #tpu.dot_dimension_numbers<[1], [0], [0], [1], [0, 0, 1, 1], [], []>} : vector<256x288xbf16>, vector<288x32xbf16>, vector<256x32xf32> -> vector<256x32xf32>
    %16 = arith.addf %10, %15 : vector<256x32xf32>
    %c0_15 = arith.constant 0 : index
    %c0_16 = arith.constant 0 : index
    %17 = vector.load %arg3[%c0_15, %c0_16] : memref<1x32xf32, #tpu.memory_space<vmem>>, vector<1x32xf32>
    %18 = vector.broadcast %17 : vector<1x32xf32> to vector<256x32xf32>
    %19 = arith.addf %16, %18 : vector<256x32xf32>
    %cst_17 = arith.constant 0.000000e+00 : f32
    %20 = vector.broadcast %cst_17 : f32 to vector<256x32xf32>
    %21 = arith.maximumf %19, %20 : vector<256x32xf32>
    %c0_18 = arith.constant 0 : index
    %c0_19 = arith.constant 0 : index
    %c0_20 = arith.constant 0 : index
    %22 = vector.load %arg4[%c0_18, %c0_19, %c0_20] : memref<1x256x32xf32, #tpu.memory_space<vmem>>, vector<1x256x32xf32>
    %23 = vector.shape_cast %22 : vector<1x256x32xf32> to vector<256x32xf32>
    %24 = vector.shape_cast %21 : vector<256x32xf32> to vector<1x256x32xf32>
    tpu.vector_store %arg4[%c0_18, %c0_19, %c0_20], %24 {strides = array<i32>} : memref<1x256x32xf32, #tpu.memory_space<vmem>>, vector<1x256x32xf32>,
    return
  }
  func.func @transform_0(%arg0: i32) -> (i32, i32, i32) {
    %c0_i32 = arith.constant 0 : i32
    %c0_i32_0 = arith.constant 0 : i32
    %c0_i32_1 = arith.constant 0 : i32
    return %arg0, %c0_i32, %c0_i32_0 : i32, i32, i32
  }
  func.func @transform_1(%arg0: i32) -> (i32, i32, i32) {
    %c0_i32 = arith.constant 0 : i32
    %c0_i32_0 = arith.constant 0 : i32
    %c0_i32_1 = arith.constant 0 : i32
    %c0_i32_2 = arith.constant 0 : i32
    return %c0_i32, %c0_i32_0, %c0_i32_1 : i32, i32, i32
  }
  func.func @transform_2(%arg0: i32) -> (i32, i32) {
    %c0_i32 = arith.constant 0 : i32
    %c0_i32_0 = arith.constant 0 : i32
    %c0_i32_1 = arith.constant 0 : i32
    return %c0_i32, %c0_i32_0 : i32, i32
  }
  func.func @transform_3(%arg0: i32) -> (i32, i32, i32) {
    %c0_i32 = arith.constant 0 : i32
    %c0_i32_0 = arith.constant 0 : i32
    %c0_i32_1 = arith.constant 0 : i32
    return %arg0, %c0_i32, %c0_i32_0 : i32, i32, i32
  }
}

module attributes {stable_mosaic.version = 11 : i64} {
  func.func @_conv3_kernel(%arg0: i32, %arg1: memref<1x288x96xbf16, #tpu.memory_space<vmem>>, %arg2: memref<3x96x32xbf16, #tpu.memory_space<vmem>>, %arg3: memref<1x32xf32, #tpu.memory_space<vmem>>, %arg4: memref<1x256x32xf32, #tpu.memory_space<vmem>>) attributes {dimension_semantics = [#tpu.dimension_semantics<parallel>], iteration_bounds = array<i64: 4>, scalar_prefetch = 0 : i64, scratch_operands = 0 : i64, tpu.core_type = #tpu.core_type<tc>, window_params = [{transform_indices = @transform_0, window_bounds = array<i64: 1, 288, 96>}, {pipeline_mode = #tpu.pipeline_mode<synchronous>, transform_indices = @transform_1, window_bounds = array<i64: 3, 96, 32>}, {pipeline_mode = #tpu.pipeline_mode<synchronous>, transform_indices = @transform_2, window_bounds = array<i64: 1, 32>}, {transform_indices = @transform_3, window_bounds = array<i64: 1, 256, 32>}]} {
    %c0 = arith.constant 0 : index
    %c0_0 = arith.constant 0 : index
    %c0_1 = arith.constant 0 : index
    %0 = vector.load %arg1[%c0, %c0_0, %c0_1] : memref<1x288x96xbf16, #tpu.memory_space<vmem>>, vector<1x256x96xbf16>
    %1 = vector.shape_cast %0 : vector<1x256x96xbf16> to vector<256x96xbf16>
    %c0_2 = arith.constant 0 : index
    %c0_3 = arith.constant 0 : index
    %c0_4 = arith.constant 0 : index
    %2 = vector.load %arg2[%c0_2, %c0_3, %c0_4] : memref<3x96x32xbf16, #tpu.memory_space<vmem>>, vector<1x96x32xbf16>
    %3 = vector.shape_cast %2 : vector<1x96x32xbf16> to vector<96x32xbf16>
    %cst = arith.constant dense<0.000000e+00> : vector<256x32xf32>
    %4 = tpu.matmul %1, %3, %cst {dimension_numbers = #tpu.dot_dimension_numbers<[1], [0], [0], [1], [0, 0, 1, 1], [], []>} : vector<256x96xbf16>, vector<96x32xbf16>, vector<256x32xf32> -> vector<256x32xf32>
    %c0_5 = arith.constant 0 : index
    %c16 = arith.constant 16 : index
    %c0_6 = arith.constant 0 : index
    %5 = vector.load %arg1[%c0_5, %c16, %c0_6] : memref<1x288x96xbf16, #tpu.memory_space<vmem>>, vector<1x256x96xbf16>
    %6 = vector.shape_cast %5 : vector<1x256x96xbf16> to vector<256x96xbf16>
    %c1 = arith.constant 1 : index
    %c0_7 = arith.constant 0 : index
    %c0_8 = arith.constant 0 : index
    %7 = vector.load %arg2[%c1, %c0_7, %c0_8] : memref<3x96x32xbf16, #tpu.memory_space<vmem>>, vector<1x96x32xbf16>
    %8 = vector.shape_cast %7 : vector<1x96x32xbf16> to vector<96x32xbf16>
    %cst_9 = arith.constant dense<0.000000e+00> : vector<256x32xf32>
    %9 = tpu.matmul %6, %8, %cst_9 {dimension_numbers = #tpu.dot_dimension_numbers<[1], [0], [0], [1], [0, 0, 1, 1], [], []>} : vector<256x96xbf16>, vector<96x32xbf16>, vector<256x32xf32> -> vector<256x32xf32>
    %10 = arith.addf %4, %9 : vector<256x32xf32>
    %c0_10 = arith.constant 0 : index
    %c32 = arith.constant 32 : index
    %c0_11 = arith.constant 0 : index
    %11 = vector.load %arg1[%c0_10, %c32, %c0_11] : memref<1x288x96xbf16, #tpu.memory_space<vmem>>, vector<1x256x96xbf16>
    %12 = vector.shape_cast %11 : vector<1x256x96xbf16> to vector<256x96xbf16>
    %c2 = arith.constant 2 : index
    %c0_12 = arith.constant 0 : index
    %c0_13 = arith.constant 0 : index
    %13 = vector.load %arg2[%c2, %c0_12, %c0_13] : memref<3x96x32xbf16, #tpu.memory_space<vmem>>, vector<1x96x32xbf16>
    %14 = vector.shape_cast %13 : vector<1x96x32xbf16> to vector<96x32xbf16>
    %cst_14 = arith.constant dense<0.000000e+00> : vector<256x32xf32>
    %15 = tpu.matmul %12, %14, %cst_14 {dimension_numbers = #tpu.dot_dimension_numbers<[1], [0], [0], [1], [0, 0, 1, 1], [], []>} : vector<256x96xbf16>, vector<96x32xbf16>, vector<256x32xf32> -> vector<256x32xf32>
    %16 = arith.addf %10, %15 : vector<256x32xf32>
    %c0_15 = arith.constant 0 : index
    %c0_16 = arith.constant 0 : index
    %17 = vector.load %arg3[%c0_15, %c0_16] : memref<1x32xf32, #tpu.memory_space<vmem>>, vector<1x32xf32>
    %18 = vector.broadcast %17 : vector<1x32xf32> to vector<256x32xf32>
    %19 = arith.addf %16, %18 : vector<256x32xf32>
    %c0_17 = arith.constant 0 : index
    %c0_18 = arith.constant 0 : index
    %c0_19 = arith.constant 0 : index
    %20 = vector.load %arg4[%c0_17, %c0_18, %c0_19] : memref<1x256x32xf32, #tpu.memory_space<vmem>>, vector<1x256x32xf32>
    %21 = vector.shape_cast %20 : vector<1x256x32xf32> to vector<256x32xf32>
    %22 = vector.shape_cast %19 : vector<256x32xf32> to vector<1x256x32xf32>
    tpu.vector_store %arg4[%c0_17, %c0_18, %c0_19], %22 {strides = array<i32>} : memref<1x256x32xf32, #tpu.memory_space<vmem>>, vector<1x256x32xf32>,
    return
  }
  func.func @transform_0(%arg0: i32) -> (i32, i32, i32) {
    %c0_i32 = arith.constant 0 : i32
    %c0_i32_0 = arith.constant 0 : i32
    %c0_i32_1 = arith.constant 0 : i32
    return %arg0, %c0_i32, %c0_i32_0 : i32, i32, i32
  }
  func.func @transform_1(%arg0: i32) -> (i32, i32, i32) {
    %c0_i32 = arith.constant 0 : i32
    %c0_i32_0 = arith.constant 0 : i32
    %c0_i32_1 = arith.constant 0 : i32
    %c0_i32_2 = arith.constant 0 : i32
    return %c0_i32, %c0_i32_0, %c0_i32_1 : i32, i32, i32
  }
  func.func @transform_2(%arg0: i32) -> (i32, i32) {
    %c0_i32 = arith.constant 0 : i32
    %c0_i32_0 = arith.constant 0 : i32
    %c0_i32_1 = arith.constant 0 : i32
    return %c0_i32, %c0_i32_0 : i32, i32
  }
  func.func @transform_3(%arg0: i32) -> (i32, i32, i32) {
    %c0_i32 = arith.constant 0 : i32
    %c0_i32_0 = arith.constant 0 : i32
    %c0_i32_1 = arith.constant 0 : i32
    return %arg0, %c0_i32, %c0_i32_0 : i32, i32, i32
  }
}

</mosaic_0001>

<llo_original>
// kernel: asi_forward.5
$region0: #{asi_forward.5}
  #allocation0 [shape = 'u32[]', space=smem, size = 0x4, offset = 0x4, fixed_abs, tag = 'smem constant byte address 0x4 - core index']
  #allocation1 [shape = 'u32[144,128]{1,0:T(1,128)}', space=vmem, size = 0x12000, scoped, tag = 'internal scratch']
  %s0 = inlined_call_operand.vmem [shape: bf16[2,288,96], index: 0, kind: input, shape index: {}]
  %s1 = inlined_call_operand.vmem [shape: bf16[3,96,32], index: 1, kind: input, shape index: {}]
  %s2 = inlined_call_operand.vmem [shape: f32[1,32], index: 2, kind: input, shape index: {}]
  %s3 = inlined_call_operand.vmem [shape: f32[2,256,32], index: 3, kind: output, shape index: {}]
  %s4 = sld [smem:[#allocation0]]
  $region45: #{asi_forward.5} parent=0
    _
  %s6 = ssub.s32 1, %s4
  %s7 = scalar_select 0, %s6, %s4
  loop: start=0, step=1, limit=4
  $region2: #{asi_forward.5} parent=0 // loop_pre_header
    _
  $region3: #{asi_forward.5} parent=0 // loop_header
    %s9 = sphi 0, %s13
    %p10 = scmp.ge.s32.totalorder %s9, 4
    %s19 = sphi 0, %s21
    %s22 = sphi 0, %s19
    %s23 = sphi 0, %s22
    %s39 = sphi 0, %s23
    %s43 = sphi 0, %s43
    %s45 = sphi 0, %s43
    %s46 = sphi 0, %s45
    %s60 = sphi 0, %s46
    %s64 = sphi 0, %s64
    %s66 = sphi 0, %s64
    %s67 = sphi 0, %s66
    %s81 = sphi 0, %s67
    %s87 = sphi 0, %s89
    %s90 = sphi 0, %s87
    %s91 = sphi 0, %s90
    %s107 = sphi 0, %s91
  $region4: #{asi_forward.5} parent=0 // loop_header_branch
    %12 = sbr.rel (%p10) target = $region8
  $region5: #{asi_forward.5} parent=0 // loop_body
    %s14 = ssub.s32 %s9, 1
    %s15 = ssub.s32 %s9, 2
    %s16 = sadd.s32 %s9, 1
    %s17 = ssub.s32 %s9, %s16
    %p18 = scmp.eq.s32.totalorder %s17, 0
    %s20 = sadd.s32 %s19, 1
    %s21 = scalar_select %p18, %s19, %s20
    %p24 = pneg %p18
    %p25 = scmp.eq.s32.totalorder %s9, 1
    %p26 = por %p24, %p25
    %p27 = scmp.ne.s32.totalorder %s19, %s22
    %p28 = scmp.eq.s32.totalorder %s9, 0
    %p29 = por %p27, %p28
    %p30 = scmp.ne.s32.totalorder %s19, %s22
    %p31 = scmp.eq.s32.totalorder %s14, 1
    %p32 = por %p30, %p31
    %p33 = scmp.ne.s32.totalorder %s22, %s23
    %p34 = scmp.eq.s32.totalorder %s14, 0
    %p35 = por %p33, %p34
    %p36 = scmp.ne.s32.totalorder %s22, %s23
    %p37 = scmp.eq.s32.totalorder %s15, 1
    %p38 = por %p36, %p37
    %p40 = scmp.ne.s32.totalorder %s23, %s39
    %p41 = scmp.eq.s32.totalorder %s15, 0
    %p42 = por %p40, %p41
    %s44 = sadd.s32 %s43, 1
    %p47 = scmp.eq.s32.totalorder %s9, 1
    %p48 = scmp.ne.s32.totalorder %s43, %s45
    %p49 = scmp.eq.s32.totalorder %s9, 0
    %p50 = por %p48, %p49
    %p51 = scmp.ne.s32.totalorder %s43, %s45
    %p52 = scmp.eq.s32.totalorder %s14, 1
    %p53 = por %p51, %p52
    %p54 = scmp.ne.s32.totalorder %s45, %s46
    %p55 = scmp.eq.s32.totalorder %s14, 0
    %p56 = por %p54, %p55
    %p57 = scmp.ne.s32.totalorder %s45, %s46
    %p58 = scmp.eq.s32.totalorder %s15, 1
    %p59 = por %p57, %p58
    %p61 = scmp.ne.s32.totalorder %s46, %s60
    %p62 = scmp.eq.s32.totalorder %s15, 0
    %p63 = por %p61, %p62
    %s65 = sadd.s32 %s64, 1
    %p68 = scmp.eq.s32.totalorder %s9, 1
    %p69 = scmp.ne.s32.totalorder %s64, %s66
    %p70 = scmp.eq.s32.totalorder %s9, 0
    %p71 = por %p69, %p70
    %p72 = scmp.ne.s32.totalorder %s64, %s66
    %p73 = scmp.eq.s32.totalorder %s14, 1
    %p74 = por %p72, %p73
    %p75 = scmp.ne.s32.totalorder %s66, %s67
    %p76 = scmp.eq.s32.totalorder %s14, 0
    %p77 = por %p75, %p76
    %p78 = scmp.ne.s32.totalorder %s66, %s67
    %p79 = scmp.eq.s32.totalorder %s15, 1
    %p80 = por %p78, %p79
    %p82 = scmp.ne.s32.totalorder %s67, %s81
    %p83 = scmp.eq.s32.totalorder %s15, 0
    %p84 = por %p82, %p83
    %s85 = ssub.s32 %s9, %s16
    %p86 = scmp.eq.s32.totalorder %s85, 0
    %s88 = sadd.s32 %s87, 1
    %s89 = scalar_select %p86, %s87, %s88
    %p92 = pneg %p86
    %p93 = scmp.eq.s32.totalorder %s9, 1
    %p94 = por %p92, %p93
    %p95 = scmp.ne.s32.totalorder %s87, %s90
    %p96 = scmp.eq.s32.totalorder %s9, 0
    %p97 = por %p95, %p96
    %p98 = scmp.ne.s32.totalorder %s87, %s90
    %p99 = scmp.eq.s32.totalorder %s14, 1
    %p100 = por %p98, %p99
    %p101 = scmp.ne.s32.totalorder %s90, %s91
    %p102 = scmp.eq.s32.totalorder %s14, 0
    %p103 = por %p101, %p102
    %p104 = scmp.ne.s32.totalorder %s90, %s91
    %p105 = scmp.eq.s32.totalorder %s15, 1
    %p106 = por %p104, %p105
    %p108 = scmp.ne.s32.totalorder %s91, %s107
    %p109 = scmp.eq.s32.totalorder %s15, 0
    %p110 = por %p108, %p109
    %p111 = scmp.le.s32.totalorder 1, %s9
    %p112 = scmp.lt.s32.totalorder %s9, 3
    %p113 = pnand %p111, %p112
    %p114 = pneg %p113
    // Predicated region
    $region9: #{asi_forward.5} parent=5 // pred_check
      _
    $region10: #{asi_forward.5} parent=5 // pred_check_branch
      %116 = sbr.rel (%p113) target = $region12
    $region11: #{asi_forward.5} parent=5 // pred_region
      %s117 = ssub.s32 %s9, 1
      // Predicated region
      $region13: #{asi_forward.5} parent=11 // pred_check
        %p118 = pneg %p56
      $region14: #{asi_forward.5} parent=11 // pred_check_branch
        %120 = sbr.rel (%p118) target = $region16
      $region15: #{asi_forward.5} parent=11 // pred_region
        _
      $region16: #{asi_forward.5} parent=11 // pred_fallthru
        _
      // Predicated region
      $region17: #{asi_forward.5} parent=11 // pred_check
        %p121 = pneg %p77
      $region18: #{asi_forward.5} parent=11 // pred_check_branch
        %123 = sbr.rel (%p121) target = $region20
      $region19: #{asi_forward.5} parent=11 // pred_region
        _
      $region20: #{asi_forward.5} parent=11 // pred_fallthru
        _
    $region12: #{asi_forward.5} parent=5 // pred_fallthru
      _
    %p124 = scmp.lt.s32.totalorder %s9, 2
    // Predicated region
    $region21: #{asi_forward.5} parent=5 // pred_check
      %p125 = pneg %p124
    $region22: #{asi_forward.5} parent=5 // pred_check_branch
      %127 = sbr.rel (%p125) target = $region24
    $region23: #{asi_forward.5} parent=5 // pred_region
      // Predicated region
      $region25: #{asi_forward.5} parent=23 // pred_check
        %p128 = pneg %p29
      $region26: #{asi_forward.5} parent=23 // pred_check_branch
        %130 = sbr.rel (%p128) target = $region28
      $region27: #{asi_forward.5} parent=23 // pred_region
        %p131 = scmp.lt.s32.totalorder %s9, 1
        %s132 = scalar_select %p131, %s9, 1
        %s133 = smul.addr %s132, 36
        %s134 = smul.addr %s133, 4
        %s135 = scalar_lea.vmem %s0, %s134
      $region28: #{asi_forward.5} parent=23 // pred_fallthru
        _
    $region24: #{asi_forward.5} parent=5 // pred_fallthru
      _
    %p136 = scmp.le.s32.totalorder 1, %s9
    %p137 = scmp.lt.s32.totalorder %s9, 3
    %p138 = pnand %p136, %p137
    %p139 = pneg %p138
    // Predicated region
    $region29: #{asi_forward.5} parent=5 // pred_check
      _
    $region30: #{asi_forward.5} parent=5 // pred_check_branch
      %141 = sbr.rel (%p138) target = $region32
    $region31: #{asi_forward.5} parent=5 // pred_region
      %s142 = ssub.s32 %s9, 1
      %p143 = scmp.lt.s32.totalorder %s14, 1
      %s144 = scalar_select %p143, %s14, 1
      %s145 = smul.addr %s144, 36
      %s146 = smul.addr %s145, 4
      %s147 = scalar_lea.vmem %s0, %s146
      %p148 = pneg %p35
      %p149 = pneg %p32
      %p150 = pneg %p56
      %p151 = pneg %p53
      %p152 = pneg %p77
      %p153 = pneg %p74
      %p154 = pneg %p103
      %p155 = pneg %p100
      %p156 = scmp.lt.s32.totalorder %s14, 1
      %s157 = scalar_select %p156, %s14, 1
      %s158 = smul.addr %s157, 32
      %s159 = smul.addr %s158, 8
      %s160 = scalar_lea.vmem %s3, %s159
      %p161 = scmp.lt.s32.totalorder %s14, 1
      %s162 = scalar_select %p161, %s14, 1
      %s163 = smul.addr %s162, 36
      %s164 = smul.addr %s163, 4
      %s165 = scalar_lea.vmem %s0, %s164
      %p166 = scmp.lt.s32.totalorder %s14, 1
      %s167 = scalar_select %p166, %s14, 1
      %s168 = smul.addr %s167, 32
      %s169 = smul.addr %s168, 8
      %s170 = scalar_lea.vmem %s3, %s169
      %v172 = vld [vmem:[%s165] sm:$0xf]
      %v173 = vld [vmem:[%s165 + $0x4] sm:$0xf]
      %v174 = vld [vmem:[%s165 + $0x8] sm:$0xf]
      %v175 = vld [vmem:[%s165 + $0xc] sm:$0xf]
      %v176 = vld [vmem:[%s165 + $0x10] sm:$0xf]
      %v177 = vld [vmem:[%s165 + $0x14] sm:$0xf]
      %v178 = vld [vmem:[%s165 + $0x18] sm:$0xf]
      %v179 = vld [vmem:[%s165 + $0x1c] sm:$0xf]
      %v180 = vld [vmem:[%s165 + $0x20] sm:$0xf]
      %v181 = vld [vmem:[%s165 + $0x24] sm:$0xf]
      %v182 = vld [vmem:[%s165 + $0x28] sm:$0xf]
      %v183 = vld [vmem:[%s165 + $0x2c] sm:$0xf]
      %v184 = vld [vmem:[%s165 + $0x30] sm:$0xf]
      %v185 = vld [vmem:[%s165 + $0x34] sm:$0xf]
      %v186 = vld [vmem:[%s165 + $0x38] sm:$0xf]
      %v187 = vld [vmem:[%s165 + $0x3c] sm:$0xf]
      %v188 = vld [vmem:[%s165 + $0x40] sm:$0xf]
      %v189 = vld [vmem:[%s165 + $0x44] sm:$0xf]
      %v190 = vld [vmem:[%s165 + $0x48] sm:$0xf]
      %v191 = vld [vmem:[%s165 + $0x4c] sm:$0xf]
      %v192 = vld [vmem:[%s165 + $0x50] sm:$0xf]
      %v193 = vld [vmem:[%s165 + $0x54] sm:$0xf]
      %v194 = vld [vmem:[%s165 + $0x58] sm:$0xf]
      %v195 = vld [vmem:[%s165 + $0x5c] sm:$0xf]
      %v196 = vld [vmem:[%s165 + $0x60] sm:$0xf]
      %v197 = vld [vmem:[%s165 + $0x64] sm:$0xf]
      %v198 = vld [vmem:[%s165 + $0x68] sm:$0xf]
      %v199 = vld [vmem:[%s165 + $0x6c] sm:$0xf]
      %v200 = vld [vmem:[%s165 + $0x70] sm:$0xf]
      %v201 = vld [vmem:[%s165 + $0x74] sm:$0xf]
      %v202 = vld [vmem:[%s165 + $0x78] sm:$0xf]
      %v203 = vld [vmem:[%s165 + $0x7c] sm:$0xf]
      %v204 = vld [vmem:[%s1] sm:$0xf]
      %v205 = vld [vmem:[%s1 + $0x4] sm:$0xf]
      %v206 = vld [vmem:[%s1 + $0x8] sm:$0xf]
      %v207 = vld [vmem:[%s1 + $0xc] sm:$0xf]
      %v208 = vld [vmem:[%s1 + $0x10] sm:$0xf]
      %v209 = vld [vmem:[%s1 + $0x14] sm:$0xf]
      %v210 = vld [vmem:[%s1 + $0x18] sm:$0xf]
      %v211 = vld [vmem:[%s1 + $0x1c] sm:$0xf]
      %v212 = vld [vmem:[%s1 + $0x20] sm:$0xf]
      %v213 = vld [vmem:[%s1 + $0x24] sm:$0xf]
      %v214 = vld [vmem:[%s1 + $0x28] sm:$0xf]
      %v215 = vld [vmem:[%s1 + $0x2c] sm:$0xf]
      %v216 = vld [vmem:[%s165 + $0x80] sm:$0xf]
      %v217 = vld [vmem:[%s165 + $0x84] sm:$0xf]
      %s218 = scalar_lea.vmem %s1, 48
      %v219 = vld [vmem:[%s218] sm:$0xf]
      %v220 = vld [vmem:[%s218 + $0x4] sm:$0xf]
      %v221 = vld [vmem:[%s218 + $0x8] sm:$0xf]
      %v222 = vld [vmem:[%s218 + $0xc] sm:$0xf]
      %v223 = vld [vmem:[%s218 + $0x10] sm:$0xf]
      %v224 = vld [vmem:[%s218 + $0x14] sm:$0xf]
      %v225 = vld [vmem:[%s218 + $0x18] sm:$0xf]
      %v226 = vld [vmem:[%s218 + $0x1c] sm:$0xf]
      %v227 = vld [vmem:[%s218 + $0x20] sm:$0xf]
      %v228 = vld [vmem:[%s218 + $0x24] sm:$0xf]
      %v229 = vld [vmem:[%s218 + $0x28] sm:$0xf]
      %v230 = vld [vmem:[%s218 + $0x2c] sm:$0xf]
      %v263 = vunpack.c.l.b16 %v174
      %v264 = vunpack.c.l.b16 %v175
      %v265 = vunpack.c.l.b16 %v176
      %v266 = vunpack.c.l.b16 %v177
      %v267 = vunpack.c.l.b16 %v178
      %v268 = vunpack.c.l.b16 %v179
      %v269 = vunpack.c.l.b16 %v180
      %v270 = vunpack.c.l.b16 %v181
      %v271 = vunpack.c.l.b16 %v182
      %v272 = vunpack.c.l.b16 %v183
      %v273 = vunpack.c.l.b16 %v184
      %v274 = vunpack.c.l.b16 %v185
      %v275 = vunpack.c.l.b16 %v186
      %v276 = vunpack.c.l.b16 %v187
      %v277 = vunpack.c.l.b16 %v188
      %v278 = vunpack.c.l.b16 %v189
      %v279 = vunpack.c.l.b16 %v190
      %v280 = vunpack.c.l.b16 %v191
      %v281 = vunpack.c.l.b16 %v192
      %v282 = vunpack.c.l.b16 %v193
      %v283 = vunpack.c.l.b16 %v194
      %v284 = vunpack.c.l.b16 %v195
      %v285 = vunpack.c.l.b16 %v196
      %v286 = vunpack.c.l.b16 %v197
      %v287 = vunpack.c.l.b16 %v198
      %v288 = vunpack.c.l.b16 %v199
      %v289 = vunpack.c.l.b16 %v200
      %v290 = vunpack.c.l.b16 %v201
      %v291 = vunpack.c.l.b16 %v202
      %v292 = vunpack.c.l.b16 %v203
      %v293 = vunpack.c.l.b16 %v216
      %v294 = vunpack.c.l.b16 %v217
      %v295 = vpack.c.b16 %v264, %v263
      %v296 = vpack.c.b16 %v266, %v265
      %v297 = vpack.c.b16 %v268, %v267
      %v298 = vpack.c.b16 %v270, %v269
      %v299 = vpack.c.b16 %v272, %v271
      %v300 = vpack.c.b16 %v274, %v273
      %v301 = vpack.c.b16 %v276, %v275
      %v302 = vpack.c.b16 %v278, %v277
      %v303 = vpack.c.b16 %v280, %v279
      %v304 = vpack.c.b16 %v282, %v281
      %v305 = vpack.c.b16 %v284, %v283
      %v306 = vpack.c.b16 %v286, %v285
      %v307 = vpack.c.b16 %v288, %v287
      %v308 = vpack.c.b16 %v290, %v289
      %v309 = vpack.c.b16 %v292, %v291
      %v310 = vpack.c.b16 %v294, %v293
      %v323 = vunpack.c.l.b16 %v219
      %v324 = vunpack.c.l.b16 %v220
      %v325 = vunpack.c.l.b16 %v221
      %v326 = vunpack.c.l.b16 %v222
      %v327 = vunpack.c.l.b16 %v223
      %v328 = vunpack.c.l.b16 %v224
      %v329 = vunpack.c.l.b16 %v225
      %v330 = vunpack.c.l.b16 %v226
      %v331 = vunpack.c.l.b16 %v227
      %v332 = vunpack.c.l.b16 %v228
      %v333 = vunpack.c.l.b16 %v229
      %v334 = vunpack.c.l.b16 %v230
      %v335 = vpack.c.b16 %v324, %v323
      %v336 = vpack.c.b16 %v326, %v325
      %v337 = vpack.c.b16 %v328, %v327
      %v338 = vpack.c.b16 %v330, %v329
      %v339 = vpack.c.b16 %v332, %v331
      %v340 = vpack.c.b16 %v334, %v333
      %vm347 = vcmask 785408
      %v349 = vsel %vm347, %v295, 0
      %v352 = vsel %vm347, %v296, 0
      %v355 = vsel %vm347, %v297, 0
      %v358 = vsel %vm347, %v298, 0
      %v361 = vsel %vm347, %v299, 0
      %v364 = vsel %vm347, %v300, 0
      %v367 = vsel %vm347, %v301, 0
      %v370 = vsel %vm347, %v302, 0
      %v373 = vsel %vm347, %v303, 0
      %v376 = vsel %vm347, %v304, 0
      %v379 = vsel %vm347, %v305, 0
      %v382 = vsel %vm347, %v306, 0
      %v385 = vsel %vm347, %v307, 0
      %v388 = vsel %vm347, %v308, 0
      %v391 = vsel %vm347, %v309, 0
      %v394 = vsel %vm347, %v310, 0
      %396 = vmatprep.subr.bf16.mxu0 0
      %397 = vmatpush1.bf16.msra.mxu0 %v335
      %398 = vmatprep.subr.bf16.mxu0 0
      %399 = vmatpush1.bf16.msra.mxu0 %v336
      %400 = vmatprep.subr.bf16.mxu0 0
      %401 = vmatpush1.bf16.msra.mxu0 %v337
      %402 = vmatprep.subr.bf16.mxu0 0
      %403 = vmatpush1.bf16.msra.mxu0 %v338
      %404 = vmatprep.subr.bf16.mxu0 0
      %405 = vmatpush1.bf16.msra.mxu0 %v339
      %406 = vmatprep.subr.bf16.mxu0 0
      %407 = vmatpush1.bf16.msra.mxu0 %v340
      %408 = vmatprep.subr.bf16.mxu0 0
      %409 = vmatpush1.bf16.msra.mxu0 0
      %410 = vmatprep.subr.bf16.mxu0 0
      %411 = vmatpush1.bf16.msra.mxu0 0
      %412 = vmatprep.subr.bf16.mxu0 0
      %413 = vmatpush1.bf16.msra.mxu0 0
      %414 = vmatprep.subr.bf16.mxu0 0
      %415 = vmatpush1.bf16.msra.mxu0 0
      %416 = vmatprep.subr.bf16.mxu0 0
      %417 = vmatpush1.bf16.msra.mxu0 0
      %418 = vmatprep.subr.bf16.mxu0 0
      %419 = vmatpush1.bf16.msra.mxu0 0
      %420 = vmatprep.subr.bf16.mxu0 0
      %421 = vmatpush1.bf16.msra.mxu0 0
      %422 = vmatprep.subr.bf16.mxu0 0
      %423 = vmatpush1.bf16.msra.mxu0 0
      %424 = vmatprep.subr.bf16.mxu0 0
      %425 = vmatpush1.bf16.msra.mxu0 0
      %426 = vmatprep.subr.bf16.mxu0 0
      %427 = vmatpush1.bf16.msra.mxu0 0
      %428 = vmatprep.mubr.bf16.mxu0 0
      %429 = vmatmul.mubr.bf16.gmra.mrb[0].mxu0 %v349
      %v430 = vpop.f32.mrb[0].mxu0
      %v431 = vadd.f32 0.0, %v430
      %v432 = vpop.f32.mrb[0].mxu0
      %v433 = vpop.f32.mrb[0].mxu0
      %v434 = vadd.f32 0.0, %v433
      %v435 = vpop.f32.mrb[0].mxu0
      %436 = vmatprep.mubr.bf16.mxu0 0
      %437 = vmatmul.mubr.bf16.gmra.mrb[0].mxu0 %v352
      %v438 = vpop.f32.mrb[0].mxu0
      %v439 = vadd.f32 0.0, %v438
      %v440 = vpop.f32.mrb[0].mxu0
      %v441 = vpop.f32.mrb[0].mxu0
      %v442 = vadd.f32 0.0, %v441
      %v443 = vpop.f32.mrb[0].mxu0
      %444 = vmatprep.mubr.bf16.mxu0 0
      %445 = vmatmul.mubr.bf16.gmra.mrb[0].mxu0 %v355
      %v446 = vpop.f32.mrb[0].mxu0
      %v447 = vadd.f32 0.0, %v446
      %v448 = vpop.f32.mrb[0].mxu0
      %v449 = vpop.f32.mrb[0].mxu0
      %v450 = vadd.f32 0.0, %v449
      %v451 = vpop.f32.mrb[0].mxu0
      %452 = vmatprep.mubr.bf16.mxu0 0
      %453 = vmatmul.mubr.bf16.gmra.mrb[0].mxu0 %v358
      %v454 = vpop.f32.mrb[0].mxu0
      %v455 = vadd.f32 0.0, %v454
      %v456 = vpop.f32.mrb[0].mxu0
      %v457 = vpop.f32.mrb[0].mxu0
      %v458 = vadd.f32 0.0, %v457
      %v459 = vpop.f32.mrb[0].mxu0
      %460 = vmatprep.mubr.bf16.mxu0 0
      %461 = vmatmul.mubr.bf16.gmra.mrb[0].mxu0 %v361
      %v462 = vpop.f32.mrb[0].mxu0
      %v463 = vadd.f32 0.0, %v462
      %v464 = vpop.f32.mrb[0].mxu0
      %v465 = vpop.f32.mrb[0].mxu0
      %v466 = vadd.f32 0.0, %v465
      %v467 = vpop.f32.mrb[0].mxu0
      %468 = vmatprep.mubr.bf16.mxu0 0
      %469 = vmatmul.mubr.bf16.gmra.mrb[0].mxu0 %v364
      %v470 = vpop.f32.mrb[0].mxu0
      %v471 = vadd.f32 0.0, %v470
      %v472 = vpop.f32.mrb[0].mxu0
      %v473 = vpop.f32.mrb[0].mxu0
      %v474 = vadd.f32 0.0, %v473
      %v475 = vpop.f32.mrb[0].mxu0
      %476 = vmatprep.mubr.bf16.mxu0 0
      %477 = vmatmul.mubr.bf16.gmra.mrb[0].mxu0 %v367
      %v478 = vpop.f32.mrb[0].mxu0
      %v479 = vadd.f32 0.0, %v478
      %v480 = vpop.f32.mrb[0].mxu0
      %v481 = vpop.f32.mrb[0].mxu0
      %v482 = vadd.f32 0.0, %v481
      %v483 = vpop.f32.mrb[0].mxu0
      %484 = vmatprep.mubr.bf16.mxu0 0
      %485 = vmatmul.mubr.bf16.gmra.mrb[0].mxu0 %v370
      %v486 = vpop.f32.mrb[0].mxu0
      %v487 = vadd.f32 0.0, %v486
      %v488 = vpop.f32.mrb[0].mxu0
      %v489 = vpop.f32.mrb[0].mxu0
      %v490 = vadd.f32 0.0, %v489
      %v491 = vpop.f32.mrb[0].mxu0
      %492 = vmatprep.mubr.bf16.mxu0 0
      %493 = vmatmul.mubr.bf16.gmra.mrb[0].mxu0 %v373
      %v494 = vpop.f32.mrb[0].mxu0
      %v495 = vadd.f32 0.0, %v494
      %v496 = vpop.f32.mrb[0].mxu0
      %v497 = vpop.f32.mrb[0].mxu0
      %v498 = vadd.f32 0.0, %v497
      %v499 = vpop.f32.mrb[0].mxu0
      %500 = vmatprep.mubr.bf16.mxu0 0
      %501 = vmatmul.mubr.bf16.gmra.mrb[0].mxu0 %v376
      %v502 = vpop.f32.mrb[0].mxu0
      %v503 = vadd.f32 0.0, %v502
      %v504 = vpop.f32.mrb[0].mxu0
      %v505 = vpop.f32.mrb[0].mxu0
      %v506 = vadd.f32 0.0, %v505
      %v507 = vpop.f32.mrb[0].mxu0
      %508 = vmatprep.mubr.bf16.mxu0 0
      %509 = vmatmul.mubr.bf16.gmra.mrb[0].mxu0 %v379
      %v510 = vpop.f32.mrb[0].mxu0
      %v511 = vadd.f32 0.0, %v510
      %v512 = vpop.f32.mrb[0].mxu0
      %v513 = vpop.f32.mrb[0].mxu0
      %v514 = vadd.f32 0.0, %v513
      %v515 = vpop.f32.mrb[0].mxu0
      %516 = vmatprep.mubr.bf16.mxu0 0
      %517 = vmatmul.mubr.bf16.gmra.mrb[0].mxu0 %v382
      %v518 = vpop.f32.mrb[0].mxu0
      %v519 = vadd.f32 0.0, %v518
      %v520 = vpop.f32.mrb[0].mxu0
      %v521 = vpop.f32.mrb[0].mxu0
      %v522 = vadd.f32 0.0, %v521
      %v523 = vpop.f32.mrb[0].mxu0
      %524 = vmatprep.mubr.bf16.mxu0 0
      %525 = vmatmul.mubr.bf16.gmra.mrb[0].mxu0 %v385
      %v526 = vpop.f32.mrb[0].mxu0
      %v527 = vadd.f32 0.0, %v526
      %v528 = vpop.f32.mrb[0].mxu0
      %v529 = vpop.f32.mrb[0].mxu0
      %v530 = vadd.f32 0.0, %v529
      %v531 = vpop.f32.mrb[0].mxu0
      %532 = vmatprep.mubr.bf16.mxu0 0
      %533 = vmatmul.mubr.bf16.gmra.mrb[0].mxu0 %v388
      %v534 = vpop.f32.mrb[0].mxu0
      %v535 = vadd.f32 0.0, %v534
      %v536 = vpop.f32.mrb[0].mxu0
      %v537 = vpop.f32.mrb[0].mxu0
      %v538 = vadd.f32 0.0, %v537
      %v539 = vpop.f32.mrb[0].mxu0
      %540 = vmatprep.mubr.bf16.mxu0 0
      %541 = vmatmul.mubr.bf16.gmra.mrb[0].mxu0 %v391
      %v542 = vpop.f32.mrb[0].mxu0
      %v543 = vadd.f32 0.0, %v542
      %v544 = vpop.f32.mrb[0].mxu0
      %v545 = vpop.f32.mrb[0].mxu0
      %v546 = vadd.f32 0.0, %v545
      %v547 = vpop.f32.mrb[0].mxu0
      %548 = vmatprep.mubr.bf16.mxu0 0
      %549 = vmatmul.mubr.bf16.gmra.mrb[0].mxu0 %v394
      %v550 = vpop.f32.mrb[0].mxu0
      %v551 = vadd.f32 0.0, %v550
      %v552 = vpop.f32.mrb[0].mxu0
      %v553 = vpop.f32.mrb[0].mxu0
      %v554 = vadd.f32 0.0, %v553
      %v555 = vpop.f32.mrb[0].mxu0
      %556 = vdwg.mxu0
      %v559 = vunpack.c.l.b16 %v172
      %v560 = vunpack.c.l.b16 %v173
      %v561 = vpack.c.b16 %v560, %v559
      %v574 = vunpack.c.l.b16 %v204
      %v575 = vunpack.c.l.b16 %v205
      %v576 = vunpack.c.l.b16 %v206
      %v577 = vunpack.c.l.b16 %v207
      %v578 = vunpack.c.l.b16 %v208
      %v579 = vunpack.c.l.b16 %v209
      %v580 = vunpack.c.l.b16 %v210
      %v581 = vunpack.c.l.b16 %v211
      %v582 = vunpack.c.l.b16 %v212
      %v583 = vunpack.c.l.b16 %v213
      %v584 = vunpack.c.l.b16 %v214
      %v585 = vunpack.c.l.b16 %v215
      %v586 = vpack.c.b16 %v575, %v574
      %v587 = vpack.c.b16 %v577, %v576
      %v588 = vpack.c.b16 %v579, %v578
      %v589 = vpack.c.b16 %v581, %v580
      %v590 = vpack.c.b16 %v583, %v582
      %v591 = vpack.c.b16 %v585, %v584
      %v599 = vsel %vm347, %v561, 0
      %601 = vmatprep.subr.bf16.mxu0 0
      %602 = vmatpush1.bf16.msra.mxu0 %v586
      %603 = vmatprep.subr.bf16.mxu0 0
      %604 = vmatpush1.bf16.msra.mxu0 %v587
      %605 = vmatprep.subr.bf16.mxu0 0
      %606 = vmatpush1.bf16.msra.mxu0 %v588
      %607 = vmatprep.subr.bf16.mxu0 0
      %608 = vmatpush1.bf16.msra.mxu0 %v589
      %609 = vmatprep.subr.bf16.mxu0 0
      %610 = vmatpush1.bf16.msra.mxu0 %v590
      %611 = vmatprep.subr.bf16.mxu0 0
      %612 = vmatpush1.bf16.msra.mxu0 %v591
      %613 = vmatprep.subr.bf16.mxu0 0
      %614 = vmatpush1.bf16.msra.mxu0 0
      %615 = vmatprep.subr.bf16.mxu0 0
      %616 = vmatpush1.bf16.msra.mxu0 0
      %617 = vmatprep.subr.bf16.mxu0 0
      %618 = vmatpush1.bf16.msra.mxu0 0
      %619 = vmatprep.subr.bf16.mxu0 0
      %620 = vmatpush1.bf16.msra.mxu0 0
      %621 = vmatprep.subr.bf16.mxu0 0
      %622 = vmatpush1.bf16.msra.mxu0 0
      %623 = vmatprep.subr.bf16.mxu0 0
      %624 = vmatpush1.bf16.msra.mxu0 0
      %625 = vmatprep.subr.bf16.mxu0 0
      %626 = vmatpush1.bf16.msra.mxu0 0
      %627 = vmatprep.subr.bf16.mxu0 0
      %628 = vmatpush1.bf16.msra.mxu0 0
      %629 = vmatprep.subr.bf16.mxu0 0
      %630 = vmatpush1.bf16.msra.mxu0 0
      %631 = vmatprep.subr.bf16.mxu0 0
      %632 = vmatpush1.bf16.msra.mxu0 0
      %633 = vmatprep.mubr.bf16.mxu0 0
      %634 = vmatmul.mubr.bf16.gmra.mrb[0].mxu0 %v599
      %v635 = vpop.f32.mrb[0].mxu0
      %v636 = vadd.f32 %v431, %v635
      %v637 = vpop.f32.mrb[0].mxu0
      %v638 = vpop.f32.mrb[0].mxu0
      %v639 = vadd.f32 %v434, %v638
      %v640 = vpop.f32.mrb[0].mxu0
      %641 = vmatprep.mubr.bf16.mxu0 0
      %642 = vmatmul.mubr.bf16.gmra.mrb[0].mxu0 %v349
      %v643 = vpop.f32.mrb[0].mxu0
      %v644 = vadd.f32 %v439, %v643
      %v645 = vpop.f32.mrb[0].mxu0
      %v646 = vpop.f32.mrb[0].mxu0
      %v647 = vadd.f32 %v442, %v646
      %v648 = vpop.f32.mrb[0].mxu0
      %649 = vmatprep.mubr.bf16.mxu0 0
      %650 = vmatmul.mubr.bf16.gmra.mrb[0].mxu0 %v352
      %v651 = vpop.f32.mrb[0].mxu0
      %v652 = vadd.f32 %v447, %v651
      %v653 = vpop.f32.mrb[0].mxu0
      %v654 = vpop.f32.mrb[0].mxu0
      %v655 = vadd.f32 %v450, %v654
      %v656 = vpop.f32.mrb[0].mxu0
      %657 = vmatprep.mubr.bf16.mxu0 0
      %658 = vmatmul.mubr.bf16.gmra.mrb[0].mxu0 %v355
      %v659 = vpop.f32.mrb[0].mxu0
      %v660 = vadd.f32 %v455, %v659
      %v661 = vpop.f32.mrb[0].mxu0
      %v662 = vpop.f32.mrb[0].mxu0
      %v663 = vadd.f32 %v458, %v662
      %v664 = vpop.f32.mrb[0].mxu0
      %665 = vmatprep.mubr.bf16.mxu0 0
      %666 = vmatmul.mubr.bf16.gmra.mrb[0].mxu0 %v358
      %v667 = vpop.f32.mrb[0].mxu0
      %v668 = vadd.f32 %v463, %v667
      %v669 = vpop.f32.mrb[0].mxu0
      %v670 = vpop.f32.mrb[0].mxu0
      %v671 = vadd.f32 %v466, %v670
      %v672 = vpop.f32.mrb[0].mxu0
      %673 = vmatprep.mubr.bf16.mxu0 0
      %674 = vmatmul.mubr.bf16.gmra.mrb[0].mxu0 %v361
      %v675 = vpop.f32.mrb[0].mxu0
      %v676 = vadd.f32 %v471, %v675
      %v677 = vpop.f32.mrb[0].mxu0
      %v678 = vpop.f32.mrb[0].mxu0
      %v679 = vadd.f32 %v474, %v678
      %v680 = vpop.f32.mrb[0].mxu0
      %681 = vmatprep.mubr.bf16.mxu0 0
      %682 = vmatmul.mubr.bf16.gmra.mrb[0].mxu0 %v364
      %v683 = vpop.f32.mrb[0].mxu0
      %v684 = vadd.f32 %v479, %v683
      %v685 = vpop.f32.mrb[0].mxu0
      %v686 = vpop.f32.mrb[0].mxu0
      %v687 = vadd.f32 %v482, %v686
      %v688 = vpop.f32.mrb[0].mxu0
      %689 = vmatprep.mubr.bf16.mxu0 0
      %690 = vmatmul.mubr.bf16.gmra.mrb[0].mxu0 %v367
      %v691 = vpop.f32.mrb[0].mxu0
      %v692 = vadd.f32 %v487, %v691
      %v693 = vpop.f32.mrb[0].mxu0
      %v694 = vpop.f32.mrb[0].mxu0
      %v695 = vadd.f32 %v490, %v694
      %v696 = vpop.f32.mrb[0].mxu0
      %697 = vmatprep.mubr.bf16.mxu0 0
      %698 = vmatmul.mubr.bf16.gmra.mrb[0].mxu0 %v370
      %v699 = vpop.f32.mrb[0].mxu0
      %v700 = vadd.f32 %v495, %v699
      %v701 = vpop.f32.mrb[0].mxu0
      %v702 = vpop.f32.mrb[0].mxu0
      %v703 = vadd.f32 %v498, %v702
      %v704 = vpop.f32.mrb[0].mxu0
      %705 = vmatprep.mubr.bf16.mxu0 0
      %706 = vmatmul.mubr.bf16.gmra.mrb[0].mxu0 %v373
      %v707 = vpop.f32.mrb[0].mxu0
      %v708 = vadd.f32 %v503, %v707
      %v709 = vpop.f32.mrb[0].mxu0
      %v710 = vpop.f32.mrb[0].mxu0
      %v711 = vadd.f32 %v506, %v710
      %v712 = vpop.f32.mrb[0].mxu0
      %713 = vmatprep.mubr.bf16.mxu0 0
      %714 = vmatmul.mubr.bf16.gmra.mrb[0].mxu0 %v376
      %v715 = vpop.f32.mrb[0].mxu0
      %v716 = vadd.f32 %v511, %v715
      %v717 = vpop.f32.mrb[0].mxu0
      %v718 = vpop.f32.mrb[0].mxu0
      %v719 = vadd.f32 %v514, %v718
      %v720 = vpop.f32.mrb[0].mxu0
      %721 = vmatprep.mubr.bf16.mxu0 0
      %722 = vmatmul.mubr.bf16.gmra.mrb[0].mxu0 %v379
      %v723 = vpop.f32.mrb[0].mxu0
      %v724 = vadd.f32 %v519, %v723
      %v725 = vpop.f32.mrb[0].mxu0
      %v726 = vpop.f32.mrb[0].mxu0
      %v727 = vadd.f32 %v522, %v726
      %v728 = vpop.f32.mrb[0].mxu0
      %729 = vmatprep.mubr.bf16.mxu0 0
      %730 = vmatmul.mubr.bf16.gmra.mrb[0].mxu0 %v382
      %v731 = vpop.f32.mrb[0].mxu0
      %v732 = vadd.f32 %v527, %v731
      %v733 = vpop.f32.mrb[0].mxu0
      %v734 = vpop.f32.mrb[0].mxu0
      %v735 = vadd.f32 %v530, %v734
      %v736 = vpop.f32.mrb[0].mxu0
      %737 = vmatprep.mubr.bf16.mxu0 0
      %738 = vmatmul.mubr.bf16.gmra.mrb[0].mxu0 %v385
      %v739 = vpop.f32.mrb[0].mxu0
      %v740 = vadd.f32 %v535, %v739
      %v741 = vpop.f32.mrb[0].mxu0
      %v742 = vpop.f32.mrb[0].mxu0
      %v743 = vadd.f32 %v538, %v742
      %v744 = vpop.f32.mrb[0].mxu0
      %745 = vmatprep.mubr.bf16.mxu0 0
      %746 = vmatmul.mubr.bf16.gmra.mrb[0].mxu0 %v388
      %v747 = vpop.f32.mrb[0].mxu0
      %v748 = vadd.f32 %v543, %v747
      %v749 = vpop.f32.mrb[0].mxu0
      %v750 = vpop.f32.mrb[0].mxu0
      %v751 = vadd.f32 %v546, %v750
      %v752 = vpop.f32.mrb[0].mxu0
      %753 = vmatprep.mubr.bf16.mxu0 0
      %754 = vmatmul.mubr.bf16.gmra.mrb[0].mxu0 %v391
      %v755 = vpop.f32.mrb[0].mxu0
      %v756 = vadd.f32 %v551, %v755
      %v757 = vpop.f32.mrb[0].mxu0
      %v758 = vpop.f32.mrb[0].mxu0
      %v759 = vadd.f32 %v554, %v758
      %v760 = vpop.f32.mrb[0].mxu0
      %761 = vdwg.mxu0
      %v762 = vld [vmem:[%s165 + $0x10] sm:$0xf]
      %v763 = vld [vmem:[%s165 + $0x14] sm:$0xf]
      %v764 = vld [vmem:[%s165 + $0x18] sm:$0xf]
      %v765 = vld [vmem:[%s165 + $0x1c] sm:$0xf]
      %v766 = vld [vmem:[%s165 + $0x20] sm:$0xf]
      %v767 = vld [vmem:[%s165 + $0x24] sm:$0xf]
      %v768 = vld [vmem:[%s165 + $0x28] sm:$0xf]
      %v769 = vld [vmem:[%s165 + $0x2c] sm:$0xf]
      %v770 = vld [vmem:[%s165 + $0x30] sm:$0xf]
      %v771 = vld [vmem:[%s165 + $0x34] sm:$0xf]
      %v772 = vld [vmem:[%s165 + $0x38] sm:$0xf]
      %v773 = vld [vmem:[%s165 + $0x3c] sm:$0xf]
      %v774 = vld [vmem:[%s165 + $0x40] sm:$0xf]
      %v775 = vld [vmem:[%s165 + $0x44] sm:$0xf]
      %v776 = vld [vmem:[%s165 + $0x48] sm:$0xf]
      %v777 = vld [vmem:[%s165 + $0x4c] sm:$0xf]
      %v778 = vld [vmem:[%s165 + $0x50] sm:$0xf]
      %v779 = vld [vmem:[%s165 + $0x54] sm:$0xf]
      %v780 = vld [vmem:[%s165 + $0x58] sm:$0xf]
      %v781 = vld [vmem:[%s165 + $0x5c] sm:$0xf]
      %v782 = vld [vmem:[%s165 + $0x60] sm:$0xf]
      %v783 = vld [vmem:[%s165 + $0x64] sm:$0xf]
      %v784 = vld [vmem:[%s165 + $0x68] sm:$0xf]
      %v785 = vld [vmem:[%s165 + $0x6c] sm:$0xf]
      %v786 = vld [vmem:[%s165 + $0x70] sm:$0xf]
      %v787 = vld [vmem:[%s165 + $0x74] sm:$0xf]
      %v788 = vld [vmem:[%s165 + $0x78] sm:$0xf]
      %v789 = vld [vmem:[%s165 + $0x7c] sm:$0xf]
      %v790 = vld [vmem:[%s165 + $0x80] sm:$0xf]
      %v791 = vld [vmem:[%s165 + $0x84] sm:$0xf]
      %v792 = vld [vmem:[%s165 + $0x88] sm:$0xf]
      %v793 = vld [vmem:[%s165 + $0x8c] sm:$0xf]
      %s794 = scalar_lea.vmem %s1, 96
      %v795 = vld [vmem:[%s794] sm:$0xf]
      %v796 = vld [vmem:[%s794 + $0x4] sm:$0xf]
      %v797 = vld [vmem:[%s794 + $0x8] sm:$0xf]
      %v798 = vld [vmem:[%s794 + $0xc] sm:$0xf]
      %v799 = vld [vmem:[%s794 + $0x10] sm:$0xf]
      %v800 = vld [vmem:[%s794 + $0x14] sm:$0xf]
      %v801 = vld [vmem:[%s794 + $0x18] sm:$0xf]
      %v802 = vld [vmem:[%s794 + $0x1c] sm:$0xf]
      %v803 = vld [vmem:[%s794 + $0x20] sm:$0xf]
      %v804 = vld [vmem:[%s794 + $0x24] sm:$0xf]
      %v805 = vld [vmem:[%s794 + $0x28] sm:$0xf]
      %v806 = vld [vmem:[%s794 + $0x2c] sm:$0xf]
      %v839 = vunpack.c.l.b16 %v762
      %v840 = vunpack.c.l.b16 %v763
      %v841 = vunpack.c.l.b16 %v764
      %v842 = vunpack.c.l.b16 %v765
      %v843 = vunpack.c.l.b16 %v766
      %v844 = vunpack.c.l.b16 %v767
      %v845 = vunpack.c.l.b16 %v768
      %v846 = vunpack.c.l.b16 %v769
      %v847 = vunpack.c.l.b16 %v770
      %v848 = vunpack.c.l.b16 %v771
      %v849 = vunpack.c.l.b16 %v772
      %v850 = vunpack.c.l.b16 %v773
      %v851 = vunpack.c.l.b16 %v774
      %v852 = vunpack.c.l.b16 %v775
      %v853 = vunpack.c.l.b16 %v776
      %v854 = vunpack.c.l.b16 %v777
      %v855 = vunpack.c.l.b16 %v778
      %v856 = vunpack.c.l.b16 %v779
      %v857 = vunpack.c.l.b16 %v780
      %v858 = vunpack.c.l.b16 %v781
      %v859 = vunpack.c.l.b16 %v782
      %v860 = vunpack.c.l.b16 %v783
      %v861 = vunpack.c.l.b16 %v784
      %v862 = vunpack.c.l.b16 %v785
      %v863 = vunpack.c.l.b16 %v786
      %v864 = vunpack.c.l.b16 %v787
      %v865 = vunpack.c.l.b16 %v788
      %v866 = vunpack.c.l.b16 %v789
      %v867 = vunpack.c.l.b16 %v790
      %v868 = vunpack.c.l.b16 %v791
      %v869 = vunpack.c.l.b16 %v792
      %v870 = vunpack.c.l.b16 %v793
      %v871 = vpack.c.b16 %v840, %v839
      %v872 = vpack.c.b16 %v842, %v841
      %v873 = vpack.c.b16 %v844, %v843
      %v874 = vpack.c.b16 %v846, %v845
      %v875 = vpack.c.b16 %v848, %v847
      %v876 = vpack.c.b16 %v850, %v849
      %v877 = vpack.c.b16 %v852, %v851
      %v878 = vpack.c.b16 %v854, %v853
      %v879 = vpack.c.b16 %v856, %v855
      %v880 = vpack.c.b16 %v858, %v857
      %v881 = vpack.c.b16 %v860, %v859
      %v882 = vpack.c.b16 %v862, %v861
      %v883 = vpack.c.b16 %v864, %v863
      %v884 = vpack.c.b16 %v866, %v865
      %v885 = vpack.c.b16 %v868, %v867
      %v886 = vpack.c.b16 %v870, %v869
      %v899 = vunpack.c.l.b16 %v795
      %v900 = vunpack.c.l.b16 %v796
      %v901 = vunpack.c.l.b16 %v797
      %v902 = vunpack.c.l.b16 %v798
      %v903 = vunpack.c.l.b16 %v799
      %v904 = vunpack.c.l.b16 %v800
      %v905 = vunpack.c.l.b16 %v801
      %v906 = vunpack.c.l.b16 %v802
      %v907 = vunpack.c.l.b16 %v803
      %v908 = vunpack.c.l.b16 %v804
      %v909 = vunpack.c.l.b16 %v805
      %v910 = vunpack.c.l.b16 %v806
      %v911 = vpack.c.b16 %v900, %v899
      %v912 = vpack.c.b16 %v902, %v901
      %v913 = vpack.c.b16 %v904, %v903
      %v914 = vpack.c.b16 %v906, %v905
      %v915 = vpack.c.b16 %v908, %v907
      %v916 = vpack.c.b16 %v910, %v909
      %v924 = vsel %vm347, %v871, 0
      %v927 = vsel %vm347, %v872, 0
      %v930 = vsel %vm347, %v873, 0
      %v933 = vsel %vm347, %v874, 0
      %v936 = vsel %vm347, %v875, 0
      %v939 = vsel %vm347, %v876, 0
      %v942 = vsel %vm347, %v877, 0
      %v945 = vsel %vm347, %v878, 0
      %v948 = vsel %vm347, %v879, 0
      %v951 = vsel %vm347, %v880, 0
      %v954 = vsel %vm347, %v881, 0
      %v957 = vsel %vm347, %v882, 0
      %v960 = vsel %vm347, %v883, 0
      %v963 = vsel %vm347, %v884, 0
      %v966 = vsel %vm347, %v885, 0
      %v969 = vsel %vm347, %v886, 0
      %971 = vmatprep.subr.bf16.mxu0 0
      %972 = vmatpush1.bf16.msra.mxu0 %v911
      %973 = vmatprep.subr.bf16.mxu0 0
      %974 = vmatpush1.bf16.msra.mxu0 %v912
      %975 = vmatprep.subr.bf16.mxu0 0
      %976 = vmatpush1.bf16.msra.mxu0 %v913
      %977 = vmatprep.subr.bf16.mxu0 0
      %978 = vmatpush1.bf16.msra.mxu0 %v914
      %979 = vmatprep.subr.bf16.mxu0 0
      %980 = vmatpush1.bf16.msra.mxu0 %v915
      %981 = vmatprep.subr.bf16.mxu0 0
      %982 = vmatpush1.bf16.msra.mxu0 %v916
      %983 = vmatprep.subr.bf16.mxu0 0
      %984 = vmatpush1.bf16.msra.mxu0 0
      %985 = vmatprep.subr.bf16.mxu0 0
      %986 = vmatpush1.bf16.msra.mxu0 0
      %987 = vmatprep.subr.bf16.mxu0 0
      %988 = vmatpush1.bf16.msra.mxu0 0
      %989 = vmatprep.subr.bf16.mxu0 0
      %990 = vmatpush1.bf16.msra.mxu0 0
      %991 = vmatprep.subr.bf16.mxu0 0
      %992 = vmatpush1.bf16.msra.mxu0 0
      %993 = vmatprep.subr.bf16.mxu0 0
      %994 = vmatpush1.bf16.msra.mxu0 0
      %995 = vmatprep.subr.bf16.mxu0 0
      %996 = vmatpush1.bf16.msra.mxu0 0
      %997 = vmatprep.subr.bf16.mxu0 0
      %998 = vmatpush1.bf16.msra.mxu0 0
      %999 = vmatprep.subr.bf16.mxu0 0
      %1000 = vmatpush1.bf16.msra.mxu0 0
      %1001 = vmatprep.subr.bf16.mxu0 0
      %1002 = vmatpush1.bf16.msra.mxu0 0
      %1003 = vmatprep.mubr.bf16.mxu0 0
      %1004 = vmatmul.mubr.bf16.gmra.mrb[0].mxu0 %v924
      %v1005 = vpop.f32.mrb[0].mxu0
      %v1006 = vadd.f32 0.0, %v1005
      %v1007 = vpop.f32.mrb[0].mxu0
      %v1008 = vpop.f32.mrb[0].mxu0
      %v1009 = vadd.f32 0.0, %v1008
      %v1010 = vpop.f32.mrb[0].mxu0
      %1011 = vmatprep.mubr.bf16.mxu0 0
      %1012 = vmatmul.mubr.bf16.gmra.mrb[0].mxu0 %v927
      %v1013 = vpop.f32.mrb[0].mxu0
      %v1014 = vadd.f32 0.0, %v1013
      %v1015 = vpop.f32.mrb[0].mxu0
      %v1016 = vpop.f32.mrb[0].mxu0
      %v1017 = vadd.f32 0.0, %v1016
      %v1018 = vpop.f32.mrb[0].mxu0
      %1019 = vmatprep.mubr.bf16.mxu0 0
      %1020 = vmatmul.mubr.bf16.gmra.mrb[0].mxu0 %v930
      %v1021 = vpop.f32.mrb[0].mxu0
      %v1022 = vadd.f32 0.0, %v1021
      %v1023 = vpop.f32.mrb[0].mxu0
      %v1024 = vpop.f32.mrb[0].mxu0
      %v1025 = vadd.f32 0.0, %v1024
      %v1026 = vpop.f32.mrb[0].mxu0
      %1027 = vmatprep.mubr.bf16.mxu0 0
      %1028 = vmatmul.mubr.bf16.gmra.mrb[0].mxu0 %v933
      %v1029 = vpop.f32.mrb[0].mxu0
      %v1030 = vadd.f32 0.0, %v1029
      %v1031 = vpop.f32.mrb[0].mxu0
      %v1032 = vpop.f32.mrb[0].mxu0
      %v1033 = vadd.f32 0.0, %v1032
      %v1034 = vpop.f32.mrb[0].mxu0
      %1035 = vmatprep.mubr.bf16.mxu0 0
      %1036 = vmatmul.mubr.bf16.gmra.mrb[0].mxu0 %v936
      %v1037 = vpop.f32.mrb[0].mxu0
      %v1038 = vadd.f32 0.0, %v1037
      %v1039 = vpop.f32.mrb[0].mxu0
      %v1040 = vpop.f32.mrb[0].mxu0
      %v1041 = vadd.f32 0.0, %v1040
      %v1042 = vpop.f32.mrb[0].mxu0
      %1043 = vmatprep.mubr.bf16.mxu0 0
      %1044 = vmatmul.mubr.bf16.gmra.mrb[0].mxu0 %v939
      %v1045 = vpop.f32.mrb[0].mxu0
      %v1046 = vadd.f32 0.0, %v1045
      %v1047 = vpop.f32.mrb[0].mxu0
      %v1048 = vpop.f32.mrb[0].mxu0
      %v1049 = vadd.f32 0.0, %v1048
      %v1050 = vpop.f32.mrb[0].mxu0
      %1051 = vmatprep.mubr.bf16.mxu0 0
      %1052 = vmatmul.mubr.bf16.gmra.mrb[0].mxu0 %v942
      %v1053 = vpop.f32.mrb[0].mxu0
      %v1054 = vadd.f32 0.0, %v1053
      %v1055 = vpop.f32.mrb[0].mxu0
      %v1056 = vpop.f32.mrb[0].mxu0
      %v1057 = vadd.f32 0.0, %v1056
      %v1058 = vpop.f32.mrb[0].mxu0
      %1059 = vmatprep.mubr.bf16.mxu0 0
      %1060 = vmatmul.mubr.bf16.gmra.mrb[0].mxu0 %v945
      %v1061 = vpop.f32.mrb[0].mxu0
      %v1062 = vadd.f32 0.0, %v1061
      %v1063 = vpop.f32.mrb[0].mxu0
      %v1064 = vpop.f32.mrb[0].mxu0
      %v1065 = vadd.f32 0.0, %v1064
      %v1066 = vpop.f32.mrb[0].mxu0
      %1067 = vmatprep.mubr.bf16.mxu0 0
      %1068 = vmatmul.mubr.bf16.gmra.mrb[0].mxu0 %v948
      %v1069 = vpop.f32.mrb[0].mxu0
      %v1070 = vadd.f32 0.0, %v1069
      %v1071 = vpop.f32.mrb[0].mxu0
      %v1072 = vpop.f32.mrb[0].mxu0
      %v1073 = vadd.f32 0.0, %v1072
      %v1074 = vpop.f32.mrb[0].mxu0
      %1075 = vmatprep.mubr.bf16.mxu0 0
      %1076 = vmatmul.mubr.bf16.gmra.mrb[0].mxu0 %v951
      %v1077 = vpop.f32.mrb[0].mxu0
      %v1078 = vadd.f32 0.0, %v1077
      %v1079 = vpop.f32.mrb[0].mxu0
      %v1080 = vpop.f32.mrb[0].mxu0
      %v1081 = vadd.f32 0.0, %v1080
      %v1082 = vpop.f32.mrb[0].mxu0
      %1083 = vmatprep.mubr.bf16.mxu0 0
      %1084 = vmatmul.mubr.bf16.gmra.mrb[0].mxu0 %v954
      %v1085 = vpop.f32.mrb[0].mxu0
      %v1086 = vadd.f32 0.0, %v1085
      %v1087 = vpop.f32.mrb[0].mxu0
      %v1088 = vpop.f32.mrb[0].mxu0
      %v1089 = vadd.f32 0.0, %v1088
      %v1090 = vpop.f32.mrb[0].mxu0
      %1091 = vmatprep.mubr.bf16.mxu0 0
      %1092 = vmatmul.mubr.bf16.gmra.mrb[0].mxu0 %v957
      %v1093 = vpop.f32.mrb[0].mxu0
      %v1094 = vadd.f32 0.0, %v1093
      %v1095 = vpop.f32.mrb[0].mxu0
      %v1096 = vpop.f32.mrb[0].mxu0
      %v1097 = vadd.f32 0.0, %v1096
      %v1098 = vpop.f32.mrb[0].mxu0
      %1099 = vmatprep.mubr.bf16.mxu0 0
      %1100 = vmatmul.mubr.bf16.gmra.mrb[0].mxu0 %v960
      %v1101 = vpop.f32.mrb[0].mxu0
      %v1102 = vadd.f32 0.0, %v1101
      %v1103 = vpop.f32.mrb[0].mxu0
      %v1104 = vpop.f32.mrb[0].mxu0
      %v1105 = vadd.f32 0.0, %v1104
      %v1106 = vpop.f32.mrb[0].mxu0
      %1107 = vmatprep.mubr.bf16.mxu0 0
      %1108 = vmatmul.mubr.bf16.gmra.mrb[0].mxu0 %v963
      %v1109 = vpop.f32.mrb[0].mxu0
      %v1110 = vadd.f32 0.0, %v1109
      %v1111 = vpop.f32.mrb[0].mxu0
      %v1112 = vpop.f32.mrb[0].mxu0
      %v1113 = vadd.f32 0.0, %v1112
      %v1114 = vpop.f32.mrb[0].mxu0
      %1115 = vmatprep.mubr.bf16.mxu0 0
      %1116 = vmatmul.mubr.bf16.gmra.mrb[0].mxu0 %v966
      %v1117 = vpop.f32.mrb[0].mxu0
      %v1118 = vadd.f32 0.0, %v1117
      %v1119 = vpop.f32.mrb[0].mxu0
      %v1120 = vpop.f32.mrb[0].mxu0
      %v1121 = vadd.f32 0.0, %v1120
      %v1122 = vpop.f32.mrb[0].mxu0
      %1123 = vmatprep.mubr.bf16.mxu0 0
      %1124 = vmatmul.mubr.bf16.gmra.mrb[0].mxu0 %v969
      %v1125 = vpop.f32.mrb[0].mxu0
      %v1126 = vadd.f32 0.0, %v1125
      %v1127 = vpop.f32.mrb[0].mxu0
      %v1128 = vpop.f32.mrb[0].mxu0
      %v1129 = vadd.f32 0.0, %v1128
      %v1130 = vpop.f32.mrb[0].mxu0
      %1131 = vdwg.mxu0
      %v1132 = vadd.f32 %v636, %v1006
      %v1133 = vadd.f32 %v639, %v1009
      %v1134 = vadd.f32 %v644, %v1014
      %v1135 = vadd.f32 %v647, %v1017
      %v1136 = vadd.f32 %v652, %v1022
      %v1137 = vadd.f32 %v655, %v1025
      %v1138 = vadd.f32 %v660, %v1030
      %v1139 = vadd.f32 %v663, %v1033
      %v1140 = vadd.f32 %v668, %v1038
      %v1141 = vadd.f32 %v671, %v1041
      %v1142 = vadd.f32 %v676, %v1046
      %v1143 = vadd.f32 %v679, %v1049
      %v1144 = vadd.f32 %v684, %v1054
      %v1145 = vadd.f32 %v687, %v1057
      %v1146 = vadd.f32 %v692, %v1062
      %v1147 = vadd.f32 %v695, %v1065
      %v1148 = vadd.f32 %v700, %v1070
      %v1149 = vadd.f32 %v703, %v1073
      %v1150 = vadd.f32 %v708, %v1078
      %v1151 = vadd.f32 %v711, %v1081
      %v1152 = vadd.f32 %v716, %v1086
      %v1153 = vadd.f32 %v719, %v1089
      %v1154 = vadd.f32 %v724, %v1094
      %v1155 = vadd.f32 %v727, %v1097
      %v1156 = vadd.f32 %v732, %v1102
      %v1157 = vadd.f32 %v735, %v1105
      %v1158 = vadd.f32 %v740, %v1110
      %v1159 = vadd.f32 %v743, %v1113
      %v1160 = vadd.f32 %v748, %v1118
      %v1161 = vadd.f32 %v751, %v1121
      %v1162 = vadd.f32 %v756, %v1126
      %v1163 = vadd.f32 %v759, %v1129
      %v1164 = vld [vmem:[%s2] sm:$0x1]
      %v1166 = vlaneseq
      %v1167 = vshrl.u32 %v1166, 7
      %v1168 = vsub.s32 0, %v1167
      %v1169 = vrot.slane %v1164, %v1168
      %v1171 = vadd.f32 %v1132, %v1169
      %v1172 = vadd.f32 %v1133, %v1169
      %v1173 = vadd.f32 %v1134, %v1169
      %v1174 = vadd.f32 %v1135, %v1169
      %v1175 = vadd.f32 %v1136, %v1169
      %v1176 = vadd.f32 %v1137, %v1169
      %v1177 = vadd.f32 %v1138, %v1169
      %v1178 = vadd.f32 %v1139, %v1169
      %v1179 = vadd.f32 %v1140, %v1169
      %v1180 = vadd.f32 %v1141, %v1169
      %v1181 = vadd.f32 %v1142, %v1169
      %v1182 = vadd.f32 %v1143, %v1169
      %v1183 = vadd.f32 %v1144, %v1169
      %v1184 = vadd.f32 %v1145, %v1169
      %v1185 = vadd.f32 %v1146, %v1169
      %v1186 = vadd.f32 %v1147, %v1169
      %v1187 = vadd.f32 %v1148, %v1169
      %v1188 = vadd.f32 %v1149, %v1169
      %v1189 = vadd.f32 %v1150, %v1169
      %v1190 = vadd.f32 %v1151, %v1169
      %v1191 = vadd.f32 %v1152, %v1169
      %v1192 = vadd.f32 %v1153, %v1169
      %v1193 = vadd.f32 %v1154, %v1169
      %v1194 = vadd.f32 %v1155, %v1169
      %v1195 = vadd.f32 %v1156, %v1169
      %v1196 = vadd.f32 %v1157, %v1169
      %v1197 = vadd.f32 %v1158, %v1169
      %v1198 = vadd.f32 %v1159, %v1169
      %v1199 = vadd.f32 %v1160, %v1169
      %v1200 = vadd.f32 %v1161, %v1169
      %v1201 = vadd.f32 %v1162, %v1169
      %v1202 = vadd.f32 %v1163, %v1169
      %v1203 = vmax.f32 %v1171, 0.0
      %v1204 = vmax.f32 %v1172, 0.0
      %v1205 = vmax.f32 %v1173, 0.0
      %v1206 = vmax.f32 %v1174, 0.0
      %v1207 = vmax.f32 %v1175, 0.0
      %v1208 = vmax.f32 %v1176, 0.0
      %v1209 = vmax.f32 %v1177, 0.0
      %v1210 = vmax.f32 %v1178, 0.0
      %v1211 = vmax.f32 %v1179, 0.0
      %v1212 = vmax.f32 %v1180, 0.0
      %v1213 = vmax.f32 %v1181, 0.0
      %v1214 = vmax.f32 %v1182, 0.0
      %v1215 = vmax.f32 %v1183, 0.0
      %v1216 = vmax.f32 %v1184, 0.0
      %v1217 = vmax.f32 %v1185, 0.0
      %v1218 = vmax.f32 %v1186, 0.0
      %v1219 = vmax.f32 %v1187, 0.0
      %v1220 = vmax.f32 %v1188, 0.0
      %v1221 = vmax.f32 %v1189, 0.0
      %v1222 = vmax.f32 %v1190, 0.0
      %v1223 = vmax.f32 %v1191, 0.0
      %v1224 = vmax.f32 %v1192, 0.0
      %v1225 = vmax.f32 %v1193, 0.0
      %v1226 = vmax.f32 %v1194, 0.0
      %v1227 = vmax.f32 %v1195, 0.0
      %v1228 = vmax.f32 %v1196, 0.0
      %v1229 = vmax.f32 %v1197, 0.0
      %v1230 = vmax.f32 %v1198, 0.0
      %v1231 = vmax.f32 %v1199, 0.0
      %v1232 = vmax.f32 %v1200, 0.0
      %v1233 = vmax.f32 %v1201, 0.0
      %v1234 = vmax.f32 %v1202, 0.0
      %vm1235 = vcmask 261120
      %1236 = vst.msk [vmem:[%s170] sm:$0xff] %vm1235, %v1203
      %1237 = vst.msk [vmem:[%s170 + $0x8] sm:$0xff] %vm1235, %v1204
      %1238 = vst.msk [vmem:[%s170 + $0x10] sm:$0xff] %vm1235, %v1205
      %1239 = vst.msk [vmem:[%s170 + $0x18] sm:$0xff] %vm1235, %v1206
      %1240 = vst.msk [vmem:[%s170 + $0x20] sm:$0xff] %vm1235, %v1207
      %1241 = vst.msk [vmem:[%s170 + $0x28] sm:$0xff] %vm1235, %v1208
      %1242 = vst.msk [vmem:[%s170 + $0x30] sm:$0xff] %vm1235, %v1209
      %1243 = vst.msk [vmem:[%s170 + $0x38] sm:$0xff] %vm1235, %v1210
      %1244 = vst.msk [vmem:[%s170 + $0x40] sm:$0xff] %vm1235, %v1211
      %1245 = vst.msk [vmem:[%s170 + $0x48] sm:$0xff] %vm1235, %v1212
      %1246 = vst.msk [vmem:[%s170 + $0x50] sm:$0xff] %vm1235, %v1213
      %1247 = vst.msk [vmem:[%s170 + $0x58] sm:$0xff] %vm1235, %v1214
      %1248 = vst.msk [vmem:[%s170 + $0x60] sm:$0xff] %vm1235, %v1215
      %1249 = vst.msk [vmem:[%s170 + $0x68] sm:$0xff] %vm1235, %v1216
      %1250 = vst.msk [vmem:[%s170 + $0x70] sm:$0xff] %vm1235, %v1217
      %1251 = vst.msk [vmem:[%s170 + $0x78] sm:$0xff] %vm1235, %v1218
      %1252 = vst.msk [vmem:[%s170 + $0x80] sm:$0xff] %vm1235, %v1219
      %1253 = vst.msk [vmem:[%s170 + $0x88] sm:$0xff] %vm1235, %v1220
      %1254 = vst.msk [vmem:[%s170 + $0x90] sm:$0xff] %vm1235, %v1221
      %1255 = vst.msk [vmem:[%s170 + $0x98] sm:$0xff] %vm1235, %v1222
      %1256 = vst.msk [vmem:[%s170 + $0xa0] sm:$0xff] %vm1235, %v1223
      %1257 = vst.msk [vmem:[%s170 + $0xa8] sm:$0xff] %vm1235, %v1224
      %1258 = vst.msk [vmem:[%s170 + $0xb0] sm:$0xff] %vm1235, %v1225
      %1259 = vst.msk [vmem:[%s170 + $0xb8] sm:$0xff] %vm1235, %v1226
      %1260 = vst.msk [vmem:[%s170 + $0xc0] sm:$0xff] %vm1235, %v1227
      %1261 = vst.msk [vmem:[%s170 + $0xc8] sm:$0xff] %vm1235, %v1228
      %1262 = vst.msk [vmem:[%s170 + $0xd0] sm:$0xff] %vm1235, %v1229
      %1263 = vst.msk [vmem:[%s170 + $0xd8] sm:$0xff] %vm1235, %v1230
      %1264 = vst.msk [vmem:[%s170 + $0xe0] sm:$0xff] %vm1235, %v1231
      %1265 = vst.msk [vmem:[%s170 + $0xe8] sm:$0xff] %vm1235, %v1232
      %1266 = vst.msk [vmem:[%s170 + $0xf0] sm:$0xff] %vm1235, %v1233
      %1267 = vst.msk [vmem:[%s170 + $0xf8] sm:$0xff] %vm1235, %v1234
      %p1268 = scmp.lt.s32.totalorder %s14, 1
      %s1269 = scalar_select %p1268, %s14, 1
      %s1270 = smul.addr %s1269, 32
      %s1271 = smul.addr %s1270, 8
      %s1272 = scalar_lea.vmem %s3, %s1271
      // Predicated region
      $region33: #{asi_forward.5} parent=31 // pred_check
        %p1273 = pneg %p100
      $region34: #{asi_forward.5} parent=31 // pred_check_branch
        %1275 = sbr.rel (%p1273) target = $region36
      $region35: #{asi_forward.5} parent=31 // pred_region
        _
      $region36: #{asi_forward.5} parent=31 // pred_fallthru
        _
    $region32: #{asi_forward.5} parent=5 // pred_fallthru
      _
    %p1276 = scmp.le.s32.totalorder 2, %s9
    // Predicated region
    $region37: #{asi_forward.5} parent=5 // pred_check
      %p1277 = pneg %p1276
    $region38: #{asi_forward.5} parent=5 // pred_check_branch
      %1279 = sbr.rel (%p1277) target = $region40
    $region39: #{asi_forward.5} parent=5 // pred_region
      %s1280 = ssub.s32 %s9, 2
      // Predicated region
      $region41: #{asi_forward.5} parent=39 // pred_check
        %p1281 = pneg %p106
      $region42: #{asi_forward.5} parent=39 // pred_check_branch
        %1283 = sbr.rel (%p1281) target = $region44
      $region43: #{asi_forward.5} parent=39 // pred_region
        %p1284 = scmp.lt.s32.totalorder %s15, 1
        %s1285 = scalar_select %p1284, %s15, 1
        %s1286 = smul.addr %s1285, 32
        %s1287 = smul.addr %s1286, 8
        %s1288 = scalar_lea.vmem %s3, %s1287
      $region44: #{asi_forward.5} parent=39 // pred_fallthru
        _
    $region40: #{asi_forward.5} parent=5 // pred_fallthru
      _
  $region6: #{asi_forward.5} parent=0 // loop_footer
    %s13 = sadd.s32 1, %s9
  $region7: #{asi_forward.5} parent=0 // loop_footer_branch
    %8 = sbr.rel target = $region3
  $region8: #{asi_forward.5} parent=0 // loop_exit
    _

// kernel: asi_forward.6
$region0: #{asi_forward.6}
  #allocation0 [shape = 'u32[]', space=smem, size = 0x4, offset = 0x4, fixed_abs, tag = 'smem constant byte address 0x4 - core index']
  #allocation1 [shape = 'u32[144,128]{1,0:T(1,128)}', space=vmem, size = 0x12000, scoped, tag = 'internal scratch']
  %s0 = inlined_call_operand.vmem [shape: bf16[2,288,192], index: 0, kind: input, shape index: {}]
  %s1 = inlined_call_operand.vmem [shape: bf16[3,192,32], index: 1, kind: input, shape index: {}]
  %s2 = inlined_call_operand.vmem [shape: f32[1,32], index: 2, kind: input, shape index: {}]
  %s3 = inlined_call_operand.vmem [shape: f32[2,256,32], index: 3, kind: output, shape index: {}]
  %s4 = sld [smem:[#allocation0]]
  $region45: #{asi_forward.6} parent=0
    _
  %s6 = ssub.s32 1, %s4
  %s7 = scalar_select 0, %s6, %s4
  loop: start=0, step=1, limit=4
  $region2: #{asi_forward.6} parent=0 // loop_pre_header
    _
  $region3: #{asi_forward.6} parent=0 // loop_header
    %s9 = sphi 0, %s13
    %p10 = scmp.ge.s32.totalorder %s9, 4
    %s19 = sphi 0, %s21
    %s22 = sphi 0, %s19
    %s23 = sphi 0, %s22
    %s39 = sphi 0, %s23
    %s43 = sphi 0, %s43
    %s45 = sphi 0, %s43
    %s46 = sphi 0, %s45
    %s60 = sphi 0, %s46
    %s64 = sphi 0, %s64
    %s66 = sphi 0, %s64
    %s67 = sphi 0, %s66
    %s81 = sphi 0, %s67
    %s87 = sphi 0, %s89
    %s90 = sphi 0, %s87
    %s91 = sphi 0, %s90
    %s107 = sphi 0, %s91
  $region4: #{asi_forward.6} parent=0 // loop_header_branch
    %12 = sbr.rel (%p10) target = $region8
  $region5: #{asi_forward.6} parent=0 // loop_body
    %s14 = ssub.s32 %s9, 1
    %s15 = ssub.s32 %s9, 2
    %s16 = sadd.s32 %s9, 1
    %s17 = ssub.s32 %s9, %s16
    %p18 = scmp.eq.s32.totalorder %s17, 0
    %s20 = sadd.s32 %s19, 1
    %s21 = scalar_select %p18, %s19, %s20
    %p24 = pneg %p18
    %p25 = scmp.eq.s32.totalorder %s9, 1
    %p26 = por %p24, %p25
    %p27 = scmp.ne.s32.totalorder %s19, %s22
    %p28 = scmp.eq.s32.totalorder %s9, 0
    %p29 = por %p27, %p28
    %p30 = scmp.ne.s32.totalorder %s19, %s22
    %p31 = scmp.eq.s32.totalorder %s14, 1
    %p32 = por %p30, %p31
    %p33 = scmp.ne.s32.totalorder %s22, %s23
    %p34 = scmp.eq.s32.totalorder %s14, 0
    %p35 = por %p33, %p34
    %p36 = scmp.ne.s32.totalorder %s22, %s23
    %p37 = scmp.eq.s32.totalorder %s15, 1
    %p38 = por %p36, %p37
    %p40 = scmp.ne.s32.totalorder %s23, %s39
    %p41 = scmp.eq.s32.totalorder %s15, 0
    %p42 = por %p40, %p41
    %s44 = sadd.s32 %s43, 1
    %p47 = scmp.eq.s32.totalorder %s9, 1
    %p48 = scmp.ne.s32.totalorder %s43, %s45
    %p49 = scmp.eq.s32.totalorder %s9, 0
    %p50 = por %p48, %p49
    %p51 = scmp.ne.s32.totalorder %s43, %s45
    %p52 = scmp.eq.s32.totalorder %s14, 1
    %p53 = por %p51, %p52
    %p54 = scmp.ne.s32.totalorder %s45, %s46
    %p55 = scmp.eq.s32.totalorder %s14, 0
    %p56 = por %p54, %p55
    %p57 = scmp.ne.s32.totalorder %s45, %s46
    %p58 = scmp.eq.s32.totalorder %s15, 1
    %p59 = por %p57, %p58
    %p61 = scmp.ne.s32.totalorder %s46, %s60
    %p62 = scmp.eq.s32.totalorder %s15, 0
    %p63 = por %p61, %p62
    %s65 = sadd.s32 %s64, 1
    %p68 = scmp.eq.s32.totalorder %s9, 1
    %p69 = scmp.ne.s32.totalorder %s64, %s66
    %p70 = scmp.eq.s32.totalorder %s9, 0
    %p71 = por %p69, %p70
    %p72 = scmp.ne.s32.totalorder %s64, %s66
    %p73 = scmp.eq.s32.totalorder %s14, 1
    %p74 = por %p72, %p73
    %p75 = scmp.ne.s32.totalorder %s66, %s67
    %p76 = scmp.eq.s32.totalorder %s14, 0
    %p77 = por %p75, %p76
    %p78 = scmp.ne.s32.totalorder %s66, %s67
    %p79 = scmp.eq.s32.totalorder %s15, 1
    %p80 = por %p78, %p79
    %p82 = scmp.ne.s32.totalorder %s67, %s81
    %p83 = scmp.eq.s32.totalorder %s15, 0
    %p84 = por %p82, %p83
    %s85 = ssub.s32 %s9, %s16
    %p86 = scmp.eq.s32.totalorder %s85, 0
    %s88 = sadd.s32 %s87, 1
    %s89 = scalar_select %p86, %s87, %s88
    %p92 = pneg %p86
    %p93 = scmp.eq.s32.totalorder %s9, 1
    %p94 = por %p92, %p93
    %p95 = scmp.ne.s32.totalorder %s87, %s90
    %p96 = scmp.eq.s32.totalorder %s9, 0
    %p97 = por %p95, %p96
    %p98 = scmp.ne.s32.totalorder %s87, %s90
    %p99 = scmp.eq.s32.totalorder %s14, 1
    %p100 = por %p98, %p99
    %p101 = scmp.ne.s32.totalorder %s90, %s91
    %p102 = scmp.eq.s32.totalorder %s14, 0
    %p103 = por %p101, %p102
    %p104 = scmp.ne.s32.totalorder %s90, %s91
    %p105 = scmp.eq.s32.totalorder %s15, 1
    %p106 = por %p104, %p105
    %p108 = scmp.ne.s32.totalorder %s91, %s107
    %p109 = scmp.eq.s32.totalorder %s15, 0
    %p110 = por %p108, %p109
    %p111 = scmp.le.s32.totalorder 1, %s9
    %p112 = scmp.lt.s32.totalorder %s9, 3
    %p113 = pnand %p111, %p112
    %p114 = pneg %p113
    // Predicated region
    $region9: #{asi_forward.6} parent=5 // pred_check
      _
    $region10: #{asi_forward.6} parent=5 // pred_check_branch
      %116 = sbr.rel (%p113) target = $region12
    $region11: #{asi_forward.6} parent=5 // pred_region
      %s117 = ssub.s32 %s9, 1
      // Predicated region
      $region13: #{asi_forward.6} parent=11 // pred_check
        %p118 = pneg %p56
      $region14: #{asi_forward.6} parent=11 // pred_check_branch
        %120 = sbr.rel (%p118) target = $region16
      $region15: #{asi_forward.6} parent=11 // pred_region
        _
      $region16: #{asi_forward.6} parent=11 // pred_fallthru
        _
      // Predicated region
      $region17: #{asi_forward.6} parent=11 // pred_check
        %p121 = pneg %p77
      $region18: #{asi_forward.6} parent=11 // pred_check_branch
        %123 = sbr.rel (%p121) target = $region20
      $region19: #{asi_forward.6} parent=11 // pred_region
        _
      $region20: #{asi_forward.6} parent=11 // pred_fallthru
        _
    $region12: #{asi_forward.6} parent=5 // pred_fallthru
      _
    %p124 = scmp.lt.s32.totalorder %s9, 2
    // Predicated region
    $region21: #{asi_forward.6} parent=5 // pred_check
      %p125 = pneg %p124
    $region22: #{asi_forward.6} parent=5 // pred_check_branch
      %127 = sbr.rel (%p125) target = $region24
    $region23: #{asi_forward.6} parent=5 // pred_region
      // Predicated region
      $region25: #{asi_forward.6} parent=23 // pred_check
        %p128 = pneg %p29
      $region26: #{asi_forward.6} parent=23 // pred_check_branch
        %130 = sbr.rel (%p128) target = $region28
      $region27: #{asi_forward.6} parent=23 // pred_region
        %p131 = scmp.lt.s32.totalorder %s9, 1
        %s132 = scalar_select %p131, %s9, 1
        %s133 = smul.addr %s132, 72
        %s134 = smul.addr %s133, 4
        %s135 = scalar_lea.vmem %s0, %s134
      $region28: #{asi_forward.6} parent=23 // pred_fallthru
        _
    $region24: #{asi_forward.6} parent=5 // pred_fallthru
      _
    %p136 = scmp.le.s32.totalorder 1, %s9
    %p137 = scmp.lt.s32.totalorder %s9, 3
    %p138 = pnand %p136, %p137
    %p139 = pneg %p138
    // Predicated region
    $region29: #{asi_forward.6} parent=5 // pred_check
      _
    $region30: #{asi_forward.6} parent=5 // pred_check_branch
      %141 = sbr.rel (%p138) target = $region32
    $region31: #{asi_forward.6} parent=5 // pred_region
      %s142 = ssub.s32 %s9, 1
      %p143 = scmp.lt.s32.totalorder %s14, 1
      %s144 = scalar_select %p143, %s14, 1
      %s145 = smul.addr %s144, 72
      %s146 = smul.addr %s145, 4
      %s147 = scalar_lea.vmem %s0, %s146
      %p148 = pneg %p35
      %p149 = pneg %p32
      %p150 = pneg %p56
      %p151 = pneg %p53
      %p152 = pneg %p77
      %p153 = pneg %p74
      %p154 = pneg %p103
      %p155 = pneg %p100
      %p156 = scmp.lt.s32.totalorder %s14, 1
      %s157 = scalar_select %p156, %s14, 1
      %s158 = smul.addr %s157, 32
      %s159 = smul.addr %s158, 8
      %s160 = scalar_lea.vmem %s3, %s159
      %p161 = scmp.lt.s32.totalorder %s14, 1
      %s162 = scalar_select %p161, %s14, 1
      %s163 = smul.addr %s162, 72
      %s164 = smul.addr %s163, 4
      %s165 = scalar_lea.vmem %s0, %s164
      %p166 = scmp.lt.s32.totalorder %s14, 1
      %s167 = scalar_select %p166, %s14, 1
      %s168 = smul.addr %s167, 32
      %s169 = smul.addr %s168, 8
      %s170 = scalar_lea.vmem %s3, %s169
      %v172 = vld [vmem:[%s165] sm:$0xff]
      %v173 = vld [vmem:[%s165 + $0x8] sm:$0xff]
      %v174 = vld [vmem:[%s165 + $0x10] sm:$0xff]
      %v175 = vld [vmem:[%s165 + $0x18] sm:$0xff]
      %v176 = vld [vmem:[%s165 + $0x20] sm:$0xff]
      %v177 = vld [vmem:[%s165 + $0x28] sm:$0xff]
      %v178 = vld [vmem:[%s165 + $0x30] sm:$0xff]
      %v179 = vld [vmem:[%s165 + $0x38] sm:$0xff]
      %v180 = vld [vmem:[%s165 + $0x40] sm:$0xff]
      %v181 = vld [vmem:[%s165 + $0x48] sm:$0xff]
      %v182 = vld [vmem:[%s165 + $0x50] sm:$0xff]
      %v183 = vld [vmem:[%s165 + $0x58] sm:$0xff]
      %v184 = vld [vmem:[%s165 + $0x60] sm:$0xff]
      %v185 = vld [vmem:[%s165 + $0x68] sm:$0xff]
      %v186 = vld [vmem:[%s165 + $0x70] sm:$0xff]
      %v187 = vld [vmem:[%s165 + $0x78] sm:$0xff]
      %v188 = vld [vmem:[%s165 + $0x80] sm:$0xff]
      %v189 = vld [vmem:[%s165 + $0x88] sm:$0xff]
      %v190 = vld [vmem:[%s165 + $0x90] sm:$0xff]
      %v191 = vld [vmem:[%s165 + $0x98] sm:$0xff]
      %v192 = vld [vmem:[%s165 + $0xa0] sm:$0xff]
      %v193 = vld [vmem:[%s165 + $0xa8] sm:$0xff]
      %v194 = vld [vmem:[%s165 + $0xb0] sm:$0xff]
      %v195 = vld [vmem:[%s165 + $0xb8] sm:$0xff]
      %v196 = vld [vmem:[%s165 + $0xc0] sm:$0xff]
      %v197 = vld [vmem:[%s165 + $0xc8] sm:$0xff]
      %v198 = vld [vmem:[%s165 + $0xd0] sm:$0xff]
      %v199 = vld [vmem:[%s165 + $0xd8] sm:$0xff]
      %v200 = vld [vmem:[%s165 + $0xe0] sm:$0xff]
      %v201 = vld [vmem:[%s165 + $0xe8] sm:$0xff]
      %v202 = vld [vmem:[%s165 + $0xf0] sm:$0xff]
      %v203 = vld [vmem:[%s165 + $0xf8] sm:$0xff]
      %v204 = vld [vmem:[%s1] sm:$0xf]
      %v205 = vld [vmem:[%s1 + $0x4] sm:$0xf]
      %v206 = vld [vmem:[%s1 + $0x8] sm:$0xf]
      %v207 = vld [vmem:[%s1 + $0xc] sm:$0xf]
      %v208 = vld [vmem:[%s1 + $0x10] sm:$0xf]
      %v209 = vld [vmem:[%s1 + $0x14] sm:$0xf]
      %v210 = vld [vmem:[%s1 + $0x18] sm:$0xf]
      %v211 = vld [vmem:[%s1 + $0x1c] sm:$0xf]
      %v212 = vld [vmem:[%s1 + $0x20] sm:$0xf]
      %v213 = vld [vmem:[%s1 + $0x24] sm:$0xf]
      %v214 = vld [vmem:[%s1 + $0x28] sm:$0xf]
      %v215 = vld [vmem:[%s1 + $0x2c] sm:$0xf]
      %v216 = vld [vmem:[%s1 + $0x30] sm:$0xf]
      %v217 = vld [vmem:[%s1 + $0x34] sm:$0xf]
      %v218 = vld [vmem:[%s1 + $0x38] sm:$0xf]
      %v219 = vld [vmem:[%s1 + $0x3c] sm:$0xf]
      %v220 = vld [vmem:[%s1 + $0x40] sm:$0xf]
      %v221 = vld [vmem:[%s1 + $0x44] sm:$0xf]
      %v222 = vld [vmem:[%s1 + $0x48] sm:$0xf]
      %v223 = vld [vmem:[%s1 + $0x4c] sm:$0xf]
      %v224 = vld [vmem:[%s1 + $0x50] sm:$0xf]
      %v225 = vld [vmem:[%s1 + $0x54] sm:$0xf]
      %v226 = vld [vmem:[%s1 + $0x58] sm:$0xf]
      %v227 = vld [vmem:[%s1 + $0x5c] sm:$0xf]
      %v228 = vld [vmem:[%s165 + $0x100] sm:$0xff]
      %v229 = vld [vmem:[%s165 + $0x108] sm:$0xff]
      %s230 = scalar_lea.vmem %s1, 96
      %v231 = vld [vmem:[%s230] sm:$0xf]
      %v232 = vld [vmem:[%s230 + $0x4] sm:$0xf]
      %v233 = vld [vmem:[%s230 + $0x8] sm:$0xf]
      %v234 = vld [vmem:[%s230 + $0xc] sm:$0xf]
      %v235 = vld [vmem:[%s230 + $0x10] sm:$0xf]
      %v236 = vld [vmem:[%s230 + $0x14] sm:$0xf]
      %v237 = vld [vmem:[%s230 + $0x18] sm:$0xf]
      %v238 = vld [vmem:[%s230 + $0x1c] sm:$0xf]
      %v239 = vld [vmem:[%s230 + $0x20] sm:$0xf]
      %v240 = vld [vmem:[%s230 + $0x24] sm:$0xf]
      %v241 = vld [vmem:[%s230 + $0x28] sm:$0xf]
      %v242 = vld [vmem:[%s230 + $0x2c] sm:$0xf]
      %v243 = vld [vmem:[%s230 + $0x30] sm:$0xf]
      %v244 = vld [vmem:[%s230 + $0x34] sm:$0xf]
      %v245 = vld [vmem:[%s230 + $0x38] sm:$0xf]
      %v246 = vld [vmem:[%s230 + $0x3c] sm:$0xf]
      %v247 = vld [vmem:[%s230 + $0x40] sm:$0xf]
      %v248 = vld [vmem:[%s230 + $0x44] sm:$0xf]
      %v249 = vld [vmem:[%s230 + $0x48] sm:$0xf]
      %v250 = vld [vmem:[%s230 + $0x4c] sm:$0xf]
      %v251 = vld [vmem:[%s230 + $0x50] sm:$0xf]
      %v252 = vld [vmem:[%s230 + $0x54] sm:$0xf]
      %v253 = vld [vmem:[%s230 + $0x58] sm:$0xf]
      %v254 = vld [vmem:[%s230 + $0x5c] sm:$0xf]
      %v287 = vunpack.c.l.b16 %v174
      %v288 = vunpack.c.h.b16 %v174
      %v289 = vunpack.c.l.b16 %v175
      %v290 = vunpack.c.h.b16 %v175
      %v291 = vunpack.c.l.b16 %v176
      %v292 = vunpack.c.h.b16 %v176
      %v293 = vunpack.c.l.b16 %v177
      %v294 = vunpack.c.h.b16 %v177
      %v295 = vunpack.c.l.b16 %v178
      %v296 = vunpack.c.h.b16 %v178
      %v297 = vunpack.c.l.b16 %v179
      %v298 = vunpack.c.h.b16 %v179
      %v299 = vunpack.c.l.b16 %v180
      %v300 = vunpack.c.h.b16 %v180
      %v301 = vunpack.c.l.b16 %v181
      %v302 = vunpack.c.h.b16 %v181
      %v303 = vunpack.c.l.b16 %v182
      %v304 = vunpack.c.h.b16 %v182
      %v305 = vunpack.c.l.b16 %v183
      %v306 = vunpack.c.h.b16 %v183
      %v307 = vunpack.c.l.b16 %v184
      %v308 = vunpack.c.h.b16 %v184
      %v309 = vunpack.c.l.b16 %v185
      %v310 = vunpack.c.h.b16 %v185
      %v311 = vunpack.c.l.b16 %v186
      %v312 = vunpack.c.h.b16 %v186
      %v313 = vunpack.c.l.b16 %v187
      %v314 = vunpack.c.h.b16 %v187
      %v315 = vunpack.c.l.b16 %v188
      %v316 = vunpack.c.h.b16 %v188
      %v317 = vunpack.c.l.b16 %v189
      %v318 = vunpack.c.h.b16 %v189
      %v319 = vunpack.c.l.b16 %v190
      %v320 = vunpack.c.h.b16 %v190
      %v321 = vunpack.c.l.b16 %v191
      %v322 = vunpack.c.h.b16 %v191
      %v323 = vunpack.c.l.b16 %v192
      %v324 = vunpack.c.h.b16 %v192
      %v325 = vunpack.c.l.b16 %v193
      %v326 = vunpack.c.h.b16 %v193
      %v327 = vunpack.c.l.b16 %v194
      %v328 = vunpack.c.h.b16 %v194
      %v329 = vunpack.c.l.b16 %v195
      %v330 = vunpack.c.h.b16 %v195
      %v331 = vunpack.c.l.b16 %v196
      %v332 = vunpack.c.h.b16 %v196
      %v333 = vunpack.c.l.b16 %v197
      %v334 = vunpack.c.h.b16 %v197
      %v335 = vunpack.c.l.b16 %v198
      %v336 = vunpack.c.h.b16 %v198
      %v337 = vunpack.c.l.b16 %v199
      %v338 = vunpack.c.h.b16 %v199
      %v339 = vunpack.c.l.b16 %v200
      %v340 = vunpack.c.h.b16 %v200
      %v341 = vunpack.c.l.b16 %v201
      %v342 = vunpack.c.h.b16 %v201
      %v343 = vunpack.c.l.b16 %v202
      %v344 = vunpack.c.h.b16 %v202
      %v345 = vunpack.c.l.b16 %v203
      %v346 = vunpack.c.h.b16 %v203
      %v347 = vunpack.c.l.b16 %v228
      %v348 = vunpack.c.h.b16 %v228
      %v349 = vunpack.c.l.b16 %v229
      %v350 = vunpack.c.h.b16 %v229
      %v351 = vpack.c.b16 %v289, %v287
      %v352 = vpack.c.b16 %v290, %v288
      %v353 = vpack.c.b16 %v293, %v291
      %v354 = vpack.c.b16 %v294, %v292
      %v355 = vpack.c.b16 %v297, %v295
      %v356 = vpack.c.b16 %v298, %v296
      %v357 = vpack.c.b16 %v301, %v299
      %v358 = vpack.c.b16 %v302, %v300
      %v359 = vpack.c.b16 %v305, %v303
      %v360 = vpack.c.b16 %v306, %v304
      %v361 = vpack.c.b16 %v309, %v307
      %v362 = vpack.c.b16 %v310, %v308
      %v363 = vpack.c.b16 %v313, %v311
      %v364 = vpack.c.b16 %v314, %v312
      %v365 = vpack.c.b16 %v317, %v315
      %v366 = vpack.c.b16 %v318, %v316
      %v367 = vpack.c.b16 %v321, %v319
      %v368 = vpack.c.b16 %v322, %v320
      %v369 = vpack.c.b16 %v325, %v323
      %v370 = vpack.c.b16 %v326, %v324
      %v371 = vpack.c.b16 %v329, %v327
      %v372 = vpack.c.b16 %v330, %v328
      %v373 = vpack.c.b16 %v333, %v331
      %v374 = vpack.c.b16 %v334, %v332
      %v375 = vpack.c.b16 %v337, %v335
      %v376 = vpack.c.b16 %v338, %v336
      %v377 = vpack.c.b16 %v341, %v339
      %v378 = vpack.c.b16 %v342, %v340
      %v379 = vpack.c.b16 %v345, %v343
      %v380 = vpack.c.b16 %v346, %v344
      %v381 = vpack.c.b16 %v349, %v347
      %v382 = vpack.c.b16 %v350, %v348
      %v423 = vunpack.c.l.b16 %v231
      %v424 = vunpack.c.l.b16 %v232
      %v425 = vunpack.c.l.b16 %v233
      %v426 = vunpack.c.l.b16 %v234
      %v427 = vunpack.c.l.b16 %v235
      %v428 = vunpack.c.l.b16 %v236
      %v429 = vunpack.c.l.b16 %v237
      %v430 = vunpack.c.l.b16 %v238
      %v431 = vunpack.c.l.b16 %v239
      %v432 = vunpack.c.l.b16 %v240
      %v433 = vunpack.c.l.b16 %v241
      %v434 = vunpack.c.l.b16 %v242
      %v435 = vunpack.c.l.b16 %v243
      %v436 = vunpack.c.l.b16 %v244
      %v437 = vunpack.c.l.b16 %v245
      %v438 = vunpack.c.l.b16 %v246
      %v439 = vunpack.c.l.b16 %v247
      %v440 = vunpack.c.l.b16 %v248
      %v441 = vunpack.c.l.b16 %v249
      %v442 = vunpack.c.l.b16 %v250
      %v443 = vunpack.c.l.b16 %v251
      %v444 = vunpack.c.l.b16 %v252
      %v445 = vunpack.c.l.b16 %v253
      %v446 = vunpack.c.l.b16 %v254
      %v447 = vpack.c.b16 %v424, %v423
      %v448 = vpack.c.b16 %v426, %v425
      %v449 = vpack.c.b16 %v428, %v427
      %v450 = vpack.c.b16 %v430, %v429
      %v451 = vpack.c.b16 %v432, %v431
      %v452 = vpack.c.b16 %v434, %v433
      %v453 = vpack.c.b16 %v436, %v435
      %v454 = vpack.c.b16 %v438, %v437
      %v455 = vpack.c.b16 %v440, %v439
      %v456 = vpack.c.b16 %v442, %v441
      %v457 = vpack.c.b16 %v444, %v443
      %v458 = vpack.c.b16 %v446, %v445
      %vm471 = vcmask 523264
      %v473 = vsel %vm471, %v352, 0
      %v476 = vsel %vm471, %v354, 0
      %v479 = vsel %vm471, %v356, 0
      %v482 = vsel %vm471, %v358, 0
      %v485 = vsel %vm471, %v360, 0
      %v488 = vsel %vm471, %v362, 0
      %v491 = vsel %vm471, %v364, 0
      %v494 = vsel %vm471, %v366, 0
      %v497 = vsel %vm471, %v368, 0
      %v500 = vsel %vm471, %v370, 0
      %v503 = vsel %vm471, %v372, 0
      %v506 = vsel %vm471, %v374, 0
      %v509 = vsel %vm471, %v376, 0
      %v512 = vsel %vm471, %v378, 0
      %v515 = vsel %vm471, %v380, 0
      %v518 = vsel %vm471, %v382, 0
      %520 = vmatprep.subr.bf16.mxu0 0
      %521 = vmatpush1.bf16.msra.mxu0 %v447
      %522 = vmatprep.subr.bf16.mxu0 0
      %523 = vmatpush1.bf16.msra.mxu0 %v448
      %524 = vmatprep.subr.bf16.mxu0 0
      %525 = vmatpush1.bf16.msra.mxu0 %v449
      %526 = vmatprep.subr.bf16.mxu0 0
      %527 = vmatpush1.bf16.msra.mxu0 %v450
      %528 = vmatprep.subr.bf16.mxu0 0
      %529 = vmatpush1.bf16.msra.mxu0 %v451
      %530 = vmatprep.subr.bf16.mxu0 0
      %531 = vmatpush1.bf16.msra.mxu0 %v452
      %532 = vmatprep.subr.bf16.mxu0 0
      %533 = vmatpush1.bf16.msra.mxu0 %v453
      %534 = vmatprep.subr.bf16.mxu0 0
      %535 = vmatpush1.bf16.msra.mxu0 %v454
      %536 = vmatprep.subr.bf16.mxu0 0
      %537 = vmatpush1.bf16.msra.mxu0 %v455
      %538 = vmatprep.subr.bf16.mxu0 0
      %539 = vmatpush1.bf16.msra.mxu0 %v456
      %540 = vmatprep.subr.bf16.mxu0 0
      %541 = vmatpush1.bf16.msra.mxu0 %v457
      %542 = vmatprep.subr.bf16.mxu0 0
      %543 = vmatpush1.bf16.msra.mxu0 %v458
      %544 = vmatprep.subr.bf16.mxu0 0
      %545 = vmatpush1.bf16.msra.mxu0 0
      %546 = vmatprep.subr.bf16.mxu0 0
      %547 = vmatpush1.bf16.msra.mxu0 0
      %548 = vmatprep.subr.bf16.mxu0 0
      %549 = vmatpush1.bf16.msra.mxu0 0
      %550 = vmatprep.subr.bf16.mxu0 0
      %551 = vmatpush1.bf16.msra.mxu0 0
      %552 = vmatprep.mubr.bf16.mxu0 %v473
      %553 = vmatmul.mubr.bf16.gmra.mrb[0].mxu0 %v351
      %v554 = vpop.f32.mrb[0].mxu0
      %v555 = vadd.f32 0.0, %v554
      %v556 = vpop.f32.mrb[0].mxu0
      %v557 = vpop.f32.mrb[0].mxu0
      %v558 = vadd.f32 0.0, %v557
      %v559 = vpop.f32.mrb[0].mxu0
      %560 = vmatprep.mubr.bf16.mxu0 %v476
      %561 = vmatmul.mubr.bf16.gmra.mrb[0].mxu0 %v353
      %v562 = vpop.f32.mrb[0].mxu0
      %v563 = vadd.f32 0.0, %v562
      %v564 = vpop.f32.mrb[0].mxu0
      %v565 = vpop.f32.mrb[0].mxu0
      %v566 = vadd.f32 0.0, %v565
      %v567 = vpop.f32.mrb[0].mxu0
      %568 = vmatprep.mubr.bf16.mxu0 %v479
      %569 = vmatmul.mubr.bf16.gmra.mrb[0].mxu0 %v355
      %v570 = vpop.f32.mrb[0].mxu0
      %v571 = vadd.f32 0.0, %v570
      %v572 = vpop.f32.mrb[0].mxu0
      %v573 = vpop.f32.mrb[0].mxu0
      %v574 = vadd.f32 0.0, %v573
      %v575 = vpop.f32.mrb[0].mxu0
      %576 = vmatprep.mubr.bf16.mxu0 %v482
      %577 = vmatmul.mubr.bf16.gmra.mrb[0].mxu0 %v357
      %v578 = vpop.f32.mrb[0].mxu0
      %v579 = vadd.f32 0.0, %v578
      %v580 = vpop.f32.mrb[0].mxu0
      %v581 = vpop.f32.mrb[0].mxu0
      %v582 = vadd.f32 0.0, %v581
      %v583 = vpop.f32.mrb[0].mxu0
      %584 = vmatprep.mubr.bf16.mxu0 %v485
      %585 = vmatmul.mubr.bf16.gmra.mrb[0].mxu0 %v359
      %v586 = vpop.f32.mrb[0].mxu0
      %v587 = vadd.f32 0.0, %v586
      %v588 = vpop.f32.mrb[0].mxu0
      %v589 = vpop.f32.mrb[0].mxu0
      %v590 = vadd.f32 0.0, %v589
      %v591 = vpop.f32.mrb[0].mxu0
      %592 = vmatprep.mubr.bf16.mxu0 %v488
      %593 = vmatmul.mubr.bf16.gmra.mrb[0].mxu0 %v361
      %v594 = vpop.f32.mrb[0].mxu0
      %v595 = vadd.f32 0.0, %v594
      %v596 = vpop.f32.mrb[0].mxu0
      %v597 = vpop.f32.mrb[0].mxu0
      %v598 = vadd.f32 0.0, %v597
      %v599 = vpop.f32.mrb[0].mxu0
      %600 = vmatprep.mubr.bf16.mxu0 %v491
      %601 = vmatmul.mubr.bf16.gmra.mrb[0].mxu0 %v363
      %v602 = vpop.f32.mrb[0].mxu0
      %v603 = vadd.f32 0.0, %v602
      %v604 = vpop.f32.mrb[0].mxu0
      %v605 = vpop.f32.mrb[0].mxu0
      %v606 = vadd.f32 0.0, %v605
      %v607 = vpop.f32.mrb[0].mxu0
      %608 = vmatprep.mubr.bf16.mxu0 %v494
      %609 = vmatmul.mubr.bf16.gmra.mrb[0].mxu0 %v365
      %v610 = vpop.f32.mrb[0].mxu0
      %v611 = vadd.f32 0.0, %v610
      %v612 = vpop.f32.mrb[0].mxu0
      %v613 = vpop.f32.mrb[0].mxu0
      %v614 = vadd.f32 0.0, %v613
      %v615 = vpop.f32.mrb[0].mxu0
      %616 = vmatprep.mubr.bf16.mxu0 %v497
      %617 = vmatmul.mubr.bf16.gmra.mrb[0].mxu0 %v367
      %v618 = vpop.f32.mrb[0].mxu0
      %v619 = vadd.f32 0.0, %v618
      %v620 = vpop.f32.mrb[0].mxu0
      %v621 = vpop.f32.mrb[0].mxu0
      %v622 = vadd.f32 0.0, %v621
      %v623 = vpop.f32.mrb[0].mxu0
      %624 = vmatprep.mubr.bf16.mxu0 %v500
      %625 = vmatmul.mubr.bf16.gmra.mrb[0].mxu0 %v369
      %v626 = vpop.f32.mrb[0].mxu0
      %v627 = vadd.f32 0.0, %v626
      %v628 = vpop.f32.mrb[0].mxu0
      %v629 = vpop.f32.mrb[0].mxu0
      %v630 = vadd.f32 0.0, %v629
      %v631 = vpop.f32.mrb[0].mxu0
      %632 = vmatprep.mubr.bf16.mxu0 %v503
      %633 = vmatmul.mubr.bf16.gmra.mrb[0].mxu0 %v371
      %v634 = vpop.f32.mrb[0].mxu0
      %v635 = vadd.f32 0.0, %v634
      %v636 = vpop.f32.mrb[0].mxu0
      %v637 = vpop.f32.mrb[0].mxu0
      %v638 = vadd.f32 0.0, %v637
      %v639 = vpop.f32.mrb[0].mxu0
      %640 = vmatprep.mubr.bf16.mxu0 %v506
      %641 = vmatmul.mubr.bf16.gmra.mrb[0].mxu0 %v373
      %v642 = vpop.f32.mrb[0].mxu0
      %v643 = vadd.f32 0.0, %v642
      %v644 = vpop.f32.mrb[0].mxu0
      %v645 = vpop.f32.mrb[0].mxu0
      %v646 = vadd.f32 0.0, %v645
      %v647 = vpop.f32.mrb[0].mxu0
      %648 = vmatprep.mubr.bf16.mxu0 %v509
      %649 = vmatmul.mubr.bf16.gmra.mrb[0].mxu0 %v375
      %v650 = vpop.f32.mrb[0].mxu0
      %v651 = vadd.f32 0.0, %v650
      %v652 = vpop.f32.mrb[0].mxu0
      %v653 = vpop.f32.mrb[0].mxu0
      %v654 = vadd.f32 0.0, %v653
      %v655 = vpop.f32.mrb[0].mxu0
      %656 = vmatprep.mubr.bf16.mxu0 %v512
      %657 = vmatmul.mubr.bf16.gmra.mrb[0].mxu0 %v377
      %v658 = vpop.f32.mrb[0].mxu0
      %v659 = vadd.f32 0.0, %v658
      %v660 = vpop.f32.mrb[0].mxu0
      %v661 = vpop.f32.mrb[0].mxu0
      %v662 = vadd.f32 0.0, %v661
      %v663 = vpop.f32.mrb[0].mxu0
      %664 = vmatprep.mubr.bf16.mxu0 %v515
      %665 = vmatmul.mubr.bf16.gmra.mrb[0].mxu0 %v379
      %v666 = vpop.f32.mrb[0].mxu0
      %v667 = vadd.f32 0.0, %v666
      %v668 = vpop.f32.mrb[0].mxu0
      %v669 = vpop.f32.mrb[0].mxu0
      %v670 = vadd.f32 0.0, %v669
      %v671 = vpop.f32.mrb[0].mxu0
      %672 = vmatprep.mubr.bf16.mxu0 %v518
      %673 = vmatmul.mubr.bf16.gmra.mrb[0].mxu0 %v381
      %v674 = vpop.f32.mrb[0].mxu0
      %v675 = vadd.f32 0.0, %v674
      %v676 = vpop.f32.mrb[0].mxu0
      %v677 = vpop.f32.mrb[0].mxu0
      %v678 = vadd.f32 0.0, %v677
      %v679 = vpop.f32.mrb[0].mxu0
      %680 = vdwg.mxu0
      %v683 = vunpack.c.l.b16 %v172
      %v684 = vunpack.c.h.b16 %v172
      %v685 = vunpack.c.l.b16 %v173
      %v686 = vunpack.c.h.b16 %v173
      %v687 = vpack.c.b16 %v685, %v683
      %v688 = vpack.c.b16 %v686, %v684
      %v714 = vunpack.c.l.b16 %v204
      %v715 = vunpack.c.l.b16 %v205
      %v716 = vunpack.c.l.b16 %v206
      %v717 = vunpack.c.l.b16 %v207
      %v718 = vunpack.c.l.b16 %v208
      %v719 = vunpack.c.l.b16 %v209
      %v720 = vunpack.c.l.b16 %v210
      %v721 = vunpack.c.l.b16 %v211
      %v722 = vunpack.c.l.b16 %v212
      %v723 = vunpack.c.l.b16 %v213
      %v724 = vunpack.c.l.b16 %v214
      %v725 = vunpack.c.l.b16 %v215
      %v726 = vunpack.c.l.b16 %v216
      %v727 = vunpack.c.l.b16 %v217
      %v728 = vunpack.c.l.b16 %v218
      %v729 = vunpack.c.l.b16 %v219
      %v730 = vunpack.c.l.b16 %v220
      %v731 = vunpack.c.l.b16 %v221
      %v732 = vunpack.c.l.b16 %v222
      %v733 = vunpack.c.l.b16 %v223
      %v734 = vunpack.c.l.b16 %v224
      %v735 = vunpack.c.l.b16 %v225
      %v736 = vunpack.c.l.b16 %v226
      %v737 = vunpack.c.l.b16 %v227
      %v738 = vpack.c.b16 %v715, %v714
      %v739 = vpack.c.b16 %v717, %v716
      %v740 = vpack.c.b16 %v719, %v718
      %v741 = vpack.c.b16 %v721, %v720
      %v742 = vpack.c.b16 %v723, %v722
      %v743 = vpack.c.b16 %v725, %v724
      %v744 = vpack.c.b16 %v727, %v726
      %v745 = vpack.c.b16 %v729, %v728
      %v746 = vpack.c.b16 %v731, %v730
      %v747 = vpack.c.b16 %v733, %v732
      %v748 = vpack.c.b16 %v735, %v734
      %v749 = vpack.c.b16 %v737, %v736
      %v763 = vsel %vm471, %v688, 0
      %765 = vmatprep.subr.bf16.mxu0 0
      %766 = vmatpush1.bf16.msra.mxu0 %v738
      %767 = vmatprep.subr.bf16.mxu0 0
      %768 = vmatpush1.bf16.msra.mxu0 %v739
      %769 = vmatprep.subr.bf16.mxu0 0
      %770 = vmatpush1.bf16.msra.mxu0 %v740
      %771 = vmatprep.subr.bf16.mxu0 0
      %772 = vmatpush1.bf16.msra.mxu0 %v741
      %773 = vmatprep.subr.bf16.mxu0 0
      %774 = vmatpush1.bf16.msra.mxu0 %v742
      %775 = vmatprep.subr.bf16.mxu0 0
      %776 = vmatpush1.bf16.msra.mxu0 %v743
      %777 = vmatprep.subr.bf16.mxu0 0
      %778 = vmatpush1.bf16.msra.mxu0 %v744
      %779 = vmatprep.subr.bf16.mxu0 0
      %780 = vmatpush1.bf16.msra.mxu0 %v745
      %781 = vmatprep.subr.bf16.mxu0 0
      %782 = vmatpush1.bf16.msra.mxu0 %v746
      %783 = vmatprep.subr.bf16.mxu0 0
      %784 = vmatpush1.bf16.msra.mxu0 %v747
      %785 = vmatprep.subr.bf16.mxu0 0
      %786 = vmatpush1.bf16.msra.mxu0 %v748
      %787 = vmatprep.subr.bf16.mxu0 0
      %788 = vmatpush1.bf16.msra.mxu0 %v749
      %789 = vmatprep.subr.bf16.mxu0 0
      %790 = vmatpush1.bf16.msra.mxu0 0
      %791 = vmatprep.subr.bf16.mxu0 0
      %792 = vmatpush1.bf16.msra.mxu0 0
      %793 = vmatprep.subr.bf16.mxu0 0
      %794 = vmatpush1.bf16.msra.mxu0 0
      %795 = vmatprep.subr.bf16.mxu0 0
      %796 = vmatpush1.bf16.msra.mxu0 0
      %797 = vmatprep.mubr.bf16.mxu0 %v763
      %798 = vmatmul.mubr.bf16.gmra.mrb[0].mxu0 %v687
      %v799 = vpop.f32.mrb[0].mxu0
      %v800 = vadd.f32 %v555, %v799
      %v801 = vpop.f32.mrb[0].mxu0
      %v802 = vpop.f32.mrb[0].mxu0
      %v803 = vadd.f32 %v558, %v802
      %v804 = vpop.f32.mrb[0].mxu0
      %805 = vmatprep.mubr.bf16.mxu0 %v473
      %806 = vmatmul.mubr.bf16.gmra.mrb[0].mxu0 %v351
      %v807 = vpop.f32.mrb[0].mxu0
      %v808 = vadd.f32 %v563, %v807
      %v809 = vpop.f32.mrb[0].mxu0
      %v810 = vpop.f32.mrb[0].mxu0
      %v811 = vadd.f32 %v566, %v810
      %v812 = vpop.f32.mrb[0].mxu0
      %813 = vmatprep.mubr.bf16.mxu0 %v476
      %814 = vmatmul.mubr.bf16.gmra.mrb[0].mxu0 %v353
      %v815 = vpop.f32.mrb[0].mxu0
      %v816 = vadd.f32 %v571, %v815
      %v817 = vpop.f32.mrb[0].mxu0
      %v818 = vpop.f32.mrb[0].mxu0
      %v819 = vadd.f32 %v574, %v818
      %v820 = vpop.f32.mrb[0].mxu0
      %821 = vmatprep.mubr.bf16.mxu0 %v479
      %822 = vmatmul.mubr.bf16.gmra.mrb[0].mxu0 %v355
      %v823 = vpop.f32.mrb[0].mxu0
      %v824 = vadd.f32 %v579, %v823
      %v825 = vpop.f32.mrb[0].mxu0
      %v826 = vpop.f32.mrb[0].mxu0
      %v827 = vadd.f32 %v582, %v826
      %v828 = vpop.f32.mrb[0].mxu0
      %829 = vmatprep.mubr.bf16.mxu0 %v482
      %830 = vmatmul.mubr.bf16.gmra.mrb[0].mxu0 %v357
      %v831 = vpop.f32.mrb[0].mxu0
      %v832 = vadd.f32 %v587, %v831
      %v833 = vpop.f32.mrb[0].mxu0
      %v834 = vpop.f32.mrb[0].mxu0
      %v835 = vadd.f32 %v590, %v834
      %v836 = vpop.f32.mrb[0].mxu0
      %837 = vmatprep.mubr.bf16.mxu0 %v485
      %838 = vmatmul.mubr.bf16.gmra.mrb[0].mxu0 %v359
      %v839 = vpop.f32.mrb[0].mxu0
      %v840 = vadd.f32 %v595, %v839
      %v841 = vpop.f32.mrb[0].mxu0
      %v842 = vpop.f32.mrb[0].mxu0
      %v843 = vadd.f32 %v598, %v842
      %v844 = vpop.f32.mrb[0].mxu0
      %845 = vmatprep.mubr.bf16.mxu0 %v488
      %846 = vmatmul.mubr.bf16.gmra.mrb[0].mxu0 %v361
      %v847 = vpop.f32.mrb[0].mxu0
      %v848 = vadd.f32 %v603, %v847
      %v849 = vpop.f32.mrb[0].mxu0
      %v850 = vpop.f32.mrb[0].mxu0
      %v851 = vadd.f32 %v606, %v850
      %v852 = vpop.f32.mrb[0].mxu0
      %853 = vmatprep.mubr.bf16.mxu0 %v491
      %854 = vmatmul.mubr.bf16.gmra.mrb[0].mxu0 %v363
      %v855 = vpop.f32.mrb[0].mxu0
      %v856 = vadd.f32 %v611, %v855
      %v857 = vpop.f32.mrb[0].mxu0
      %v858 = vpop.f32.mrb[0].mxu0
      %v859 = vadd.f32 %v614, %v858
      %v860 = vpop.f32.mrb[0].mxu0
      %861 = vmatprep.mubr.bf16.mxu0 %v494
      %862 = vmatmul.mubr.bf16.gmra.mrb[0].mxu0 %v365
      %v863 = vpop.f32.mrb[0].mxu0
      %v864 = vadd.f32 %v619, %v863
      %v865 = vpop.f32.mrb[0].mxu0
      %v866 = vpop.f32.mrb[0].mxu0
      %v867 = vadd.f32 %v622, %v866
      %v868 = vpop.f32.mrb[0].mxu0
      %869 = vmatprep.mubr.bf16.mxu0 %v497
      %870 = vmatmul.mubr.bf16.gmra.mrb[0].mxu0 %v367
      %v871 = vpop.f32.mrb[0].mxu0
      %v872 = vadd.f32 %v627, %v871
      %v873 = vpop.f32.mrb[0].mxu0
      %v874 = vpop.f32.mrb[0].mxu0
      %v875 = vadd.f32 %v630, %v874
      %v876 = vpop.f32.mrb[0].mxu0
      %877 = vmatprep.mubr.bf16.mxu0 %v500
      %878 = vmatmul.mubr.bf16.gmra.mrb[0].mxu0 %v369
      %v879 = vpop.f32.mrb[0].mxu0
      %v880 = vadd.f32 %v635, %v879
      %v881 = vpop.f32.mrb[0].mxu0
      %v882 = vpop.f32.mrb[0].mxu0
      %v883 = vadd.f32 %v638, %v882
      %v884 = vpop.f32.mrb[0].mxu0
      %885 = vmatprep.mubr.bf16.mxu0 %v503
      %886 = vmatmul.mubr.bf16.gmra.mrb[0].mxu0 %v371
      %v887 = vpop.f32.mrb[0].mxu0
      %v888 = vadd.f32 %v643, %v887
      %v889 = vpop.f32.mrb[0].mxu0
      %v890 = vpop.f32.mrb[0].mxu0
      %v891 = vadd.f32 %v646, %v890
      %v892 = vpop.f32.mrb[0].mxu0
      %893 = vmatprep.mubr.bf16.mxu0 %v506
      %894 = vmatmul.mubr.bf16.gmra.mrb[0].mxu0 %v373
      %v895 = vpop.f32.mrb[0].mxu0
      %v896 = vadd.f32 %v651, %v895
      %v897 = vpop.f32.mrb[0].mxu0
      %v898 = vpop.f32.mrb[0].mxu0
      %v899 = vadd.f32 %v654, %v898
      %v900 = vpop.f32.mrb[0].mxu0
      %901 = vmatprep.mubr.bf16.mxu0 %v509
      %902 = vmatmul.mubr.bf16.gmra.mrb[0].mxu0 %v375
      %v903 = vpop.f32.mrb[0].mxu0
      %v904 = vadd.f32 %v659, %v903
      %v905 = vpop.f32.mrb[0].mxu0
      %v906 = vpop.f32.mrb[0].mxu0
      %v907 = vadd.f32 %v662, %v906
      %v908 = vpop.f32.mrb[0].mxu0
      %909 = vmatprep.mubr.bf16.mxu0 %v512
      %910 = vmatmul.mubr.bf16.gmra.mrb[0].mxu0 %v377
      %v911 = vpop.f32.mrb[0].mxu0
      %v912 = vadd.f32 %v667, %v911
      %v913 = vpop.f32.mrb[0].mxu0
      %v914 = vpop.f32.mrb[0].mxu0
      %v915 = vadd.f32 %v670, %v914
      %v916 = vpop.f32.mrb[0].mxu0
      %917 = vmatprep.mubr.bf16.mxu0 %v515
      %918 = vmatmul.mubr.bf16.gmra.mrb[0].mxu0 %v379
      %v919 = vpop.f32.mrb[0].mxu0
      %v920 = vadd.f32 %v675, %v919
      %v921 = vpop.f32.mrb[0].mxu0
      %v922 = vpop.f32.mrb[0].mxu0
      %v923 = vadd.f32 %v678, %v922
      %v924 = vpop.f32.mrb[0].mxu0
      %925 = vdwg.mxu0
      %v926 = vld [vmem:[%s165 + $0x20] sm:$0xff]
      %v927 = vld [vmem:[%s165 + $0x28] sm:$0xff]
      %v928 = vld [vmem:[%s165 + $0x30] sm:$0xff]
      %v929 = vld [vmem:[%s165 + $0x38] sm:$0xff]
      %v930 = vld [vmem:[%s165 + $0x40] sm:$0xff]
      %v931 = vld [vmem:[%s165 + $0x48] sm:$0xff]
      %v932 = vld [vmem:[%s165 + $0x50] sm:$0xff]
      %v933 = vld [vmem:[%s165 + $0x58] sm:$0xff]
      %v934 = vld [vmem:[%s165 + $0x60] sm:$0xff]
      %v935 = vld [vmem:[%s165 + $0x68] sm:$0xff]
      %v936 = vld [vmem:[%s165 + $0x70] sm:$0xff]
      %v937 = vld [vmem:[%s165 + $0x78] sm:$0xff]
      %v938 = vld [vmem:[%s165 + $0x80] sm:$0xff]
      %v939 = vld [vmem:[%s165 + $0x88] sm:$0xff]
      %v940 = vld [vmem:[%s165 + $0x90] sm:$0xff]
      %v941 = vld [vmem:[%s165 + $0x98] sm:$0xff]
      %v942 = vld [vmem:[%s165 + $0xa0] sm:$0xff]
      %v943 = vld [vmem:[%s165 + $0xa8] sm:$0xff]
      %v944 = vld [vmem:[%s165 + $0xb0] sm:$0xff]
      %v945 = vld [vmem:[%s165 + $0xb8] sm:$0xff]
      %v946 = vld [vmem:[%s165 + $0xc0] sm:$0xff]
      %v947 = vld [vmem:[%s165 + $0xc8] sm:$0xff]
      %v948 = vld [vmem:[%s165 + $0xd0] sm:$0xff]
      %v949 = vld [vmem:[%s165 + $0xd8] sm:$0xff]
      %v950 = vld [vmem:[%s165 + $0xe0] sm:$0xff]
      %v951 = vld [vmem:[%s165 + $0xe8] sm:$0xff]
      %v952 = vld [vmem:[%s165 + $0xf0] sm:$0xff]
      %v953 = vld [vmem:[%s165 + $0xf8] sm:$0xff]
      %v954 = vld [vmem:[%s165 + $0x100] sm:$0xff]
      %v955 = vld [vmem:[%s165 + $0x108] sm:$0xff]
      %v956 = vld [vmem:[%s165 + $0x110] sm:$0xff]
      %v957 = vld [vmem:[%s165 + $0x118] sm:$0xff]
      %s958 = scalar_lea.vmem %s1, 192
      %v959 = vld [vmem:[%s958] sm:$0xf]
      %v960 = vld [vmem:[%s958 + $0x4] sm:$0xf]
      %v961 = vld [vmem:[%s958 + $0x8] sm:$0xf]
      %v962 = vld [vmem:[%s958 + $0xc] sm:$0xf]
      %v963 = vld [vmem:[%s958 + $0x10] sm:$0xf]
      %v964 = vld [vmem:[%s958 + $0x14] sm:$0xf]
      %v965 = vld [vmem:[%s958 + $0x18] sm:$0xf]
      %v966 = vld [vmem:[%s958 + $0x1c] sm:$0xf]
      %v967 = vld [vmem:[%s958 + $0x20] sm:$0xf]
      %v968 = vld [vmem:[%s958 + $0x24] sm:$0xf]
      %v969 = vld [vmem:[%s958 + $0x28] sm:$0xf]
      %v970 = vld [vmem:[%s958 + $0x2c] sm:$0xf]
      %v971 = vld [vmem:[%s958 + $0x30] sm:$0xf]
      %v972 = vld [vmem:[%s958 + $0x34] sm:$0xf]
      %v973 = vld [vmem:[%s958 + $0x38] sm:$0xf]
      %v974 = vld [vmem:[%s958 + $0x3c] sm:$0xf]
      %v975 = vld [vmem:[%s958 + $0x40] sm:$0xf]
      %v976 = vld [vmem:[%s958 + $0x44] sm:$0xf]
      %v977 = vld [vmem:[%s958 + $0x48] sm:$0xf]
      %v978 = vld [vmem:[%s958 + $0x4c] sm:$0xf]
      %v979 = vld [vmem:[%s958 + $0x50] sm:$0xf]
      %v980 = vld [vmem:[%s958 + $0x54] sm:$0xf]
      %v981 = vld [vmem:[%s958 + $0x58] sm:$0xf]
      %v982 = vld [vmem:[%s958 + $0x5c] sm:$0xf]
      %v1015 = vunpack.c.l.b16 %v926
      %v1016 = vunpack.c.h.b16 %v926
      %v1017 = vunpack.c.l.b16 %v927
      %v1018 = vunpack.c.h.b16 %v927
      %v1019 = vunpack.c.l.b16 %v928
      %v1020 = vunpack.c.h.b16 %v928
      %v1021 = vunpack.c.l.b16 %v929
      %v1022 = vunpack.c.h.b16 %v929
      %v1023 = vunpack.c.l.b16 %v930
      %v1024 = vunpack.c.h.b16 %v930
      %v1025 = vunpack.c.l.b16 %v931
      %v1026 = vunpack.c.h.b16 %v931
      %v1027 = vunpack.c.l.b16 %v932
      %v1028 = vunpack.c.h.b16 %v932
      %v1029 = vunpack.c.l.b16 %v933
      %v1030 = vunpack.c.h.b16 %v933
      %v1031 = vunpack.c.l.b16 %v934
      %v1032 = vunpack.c.h.b16 %v934
      %v1033 = vunpack.c.l.b16 %v935
      %v1034 = vunpack.c.h.b16 %v935
      %v1035 = vunpack.c.l.b16 %v936
      %v1036 = vunpack.c.h.b16 %v936
      %v1037 = vunpack.c.l.b16 %v937
      %v1038 = vunpack.c.h.b16 %v937
      %v1039 = vunpack.c.l.b16 %v938
      %v1040 = vunpack.c.h.b16 %v938
      %v1041 = vunpack.c.l.b16 %v939
      %v1042 = vunpack.c.h.b16 %v939
      %v1043 = vunpack.c.l.b16 %v940
      %v1044 = vunpack.c.h.b16 %v940
      %v1045 = vunpack.c.l.b16 %v941
      %v1046 = vunpack.c.h.b16 %v941
      %v1047 = vunpack.c.l.b16 %v942
      %v1048 = vunpack.c.h.b16 %v942
      %v1049 = vunpack.c.l.b16 %v943
      %v1050 = vunpack.c.h.b16 %v943
      %v1051 = vunpack.c.l.b16 %v944
      %v1052 = vunpack.c.h.b16 %v944
      %v1053 = vunpack.c.l.b16 %v945
      %v1054 = vunpack.c.h.b16 %v945
      %v1055 = vunpack.c.l.b16 %v946
      %v1056 = vunpack.c.h.b16 %v946
      %v1057 = vunpack.c.l.b16 %v947
      %v1058 = vunpack.c.h.b16 %v947
      %v1059 = vunpack.c.l.b16 %v948
      %v1060 = vunpack.c.h.b16 %v948
      %v1061 = vunpack.c.l.b16 %v949
      %v1062 = vunpack.c.h.b16 %v949
      %v1063 = vunpack.c.l.b16 %v950
      %v1064 = vunpack.c.h.b16 %v950
      %v1065 = vunpack.c.l.b16 %v951
      %v1066 = vunpack.c.h.b16 %v951
      %v1067 = vunpack.c.l.b16 %v952
      %v1068 = vunpack.c.h.b16 %v952
      %v1069 = vunpack.c.l.b16 %v953
      %v1070 = vunpack.c.h.b16 %v953
      %v1071 = vunpack.c.l.b16 %v954
      %v1072 = vunpack.c.h.b16 %v954
      %v1073 = vunpack.c.l.b16 %v955
      %v1074 = vunpack.c.h.b16 %v955
      %v1075 = vunpack.c.l.b16 %v956
      %v1076 = vunpack.c.h.b16 %v956
      %v1077 = vunpack.c.l.b16 %v957
      %v1078 = vunpack.c.h.b16 %v957
      %v1079 = vpack.c.b16 %v1017, %v1015
      %v1080 = vpack.c.b16 %v1018, %v1016
      %v1081 = vpack.c.b16 %v1021, %v1019
      %v1082 = vpack.c.b16 %v1022, %v1020
      %v1083 = vpack.c.b16 %v1025, %v1023
      %v1084 = vpack.c.b16 %v1026, %v1024
      %v1085 = vpack.c.b16 %v1029, %v1027
      %v1086 = vpack.c.b16 %v1030, %v1028
      %v1087 = vpack.c.b16 %v1033, %v1031
      %v1088 = vpack.c.b16 %v1034, %v1032
      %v1089 = vpack.c.b16 %v1037, %v1035
      %v1090 = vpack.c.b16 %v1038, %v1036
      %v1091 = vpack.c.b16 %v1041, %v1039
      %v1092 = vpack.c.b16 %v1042, %v1040
      %v1093 = vpack.c.b16 %v1045, %v1043
      %v1094 = vpack.c.b16 %v1046, %v1044
      %v1095 = vpack.c.b16 %v1049, %v1047
      %v1096 = vpack.c.b16 %v1050, %v1048
      %v1097 = vpack.c.b16 %v1053, %v1051
      %v1098 = vpack.c.b16 %v1054, %v1052
      %v1099 = vpack.c.b16 %v1057, %v1055
      %v1100 = vpack.c.b16 %v1058, %v1056
      %v1101 = vpack.c.b16 %v1061, %v1059
      %v1102 = vpack.c.b16 %v1062, %v1060
      %v1103 = vpack.c.b16 %v1065, %v1063
      %v1104 = vpack.c.b16 %v1066, %v1064
      %v1105 = vpack.c.b16 %v1069, %v1067
      %v1106 = vpack.c.b16 %v1070, %v1068
      %v1107 = vpack.c.b16 %v1073, %v1071
      %v1108 = vpack.c.b16 %v1074, %v1072
      %v1109 = vpack.c.b16 %v1077, %v1075
      %v1110 = vpack.c.b16 %v1078, %v1076
      %v1151 = vunpack.c.l.b16 %v959
      %v1152 = vunpack.c.l.b16 %v960
      %v1153 = vunpack.c.l.b16 %v961
      %v1154 = vunpack.c.l.b16 %v962
      %v1155 = vunpack.c.l.b16 %v963
      %v1156 = vunpack.c.l.b16 %v964
      %v1157 = vunpack.c.l.b16 %v965
      %v1158 = vunpack.c.l.b16 %v966
      %v1159 = vunpack.c.l.b16 %v967
      %v1160 = vunpack.c.l.b16 %v968
      %v1161 = vunpack.c.l.b16 %v969
      %v1162 = vunpack.c.l.b16 %v970
      %v1163 = vunpack.c.l.b16 %v971
      %v1164 = vunpack.c.l.b16 %v972
      %v1165 = vunpack.c.l.b16 %v973
      %v1166 = vunpack.c.l.b16 %v974
      %v1167 = vunpack.c.l.b16 %v975
      %v1168 = vunpack.c.l.b16 %v976
      %v1169 = vunpack.c.l.b16 %v977
      %v1170 = vunpack.c.l.b16 %v978
      %v1171 = vunpack.c.l.b16 %v979
      %v1172 = vunpack.c.l.b16 %v980
      %v1173 = vunpack.c.l.b16 %v981
      %v1174 = vunpack.c.l.b16 %v982
      %v1175 = vpack.c.b16 %v1152, %v1151
      %v1176 = vpack.c.b16 %v1154, %v1153
      %v1177 = vpack.c.b16 %v1156, %v1155
      %v1178 = vpack.c.b16 %v1158, %v1157
      %v1179 = vpack.c.b16 %v1160, %v1159
      %v1180 = vpack.c.b16 %v1162, %v1161
      %v1181 = vpack.c.b16 %v1164, %v1163
      %v1182 = vpack.c.b16 %v1166, %v1165
      %v1183 = vpack.c.b16 %v1168, %v1167
      %v1184 = vpack.c.b16 %v1170, %v1169
      %v1185 = vpack.c.b16 %v1172, %v1171
      %v1186 = vpack.c.b16 %v1174, %v1173
      %v1200 = vsel %vm471, %v1080, 0
      %v1203 = vsel %vm471, %v1082, 0
      %v1206 = vsel %vm471, %v1084, 0
      %v1209 = vsel %vm471, %v1086, 0
      %v1212 = vsel %vm471, %v1088, 0
      %v1215 = vsel %vm471, %v1090, 0
      %v1218 = vsel %vm471, %v1092, 0
      %v1221 = vsel %vm471, %v1094, 0
      %v1224 = vsel %vm471, %v1096, 0
      %v1227 = vsel %vm471, %v1098, 0
      %v1230 = vsel %vm471, %v1100, 0
      %v1233 = vsel %vm471, %v1102, 0
      %v1236 = vsel %vm471, %v1104, 0
      %v1239 = vsel %vm471, %v1106, 0
      %v1242 = vsel %vm471, %v1108, 0
      %v1245 = vsel %vm471, %v1110, 0
      %1247 = vmatprep.subr.bf16.mxu0 0
      %1248 = vmatpush1.bf16.msra.mxu0 %v1175
      %1249 = vmatprep.subr.bf16.mxu0 0
      %1250 = vmatpush1.bf16.msra.mxu0 %v1176
      %1251 = vmatprep.subr.bf16.mxu0 0
      %1252 = vmatpush1.bf16.msra.mxu0 %v1177
      %1253 = vmatprep.subr.bf16.mxu0 0
      %1254 = vmatpush1.bf16.msra.mxu0 %v1178
      %1255 = vmatprep.subr.bf16.mxu0 0
      %1256 = vmatpush1.bf16.msra.mxu0 %v1179
      %1257 = vmatprep.subr.bf16.mxu0 0
      %1258 = vmatpush1.bf16.msra.mxu0 %v1180
      %1259 = vmatprep.subr.bf16.mxu0 0
      %1260 = vmatpush1.bf16.msra.mxu0 %v1181
      %1261 = vmatprep.subr.bf16.mxu0 0
      %1262 = vmatpush1.bf16.msra.mxu0 %v1182
      %1263 = vmatprep.subr.bf16.mxu0 0
      %1264 = vmatpush1.bf16.msra.mxu0 %v1183
      %1265 = vmatprep.subr.bf16.mxu0 0
      %1266 = vmatpush1.bf16.msra.mxu0 %v1184
      %1267 = vmatprep.subr.bf16.mxu0 0
      %1268 = vmatpush1.bf16.msra.mxu0 %v1185
      %1269 = vmatprep.subr.bf16.mxu0 0
      %1270 = vmatpush1.bf16.msra.mxu0 %v1186
      %1271 = vmatprep.subr.bf16.mxu0 0
      %1272 = vmatpush1.bf16.msra.mxu0 0
      %1273 = vmatprep.subr.bf16.mxu0 0
      %1274 = vmatpush1.bf16.msra.mxu0 0
      %1275 = vmatprep.subr.bf16.mxu0 0
      %1276 = vmatpush1.bf16.msra.mxu0 0
      %1277 = vmatprep.subr.bf16.mxu0 0
      %1278 = vmatpush1.bf16.msra.mxu0 0
      %1279 = vmatprep.mubr.bf16.mxu0 %v1200
      %1280 = vmatmul.mubr.bf16.gmra.mrb[0].mxu0 %v1079
      %v1281 = vpop.f32.mrb[0].mxu0
      %v1282 = vadd.f32 0.0, %v1281
      %v1283 = vpop.f32.mrb[0].mxu0
      %v1284 = vpop.f32.mrb[0].mxu0
      %v1285 = vadd.f32 0.0, %v1284
      %v1286 = vpop.f32.mrb[0].mxu0
      %1287 = vmatprep.mubr.bf16.mxu0 %v1203
      %1288 = vmatmul.mubr.bf16.gmra.mrb[0].mxu0 %v1081
      %v1289 = vpop.f32.mrb[0].mxu0
      %v1290 = vadd.f32 0.0, %v1289
      %v1291 = vpop.f32.mrb[0].mxu0
      %v1292 = vpop.f32.mrb[0].mxu0
      %v1293 = vadd.f32 0.0, %v1292
      %v1294 = vpop.f32.mrb[0].mxu0
      %1295 = vmatprep.mubr.bf16.mxu0 %v1206
      %1296 = vmatmul.mubr.bf16.gmra.mrb[0].mxu0 %v1083
      %v1297 = vpop.f32.mrb[0].mxu0
      %v1298 = vadd.f32 0.0, %v1297
      %v1299 = vpop.f32.mrb[0].mxu0
      %v1300 = vpop.f32.mrb[0].mxu0
      %v1301 = vadd.f32 0.0, %v1300
      %v1302 = vpop.f32.mrb[0].mxu0
      %1303 = vmatprep.mubr.bf16.mxu0 %v1209
      %1304 = vmatmul.mubr.bf16.gmra.mrb[0].mxu0 %v1085
      %v1305 = vpop.f32.mrb[0].mxu0
      %v1306 = vadd.f32 0.0, %v1305
      %v1307 = vpop.f32.mrb[0].mxu0
      %v1308 = vpop.f32.mrb[0].mxu0
      %v1309 = vadd.f32 0.0, %v1308
      %v1310 = vpop.f32.mrb[0].mxu0
      %1311 = vmatprep.mubr.bf16.mxu0 %v1212
      %1312 = vmatmul.mubr.bf16.gmra.mrb[0].mxu0 %v1087
      %v1313 = vpop.f32.mrb[0].mxu0
      %v1314 = vadd.f32 0.0, %v1313
      %v1315 = vpop.f32.mrb[0].mxu0
      %v1316 = vpop.f32.mrb[0].mxu0
      %v1317 = vadd.f32 0.0, %v1316
      %v1318 = vpop.f32.mrb[0].mxu0
      %1319 = vmatprep.mubr.bf16.mxu0 %v1215
      %1320 = vmatmul.mubr.bf16.gmra.mrb[0].mxu0 %v1089
      %v1321 = vpop.f32.mrb[0].mxu0
      %v1322 = vadd.f32 0.0, %v1321
      %v1323 = vpop.f32.mrb[0].mxu0
      %v1324 = vpop.f32.mrb[0].mxu0
      %v1325 = vadd.f32 0.0, %v1324
      %v1326 = vpop.f32.mrb[0].mxu0
      %1327 = vmatprep.mubr.bf16.mxu0 %v1218
      %1328 = vmatmul.mubr.bf16.gmra.mrb[0].mxu0 %v1091
      %v1329 = vpop.f32.mrb[0].mxu0
      %v1330 = vadd.f32 0.0, %v1329
      %v1331 = vpop.f32.mrb[0].mxu0
      %v1332 = vpop.f32.mrb[0].mxu0
      %v1333 = vadd.f32 0.0, %v1332
      %v1334 = vpop.f32.mrb[0].mxu0
      %1335 = vmatprep.mubr.bf16.mxu0 %v1221
      %1336 = vmatmul.mubr.bf16.gmra.mrb[0].mxu0 %v1093
      %v1337 = vpop.f32.mrb[0].mxu0
      %v1338 = vadd.f32 0.0, %v1337
      %v1339 = vpop.f32.mrb[0].mxu0
      %v1340 = vpop.f32.mrb[0].mxu0
      %v1341 = vadd.f32 0.0, %v1340
      %v1342 = vpop.f32.mrb[0].mxu0
      %1343 = vmatprep.mubr.bf16.mxu0 %v1224
      %1344 = vmatmul.mubr.bf16.gmra.mrb[0].mxu0 %v1095
      %v1345 = vpop.f32.mrb[0].mxu0
      %v1346 = vadd.f32 0.0, %v1345
      %v1347 = vpop.f32.mrb[0].mxu0
      %v1348 = vpop.f32.mrb[0].mxu0
      %v1349 = vadd.f32 0.0, %v1348
      %v1350 = vpop.f32.mrb[0].mxu0
      %1351 = vmatprep.mubr.bf16.mxu0 %v1227
      %1352 = vmatmul.mubr.bf16.gmra.mrb[0].mxu0 %v1097
      %v1353 = vpop.f32.mrb[0].mxu0
      %v1354 = vadd.f32 0.0, %v1353
      %v1355 = vpop.f32.mrb[0].mxu0
      %v1356 = vpop.f32.mrb[0].mxu0
      %v1357 = vadd.f32 0.0, %v1356
      %v1358 = vpop.f32.mrb[0].mxu0
      %1359 = vmatprep.mubr.bf16.mxu0 %v1230
      %1360 = vmatmul.mubr.bf16.gmra.mrb[0].mxu0 %v1099
      %v1361 = vpop.f32.mrb[0].mxu0
      %v1362 = vadd.f32 0.0, %v1361
      %v1363 = vpop.f32.mrb[0].mxu0
      %v1364 = vpop.f32.mrb[0].mxu0
      %v1365 = vadd.f32 0.0, %v1364
      %v1366 = vpop.f32.mrb[0].mxu0
      %1367 = vmatprep.mubr.bf16.mxu0 %v1233
      %1368 = vmatmul.mubr.bf16.gmra.mrb[0].mxu0 %v1101
      %v1369 = vpop.f32.mrb[0].mxu0
      %v1370 = vadd.f32 0.0, %v1369
      %v1371 = vpop.f32.mrb[0].mxu0
      %v1372 = vpop.f32.mrb[0].mxu0
      %v1373 = vadd.f32 0.0, %v1372
      %v1374 = vpop.f32.mrb[0].mxu0
      %1375 = vmatprep.mubr.bf16.mxu0 %v1236
      %1376 = vmatmul.mubr.bf16.gmra.mrb[0].mxu0 %v1103
      %v1377 = vpop.f32.mrb[0].mxu0
      %v1378 = vadd.f32 0.0, %v1377
      %v1379 = vpop.f32.mrb[0].mxu0
      %v1380 = vpop.f32.mrb[0].mxu0
      %v1381 = vadd.f32 0.0, %v1380
      %v1382 = vpop.f32.mrb[0].mxu0
      %1383 = vmatprep.mubr.bf16.mxu0 %v1239
      %1384 = vmatmul.mubr.bf16.gmra.mrb[0].mxu0 %v1105
      %v1385 = vpop.f32.mrb[0].mxu0
      %v1386 = vadd.f32 0.0, %v1385
      %v1387 = vpop.f32.mrb[0].mxu0
      %v1388 = vpop.f32.mrb[0].mxu0
      %v1389 = vadd.f32 0.0, %v1388
      %v1390 = vpop.f32.mrb[0].mxu0
      %1391 = vmatprep.mubr.bf16.mxu0 %v1242
      %1392 = vmatmul.mubr.bf16.gmra.mrb[0].mxu0 %v1107
      %v1393 = vpop.f32.mrb[0].mxu0
      %v1394 = vadd.f32 0.0, %v1393
      %v1395 = vpop.f32.mrb[0].mxu0
      %v1396 = vpop.f32.mrb[0].mxu0
      %v1397 = vadd.f32 0.0, %v1396
      %v1398 = vpop.f32.mrb[0].mxu0
      %1399 = vmatprep.mubr.bf16.mxu0 %v1245
      %1400 = vmatmul.mubr.bf16.gmra.mrb[0].mxu0 %v1109
      %v1401 = vpop.f32.mrb[0].mxu0
      %v1402 = vadd.f32 0.0, %v1401
      %v1403 = vpop.f32.mrb[0].mxu0
      %v1404 = vpop.f32.mrb[0].mxu0
      %v1405 = vadd.f32 0.0, %v1404
      %v1406 = vpop.f32.mrb[0].mxu0
      %1407 = vdwg.mxu0
      %v1408 = vadd.f32 %v800, %v1282
      %v1409 = vadd.f32 %v803, %v1285
      %v1410 = vadd.f32 %v808, %v1290
      %v1411 = vadd.f32 %v811, %v1293
      %v1412 = vadd.f32 %v816, %v1298
      %v1413 = vadd.f32 %v819, %v1301
      %v1414 = vadd.f32 %v824, %v1306
      %v1415 = vadd.f32 %v827, %v1309
      %v1416 = vadd.f32 %v832, %v1314
      %v1417 = vadd.f32 %v835, %v1317
      %v1418 = vadd.f32 %v840, %v1322
      %v1419 = vadd.f32 %v843, %v1325
      %v1420 = vadd.f32 %v848, %v1330
      %v1421 = vadd.f32 %v851, %v1333
      %v1422 = vadd.f32 %v856, %v1338
      %v1423 = vadd.f32 %v859, %v1341
      %v1424 = vadd.f32 %v864, %v1346
      %v1425 = vadd.f32 %v867, %v1349
      %v1426 = vadd.f32 %v872, %v1354
      %v1427 = vadd.f32 %v875, %v1357
      %v1428 = vadd.f32 %v880, %v1362
      %v1429 = vadd.f32 %v883, %v1365
      %v1430 = vadd.f32 %v888, %v1370
      %v1431 = vadd.f32 %v891, %v1373
      %v1432 = vadd.f32 %v896, %v1378
      %v1433 = vadd.f32 %v899, %v1381
      %v1434 = vadd.f32 %v904, %v1386
      %v1435 = vadd.f32 %v907, %v1389
      %v1436 = vadd.f32 %v912, %v1394
      %v1437 = vadd.f32 %v915, %v1397
      %v1438 = vadd.f32 %v920, %v1402
      %v1439 = vadd.f32 %v923, %v1405
      %v1440 = vld [vmem:[%s2] sm:$0x1]
      %v1442 = vlaneseq
      %v1443 = vshrl.u32 %v1442, 7
      %v1444 = vsub.s32 0, %v1443
      %v1445 = vrot.slane %v1440, %v1444
      %v1447 = vadd.f32 %v1408, %v1445
      %v1448 = vadd.f32 %v1409, %v1445
      %v1449 = vadd.f32 %v1410, %v1445
      %v1450 = vadd.f32 %v1411, %v1445
      %v1451 = vadd.f32 %v1412, %v1445
      %v1452 = vadd.f32 %v1413, %v1445
      %v1453 = vadd.f32 %v1414, %v1445
      %v1454 = vadd.f32 %v1415, %v1445
      %v1455 = vadd.f32 %v1416, %v1445
      %v1456 = vadd.f32 %v1417, %v1445
      %v1457 = vadd.f32 %v1418, %v1445
      %v1458 = vadd.f32 %v1419, %v1445
      %v1459 = vadd.f32 %v1420, %v1445
      %v1460 = vadd.f32 %v1421, %v1445
      %v1461 = vadd.f32 %v1422, %v1445
      %v1462 = vadd.f32 %v1423, %v1445
      %v1463 = vadd.f32 %v1424, %v1445
      %v1464 = vadd.f32 %v1425, %v1445
      %v1465 = vadd.f32 %v1426, %v1445
      %v1466 = vadd.f32 %v1427, %v1445
      %v1467 = vadd.f32 %v1428, %v1445
      %v1468 = vadd.f32 %v1429, %v1445
      %v1469 = vadd.f32 %v1430, %v1445
      %v1470 = vadd.f32 %v1431, %v1445
      %v1471 = vadd.f32 %v1432, %v1445
      %v1472 = vadd.f32 %v1433, %v1445
      %v1473 = vadd.f32 %v1434, %v1445
      %v1474 = vadd.f32 %v1435, %v1445
      %v1475 = vadd.f32 %v1436, %v1445
      %v1476 = vadd.f32 %v1437, %v1445
      %v1477 = vadd.f32 %v1438, %v1445
      %v1478 = vadd.f32 %v1439, %v1445
      %v1479 = vmax.f32 %v1447, 0.0
      %v1480 = vmax.f32 %v1448, 0.0
      %v1481 = vmax.f32 %v1449, 0.0
      %v1482 = vmax.f32 %v1450, 0.0
      %v1483 = vmax.f32 %v1451, 0.0
      %v1484 = vmax.f32 %v1452, 0.0
      %v1485 = vmax.f32 %v1453, 0.0
      %v1486 = vmax.f32 %v1454, 0.0
      %v1487 = vmax.f32 %v1455, 0.0
      %v1488 = vmax.f32 %v1456, 0.0
      %v1489 = vmax.f32 %v1457, 0.0
      %v1490 = vmax.f32 %v1458, 0.0
      %v1491 = vmax.f32 %v1459, 0.0
      %v1492 = vmax.f32 %v1460, 0.0
      %v1493 = vmax.f32 %v1461, 0.0
      %v1494 = vmax.f32 %v1462, 0.0
      %v1495 = vmax.f32 %v1463, 0.0
      %v1496 = vmax.f32 %v1464, 0.0
      %v1497 = vmax.f32 %v1465, 0.0
      %v1498 = vmax.f32 %v1466, 0.0
      %v1499 = vmax.f32 %v1467, 0.0
      %v1500 = vmax.f32 %v1468, 0.0
      %v1501 = vmax.f32 %v1469, 0.0
      %v1502 = vmax.f32 %v1470, 0.0
      %v1503 = vmax.f32 %v1471, 0.0
      %v1504 = vmax.f32 %v1472, 0.0
      %v1505 = vmax.f32 %v1473, 0.0
      %v1506 = vmax.f32 %v1474, 0.0
      %v1507 = vmax.f32 %v1475, 0.0
      %v1508 = vmax.f32 %v1476, 0.0
      %v1509 = vmax.f32 %v1477, 0.0
      %v1510 = vmax.f32 %v1478, 0.0
      %vm1511 = vcmask 261120
      %1512 = vst.msk [vmem:[%s170] sm:$0xff] %vm1511, %v1479
      %1513 = vst.msk [vmem:[%s170 + $0x8] sm:$0xff] %vm1511, %v1480
      %1514 = vst.msk [vmem:[%s170 + $0x10] sm:$0xff] %vm1511, %v1481
      %1515 = vst.msk [vmem:[%s170 + $0x18] sm:$0xff] %vm1511, %v1482
      %1516 = vst.msk [vmem:[%s170 + $0x20] sm:$0xff] %vm1511, %v1483
      %1517 = vst.msk [vmem:[%s170 + $0x28] sm:$0xff] %vm1511, %v1484
      %1518 = vst.msk [vmem:[%s170 + $0x30] sm:$0xff] %vm1511, %v1485
      %1519 = vst.msk [vmem:[%s170 + $0x38] sm:$0xff] %vm1511, %v1486
      %1520 = vst.msk [vmem:[%s170 + $0x40] sm:$0xff] %vm1511, %v1487
      %1521 = vst.msk [vmem:[%s170 + $0x48] sm:$0xff] %vm1511, %v1488
      %1522 = vst.msk [vmem:[%s170 + $0x50] sm:$0xff] %vm1511, %v1489
      %1523 = vst.msk [vmem:[%s170 + $0x58] sm:$0xff] %vm1511, %v1490
      %1524 = vst.msk [vmem:[%s170 + $0x60] sm:$0xff] %vm1511, %v1491
      %1525 = vst.msk [vmem:[%s170 + $0x68] sm:$0xff] %vm1511, %v1492
      %1526 = vst.msk [vmem:[%s170 + $0x70] sm:$0xff] %vm1511, %v1493
      %1527 = vst.msk [vmem:[%s170 + $0x78] sm:$0xff] %vm1511, %v1494
      %1528 = vst.msk [vmem:[%s170 + $0x80] sm:$0xff] %vm1511, %v1495
      %1529 = vst.msk [vmem:[%s170 + $0x88] sm:$0xff] %vm1511, %v1496
      %1530 = vst.msk [vmem:[%s170 + $0x90] sm:$0xff] %vm1511, %v1497
      %1531 = vst.msk [vmem:[%s170 + $0x98] sm:$0xff] %vm1511, %v1498
      %1532 = vst.msk [vmem:[%s170 + $0xa0] sm:$0xff] %vm1511, %v1499
      %1533 = vst.msk [vmem:[%s170 + $0xa8] sm:$0xff] %vm1511, %v1500
      %1534 = vst.msk [vmem:[%s170 + $0xb0] sm:$0xff] %vm1511, %v1501
      %1535 = vst.msk [vmem:[%s170 + $0xb8] sm:$0xff] %vm1511, %v1502
      %1536 = vst.msk [vmem:[%s170 + $0xc0] sm:$0xff] %vm1511, %v1503
      %1537 = vst.msk [vmem:[%s170 + $0xc8] sm:$0xff] %vm1511, %v1504
      %1538 = vst.msk [vmem:[%s170 + $0xd0] sm:$0xff] %vm1511, %v1505
      %1539 = vst.msk [vmem:[%s170 + $0xd8] sm:$0xff] %vm1511, %v1506
      %1540 = vst.msk [vmem:[%s170 + $0xe0] sm:$0xff] %vm1511, %v1507
      %1541 = vst.msk [vmem:[%s170 + $0xe8] sm:$0xff] %vm1511, %v1508
      %1542 = vst.msk [vmem:[%s170 + $0xf0] sm:$0xff] %vm1511, %v1509
      %1543 = vst.msk [vmem:[%s170 + $0xf8] sm:$0xff] %vm1511, %v1510
      %p1544 = scmp.lt.s32.totalorder %s14, 1
      %s1545 = scalar_select %p1544, %s14, 1
      %s1546 = smul.addr %s1545, 32
      %s1547 = smul.addr %s1546, 8
      %s1548 = scalar_lea.vmem %s3, %s1547
      // Predicated region
      $region33: #{asi_forward.6} parent=31 // pred_check
        %p1549 = pneg %p100
      $region34: #{asi_forward.6} parent=31 // pred_check_branch
        %1551 = sbr.rel (%p1549) target = $region36
      $region35: #{asi_forward.6} parent=31 // pred_region
        _
      $region36: #{asi_forward.6} parent=31 // pred_fallthru
        _
    $region32: #{asi_forward.6} parent=5 // pred_fallthru
      _
    %p1552 = scmp.le.s32.totalorder 2, %s9
    // Predicated region
    $region37: #{asi_forward.6} parent=5 // pred_check
      %p1553 = pneg %p1552
    $region38: #{asi_forward.6} parent=5 // pred_check_branch
      %1555 = sbr.rel (%p1553) target = $region40
    $region39: #{asi_forward.6} parent=5 // pred_region
      %s1556 = ssub.s32 %s9, 2
      // Predicated region
      $region41: #{asi_forward.6} parent=39 // pred_check
        %p1557 = pneg %p106
      $region42: #{asi_forward.6} parent=39 // pred_check_branch
        %1559 = sbr.rel (%p1557) target = $region44
      $region43: #{asi_forward.6} parent=39 // pred_region
        %p1560 = scmp.lt.s32.totalorder %s15, 1
        %s1561 = scalar_select %p1560, %s15, 1
        %s1562 = smul.addr %s1561, 32
        %s1563 = smul.addr %s1562, 8
        %s1564 = scalar_lea.vmem %s3, %s1563
      $region44: #{asi_forward.6} parent=39 // pred_fallthru
        _
    $region40: #{asi_forward.6} parent=5 // pred_fallthru
      _
  $region6: #{asi_forward.6} parent=0 // loop_footer
    %s13 = sadd.s32 1, %s9
  $region7: #{asi_forward.6} parent=0 // loop_footer_branch
    %8 = sbr.rel target = $region3
  $region8: #{asi_forward.6} parent=0 // loop_exit
    _

// kernel: asi_forward.7
$region0: #{asi_forward.7}
  #allocation0 [shape = 'u32[]', space=smem, size = 0x4, offset = 0x4, fixed_abs, tag = 'smem constant byte address 0x4 - core index']
  #allocation1 [shape = 'u32[144,128]{1,0:T(1,128)}', space=vmem, size = 0x12000, scoped, tag = 'internal scratch']
  %s0 = inlined_call_operand.vmem [shape: bf16[6,288,96], index: 0, kind: input, shape index: {}]
  %s1 = inlined_call_operand.vmem [shape: bf16[3,96,32], index: 1, kind: input, shape index: {}]
  %s2 = inlined_call_operand.vmem [shape: f32[1,32], index: 2, kind: input, shape index: {}]
  %s3 = inlined_call_operand.vmem [shape: f32[6,256,32], index: 3, kind: output, shape index: {}]
  %s4 = sld [smem:[#allocation0]]
  $region45: #{asi_forward.7} parent=0
    _
  %s6 = ssub.s32 1, %s4
  %s7 = scalar_select 0, %s6, %s4
  loop: start=0, step=1, limit=8
  $region2: #{asi_forward.7} parent=0 // loop_pre_header
    _
  $region3: #{asi_forward.7} parent=0 // loop_header
    %s9 = sphi 0, %s13
    %p10 = scmp.ge.s32.totalorder %s9, 8
    %s19 = sphi 0, %s21
    %s22 = sphi 0, %s19
    %s23 = sphi 0, %s22
    %s39 = sphi 0, %s23
    %s43 = sphi 0, %s43
    %s45 = sphi 0, %s43
    %s46 = sphi 0, %s45
    %s60 = sphi 0, %s46
    %s64 = sphi 0, %s64
    %s66 = sphi 0, %s64
    %s67 = sphi 0, %s66
    %s81 = sphi 0, %s67
    %s87 = sphi 0, %s89
    %s90 = sphi 0, %s87
    %s91 = sphi 0, %s90
    %s107 = sphi 0, %s91
  $region4: #{asi_forward.7} parent=0 // loop_header_branch
    %12 = sbr.rel (%p10) target = $region8
  $region5: #{asi_forward.7} parent=0 // loop_body
    %s14 = ssub.s32 %s9, 1
    %s15 = ssub.s32 %s9, 2
    %s16 = sadd.s32 %s9, 1
    %s17 = ssub.s32 %s9, %s16
    %p18 = scmp.eq.s32.totalorder %s17, 0
    %s20 = sadd.s32 %s19, 1
    %s21 = scalar_select %p18, %s19, %s20
    %p24 = pneg %p18
    %p25 = scmp.eq.s32.totalorder %s9, 5
    %p26 = por %p24, %p25
    %p27 = scmp.ne.s32.totalorder %s19, %s22
    %p28 = scmp.eq.s32.totalorder %s9, 0
    %p29 = por %p27, %p28
    %p30 = scmp.ne.s32.totalorder %s19, %s22
    %p31 = scmp.eq.s32.totalorder %s14, 5
    %p32 = por %p30, %p31
    %p33 = scmp.ne.s32.totalorder %s22, %s23
    %p34 = scmp.eq.s32.totalorder %s14, 0
    %p35 = por %p33, %p34
    %p36 = scmp.ne.s32.totalorder %s22, %s23
    %p37 = scmp.eq.s32.totalorder %s15, 5
    %p38 = por %p36, %p37
    %p40 = scmp.ne.s32.totalorder %s23, %s39
    %p41 = scmp.eq.s32.totalorder %s15, 0
    %p42 = por %p40, %p41
    %s44 = sadd.s32 %s43, 1
    %p47 = scmp.eq.s32.totalorder %s9, 5
    %p48 = scmp.ne.s32.totalorder %s43, %s45
    %p49 = scmp.eq.s32.totalorder %s9, 0
    %p50 = por %p48, %p49
    %p51 = scmp.ne.s32.totalorder %s43, %s45
    %p52 = scmp.eq.s32.totalorder %s14, 5
    %p53 = por %p51, %p52
    %p54 = scmp.ne.s32.totalorder %s45, %s46
    %p55 = scmp.eq.s32.totalorder %s14, 0
    %p56 = por %p54, %p55
    %p57 = scmp.ne.s32.totalorder %s45, %s46
    %p58 = scmp.eq.s32.totalorder %s15, 5
    %p59 = por %p57, %p58
    %p61 = scmp.ne.s32.totalorder %s46, %s60
    %p62 = scmp.eq.s32.totalorder %s15, 0
    %p63 = por %p61, %p62
    %s65 = sadd.s32 %s64, 1
    %p68 = scmp.eq.s32.totalorder %s9, 5
    %p69 = scmp.ne.s32.totalorder %s64, %s66
    %p70 = scmp.eq.s32.totalorder %s9, 0
    %p71 = por %p69, %p70
    %p72 = scmp.ne.s32.totalorder %s64, %s66
    %p73 = scmp.eq.s32.totalorder %s14, 5
    %p74 = por %p72, %p73
    %p75 = scmp.ne.s32.totalorder %s66, %s67
    %p76 = scmp.eq.s32.totalorder %s14, 0
    %p77 = por %p75, %p76
    %p78 = scmp.ne.s32.totalorder %s66, %s67
    %p79 = scmp.eq.s32.totalorder %s15, 5
    %p80 = por %p78, %p79
    %p82 = scmp.ne.s32.totalorder %s67, %s81
    %p83 = scmp.eq.s32.totalorder %s15, 0
    %p84 = por %p82, %p83
    %s85 = ssub.s32 %s9, %s16
    %p86 = scmp.eq.s32.totalorder %s85, 0
    %s88 = sadd.s32 %s87, 1
    %s89 = scalar_select %p86, %s87, %s88
    %p92 = pneg %p86
    %p93 = scmp.eq.s32.totalorder %s9, 5
    %p94 = por %p92, %p93
    %p95 = scmp.ne.s32.totalorder %s87, %s90
    %p96 = scmp.eq.s32.totalorder %s9, 0
    %p97 = por %p95, %p96
    %p98 = scmp.ne.s32.totalorder %s87, %s90
    %p99 = scmp.eq.s32.totalorder %s14, 5
    %p100 = por %p98, %p99
    %p101 = scmp.ne.s32.totalorder %s90, %s91
    %p102 = scmp.eq.s32.totalorder %s14, 0
    %p103 = por %p101, %p102
    %p104 = scmp.ne.s32.totalorder %s90, %s91
    %p105 = scmp.eq.s32.totalorder %s15, 5
    %p106 = por %p104, %p105
    %p108 = scmp.ne.s32.totalorder %s91, %s107
    %p109 = scmp.eq.s32.totalorder %s15, 0
    %p110 = por %p108, %p109
    %p111 = scmp.le.s32.totalorder 1, %s9
    %p112 = scmp.lt.s32.totalorder %s9, 7
    %p113 = pnand %p111, %p112
    %p114 = pneg %p113
    // Predicated region
    $region9: #{asi_forward.7} parent=5 // pred_check
      _
    $region10: #{asi_forward.7} parent=5 // pred_check_branch
      %116 = sbr.rel (%p113) target = $region12
    $region11: #{asi_forward.7} parent=5 // pred_region
      %s117 = ssub.s32 %s9, 1
      // Predicated region
      $region13: #{asi_forward.7} parent=11 // pred_check
        %p118 = pneg %p56
      $region14: #{asi_forward.7} parent=11 // pred_check_branch
        %120 = sbr.rel (%p118) target = $region16
      $region15: #{asi_forward.7} parent=11 // pred_region
        _
      $region16: #{asi_forward.7} parent=11 // pred_fallthru
        _
      // Predicated region
      $region17: #{asi_forward.7} parent=11 // pred_check
        %p121 = pneg %p77
      $region18: #{asi_forward.7} parent=11 // pred_check_branch
        %123 = sbr.rel (%p121) target = $region20
      $region19: #{asi_forward.7} parent=11 // pred_region
        _
      $region20: #{asi_forward.7} parent=11 // pred_fallthru
        _
    $region12: #{asi_forward.7} parent=5 // pred_fallthru
      _
    %p124 = scmp.lt.s32.totalorder %s9, 6
    // Predicated region
    $region21: #{asi_forward.7} parent=5 // pred_check
      %p125 = pneg %p124
    $region22: #{asi_forward.7} parent=5 // pred_check_branch
      %127 = sbr.rel (%p125) target = $region24
    $region23: #{asi_forward.7} parent=5 // pred_region
      // Predicated region
      $region25: #{asi_forward.7} parent=23 // pred_check
        %p128 = pneg %p29
      $region26: #{asi_forward.7} parent=23 // pred_check_branch
        %130 = sbr.rel (%p128) target = $region28
      $region27: #{asi_forward.7} parent=23 // pred_region
        %p131 = scmp.lt.s32.totalorder %s9, 5
        %s132 = scalar_select %p131, %s9, 5
        %s133 = smul.addr %s132, 36
        %s134 = smul.addr %s133, 4
        %s135 = scalar_lea.vmem %s0, %s134
      $region28: #{asi_forward.7} parent=23 // pred_fallthru
        _
    $region24: #{asi_forward.7} parent=5 // pred_fallthru
      _
    %p136 = scmp.le.s32.totalorder 1, %s9
    %p137 = scmp.lt.s32.totalorder %s9, 7
    %p138 = pnand %p136, %p137
    %p139 = pneg %p138
    // Predicated region
    $region29: #{asi_forward.7} parent=5 // pred_check
      _
    $region30: #{asi_forward.7} parent=5 // pred_check_branch
      %141 = sbr.rel (%p138) target = $region32
    $region31: #{asi_forward.7} parent=5 // pred_region
      %s142 = ssub.s32 %s9, 1
      %p143 = scmp.lt.s32.totalorder %s14, 5
      %s144 = scalar_select %p143, %s14, 5
      %s145 = smul.addr %s144, 36
      %s146 = smul.addr %s145, 4
      %s147 = scalar_lea.vmem %s0, %s146
      %p148 = pneg %p35
      %p149 = pneg %p32
      %p150 = pneg %p56
      %p151 = pneg %p53
      %p152 = pneg %p77
      %p153 = pneg %p74
      %p154 = pneg %p103
      %p155 = pneg %p100
      %p156 = scmp.lt.s32.totalorder %s14, 5
      %s157 = scalar_select %p156, %s14, 5
      %s158 = smul.addr %s157, 32
      %s159 = smul.addr %s158, 8
      %s160 = scalar_lea.vmem %s3, %s159
      %p161 = scmp.lt.s32.totalorder %s14, 5
      %s162 = scalar_select %p161, %s14, 5
      %s163 = smul.addr %s162, 36
      %s164 = smul.addr %s163, 4
      %s165 = scalar_lea.vmem %s0, %s164
      %p166 = scmp.lt.s32.totalorder %s14, 5
      %s167 = scalar_select %p166, %s14, 5
      %s168 = smul.addr %s167, 32
      %s169 = smul.addr %s168, 8
      %s170 = scalar_lea.vmem %s3, %s169
      %v172 = vld [vmem:[%s165] sm:$0xf]
      %v173 = vld [vmem:[%s165 + $0x4] sm:$0xf]
      %v174 = vld [vmem:[%s165 + $0x8] sm:$0xf]
      %v175 = vld [vmem:[%s165 + $0xc] sm:$0xf]
      %v176 = vld [vmem:[%s165 + $0x10] sm:$0xf]
      %v177 = vld [vmem:[%s165 + $0x14] sm:$0xf]
      %v178 = vld [vmem:[%s165 + $0x18] sm:$0xf]
      %v179 = vld [vmem:[%s165 + $0x1c] sm:$0xf]
      %v180 = vld [vmem:[%s165 + $0x20] sm:$0xf]
      %v181 = vld [vmem:[%s165 + $0x24] sm:$0xf]
      %v182 = vld [vmem:[%s165 + $0x28] sm:$0xf]
      %v183 = vld [vmem:[%s165 + $0x2c] sm:$0xf]
      %v184 = vld [vmem:[%s165 + $0x30] sm:$0xf]
      %v185 = vld [vmem:[%s165 + $0x34] sm:$0xf]
      %v186 = vld [vmem:[%s165 + $0x38] sm:$0xf]
      %v187 = vld [vmem:[%s165 + $0x3c] sm:$0xf]
      %v188 = vld [vmem:[%s165 + $0x40] sm:$0xf]
      %v189 = vld [vmem:[%s165 + $0x44] sm:$0xf]
      %v190 = vld [vmem:[%s165 + $0x48] sm:$0xf]
      %v191 = vld [vmem:[%s165 + $0x4c] sm:$0xf]
      %v192 = vld [vmem:[%s165 + $0x50] sm:$0xf]
      %v193 = vld [vmem:[%s165 + $0x54] sm:$0xf]
      %v194 = vld [vmem:[%s165 + $0x58] sm:$0xf]
      %v195 = vld [vmem:[%s165 + $0x5c] sm:$0xf]
      %v196 = vld [vmem:[%s165 + $0x60] sm:$0xf]
      %v197 = vld [vmem:[%s165 + $0x64] sm:$0xf]
      %v198 = vld [vmem:[%s165 + $0x68] sm:$0xf]
      %v199 = vld [vmem:[%s165 + $0x6c] sm:$0xf]
      %v200 = vld [vmem:[%s165 + $0x70] sm:$0xf]
      %v201 = vld [vmem:[%s165 + $0x74] sm:$0xf]
      %v202 = vld [vmem:[%s165 + $0x78] sm:$0xf]
      %v203 = vld [vmem:[%s165 + $0x7c] sm:$0xf]
      %v204 = vld [vmem:[%s1] sm:$0xf]
      %v205 = vld [vmem:[%s1 + $0x4] sm:$0xf]
      %v206 = vld [vmem:[%s1 + $0x8] sm:$0xf]
      %v207 = vld [vmem:[%s1 + $0xc] sm:$0xf]
      %v208 = vld [vmem:[%s1 + $0x10] sm:$0xf]
      %v209 = vld [vmem:[%s1 + $0x14] sm:$0xf]
      %v210 = vld [vmem:[%s1 + $0x18] sm:$0xf]
      %v211 = vld [vmem:[%s1 + $0x1c] sm:$0xf]
      %v212 = vld [vmem:[%s1 + $0x20] sm:$0xf]
      %v213 = vld [vmem:[%s1 + $0x24] sm:$0xf]
      %v214 = vld [vmem:[%s1 + $0x28] sm:$0xf]
      %v215 = vld [vmem:[%s1 + $0x2c] sm:$0xf]
      %v216 = vld [vmem:[%s165 + $0x80] sm:$0xf]
      %v217 = vld [vmem:[%s165 + $0x84] sm:$0xf]
      %s218 = scalar_lea.vmem %s1, 48
      %v219 = vld [vmem:[%s218] sm:$0xf]
      %v220 = vld [vmem:[%s218 + $0x4] sm:$0xf]
      %v221 = vld [vmem:[%s218 + $0x8] sm:$0xf]
      %v222 = vld [vmem:[%s218 + $0xc] sm:$0xf]
      %v223 = vld [vmem:[%s218 + $0x10] sm:$0xf]
      %v224 = vld [vmem:[%s218 + $0x14] sm:$0xf]
      %v225 = vld [vmem:[%s218 + $0x18] sm:$0xf]
      %v226 = vld [vmem:[%s218 + $0x1c] sm:$0xf]
      %v227 = vld [vmem:[%s218 + $0x20] sm:$0xf]
      %v228 = vld [vmem:[%s218 + $0x24] sm:$0xf]
      %v229 = vld [vmem:[%s218 + $0x28] sm:$0xf]
      %v230 = vld [vmem:[%s218 + $0x2c] sm:$0xf]
      %v263 = vunpack.c.l.b16 %v174
      %v264 = vunpack.c.l.b16 %v175
      %v265 = vunpack.c.l.b16 %v176
      %v266 = vunpack.c.l.b16 %v177
      %v267 = vunpack.c.l.b16 %v178
      %v268 = vunpack.c.l.b16 %v179
      %v269 = vunpack.c.l.b16 %v180
      %v270 = vunpack.c.l.b16 %v181
      %v271 = vunpack.c.l.b16 %v182
      %v272 = vunpack.c.l.b16 %v183
      %v273 = vunpack.c.l.b16 %v184
      %v274 = vunpack.c.l.b16 %v185
      %v275 = vunpack.c.l.b16 %v186
      %v276 = vunpack.c.l.b16 %v187
      %v277 = vunpack.c.l.b16 %v188
      %v278 = vunpack.c.l.b16 %v189
      %v279 = vunpack.c.l.b16 %v190
      %v280 = vunpack.c.l.b16 %v191
      %v281 = vunpack.c.l.b16 %v192
      %v282 = vunpack.c.l.b16 %v193
      %v283 = vunpack.c.l.b16 %v194
      %v284 = vunpack.c.l.b16 %v195
      %v285 = vunpack.c.l.b16 %v196
      %v286 = vunpack.c.l.b16 %v197
      %v287 = vunpack.c.l.b16 %v198
      %v288 = vunpack.c.l.b16 %v199
      %v289 = vunpack.c.l.b16 %v200
      %v290 = vunpack.c.l.b16 %v201
      %v291 = vunpack.c.l.b16 %v202
      %v292 = vunpack.c.l.b16 %v203
      %v293 = vunpack.c.l.b16 %v216
      %v294 = vunpack.c.l.b16 %v217
      %v295 = vpack.c.b16 %v264, %v263
      %v296 = vpack.c.b16 %v266, %v265
      %v297 = vpack.c.b16 %v268, %v267
      %v298 = vpack.c.b16 %v270, %v269
      %v299 = vpack.c.b16 %v272, %v271
      %v300 = vpack.c.b16 %v274, %v273
      %v301 = vpack.c.b16 %v276, %v275
      %v302 = vpack.c.b16 %v278, %v277
      %v303 = vpack.c.b16 %v280, %v279
      %v304 = vpack.c.b16 %v282, %v281
      %v305 = vpack.c.b16 %v284, %v283
      %v306 = vpack.c.b16 %v286, %v285
      %v307 = vpack.c.b16 %v288, %v287
      %v308 = vpack.c.b16 %v290, %v289
      %v309 = vpack.c.b16 %v292, %v291
      %v310 = vpack.c.b16 %v294, %v293
      %v323 = vunpack.c.l.b16 %v219
      %v324 = vunpack.c.l.b16 %v220
      %v325 = vunpack.c.l.b16 %v221
      %v326 = vunpack.c.l.b16 %v222
      %v327 = vunpack.c.l.b16 %v223
      %v328 = vunpack.c.l.b16 %v224
      %v329 = vunpack.c.l.b16 %v225
      %v330 = vunpack.c.l.b16 %v226
      %v331 = vunpack.c.l.b16 %v227
      %v332 = vunpack.c.l.b16 %v228
      %v333 = vunpack.c.l.b16 %v229
      %v334 = vunpack.c.l.b16 %v230
      %v335 = vpack.c.b16 %v324, %v323
      %v336 = vpack.c.b16 %v326, %v325
      %v337 = vpack.c.b16 %v328, %v327
      %v338 = vpack.c.b16 %v330, %v329
      %v339 = vpack.c.b16 %v332, %v331
      %v340 = vpack.c.b16 %v334, %v333
      %vm347 = vcmask 785408
      %v349 = vsel %vm347, %v295, 0
      %v352 = vsel %vm347, %v296, 0
      %v355 = vsel %vm347, %v297, 0
      %v358 = vsel %vm347, %v298, 0
      %v361 = vsel %vm347, %v299, 0
      %v364 = vsel %vm347, %v300, 0
      %v367 = vsel %vm347, %v301, 0
      %v370 = vsel %vm347, %v302, 0
      %v373 = vsel %vm347, %v303, 0
      %v376 = vsel %vm347, %v304, 0
      %v379 = vsel %vm347, %v305, 0
      %v382 = vsel %vm347, %v306, 0
      %v385 = vsel %vm347, %v307, 0
      %v388 = vsel %vm347, %v308, 0
      %v391 = vsel %vm347, %v309, 0
      %v394 = vsel %vm347, %v310, 0
      %396 = vmatprep.subr.bf16.mxu0 0
      %397 = vmatpush1.bf16.msra.mxu0 %v335
      %398 = vmatprep.subr.bf16.mxu0 0
      %399 = vmatpush1.bf16.msra.mxu0 %v336
      %400 = vmatprep.subr.bf16.mxu0 0
      %401 = vmatpush1.bf16.msra.mxu0 %v337
      %402 = vmatprep.subr.bf16.mxu0 0
      %403 = vmatpush1.bf16.msra.mxu0 %v338
      %404 = vmatprep.subr.bf16.mxu0 0
      %405 = vmatpush1.bf16.msra.mxu0 %v339
      %406 = vmatprep.subr.bf16.mxu0 0
      %407 = vmatpush1.bf16.msra.mxu0 %v340
      %408 = vmatprep.subr.bf16.mxu0 0
      %409 = vmatpush1.bf16.msra.mxu0 0
      %410 = vmatprep.subr.bf16.mxu0 0
      %411 = vmatpush1.bf16.msra.mxu0 0
      %412 = vmatprep.subr.bf16.mxu0 0
      %413 = vmatpush1.bf16.msra.mxu0 0
      %414 = vmatprep.subr.bf16.mxu0 0
      %415 = vmatpush1.bf16.msra.mxu0 0
      %416 = vmatprep.subr.bf16.mxu0 0
      %417 = vmatpush1.bf16.msra.mxu0 0
      %418 = vmatprep.subr.bf16.mxu0 0
      %419 = vmatpush1.bf16.msra.mxu0 0
      %420 = vmatprep.subr.bf16.mxu0 0
      %421 = vmatpush1.bf16.msra.mxu0 0
      %422 = vmatprep.subr.bf16.mxu0 0
      %423 = vmatpush1.bf16.msra.mxu0 0
      %424 = vmatprep.subr.bf16.mxu0 0
      %425 = vmatpush1.bf16.msra.mxu0 0
      %426 = vmatprep.subr.bf16.mxu0 0
      %427 = vmatpush1.bf16.msra.mxu0 0
      %428 = vmatprep.mubr.bf16.mxu0 0
      %429 = vmatmul.mubr.bf16.gmra.mrb[0].mxu0 %v349
      %v430 = vpop.f32.mrb[0].mxu0
      %v431 = vadd.f32 0.0, %v430
      %v432 = vpop.f32.mrb[0].mxu0
      %v433 = vpop.f32.mrb[0].mxu0
      %v434 = vadd.f32 0.0, %v433
      %v435 = vpop.f32.mrb[0].mxu0
      %436 = vmatprep.mubr.bf16.mxu0 0
      %437 = vmatmul.mubr.bf16.gmra.mrb[0].mxu0 %v352
      %v438 = vpop.f32.mrb[0].mxu0
      %v439 = vadd.f32 0.0, %v438
      %v440 = vpop.f32.mrb[0].mxu0
      %v441 = vpop.f32.mrb[0].mxu0
      %v442 = vadd.f32 0.0, %v441
      %v443 = vpop.f32.mrb[0].mxu0
      %444 = vmatprep.mubr.bf16.mxu0 0
      %445 = vmatmul.mubr.bf16.gmra.mrb[0].mxu0 %v355
      %v446 = vpop.f32.mrb[0].mxu0
      %v447 = vadd.f32 0.0, %v446
      %v448 = vpop.f32.mrb[0].mxu0
      %v449 = vpop.f32.mrb[0].mxu0
      %v450 = vadd.f32 0.0, %v449
      %v451 = vpop.f32.mrb[0].mxu0
      %452 = vmatprep.mubr.bf16.mxu0 0
      %453 = vmatmul.mubr.bf16.gmra.mrb[0].mxu0 %v358
      %v454 = vpop.f32.mrb[0].mxu0
      %v455 = vadd.f32 0.0, %v454
      %v456 = vpop.f32.mrb[0].mxu0
      %v457 = vpop.f32.mrb[0].mxu0
      %v458 = vadd.f32 0.0, %v457
      %v459 = vpop.f32.mrb[0].mxu0
      %460 = vmatprep.mubr.bf16.mxu0 0
      %461 = vmatmul.mubr.bf16.gmra.mrb[0].mxu0 %v361
      %v462 = vpop.f32.mrb[0].mxu0
      %v463 = vadd.f32 0.0, %v462
      %v464 = vpop.f32.mrb[0].mxu0
      %v465 = vpop.f32.mrb[0].mxu0
      %v466 = vadd.f32 0.0, %v465
      %v467 = vpop.f32.mrb[0].mxu0
      %468 = vmatprep.mubr.bf16.mxu0 0
      %469 = vmatmul.mubr.bf16.gmra.mrb[0].mxu0 %v364
      %v470 = vpop.f32.mrb[0].mxu0
      %v471 = vadd.f32 0.0, %v470
      %v472 = vpop.f32.mrb[0].mxu0
      %v473 = vpop.f32.mrb[0].mxu0
      %v474 = vadd.f32 0.0, %v473
      %v475 = vpop.f32.mrb[0].mxu0
      %476 = vmatprep.mubr.bf16.mxu0 0
      %477 = vmatmul.mubr.bf16.gmra.mrb[0].mxu0 %v367
      %v478 = vpop.f32.mrb[0].mxu0
      %v479 = vadd.f32 0.0, %v478
      %v480 = vpop.f32.mrb[0].mxu0
      %v481 = vpop.f32.mrb[0].mxu0
      %v482 = vadd.f32 0.0, %v481
      %v483 = vpop.f32.mrb[0].mxu0
      %484 = vmatprep.mubr.bf16.mxu0 0
      %485 = vmatmul.mubr.bf16.gmra.mrb[0].mxu0 %v370
      %v486 = vpop.f32.mrb[0].mxu0
      %v487 = vadd.f32 0.0, %v486
      %v488 = vpop.f32.mrb[0].mxu0
      %v489 = vpop.f32.mrb[0].mxu0
      %v490 = vadd.f32 0.0, %v489
      %v491 = vpop.f32.mrb[0].mxu0
      %492 = vmatprep.mubr.bf16.mxu0 0
      %493 = vmatmul.mubr.bf16.gmra.mrb[0].mxu0 %v373
      %v494 = vpop.f32.mrb[0].mxu0
      %v495 = vadd.f32 0.0, %v494
      %v496 = vpop.f32.mrb[0].mxu0
      %v497 = vpop.f32.mrb[0].mxu0
      %v498 = vadd.f32 0.0, %v497
      %v499 = vpop.f32.mrb[0].mxu0
      %500 = vmatprep.mubr.bf16.mxu0 0
      %501 = vmatmul.mubr.bf16.gmra.mrb[0].mxu0 %v376
      %v502 = vpop.f32.mrb[0].mxu0
      %v503 = vadd.f32 0.0, %v502
      %v504 = vpop.f32.mrb[0].mxu0
      %v505 = vpop.f32.mrb[0].mxu0
      %v506 = vadd.f32 0.0, %v505
      %v507 = vpop.f32.mrb[0].mxu0
      %508 = vmatprep.mubr.bf16.mxu0 0
      %509 = vmatmul.mubr.bf16.gmra.mrb[0].mxu0 %v379
      %v510 = vpop.f32.mrb[0].mxu0
      %v511 = vadd.f32 0.0, %v510
      %v512 = vpop.f32.mrb[0].mxu0
      %v513 = vpop.f32.mrb[0].mxu0
      %v514 = vadd.f32 0.0, %v513
      %v515 = vpop.f32.mrb[0].mxu0
      %516 = vmatprep.mubr.bf16.mxu0 0
      %517 = vmatmul.mubr.bf16.gmra.mrb[0].mxu0 %v382
      %v518 = vpop.f32.mrb[0].mxu0
      %v519 = vadd.f32 0.0, %v518
      %v520 = vpop.f32.mrb[0].mxu0
      %v521 = vpop.f32.mrb[0].mxu0
      %v522 = vadd.f32 0.0, %v521
      %v523 = vpop.f32.mrb[0].mxu0
      %524 = vmatprep.mubr.bf16.mxu0 0
      %525 = vmatmul.mubr.bf16.gmra.mrb[0].mxu0 %v385
      %v526 = vpop.f32.mrb[0].mxu0
      %v527 = vadd.f32 0.0, %v526
      %v528 = vpop.f32.mrb[0].mxu0
      %v529 = vpop.f32.mrb[0].mxu0
      %v530 = vadd.f32 0.0, %v529
      %v531 = vpop.f32.mrb[0].mxu0
      %532 = vmatprep.mubr.bf16.mxu0 0
      %533 = vmatmul.mubr.bf16.gmra.mrb[0].mxu0 %v388
      %v534 = vpop.f32.mrb[0].mxu0
      %v535 = vadd.f32 0.0, %v534
      %v536 = vpop.f32.mrb[0].mxu0
      %v537 = vpop.f32.mrb[0].mxu0
      %v538 = vadd.f32 0.0, %v537
      %v539 = vpop.f32.mrb[0].mxu0
      %540 = vmatprep.mubr.bf16.mxu0 0
      %541 = vmatmul.mubr.bf16.gmra.mrb[0].mxu0 %v391
      %v542 = vpop.f32.mrb[0].mxu0
      %v543 = vadd.f32 0.0, %v542
      %v544 = vpop.f32.mrb[0].mxu0
      %v545 = vpop.f32.mrb[0].mxu0
      %v546 = vadd.f32 0.0, %v545
      %v547 = vpop.f32.mrb[0].mxu0
      %548 = vmatprep.mubr.bf16.mxu0 0
      %549 = vmatmul.mubr.bf16.gmra.mrb[0].mxu0 %v394
      %v550 = vpop.f32.mrb[0].mxu0
      %v551 = vadd.f32 0.0, %v550
      %v552 = vpop.f32.mrb[0].mxu0
      %v553 = vpop.f32.mrb[0].mxu0
      %v554 = vadd.f32 0.0, %v553
      %v555 = vpop.f32.mrb[0].mxu0
      %556 = vdwg.mxu0
      %v559 = vunpack.c.l.b16 %v172
      %v560 = vunpack.c.l.b16 %v173
      %v561 = vpack.c.b16 %v560, %v559
      %v574 = vunpack.c.l.b16 %v204
      %v575 = vunpack.c.l.b16 %v205
      %v576 = vunpack.c.l.b16 %v206
      %v577 = vunpack.c.l.b16 %v207
      %v578 = vunpack.c.l.b16 %v208
      %v579 = vunpack.c.l.b16 %v209
      %v580 = vunpack.c.l.b16 %v210
      %v581 = vunpack.c.l.b16 %v211
      %v582 = vunpack.c.l.b16 %v212
      %v583 = vunpack.c.l.b16 %v213
      %v584 = vunpack.c.l.b16 %v214
      %v585 = vunpack.c.l.b16 %v215
      %v586 = vpack.c.b16 %v575, %v574
      %v587 = vpack.c.b16 %v577, %v576
      %v588 = vpack.c.b16 %v579, %v578
      %v589 = vpack.c.b16 %v581, %v580
      %v590 = vpack.c.b16 %v583, %v582
      %v591 = vpack.c.b16 %v585, %v584
      %v599 = vsel %vm347, %v561, 0
      %601 = vmatprep.subr.bf16.mxu0 0
      %602 = vmatpush1.bf16.msra.mxu0 %v586
      %603 = vmatprep.subr.bf16.mxu0 0
      %604 = vmatpush1.bf16.msra.mxu0 %v587
      %605 = vmatprep.subr.bf16.mxu0 0
      %606 = vmatpush1.bf16.msra.mxu0 %v588
      %607 = vmatprep.subr.bf16.mxu0 0
      %608 = vmatpush1.bf16.msra.mxu0 %v589
      %609 = vmatprep.subr.bf16.mxu0 0
      %610 = vmatpush1.bf16.msra.mxu0 %v590
      %611 = vmatprep.subr.bf16.mxu0 0
      %612 = vmatpush1.bf16.msra.mxu0 %v591
      %613 = vmatprep.subr.bf16.mxu0 0
      %614 = vmatpush1.bf16.msra.mxu0 0
      %615 = vmatprep.subr.bf16.mxu0 0
      %616 = vmatpush1.bf16.msra.mxu0 0
      %617 = vmatprep.subr.bf16.mxu0 0
      %618 = vmatpush1.bf16.msra.mxu0 0
      %619 = vmatprep.subr.bf16.mxu0 0
      %620 = vmatpush1.bf16.msra.mxu0 0
      %621 = vmatprep.subr.bf16.mxu0 0
      %622 = vmatpush1.bf16.msra.mxu0 0
      %623 = vmatprep.subr.bf16.mxu0 0
      %624 = vmatpush1.bf16.msra.mxu0 0
      %625 = vmatprep.subr.bf16.mxu0 0
      %626 = vmatpush1.bf16.msra.mxu0 0
      %627 = vmatprep.subr.bf16.mxu0 0
      %628 = vmatpush1.bf16.msra.mxu0 0
      %629 = vmatprep.subr.bf16.mxu0 0
      %630 = vmatpush1.bf16.msra.mxu0 0
      %631 = vmatprep.subr.bf16.mxu0 0
      %632 = vmatpush1.bf16.msra.mxu0 0
      %633 = vmatprep.mubr.bf16.mxu0 0
      %634 = vmatmul.mubr.bf16.gmra.mrb[0].mxu0 %v599
      %v635 = vpop.f32.mrb[0].mxu0
      %v636 = vadd.f32 %v431, %v635
      %v637 = vpop.f32.mrb[0].mxu0
      %v638 = vpop.f32.mrb[0].mxu0
      %v639 = vadd.f32 %v434, %v638
      %v640 = vpop.f32.mrb[0].mxu0
      %641 = vmatprep.mubr.bf16.mxu0 0
      %642 = vmatmul.mubr.bf16.gmra.mrb[0].mxu0 %v349
      %v643 = vpop.f32.mrb[0].mxu0
      %v644 = vadd.f32 %v439, %v643
      %v645 = vpop.f32.mrb[0].mxu0
      %v646 = vpop.f32.mrb[0].mxu0
      %v647 = vadd.f32 %v442, %v646
      %v648 = vpop.f32.mrb[0].mxu0
      %649 = vmatprep.mubr.bf16.mxu0 0
      %650 = vmatmul.mubr.bf16.gmra.mrb[0].mxu0 %v352
      %v651 = vpop.f32.mrb[0].mxu0
      %v652 = vadd.f32 %v447, %v651
      %v653 = vpop.f32.mrb[0].mxu0
      %v654 = vpop.f32.mrb[0].mxu0
      %v655 = vadd.f32 %v450, %v654
      %v656 = vpop.f32.mrb[0].mxu0
      %657 = vmatprep.mubr.bf16.mxu0 0
      %658 = vmatmul.mubr.bf16.gmra.mrb[0].mxu0 %v355
      %v659 = vpop.f32.mrb[0].mxu0
      %v660 = vadd.f32 %v455, %v659
      %v661 = vpop.f32.mrb[0].mxu0
      %v662 = vpop.f32.mrb[0].mxu0
      %v663 = vadd.f32 %v458, %v662
      %v664 = vpop.f32.mrb[0].mxu0
      %665 = vmatprep.mubr.bf16.mxu0 0
      %666 = vmatmul.mubr.bf16.gmra.mrb[0].mxu0 %v358
      %v667 = vpop.f32.mrb[0].mxu0
      %v668 = vadd.f32 %v463, %v667
      %v669 = vpop.f32.mrb[0].mxu0
      %v670 = vpop.f32.mrb[0].mxu0
      %v671 = vadd.f32 %v466, %v670
      %v672 = vpop.f32.mrb[0].mxu0
      %673 = vmatprep.mubr.bf16.mxu0 0
      %674 = vmatmul.mubr.bf16.gmra.mrb[0].mxu0 %v361
      %v675 = vpop.f32.mrb[0].mxu0
      %v676 = vadd.f32 %v471, %v675
      %v677 = vpop.f32.mrb[0].mxu0
      %v678 = vpop.f32.mrb[0].mxu0
      %v679 = vadd.f32 %v474, %v678
      %v680 = vpop.f32.mrb[0].mxu0
      %681 = vmatprep.mubr.bf16.mxu0 0
      %682 = vmatmul.mubr.bf16.gmra.mrb[0].mxu0 %v364
      %v683 = vpop.f32.mrb[0].mxu0
      %v684 = vadd.f32 %v479, %v683
      %v685 = vpop.f32.mrb[0].mxu0
      %v686 = vpop.f32.mrb[0].mxu0
      %v687 = vadd.f32 %v482, %v686
      %v688 = vpop.f32.mrb[0].mxu0
      %689 = vmatprep.mubr.bf16.mxu0 0
      %690 = vmatmul.mubr.bf16.gmra.mrb[0].mxu0 %v367
      %v691 = vpop.f32.mrb[0].mxu0
      %v692 = vadd.f32 %v487, %v691
      %v693 = vpop.f32.mrb[0].mxu0
      %v694 = vpop.f32.mrb[0].mxu0
      %v695 = vadd.f32 %v490, %v694
      %v696 = vpop.f32.mrb[0].mxu0
      %697 = vmatprep.mubr.bf16.mxu0 0
      %698 = vmatmul.mubr.bf16.gmra.mrb[0].mxu0 %v370
      %v699 = vpop.f32.mrb[0].mxu0
      %v700 = vadd.f32 %v495, %v699
      %v701 = vpop.f32.mrb[0].mxu0
      %v702 = vpop.f32.mrb[0].mxu0
      %v703 = vadd.f32 %v498, %v702
      %v704 = vpop.f32.mrb[0].mxu0
      %705 = vmatprep.mubr.bf16.mxu0 0
      %706 = vmatmul.mubr.bf16.gmra.mrb[0].mxu0 %v373
      %v707 = vpop.f32.mrb[0].mxu0
      %v708 = vadd.f32 %v503, %v707
      %v709 = vpop.f32.mrb[0].mxu0
      %v710 = vpop.f32.mrb[0].mxu0
      %v711 = vadd.f32 %v506, %v710
      %v712 = vpop.f32.mrb[0].mxu0
      %713 = vmatprep.mubr.bf16.mxu0 0
      %714 = vmatmul.mubr.bf16.gmra.mrb[0].mxu0 %v376
      %v715 = vpop.f32.mrb[0].mxu0
      %v716 = vadd.f32 %v511, %v715
      %v717 = vpop.f32.mrb[0].mxu0
      %v718 = vpop.f32.mrb[0].mxu0
      %v719 = vadd.f32 %v514, %v718
      %v720 = vpop.f32.mrb[0].mxu0
      %721 = vmatprep.mubr.bf16.mxu0 0
      %722 = vmatmul.mubr.bf16.gmra.mrb[0].mxu0 %v379
      %v723 = vpop.f32.mrb[0].mxu0
      %v724 = vadd.f32 %v519, %v723
      %v725 = vpop.f32.mrb[0].mxu0
      %v726 = vpop.f32.mrb[0].mxu0
      %v727 = vadd.f32 %v522, %v726
      %v728 = vpop.f32.mrb[0].mxu0
      %729 = vmatprep.mubr.bf16.mxu0 0
      %730 = vmatmul.mubr.bf16.gmra.mrb[0].mxu0 %v382
      %v731 = vpop.f32.mrb[0].mxu0
      %v732 = vadd.f32 %v527, %v731
      %v733 = vpop.f32.mrb[0].mxu0
      %v734 = vpop.f32.mrb[0].mxu0
      %v735 = vadd.f32 %v530, %v734
      %v736 = vpop.f32.mrb[0].mxu0
      %737 = vmatprep.mubr.bf16.mxu0 0
      %738 = vmatmul.mubr.bf16.gmra.mrb[0].mxu0 %v385
      %v739 = vpop.f32.mrb[0].mxu0
      %v740 = vadd.f32 %v535, %v739
      %v741 = vpop.f32.mrb[0].mxu0
      %v742 = vpop.f32.mrb[0].mxu0
      %v743 = vadd.f32 %v538, %v742
      %v744 = vpop.f32.mrb[0].mxu0
      %745 = vmatprep.mubr.bf16.mxu0 0
      %746 = vmatmul.mubr.bf16.gmra.mrb[0].mxu0 %v388
      %v747 = vpop.f32.mrb[0].mxu0
      %v748 = vadd.f32 %v543, %v747
      %v749 = vpop.f32.mrb[0].mxu0
      %v750 = vpop.f32.mrb[0].mxu0
      %v751 = vadd.f32 %v546, %v750
      %v752 = vpop.f32.mrb[0].mxu0
      %753 = vmatprep.mubr.bf16.mxu0 0
      %754 = vmatmul.mubr.bf16.gmra.mrb[0].mxu0 %v391
      %v755 = vpop.f32.mrb[0].mxu0
      %v756 = vadd.f32 %v551, %v755
      %v757 = vpop.f32.mrb[0].mxu0
      %v758 = vpop.f32.mrb[0].mxu0
      %v759 = vadd.f32 %v554, %v758
      %v760 = vpop.f32.mrb[0].mxu0
      %761 = vdwg.mxu0
      %v762 = vld [vmem:[%s165 + $0x10] sm:$0xf]
      %v763 = vld [vmem:[%s165 + $0x14] sm:$0xf]
      %v764 = vld [vmem:[%s165 + $0x18] sm:$0xf]
      %v765 = vld [vmem:[%s165 + $0x1c] sm:$0xf]
      %v766 = vld [vmem:[%s165 + $0x20] sm:$0xf]
      %v767 = vld [vmem:[%s165 + $0x24] sm:$0xf]
      %v768 = vld [vmem:[%s165 + $0x28] sm:$0xf]
      %v769 = vld [vmem:[%s165 + $0x2c] sm:$0xf]
      %v770 = vld [vmem:[%s165 + $0x30] sm:$0xf]
      %v771 = vld [vmem:[%s165 + $0x34] sm:$0xf]
      %v772 = vld [vmem:[%s165 + $0x38] sm:$0xf]
      %v773 = vld [vmem:[%s165 + $0x3c] sm:$0xf]
      %v774 = vld [vmem:[%s165 + $0x40] sm:$0xf]
      %v775 = vld [vmem:[%s165 + $0x44] sm:$0xf]
      %v776 = vld [vmem:[%s165 + $0x48] sm:$0xf]
      %v777 = vld [vmem:[%s165 + $0x4c] sm:$0xf]
      %v778 = vld [vmem:[%s165 + $0x50] sm:$0xf]
      %v779 = vld [vmem:[%s165 + $0x54] sm:$0xf]
      %v780 = vld [vmem:[%s165 + $0x58] sm:$0xf]
      %v781 = vld [vmem:[%s165 + $0x5c] sm:$0xf]
      %v782 = vld [vmem:[%s165 + $0x60] sm:$0xf]
      %v783 = vld [vmem:[%s165 + $0x64] sm:$0xf]
      %v784 = vld [vmem:[%s165 + $0x68] sm:$0xf]
      %v785 = vld [vmem:[%s165 + $0x6c] sm:$0xf]
      %v786 = vld [vmem:[%s165 + $0x70] sm:$0xf]
      %v787 = vld [vmem:[%s165 + $0x74] sm:$0xf]
      %v788 = vld [vmem:[%s165 + $0x78] sm:$0xf]
      %v789 = vld [vmem:[%s165 + $0x7c] sm:$0xf]
      %v790 = vld [vmem:[%s165 + $0x80] sm:$0xf]
      %v791 = vld [vmem:[%s165 + $0x84] sm:$0xf]
      %v792 = vld [vmem:[%s165 + $0x88] sm:$0xf]
      %v793 = vld [vmem:[%s165 + $0x8c] sm:$0xf]
      %s794 = scalar_lea.vmem %s1, 96
      %v795 = vld [vmem:[%s794] sm:$0xf]
      %v796 = vld [vmem:[%s794 + $0x4] sm:$0xf]
      %v797 = vld [vmem:[%s794 + $0x8] sm:$0xf]
      %v798 = vld [vmem:[%s794 + $0xc] sm:$0xf]
      %v799 = vld [vmem:[%s794 + $0x10] sm:$0xf]
      %v800 = vld [vmem:[%s794 + $0x14] sm:$0xf]
      %v801 = vld [vmem:[%s794 + $0x18] sm:$0xf]
      %v802 = vld [vmem:[%s794 + $0x1c] sm:$0xf]
      %v803 = vld [vmem:[%s794 + $0x20] sm:$0xf]
      %v804 = vld [vmem:[%s794 + $0x24] sm:$0xf]
      %v805 = vld [vmem:[%s794 + $0x28] sm:$0xf]
      %v806 = vld [vmem:[%s794 + $0x2c] sm:$0xf]
      %v839 = vunpack.c.l.b16 %v762
      %v840 = vunpack.c.l.b16 %v763
      %v841 = vunpack.c.l.b16 %v764
      %v842 = vunpack.c.l.b16 %v765
      %v843 = vunpack.c.l.b16 %v766
      %v844 = vunpack.c.l.b16 %v767
      %v845 = vunpack.c.l.b16 %v768
      %v846 = vunpack.c.l.b16 %v769
      %v847 = vunpack.c.l.b16 %v770
      %v848 = vunpack.c.l.b16 %v771
      %v849 = vunpack.c.l.b16 %v772
      %v850 = vunpack.c.l.b16 %v773
      %v851 = vunpack.c.l.b16 %v774
      %v852 = vunpack.c.l.b16 %v775
      %v853 = vunpack.c.l.b16 %v776
      %v854 = vunpack.c.l.b16 %v777
      %v855 = vunpack.c.l.b16 %v778
      %v856 = vunpack.c.l.b16 %v779
      %v857 = vunpack.c.l.b16 %v780
      %v858 = vunpack.c.l.b16 %v781
      %v859 = vunpack.c.l.b16 %v782
      %v860 = vunpack.c.l.b16 %v783
      %v861 = vunpack.c.l.b16 %v784
      %v862 = vunpack.c.l.b16 %v785
      %v863 = vunpack.c.l.b16 %v786
      %v864 = vunpack.c.l.b16 %v787
      %v865 = vunpack.c.l.b16 %v788
      %v866 = vunpack.c.l.b16 %v789
      %v867 = vunpack.c.l.b16 %v790
      %v868 = vunpack.c.l.b16 %v791
      %v869 = vunpack.c.l.b16 %v792
      %v870 = vunpack.c.l.b16 %v793
      %v871 = vpack.c.b16 %v840, %v839
      %v872 = vpack.c.b16 %v842, %v841
      %v873 = vpack.c.b16 %v844, %v843
      %v874 = vpack.c.b16 %v846, %v845
      %v875 = vpack.c.b16 %v848, %v847
      %v876 = vpack.c.b16 %v850, %v849
      %v877 = vpack.c.b16 %v852, %v851
      %v878 = vpack.c.b16 %v854, %v853
      %v879 = vpack.c.b16 %v856, %v855
      %v880 = vpack.c.b16 %v858, %v857
      %v881 = vpack.c.b16 %v860, %v859
      %v882 = vpack.c.b16 %v862, %v861
      %v883 = vpack.c.b16 %v864, %v863
      %v884 = vpack.c.b16 %v866, %v865
      %v885 = vpack.c.b16 %v868, %v867
      %v886 = vpack.c.b16 %v870, %v869
      %v899 = vunpack.c.l.b16 %v795
      %v900 = vunpack.c.l.b16 %v796
      %v901 = vunpack.c.l.b16 %v797
      %v902 = vunpack.c.l.b16 %v798
      %v903 = vunpack.c.l.b16 %v799
      %v904 = vunpack.c.l.b16 %v800
      %v905 = vunpack.c.l.b16 %v801
      %v906 = vunpack.c.l.b16 %v802
      %v907 = vunpack.c.l.b16 %v803
      %v908 = vunpack.c.l.b16 %v804
      %v909 = vunpack.c.l.b16 %v805
      %v910 = vunpack.c.l.b16 %v806
      %v911 = vpack.c.b16 %v900, %v899
      %v912 = vpack.c.b16 %v902, %v901
      %v913 = vpack.c.b16 %v904, %v903
      %v914 = vpack.c.b16 %v906, %v905
      %v915 = vpack.c.b16 %v908, %v907
      %v916 = vpack.c.b16 %v910, %v909
      %v924 = vsel %vm347, %v871, 0
      %v927 = vsel %vm347, %v872, 0
      %v930 = vsel %vm347, %v873, 0
      %v933 = vsel %vm347, %v874, 0
      %v936 = vsel %vm347, %v875, 0
      %v939 = vsel %vm347, %v876, 0
      %v942 = vsel %vm347, %v877, 0
      %v945 = vsel %vm347, %v878, 0
      %v948 = vsel %vm347, %v879, 0
      %v951 = vsel %vm347, %v880, 0
      %v954 = vsel %vm347, %v881, 0
      %v957 = vsel %vm347, %v882, 0
      %v960 = vsel %vm347, %v883, 0
      %v963 = vsel %vm347, %v884, 0
      %v966 = vsel %vm347, %v885, 0
      %v969 = vsel %vm347, %v886, 0
      %971 = vmatprep.subr.bf16.mxu0 0
      %972 = vmatpush1.bf16.msra.mxu0 %v911
      %973 = vmatprep.subr.bf16.mxu0 0
      %974 = vmatpush1.bf16.msra.mxu0 %v912
      %975 = vmatprep.subr.bf16.mxu0 0
      %976 = vmatpush1.bf16.msra.mxu0 %v913
      %977 = vmatprep.subr.bf16.mxu0 0
      %978 = vmatpush1.bf16.msra.mxu0 %v914
      %979 = vmatprep.subr.bf16.mxu0 0
      %980 = vmatpush1.bf16.msra.mxu0 %v915
      %981 = vmatprep.subr.bf16.mxu0 0
      %982 = vmatpush1.bf16.msra.mxu0 %v916
      %983 = vmatprep.subr.bf16.mxu0 0
      %984 = vmatpush1.bf16.msra.mxu0 0
      %985 = vmatprep.subr.bf16.mxu0 0
      %986 = vmatpush1.bf16.msra.mxu0 0
      %987 = vmatprep.subr.bf16.mxu0 0
      %988 = vmatpush1.bf16.msra.mxu0 0
      %989 = vmatprep.subr.bf16.mxu0 0
      %990 = vmatpush1.bf16.msra.mxu0 0
      %991 = vmatprep.subr.bf16.mxu0 0
      %992 = vmatpush1.bf16.msra.mxu0 0
      %993 = vmatprep.subr.bf16.mxu0 0
      %994 = vmatpush1.bf16.msra.mxu0 0
      %995 = vmatprep.subr.bf16.mxu0 0
      %996 = vmatpush1.bf16.msra.mxu0 0
      %997 = vmatprep.subr.bf16.mxu0 0
      %998 = vmatpush1.bf16.msra.mxu0 0
      %999 = vmatprep.subr.bf16.mxu0 0
      %1000 = vmatpush1.bf16.msra.mxu0 0
      %1001 = vmatprep.subr.bf16.mxu0 0
      %1002 = vmatpush1.bf16.msra.mxu0 0
      %1003 = vmatprep.mubr.bf16.mxu0 0
      %1004 = vmatmul.mubr.bf16.gmra.mrb[0].mxu0 %v924
      %v1005 = vpop.f32.mrb[0].mxu0
      %v1006 = vadd.f32 0.0, %v1005
      %v1007 = vpop.f32.mrb[0].mxu0
      %v1008 = vpop.f32.mrb[0].mxu0
      %v1009 = vadd.f32 0.0, %v1008
      %v1010 = vpop.f32.mrb[0].mxu0
      %1011 = vmatprep.mubr.bf16.mxu0 0
      %1012 = vmatmul.mubr.bf16.gmra.mrb[0].mxu0 %v927
      %v1013 = vpop.f32.mrb[0].mxu0
      %v1014 = vadd.f32 0.0, %v1013
      %v1015 = vpop.f32.mrb[0].mxu0
      %v1016 = vpop.f32.mrb[0].mxu0
      %v1017 = vadd.f32 0.0, %v1016
      %v1018 = vpop.f32.mrb[0].mxu0
      %1019 = vmatprep.mubr.bf16.mxu0 0
      %1020 = vmatmul.mubr.bf16.gmra.mrb[0].mxu0 %v930
      %v1021 = vpop.f32.mrb[0].mxu0
      %v1022 = vadd.f32 0.0, %v1021
      %v1023 = vpop.f32.mrb[0].mxu0
      %v1024 = vpop.f32.mrb[0].mxu0
      %v1025 = vadd.f32 0.0, %v1024
      %v1026 = vpop.f32.mrb[0].mxu0
      %1027 = vmatprep.mubr.bf16.mxu0 0
      %1028 = vmatmul.mubr.bf16.gmra.mrb[0].mxu0 %v933
      %v1029 = vpop.f32.mrb[0].mxu0
      %v1030 = vadd.f32 0.0, %v1029
      %v1031 = vpop.f32.mrb[0].mxu0
      %v1032 = vpop.f32.mrb[0].mxu0
      %v1033 = vadd.f32 0.0, %v1032
      %v1034 = vpop.f32.mrb[0].mxu0
      %1035 = vmatprep.mubr.bf16.mxu0 0
      %1036 = vmatmul.mubr.bf16.gmra.mrb[0].mxu0 %v936
      %v1037 = vpop.f32.mrb[0].mxu0
      %v1038 = vadd.f32 0.0, %v1037
      %v1039 = vpop.f32.mrb[0].mxu0
      %v1040 = vpop.f32.mrb[0].mxu0
      %v1041 = vadd.f32 0.0, %v1040
      %v1042 = vpop.f32.mrb[0].mxu0
      %1043 = vmatprep.mubr.bf16.mxu0 0
      %1044 = vmatmul.mubr.bf16.gmra.mrb[0].mxu0 %v939
      %v1045 = vpop.f32.mrb[0].mxu0
      %v1046 = vadd.f32 0.0, %v1045
      %v1047 = vpop.f32.mrb[0].mxu0
      %v1048 = vpop.f32.mrb[0].mxu0
      %v1049 = vadd.f32 0.0, %v1048
      %v1050 = vpop.f32.mrb[0].mxu0
      %1051 = vmatprep.mubr.bf16.mxu0 0
      %1052 = vmatmul.mubr.bf16.gmra.mrb[0].mxu0 %v942
      %v1053 = vpop.f32.mrb[0].mxu0
      %v1054 = vadd.f32 0.0, %v1053
      %v1055 = vpop.f32.mrb[0].mxu0
      %v1056 = vpop.f32.mrb[0].mxu0
      %v1057 = vadd.f32 0.0, %v1056
      %v1058 = vpop.f32.mrb[0].mxu0
      %1059 = vmatprep.mubr.bf16.mxu0 0
      %1060 = vmatmul.mubr.bf16.gmra.mrb[0].mxu0 %v945
      %v1061 = vpop.f32.mrb[0].mxu0
      %v1062 = vadd.f32 0.0, %v1061
      %v1063 = vpop.f32.mrb[0].mxu0
      %v1064 = vpop.f32.mrb[0].mxu0
      %v1065 = vadd.f32 0.0, %v1064
      %v1066 = vpop.f32.mrb[0].mxu0
      %1067 = vmatprep.mubr.bf16.mxu0 0
      %1068 = vmatmul.mubr.bf16.gmra.mrb[0].mxu0 %v948
      %v1069 = vpop.f32.mrb[0].mxu0
      %v1070 = vadd.f32 0.0, %v1069
      %v1071 = vpop.f32.mrb[0].mxu0
      %v1072 = vpop.f32.mrb[0].mxu0
      %v1073 = vadd.f32 0.0, %v1072
      %v1074 = vpop.f32.mrb[0].mxu0
      %1075 = vmatprep.mubr.bf16.mxu0 0
      %1076 = vmatmul.mubr.bf16.gmra.mrb[0].mxu0 %v951
      %v1077 = vpop.f32.mrb[0].mxu0
      %v1078 = vadd.f32 0.0, %v1077
      %v1079 = vpop.f32.mrb[0].mxu0
      %v1080 = vpop.f32.mrb[0].mxu0
      %v1081 = vadd.f32 0.0, %v1080
      %v1082 = vpop.f32.mrb[0].mxu0
      %1083 = vmatprep.mubr.bf16.mxu0 0
      %1084 = vmatmul.mubr.bf16.gmra.mrb[0].mxu0 %v954
      %v1085 = vpop.f32.mrb[0].mxu0
      %v1086 = vadd.f32 0.0, %v1085
      %v1087 = vpop.f32.mrb[0].mxu0
      %v1088 = vpop.f32.mrb[0].mxu0
      %v1089 = vadd.f32 0.0, %v1088
      %v1090 = vpop.f32.mrb[0].mxu0
      %1091 = vmatprep.mubr.bf16.mxu0 0
      %1092 = vmatmul.mubr.bf16.gmra.mrb[0].mxu0 %v957
      %v1093 = vpop.f32.mrb[0].mxu0
      %v1094 = vadd.f32 0.0, %v1093
      %v1095 = vpop.f32.mrb[0].mxu0
      %v1096 = vpop.f32.mrb[0].mxu0
      %v1097 = vadd.f32 0.0, %v1096
      %v1098 = vpop.f32.mrb[0].mxu0
      %1099 = vmatprep.mubr.bf16.mxu0 0
      %1100 = vmatmul.mubr.bf16.gmra.mrb[0].mxu0 %v960
      %v1101 = vpop.f32.mrb[0].mxu0
      %v1102 = vadd.f32 0.0, %v1101
      %v1103 = vpop.f32.mrb[0].mxu0
      %v1104 = vpop.f32.mrb[0].mxu0
      %v1105 = vadd.f32 0.0, %v1104
      %v1106 = vpop.f32.mrb[0].mxu0
      %1107 = vmatprep.mubr.bf16.mxu0 0
      %1108 = vmatmul.mubr.bf16.gmra.mrb[0].mxu0 %v963
      %v1109 = vpop.f32.mrb[0].mxu0
      %v1110 = vadd.f32 0.0, %v1109
      %v1111 = vpop.f32.mrb[0].mxu0
      %v1112 = vpop.f32.mrb[0].mxu0
      %v1113 = vadd.f32 0.0, %v1112
      %v1114 = vpop.f32.mrb[0].mxu0
      %1115 = vmatprep.mubr.bf16.mxu0 0
      %1116 = vmatmul.mubr.bf16.gmra.mrb[0].mxu0 %v966
      %v1117 = vpop.f32.mrb[0].mxu0
      %v1118 = vadd.f32 0.0, %v1117
      %v1119 = vpop.f32.mrb[0].mxu0
      %v1120 = vpop.f32.mrb[0].mxu0
      %v1121 = vadd.f32 0.0, %v1120
      %v1122 = vpop.f32.mrb[0].mxu0
      %1123 = vmatprep.mubr.bf16.mxu0 0
      %1124 = vmatmul.mubr.bf16.gmra.mrb[0].mxu0 %v969
      %v1125 = vpop.f32.mrb[0].mxu0
      %v1126 = vadd.f32 0.0, %v1125
      %v1127 = vpop.f32.mrb[0].mxu0
      %v1128 = vpop.f32.mrb[0].mxu0
      %v1129 = vadd.f32 0.0, %v1128
      %v1130 = vpop.f32.mrb[0].mxu0
      %1131 = vdwg.mxu0
      %v1132 = vadd.f32 %v636, %v1006
      %v1133 = vadd.f32 %v639, %v1009
      %v1134 = vadd.f32 %v644, %v1014
      %v1135 = vadd.f32 %v647, %v1017
      %v1136 = vadd.f32 %v652, %v1022
      %v1137 = vadd.f32 %v655, %v1025
      %v1138 = vadd.f32 %v660, %v1030
      %v1139 = vadd.f32 %v663, %v1033
      %v1140 = vadd.f32 %v668, %v1038
      %v1141 = vadd.f32 %v671, %v1041
      %v1142 = vadd.f32 %v676, %v1046
      %v1143 = vadd.f32 %v679, %v1049
      %v1144 = vadd.f32 %v684, %v1054
      %v1145 = vadd.f32 %v687, %v1057
      %v1146 = vadd.f32 %v692, %v1062
      %v1147 = vadd.f32 %v695, %v1065
      %v1148 = vadd.f32 %v700, %v1070
      %v1149 = vadd.f32 %v703, %v1073
      %v1150 = vadd.f32 %v708, %v1078
      %v1151 = vadd.f32 %v711, %v1081
      %v1152 = vadd.f32 %v716, %v1086
      %v1153 = vadd.f32 %v719, %v1089
      %v1154 = vadd.f32 %v724, %v1094
      %v1155 = vadd.f32 %v727, %v1097
      %v1156 = vadd.f32 %v732, %v1102
      %v1157 = vadd.f32 %v735, %v1105
      %v1158 = vadd.f32 %v740, %v1110
      %v1159 = vadd.f32 %v743, %v1113
      %v1160 = vadd.f32 %v748, %v1118
      %v1161 = vadd.f32 %v751, %v1121
      %v1162 = vadd.f32 %v756, %v1126
      %v1163 = vadd.f32 %v759, %v1129
      %v1164 = vld [vmem:[%s2] sm:$0x1]
      %v1166 = vlaneseq
      %v1167 = vshrl.u32 %v1166, 7
      %v1168 = vsub.s32 0, %v1167
      %v1169 = vrot.slane %v1164, %v1168
      %v1171 = vadd.f32 %v1132, %v1169
      %v1172 = vadd.f32 %v1133, %v1169
      %v1173 = vadd.f32 %v1134, %v1169
      %v1174 = vadd.f32 %v1135, %v1169
      %v1175 = vadd.f32 %v1136, %v1169
      %v1176 = vadd.f32 %v1137, %v1169
      %v1177 = vadd.f32 %v1138, %v1169
      %v1178 = vadd.f32 %v1139, %v1169
      %v1179 = vadd.f32 %v1140, %v1169
      %v1180 = vadd.f32 %v1141, %v1169
      %v1181 = vadd.f32 %v1142, %v1169
      %v1182 = vadd.f32 %v1143, %v1169
      %v1183 = vadd.f32 %v1144, %v1169
      %v1184 = vadd.f32 %v1145, %v1169
      %v1185 = vadd.f32 %v1146, %v1169
      %v1186 = vadd.f32 %v1147, %v1169
      %v1187 = vadd.f32 %v1148, %v1169
      %v1188 = vadd.f32 %v1149, %v1169
      %v1189 = vadd.f32 %v1150, %v1169
      %v1190 = vadd.f32 %v1151, %v1169
      %v1191 = vadd.f32 %v1152, %v1169
      %v1192 = vadd.f32 %v1153, %v1169
      %v1193 = vadd.f32 %v1154, %v1169
      %v1194 = vadd.f32 %v1155, %v1169
      %v1195 = vadd.f32 %v1156, %v1169
      %v1196 = vadd.f32 %v1157, %v1169
      %v1197 = vadd.f32 %v1158, %v1169
      %v1198 = vadd.f32 %v1159, %v1169
      %v1199 = vadd.f32 %v1160, %v1169
      %v1200 = vadd.f32 %v1161, %v1169
      %v1201 = vadd.f32 %v1162, %v1169
      %v1202 = vadd.f32 %v1163, %v1169
      %vm1203 = vcmask 261120
      %1204 = vst.msk [vmem:[%s170] sm:$0xff] %vm1203, %v1171
      %1205 = vst.msk [vmem:[%s170 + $0x8] sm:$0xff] %vm1203, %v1172
      %1206 = vst.msk [vmem:[%s170 + $0x10] sm:$0xff] %vm1203, %v1173
      %1207 = vst.msk [vmem:[%s170 + $0x18] sm:$0xff] %vm1203, %v1174
      %1208 = vst.msk [vmem:[%s170 + $0x20] sm:$0xff] %vm1203, %v1175
      %1209 = vst.msk [vmem:[%s170 + $0x28] sm:$0xff] %vm1203, %v1176
      %1210 = vst.msk [vmem:[%s170 + $0x30] sm:$0xff] %vm1203, %v1177
      %1211 = vst.msk [vmem:[%s170 + $0x38] sm:$0xff] %vm1203, %v1178
      %1212 = vst.msk [vmem:[%s170 + $0x40] sm:$0xff] %vm1203, %v1179
      %1213 = vst.msk [vmem:[%s170 + $0x48] sm:$0xff] %vm1203, %v1180
      %1214 = vst.msk [vmem:[%s170 + $0x50] sm:$0xff] %vm1203, %v1181
      %1215 = vst.msk [vmem:[%s170 + $0x58] sm:$0xff] %vm1203, %v1182
      %1216 = vst.msk [vmem:[%s170 + $0x60] sm:$0xff] %vm1203, %v1183
      %1217 = vst.msk [vmem:[%s170 + $0x68] sm:$0xff] %vm1203, %v1184
      %1218 = vst.msk [vmem:[%s170 + $0x70] sm:$0xff] %vm1203, %v1185
      %1219 = vst.msk [vmem:[%s170 + $0x78] sm:$0xff] %vm1203, %v1186
      %1220 = vst.msk [vmem:[%s170 + $0x80] sm:$0xff] %vm1203, %v1187
      %1221 = vst.msk [vmem:[%s170 + $0x88] sm:$0xff] %vm1203, %v1188
      %1222 = vst.msk [vmem:[%s170 + $0x90] sm:$0xff] %vm1203, %v1189
      %1223 = vst.msk [vmem:[%s170 + $0x98] sm:$0xff] %vm1203, %v1190
      %1224 = vst.msk [vmem:[%s170 + $0xa0] sm:$0xff] %vm1203, %v1191
      %1225 = vst.msk [vmem:[%s170 + $0xa8] sm:$0xff] %vm1203, %v1192
      %1226 = vst.msk [vmem:[%s170 + $0xb0] sm:$0xff] %vm1203, %v1193
      %1227 = vst.msk [vmem:[%s170 + $0xb8] sm:$0xff] %vm1203, %v1194
      %1228 = vst.msk [vmem:[%s170 + $0xc0] sm:$0xff] %vm1203, %v1195
      %1229 = vst.msk [vmem:[%s170 + $0xc8] sm:$0xff] %vm1203, %v1196
      %1230 = vst.msk [vmem:[%s170 + $0xd0] sm:$0xff] %vm1203, %v1197
      %1231 = vst.msk [vmem:[%s170 + $0xd8] sm:$0xff] %vm1203, %v1198
      %1232 = vst.msk [vmem:[%s170 + $0xe0] sm:$0xff] %vm1203, %v1199
      %1233 = vst.msk [vmem:[%s170 + $0xe8] sm:$0xff] %vm1203, %v1200
      %1234 = vst.msk [vmem:[%s170 + $0xf0] sm:$0xff] %vm1203, %v1201
      %1235 = vst.msk [vmem:[%s170 + $0xf8] sm:$0xff] %vm1203, %v1202
      %p1236 = scmp.lt.s32.totalorder %s14, 5
      %s1237 = scalar_select %p1236, %s14, 5
      %s1238 = smul.addr %s1237, 32
      %s1239 = smul.addr %s1238, 8
      %s1240 = scalar_lea.vmem %s3, %s1239
      // Predicated region
      $region33: #{asi_forward.7} parent=31 // pred_check
        %p1241 = pneg %p100
      $region34: #{asi_forward.7} parent=31 // pred_check_branch
        %1243 = sbr.rel (%p1241) target = $region36
      $region35: #{asi_forward.7} parent=31 // pred_region
        _
      $region36: #{asi_forward.7} parent=31 // pred_fallthru
        _
    $region32: #{asi_forward.7} parent=5 // pred_fallthru
      _
    %p1244 = scmp.le.s32.totalorder 2, %s9
    // Predicated region
    $region37: #{asi_forward.7} parent=5 // pred_check
      %p1245 = pneg %p1244
    $region38: #{asi_forward.7} parent=5 // pred_check_branch
      %1247 = sbr.rel (%p1245) target = $region40
    $region39: #{asi_forward.7} parent=5 // pred_region
      %s1248 = ssub.s32 %s9, 2
      // Predicated region
      $region41: #{asi_forward.7} parent=39 // pred_check
        %p1249 = pneg %p106
      $region42: #{asi_forward.7} parent=39 // pred_check_branch
        %1251 = sbr.rel (%p1249) target = $region44
      $region43: #{asi_forward.7} parent=39 // pred_region
        %p1252 = scmp.lt.s32.totalorder %s15, 5
        %s1253 = scalar_select %p1252, %s15, 5
        %s1254 = smul.addr %s1253, 32
        %s1255 = smul.addr %s1254, 8
        %s1256 = scalar_lea.vmem %s3, %s1255
      $region44: #{asi_forward.7} parent=39 // pred_fallthru
        _
    $region40: #{asi_forward.7} parent=5 // pred_fallthru
      _
  $region6: #{asi_forward.7} parent=0 // loop_footer
    %s13 = sadd.s32 1, %s9
  $region7: #{asi_forward.7} parent=0 // loop_footer_branch
    %8 = sbr.rel target = $region3
  $region8: #{asi_forward.7} parent=0 // loop_exit
    _

// kernel: asi_forward.8
$region0: #{asi_forward.8}
  #allocation0 [shape = 'u32[]', space=smem, size = 0x4, offset = 0x4, fixed_abs, tag = 'smem constant byte address 0x4 - core index']
  #allocation1 [shape = 'u32[144,128]{1,0:T(1,128)}', space=vmem, size = 0x12000, scoped, tag = 'internal scratch']
  %s0 = inlined_call_operand.vmem [shape: bf16[2,288,288], index: 0, kind: input, shape index: {}]
  %s1 = inlined_call_operand.vmem [shape: bf16[3,288,32], index: 1, kind: input, shape index: {}]
  %s2 = inlined_call_operand.vmem [shape: f32[1,32], index: 2, kind: input, shape index: {}]
  %s3 = inlined_call_operand.vmem [shape: f32[2,256,32], index: 3, kind: output, shape index: {}]
  %s4 = sld [smem:[#allocation0]]
  $region45: #{asi_forward.8} parent=0
    _
  %s6 = ssub.s32 1, %s4
  %s7 = scalar_select 0, %s6, %s4
  loop: start=0, step=1, limit=4
  $region2: #{asi_forward.8} parent=0 // loop_pre_header
    _
  $region3: #{asi_forward.8} parent=0 // loop_header
    %s9 = sphi 0, %s13
    %p10 = scmp.ge.s32.totalorder %s9, 4
    %s19 = sphi 0, %s21
    %s22 = sphi 0, %s19
    %s23 = sphi 0, %s22
    %s39 = sphi 0, %s23
    %s43 = sphi 0, %s43
    %s45 = sphi 0, %s43
    %s46 = sphi 0, %s45
    %s60 = sphi 0, %s46
    %s64 = sphi 0, %s64
    %s66 = sphi 0, %s64
    %s67 = sphi 0, %s66
    %s81 = sphi 0, %s67
    %s87 = sphi 0, %s89
    %s90 = sphi 0, %s87
    %s91 = sphi 0, %s90
    %s107 = sphi 0, %s91
  $region4: #{asi_forward.8} parent=0 // loop_header_branch
    %12 = sbr.rel (%p10) target = $region8
  $region5: #{asi_forward.8} parent=0 // loop_body
    %s14 = ssub.s32 %s9, 1
    %s15 = ssub.s32 %s9, 2
    %s16 = sadd.s32 %s9, 1
    %s17 = ssub.s32 %s9, %s16
    %p18 = scmp.eq.s32.totalorder %s17, 0
    %s20 = sadd.s32 %s19, 1
    %s21 = scalar_select %p18, %s19, %s20
    %p24 = pneg %p18
    %p25 = scmp.eq.s32.totalorder %s9, 1
    %p26 = por %p24, %p25
    %p27 = scmp.ne.s32.totalorder %s19, %s22
    %p28 = scmp.eq.s32.totalorder %s9, 0
    %p29 = por %p27, %p28
    %p30 = scmp.ne.s32.totalorder %s19, %s22
    %p31 = scmp.eq.s32.totalorder %s14, 1
    %p32 = por %p30, %p31
    %p33 = scmp.ne.s32.totalorder %s22, %s23
    %p34 = scmp.eq.s32.totalorder %s14, 0
    %p35 = por %p33, %p34
    %p36 = scmp.ne.s32.totalorder %s22, %s23
    %p37 = scmp.eq.s32.totalorder %s15, 1
    %p38 = por %p36, %p37
    %p40 = scmp.ne.s32.totalorder %s23, %s39
    %p41 = scmp.eq.s32.totalorder %s15, 0
    %p42 = por %p40, %p41
    %s44 = sadd.s32 %s43, 1
    %p47 = scmp.eq.s32.totalorder %s9, 1
    %p48 = scmp.ne.s32.totalorder %s43, %s45
    %p49 = scmp.eq.s32.totalorder %s9, 0
    %p50 = por %p48, %p49
    %p51 = scmp.ne.s32.totalorder %s43, %s45
    %p52 = scmp.eq.s32.totalorder %s14, 1
    %p53 = por %p51, %p52
    %p54 = scmp.ne.s32.totalorder %s45, %s46
    %p55 = scmp.eq.s32.totalorder %s14, 0
    %p56 = por %p54, %p55
    %p57 = scmp.ne.s32.totalorder %s45, %s46
    %p58 = scmp.eq.s32.totalorder %s15, 1
    %p59 = por %p57, %p58
    %p61 = scmp.ne.s32.totalorder %s46, %s60
    %p62 = scmp.eq.s32.totalorder %s15, 0
    %p63 = por %p61, %p62
    %s65 = sadd.s32 %s64, 1
    %p68 = scmp.eq.s32.totalorder %s9, 1
    %p69 = scmp.ne.s32.totalorder %s64, %s66
    %p70 = scmp.eq.s32.totalorder %s9, 0
    %p71 = por %p69, %p70
    %p72 = scmp.ne.s32.totalorder %s64, %s66
    %p73 = scmp.eq.s32.totalorder %s14, 1
    %p74 = por %p72, %p73
    %p75 = scmp.ne.s32.totalorder %s66, %s67
    %p76 = scmp.eq.s32.totalorder %s14, 0
    %p77 = por %p75, %p76
    %p78 = scmp.ne.s32.totalorder %s66, %s67
    %p79 = scmp.eq.s32.totalorder %s15, 1
    %p80 = por %p78, %p79
    %p82 = scmp.ne.s32.totalorder %s67, %s81
    %p83 = scmp.eq.s32.totalorder %s15, 0
    %p84 = por %p82, %p83
    %s85 = ssub.s32 %s9, %s16
    %p86 = scmp.eq.s32.totalorder %s85, 0
    %s88 = sadd.s32 %s87, 1
    %s89 = scalar_select %p86, %s87, %s88
    %p92 = pneg %p86
    %p93 = scmp.eq.s32.totalorder %s9, 1
    %p94 = por %p92, %p93
    %p95 = scmp.ne.s32.totalorder %s87, %s90
    %p96 = scmp.eq.s32.totalorder %s9, 0
    %p97 = por %p95, %p96
    %p98 = scmp.ne.s32.totalorder %s87, %s90
    %p99 = scmp.eq.s32.totalorder %s14, 1
    %p100 = por %p98, %p99
    %p101 = scmp.ne.s32.totalorder %s90, %s91
    %p102 = scmp.eq.s32.totalorder %s14, 0
    %p103 = por %p101, %p102
    %p104 = scmp.ne.s32.totalorder %s90, %s91
    %p105 = scmp.eq.s32.totalorder %s15, 1
    %p106 = por %p104, %p105
    %p108 = scmp.ne.s32.totalorder %s91, %s107
    %p109 = scmp.eq.s32.totalorder %s15, 0
    %p110 = por %p108, %p109
    %p111 = scmp.le.s32.totalorder 1, %s9
    %p112 = scmp.lt.s32.totalorder %s9, 3
    %p113 = pnand %p111, %p112
    %p114 = pneg %p113
    // Predicated region
    $region9: #{asi_forward.8} parent=5 // pred_check
      _
    $region10: #{asi_forward.8} parent=5 // pred_check_branch
      %116 = sbr.rel (%p113) target = $region12
    $region11: #{asi_forward.8} parent=5 // pred_region
      %s117 = ssub.s32 %s9, 1
      // Predicated region
      $region13: #{asi_forward.8} parent=11 // pred_check
        %p118 = pneg %p56
      $region14: #{asi_forward.8} parent=11 // pred_check_branch
        %120 = sbr.rel (%p118) target = $region16
      $region15: #{asi_forward.8} parent=11 // pred_region
        _
      $region16: #{asi_forward.8} parent=11 // pred_fallthru
        _
      // Predicated region
      $region17: #{asi_forward.8} parent=11 // pred_check
        %p121 = pneg %p77
      $region18: #{asi_forward.8} parent=11 // pred_check_branch
        %123 = sbr.rel (%p121) target = $region20
      $region19: #{asi_forward.8} parent=11 // pred_region
        _
      $region20: #{asi_forward.8} parent=11 // pred_fallthru
        _
    $region12: #{asi_forward.8} parent=5 // pred_fallthru
      _
    %p124 = scmp.lt.s32.totalorder %s9, 2
    // Predicated region
    $region21: #{asi_forward.8} parent=5 // pred_check
      %p125 = pneg %p124
    $region22: #{asi_forward.8} parent=5 // pred_check_branch
      %127 = sbr.rel (%p125) target = $region24
    $region23: #{asi_forward.8} parent=5 // pred_region
      // Predicated region
      $region25: #{asi_forward.8} parent=23 // pred_check
        %p128 = pneg %p29
      $region26: #{asi_forward.8} parent=23 // pred_check_branch
        %130 = sbr.rel (%p128) target = $region28
      $region27: #{asi_forward.8} parent=23 // pred_region
        %p131 = scmp.lt.s32.totalorder %s9, 1
        %s132 = scalar_select %p131, %s9, 1
        %s133 = smul.addr %s132, 108
        %s134 = smul.addr %s133, 4
        %s135 = scalar_lea.vmem %s0, %s134
      $region28: #{asi_forward.8} parent=23 // pred_fallthru
        _
    $region24: #{asi_forward.8} parent=5 // pred_fallthru
      _
    %p136 = scmp.le.s32.totalorder 1, %s9
    %p137 = scmp.lt.s32.totalorder %s9, 3
    %p138 = pnand %p136, %p137
    %p139 = pneg %p138
    // Predicated region
    $region29: #{asi_forward.8} parent=5 // pred_check
      _
    $region30: #{asi_forward.8} parent=5 // pred_check_branch
      %141 = sbr.rel (%p138) target = $region32
    $region31: #{asi_forward.8} parent=5 // pred_region
      %s142 = ssub.s32 %s9, 1
      %p143 = scmp.lt.s32.totalorder %s14, 1
      %s144 = scalar_select %p143, %s14, 1
      %s145 = smul.addr %s144, 108
      %s146 = smul.addr %s145, 4
      %s147 = scalar_lea.vmem %s0, %s146
      %p148 = pneg %p35
      %p149 = pneg %p32
      %p150 = pneg %p56
      %p151 = pneg %p53
      %p152 = pneg %p77
      %p153 = pneg %p74
      %p154 = pneg %p103
      %p155 = pneg %p100
      %p156 = scmp.lt.s32.totalorder %s14, 1
      %s157 = scalar_select %p156, %s14, 1
      %s158 = smul.addr %s157, 32
      %s159 = smul.addr %s158, 8
      %s160 = scalar_lea.vmem %s3, %s159
      %p161 = scmp.lt.s32.totalorder %s14, 1
      %s162 = scalar_select %p161, %s14, 1
      %s163 = smul.addr %s162, 108
      %s164 = smul.addr %s163, 4
      %s165 = scalar_lea.vmem %s0, %s164
      %p166 = scmp.lt.s32.totalorder %s14, 1
      %s167 = scalar_select %p166, %s14, 1
      %s168 = smul.addr %s167, 32
      %s169 = smul.addr %s168, 8
      %s170 = scalar_lea.vmem %s3, %s169
      %v172 = vld [vmem:[%s165] sm:$0xff]
      %v173 = vld [vmem:[%s165 + $0x8] sm:$0xf]
      %v174 = vld [vmem:[%s165 + $0xc] sm:$0xff]
      %v175 = vld [vmem:[%s165 + $0x14] sm:$0xf]
      %v176 = vld [vmem:[%s165 + $0x18] sm:$0xff]
      %v177 = vld [vmem:[%s165 + $0x20] sm:$0xf]
      %v178 = vld [vmem:[%s165 + $0x24] sm:$0xff]
      %v179 = vld [vmem:[%s165 + $0x2c] sm:$0xf]
      %v180 = vld [vmem:[%s165 + $0x30] sm:$0xff]
      %v181 = vld [vmem:[%s165 + $0x38] sm:$0xf]
      %v182 = vld [vmem:[%s165 + $0x3c] sm:$0xff]
      %v183 = vld [vmem:[%s165 + $0x44] sm:$0xf]
      %v184 = vld [vmem:[%s165 + $0x48] sm:$0xff]
      %v185 = vld [vmem:[%s165 + $0x50] sm:$0xf]
      %v186 = vld [vmem:[%s165 + $0x54] sm:$0xff]
      %v187 = vld [vmem:[%s165 + $0x5c] sm:$0xf]
      %v188 = vld [vmem:[%s165 + $0x60] sm:$0xff]
      %v189 = vld [vmem:[%s165 + $0x68] sm:$0xf]
      %v190 = vld [vmem:[%s165 + $0x6c] sm:$0xff]
      %v191 = vld [vmem:[%s165 + $0x74] sm:$0xf]
      %v192 = vld [vmem:[%s165 + $0x78] sm:$0xff]
      %v193 = vld [vmem:[%s165 + $0x80] sm:$0xf]
      %v194 = vld [vmem:[%s165 + $0x84] sm:$0xff]
      %v195 = vld [vmem:[%s165 + $0x8c] sm:$0xf]
      %v196 = vld [vmem:[%s165 + $0x90] sm:$0xff]
      %v197 = vld [vmem:[%s165 + $0x98] sm:$0xf]
      %v198 = vld [vmem:[%s165 + $0x9c] sm:$0xff]
      %v199 = vld [vmem:[%s165 + $0xa4] sm:$0xf]
      %v200 = vld [vmem:[%s165 + $0xa8] sm:$0xff]
      %v201 = vld [vmem:[%s165 + $0xb0] sm:$0xf]
      %v202 = vld [vmem:[%s165 + $0xb4] sm:$0xff]
      %v203 = vld [vmem:[%s165 + $0xbc] sm:$0xf]
      %v204 = vld [vmem:[%s165 + $0xc0] sm:$0xff]
      %v205 = vld [vmem:[%s165 + $0xc8] sm:$0xf]
      %v206 = vld [vmem:[%s165 + $0xcc] sm:$0xff]
      %v207 = vld [vmem:[%s165 + $0xd4] sm:$0xf]
      %v208 = vld [vmem:[%s165 + $0xd8] sm:$0xff]
      %v209 = vld [vmem:[%s165 + $0xe0] sm:$0xf]
      %v210 = vld [vmem:[%s165 + $0xe4] sm:$0xff]
      %v211 = vld [vmem:[%s165 + $0xec] sm:$0xf]
      %v212 = vld [vmem:[%s165 + $0xf0] sm:$0xff]
      %v213 = vld [vmem:[%s165 + $0xf8] sm:$0xf]
      %v214 = vld [vmem:[%s165 + $0xfc] sm:$0xff]
      %v215 = vld [vmem:[%s165 + $0x104] sm:$0xf]
      %v216 = vld [vmem:[%s165 + $0x108] sm:$0xff]
      %v217 = vld [vmem:[%s165 + $0x110] sm:$0xf]
      %v218 = vld [vmem:[%s165 + $0x114] sm:$0xff]
      %v219 = vld [vmem:[%s165 + $0x11c] sm:$0xf]
      %v220 = vld [vmem:[%s165 + $0x120] sm:$0xff]
      %v221 = vld [vmem:[%s165 + $0x128] sm:$0xf]
      %v222 = vld [vmem:[%s165 + $0x12c] sm:$0xff]
      %v223 = vld [vmem:[%s165 + $0x134] sm:$0xf]
      %v224 = vld [vmem:[%s165 + $0x138] sm:$0xff]
      %v225 = vld [vmem:[%s165 + $0x140] sm:$0xf]
      %v226 = vld [vmem:[%s165 + $0x144] sm:$0xff]
      %v227 = vld [vmem:[%s165 + $0x14c] sm:$0xf]
      %v228 = vld [vmem:[%s165 + $0x150] sm:$0xff]
      %v229 = vld [vmem:[%s165 + $0x158] sm:$0xf]
      %v230 = vld [vmem:[%s165 + $0x15c] sm:$0xff]
      %v231 = vld [vmem:[%s165 + $0x164] sm:$0xf]
      %v232 = vld [vmem:[%s165 + $0x168] sm:$0xff]
      %v233 = vld [vmem:[%s165 + $0x170] sm:$0xf]
      %v234 = vld [vmem:[%s165 + $0x174] sm:$0xff]
      %v235 = vld [vmem:[%s165 + $0x17c] sm:$0xf]
      %v236 = vld [vmem:[%s1] sm:$0xf]
      %v237 = vld [vmem:[%s1 + $0x4] sm:$0xf]
      %v238 = vld [vmem:[%s1 + $0x8] sm:$0xf]
      %v239 = vld [vmem:[%s1 + $0xc] sm:$0xf]
      %v240 = vld [vmem:[%s1 + $0x10] sm:$0xf]
      %v241 = vld [vmem:[%s1 + $0x14] sm:$0xf]
      %v242 = vld [vmem:[%s1 + $0x18] sm:$0xf]
      %v243 = vld [vmem:[%s1 + $0x1c] sm:$0xf]
      %v244 = vld [vmem:[%s1 + $0x20] sm:$0xf]
      %v245 = vld [vmem:[%s1 + $0x24] sm:$0xf]
      %v246 = vld [vmem:[%s1 + $0x28] sm:$0xf]
      %v247 = vld [vmem:[%s1 + $0x2c] sm:$0xf]
      %v248 = vld [vmem:[%s1 + $0x30] sm:$0xf]
      %v249 = vld [vmem:[%s1 + $0x34] sm:$0xf]
      %v250 = vld [vmem:[%s1 + $0x38] sm:$0xf]
      %v251 = vld [vmem:[%s1 + $0x3c] sm:$0xf]
      %v252 = vld [vmem:[%s1 + $0x40] sm:$0xf]
      %v253 = vld [vmem:[%s1 + $0x44] sm:$0xf]
      %v254 = vld [vmem:[%s1 + $0x48] sm:$0xf]
      %v255 = vld [vmem:[%s1 + $0x4c] sm:$0xf]
      %v256 = vld [vmem:[%s1 + $0x50] sm:$0xf]
      %v257 = vld [vmem:[%s1 + $0x54] sm:$0xf]
      %v258 = vld [vmem:[%s1 + $0x58] sm:$0xf]
      %v259 = vld [vmem:[%s1 + $0x5c] sm:$0xf]
      %v260 = vld [vmem:[%s1 + $0x60] sm:$0xf]
      %v261 = vld [vmem:[%s1 + $0x64] sm:$0xf]
      %v262 = vld [vmem:[%s1 + $0x68] sm:$0xf]
      %v263 = vld [vmem:[%s1 + $0x6c] sm:$0xf]
      %v264 = vld [vmem:[%s1 + $0x70] sm:$0xf]
      %v265 = vld [vmem:[%s1 + $0x74] sm:$0xf]
      %v266 = vld [vmem:[%s1 + $0x78] sm:$0xf]
      %v267 = vld [vmem:[%s1 + $0x7c] sm:$0xf]
      %v268 = vld [vmem:[%s1 + $0x80] sm:$0xf]
      %v269 = vld [vmem:[%s1 + $0x84] sm:$0xf]
      %v270 = vld [vmem:[%s1 + $0x88] sm:$0xf]
      %v271 = vld [vmem:[%s1 + $0x8c] sm:$0xf]
      %v272 = vld [vmem:[%s165 + $0x180] sm:$0xff]
      %v273 = vld [vmem:[%s165 + $0x188] sm:$0xf]
      %v274 = vld [vmem:[%s165 + $0x18c] sm:$0xff]
      %v275 = vld [vmem:[%s165 + $0x194] sm:$0xf]
      %s276 = scalar_lea.vmem %s1, 144
      %v277 = vld [vmem:[%s276] sm:$0xf]
      %v278 = vld [vmem:[%s276 + $0x4] sm:$0xf]
      %v279 = vld [vmem:[%s276 + $0x8] sm:$0xf]
      %v280 = vld [vmem:[%s276 + $0xc] sm:$0xf]
      %v281 = vld [vmem:[%s276 + $0x10] sm:$0xf]
      %v282 = vld [vmem:[%s276 + $0x14] sm:$0xf]
      %v283 = vld [vmem:[%s276 + $0x18] sm:$0xf]
      %v284 = vld [vmem:[%s276 + $0x1c] sm:$0xf]
      %v285 = vld [vmem:[%s276 + $0x20] sm:$0xf]
      %v286 = vld [vmem:[%s276 + $0x24] sm:$0xf]
      %v287 = vld [vmem:[%s276 + $0x28] sm:$0xf]
      %v288 = vld [vmem:[%s276 + $0x2c] sm:$0xf]
      %v289 = vld [vmem:[%s276 + $0x30] sm:$0xf]
      %v290 = vld [vmem:[%s276 + $0x34] sm:$0xf]
      %v291 = vld [vmem:[%s276 + $0x38] sm:$0xf]
      %v292 = vld [vmem:[%s276 + $0x3c] sm:$0xf]
      %v293 = vld [vmem:[%s276 + $0x40] sm:$0xf]
      %v294 = vld [vmem:[%s276 + $0x44] sm:$0xf]
      %v295 = vld [vmem:[%s276 + $0x48] sm:$0xf]
      %v296 = vld [vmem:[%s276 + $0x4c] sm:$0xf]
      %v297 = vld [vmem:[%s276 + $0x50] sm:$0xf]
      %v298 = vld [vmem:[%s276 + $0x54] sm:$0xf]
      %v299 = vld [vmem:[%s276 + $0x58] sm:$0xf]
      %v300 = vld [vmem:[%s276 + $0x5c] sm:$0xf]
      %v301 = vld [vmem:[%s276 + $0x60] sm:$0xf]
      %v302 = vld [vmem:[%s276 + $0x64] sm:$0xf]
      %v303 = vld [vmem:[%s276 + $0x68] sm:$0xf]
      %v304 = vld [vmem:[%s276 + $0x6c] sm:$0xf]
      %v305 = vld [vmem:[%s276 + $0x70] sm:$0xf]
      %v306 = vld [vmem:[%s276 + $0x74] sm:$0xf]
      %v307 = vld [vmem:[%s276 + $0x78] sm:$0xf]
      %v308 = vld [vmem:[%s276 + $0x7c] sm:$0xf]
      %v309 = vld [vmem:[%s276 + $0x80] sm:$0xf]
      %v310 = vld [vmem:[%s276 + $0x84] sm:$0xf]
      %v311 = vld [vmem:[%s276 + $0x88] sm:$0xf]
      %v312 = vld [vmem:[%s276 + $0x8c] sm:$0xf]
      %v377 = vunpack.c.l.b16 %v176
      %v378 = vunpack.c.h.b16 %v176
      %v379 = vunpack.c.l.b16 %v177
      %v380 = vunpack.c.l.b16 %v178
      %v381 = vunpack.c.h.b16 %v178
      %v382 = vunpack.c.l.b16 %v179
      %v383 = vunpack.c.l.b16 %v180
      %v384 = vunpack.c.h.b16 %v180
      %v385 = vunpack.c.l.b16 %v181
      %v386 = vunpack.c.l.b16 %v182
      %v387 = vunpack.c.h.b16 %v182
      %v388 = vunpack.c.l.b16 %v183
      %v389 = vunpack.c.l.b16 %v184
      %v390 = vunpack.c.h.b16 %v184
      %v391 = vunpack.c.l.b16 %v185
      %v392 = vunpack.c.l.b16 %v186
      %v393 = vunpack.c.h.b16 %v186
      %v394 = vunpack.c.l.b16 %v187
      %v395 = vunpack.c.l.b16 %v188
      %v396 = vunpack.c.h.b16 %v188
      %v397 = vunpack.c.l.b16 %v189
      %v398 = vunpack.c.l.b16 %v190
      %v399 = vunpack.c.h.b16 %v190
      %v400 = vunpack.c.l.b16 %v191
      %v401 = vunpack.c.l.b16 %v192
      %v402 = vunpack.c.h.b16 %v192
      %v403 = vunpack.c.l.b16 %v193
      %v404 = vunpack.c.l.b16 %v194
      %v405 = vunpack.c.h.b16 %v194
      %v406 = vunpack.c.l.b16 %v195
      %v407 = vunpack.c.l.b16 %v196
      %v408 = vunpack.c.h.b16 %v196
      %v409 = vunpack.c.l.b16 %v197
      %v410 = vunpack.c.l.b16 %v198
      %v411 = vunpack.c.h.b16 %v198
      %v412 = vunpack.c.l.b16 %v199
      %v413 = vunpack.c.l.b16 %v200
      %v414 = vunpack.c.h.b16 %v200
      %v415 = vunpack.c.l.b16 %v201
      %v416 = vunpack.c.l.b16 %v202
      %v417 = vunpack.c.h.b16 %v202
      %v418 = vunpack.c.l.b16 %v203
      %v419 = vunpack.c.l.b16 %v204
      %v420 = vunpack.c.h.b16 %v204
      %v421 = vunpack.c.l.b16 %v205
      %v422 = vunpack.c.l.b16 %v206
      %v423 = vunpack.c.h.b16 %v206
      %v424 = vunpack.c.l.b16 %v207
      %v425 = vunpack.c.l.b16 %v208
      %v426 = vunpack.c.h.b16 %v208
      %v427 = vunpack.c.l.b16 %v209
      %v428 = vunpack.c.l.b16 %v210
      %v429 = vunpack.c.h.b16 %v210
      %v430 = vunpack.c.l.b16 %v211
      %v431 = vunpack.c.l.b16 %v212
      %v432 = vunpack.c.h.b16 %v212
      %v433 = vunpack.c.l.b16 %v213
      %v434 = vunpack.c.l.b16 %v214
      %v435 = vunpack.c.h.b16 %v214
      %v436 = vunpack.c.l.b16 %v215
      %v437 = vunpack.c.l.b16 %v216
      %v438 = vunpack.c.h.b16 %v216
      %v439 = vunpack.c.l.b16 %v217
      %v440 = vunpack.c.l.b16 %v218
      %v441 = vunpack.c.h.b16 %v218
      %v442 = vunpack.c.l.b16 %v219
      %v443 = vunpack.c.l.b16 %v220
      %v444 = vunpack.c.h.b16 %v220
      %v445 = vunpack.c.l.b16 %v221
      %v446 = vunpack.c.l.b16 %v222
      %v447 = vunpack.c.h.b16 %v222
      %v448 = vunpack.c.l.b16 %v223
      %v449 = vunpack.c.l.b16 %v224
      %v450 = vunpack.c.h.b16 %v224
      %v451 = vunpack.c.l.b16 %v225
      %v452 = vunpack.c.l.b16 %v226
      %v453 = vunpack.c.h.b16 %v226
      %v454 = vunpack.c.l.b16 %v227
      %v455 = vunpack.c.l.b16 %v228
      %v456 = vunpack.c.h.b16 %v228
      %v457 = vunpack.c.l.b16 %v229
      %v458 = vunpack.c.l.b16 %v230
      %v459 = vunpack.c.h.b16 %v230
      %v460 = vunpack.c.l.b16 %v231
      %v461 = vunpack.c.l.b16 %v232
      %v462 = vunpack.c.h.b16 %v232
      %v463 = vunpack.c.l.b16 %v233
      %v464 = vunpack.c.l.b16 %v234
      %v465 = vunpack.c.h.b16 %v234
      %v466 = vunpack.c.l.b16 %v235
      %v467 = vunpack.c.l.b16 %v272
      %v468 = vunpack.c.h.b16 %v272
      %v469 = vunpack.c.l.b16 %v273
      %v470 = vunpack.c.l.b16 %v274
      %v471 = vunpack.c.h.b16 %v274
      %v472 = vunpack.c.l.b16 %v275
      %v473 = vpack.c.b16 %v380, %v377
      %v474 = vpack.c.b16 %v381, %v378
      %v475 = vpack.c.b16 %v382, %v379
      %v476 = vpack.c.b16 %v386, %v383
      %v477 = vpack.c.b16 %v387, %v384
      %v478 = vpack.c.b16 %v388, %v385
      %v479 = vpack.c.b16 %v392, %v389
      %v480 = vpack.c.b16 %v393, %v390
      %v481 = vpack.c.b16 %v394, %v391
      %v482 = vpack.c.b16 %v398, %v395
      %v483 = vpack.c.b16 %v399, %v396
      %v484 = vpack.c.b16 %v400, %v397
      %v485 = vpack.c.b16 %v404, %v401
      %v486 = vpack.c.b16 %v405, %v402
      %v487 = vpack.c.b16 %v406, %v403
      %v488 = vpack.c.b16 %v410, %v407
      %v489 = vpack.c.b16 %v411, %v408
      %v490 = vpack.c.b16 %v412, %v409
      %v491 = vpack.c.b16 %v416, %v413
      %v492 = vpack.c.b16 %v417, %v414
      %v493 = vpack.c.b16 %v418, %v415
      %v494 = vpack.c.b16 %v422, %v419
      %v495 = vpack.c.b16 %v423, %v420
      %v496 = vpack.c.b16 %v424, %v421
      %v497 = vpack.c.b16 %v428, %v425
      %v498 = vpack.c.b16 %v429, %v426
      %v499 = vpack.c.b16 %v430, %v427
      %v500 = vpack.c.b16 %v434, %v431
      %v501 = vpack.c.b16 %v435, %v432
      %v502 = vpack.c.b16 %v436, %v433
      %v503 = vpack.c.b16 %v440, %v437
      %v504 = vpack.c.b16 %v441, %v438
      %v505 = vpack.c.b16 %v442, %v439
      %v506 = vpack.c.b16 %v446, %v443
      %v507 = vpack.c.b16 %v447, %v444
      %v508 = vpack.c.b16 %v448, %v445
      %v509 = vpack.c.b16 %v452, %v449
      %v510 = vpack.c.b16 %v453, %v450
      %v511 = vpack.c.b16 %v454, %v451
      %v512 = vpack.c.b16 %v458, %v455
      %v513 = vpack.c.b16 %v459, %v456
      %v514 = vpack.c.b16 %v460, %v457
      %v515 = vpack.c.b16 %v464, %v461
      %v516 = vpack.c.b16 %v465, %v462
      %v517 = vpack.c.b16 %v466, %v463
      %v518 = vpack.c.b16 %v470, %v467
      %v519 = vpack.c.b16 %v471, %v468
      %v520 = vpack.c.b16 %v472, %v469
      %v589 = vunpack.c.l.b16 %v277
      %v590 = vunpack.c.l.b16 %v278
      %v591 = vunpack.c.l.b16 %v279
      %v592 = vunpack.c.l.b16 %v280
      %v593 = vunpack.c.l.b16 %v281
      %v594 = vunpack.c.l.b16 %v282
      %v595 = vunpack.c.l.b16 %v283
      %v596 = vunpack.c.l.b16 %v284
      %v597 = vunpack.c.l.b16 %v285
      %v598 = vunpack.c.l.b16 %v286
      %v599 = vunpack.c.l.b16 %v287
      %v600 = vunpack.c.l.b16 %v288
      %v601 = vunpack.c.l.b16 %v289
      %v602 = vunpack.c.l.b16 %v290
      %v603 = vunpack.c.l.b16 %v291
      %v604 = vunpack.c.l.b16 %v292
      %v605 = vunpack.c.l.b16 %v293
      %v606 = vunpack.c.l.b16 %v294
      %v607 = vunpack.c.l.b16 %v295
      %v608 = vunpack.c.l.b16 %v296
      %v609 = vunpack.c.l.b16 %v297
      %v610 = vunpack.c.l.b16 %v298
      %v611 = vunpack.c.l.b16 %v299
      %v612 = vunpack.c.l.b16 %v300
      %v613 = vunpack.c.l.b16 %v301
      %v614 = vunpack.c.l.b16 %v302
      %v615 = vunpack.c.l.b16 %v303
      %v616 = vunpack.c.l.b16 %v304
      %v617 = vunpack.c.l.b16 %v305
      %v618 = vunpack.c.l.b16 %v306
      %v619 = vunpack.c.l.b16 %v307
      %v620 = vunpack.c.l.b16 %v308
      %v621 = vunpack.c.l.b16 %v309
      %v622 = vunpack.c.l.b16 %v310
      %v623 = vunpack.c.l.b16 %v311
      %v624 = vunpack.c.l.b16 %v312
      %v625 = vpack.c.b16 %v590, %v589
      %v626 = vpack.c.b16 %v592, %v591
      %v627 = vpack.c.b16 %v594, %v593
      %v628 = vpack.c.b16 %v596, %v595
      %v629 = vpack.c.b16 %v598, %v597
      %v630 = vpack.c.b16 %v600, %v599
      %v631 = vpack.c.b16 %v602, %v601
      %v632 = vpack.c.b16 %v604, %v603
      %v633 = vpack.c.b16 %v606, %v605
      %v634 = vpack.c.b16 %v608, %v607
      %v635 = vpack.c.b16 %v610, %v609
      %v636 = vpack.c.b16 %v612, %v611
      %v637 = vpack.c.b16 %v614, %v613
      %v638 = vpack.c.b16 %v616, %v615
      %v639 = vpack.c.b16 %v618, %v617
      %v640 = vpack.c.b16 %v620, %v619
      %v641 = vpack.c.b16 %v622, %v621
      %v642 = vpack.c.b16 %v624, %v623
      %vm661 = vcmask 261120
      %v663 = vsel %vm661, %v475, 0
      %v666 = vsel %vm661, %v478, 0
      %v669 = vsel %vm661, %v481, 0
      %v672 = vsel %vm661, %v484, 0
      %v675 = vsel %vm661, %v487, 0
      %v678 = vsel %vm661, %v490, 0
      %v681 = vsel %vm661, %v493, 0
      %v684 = vsel %vm661, %v496, 0
      %v687 = vsel %vm661, %v499, 0
      %v690 = vsel %vm661, %v502, 0
      %v693 = vsel %vm661, %v505, 0
      %v696 = vsel %vm661, %v508, 0
      %v699 = vsel %vm661, %v511, 0
      %v702 = vsel %vm661, %v514, 0
      %v705 = vsel %vm661, %v517, 0
      %v708 = vsel %vm661, %v520, 0
      %710 = vmatprep.subr.bf16.mxu0 0
      %711 = vmatpush1.bf16.msra.mxu0 %v625
      %712 = vmatprep.subr.bf16.mxu0 0
      %713 = vmatpush1.bf16.msra.mxu0 %v626
      %714 = vmatprep.subr.bf16.mxu0 0
      %715 = vmatpush1.bf16.msra.mxu0 %v627
      %716 = vmatprep.subr.bf16.mxu0 0
      %717 = vmatpush1.bf16.msra.mxu0 %v628
      %718 = vmatprep.subr.bf16.mxu0 0
      %719 = vmatpush1.bf16.msra.mxu0 %v629
      %720 = vmatprep.subr.bf16.mxu0 0
      %721 = vmatpush1.bf16.msra.mxu0 %v630
      %722 = vmatprep.subr.bf16.mxu0 0
      %723 = vmatpush1.bf16.msra.mxu0 %v631
      %724 = vmatprep.subr.bf16.mxu0 0
      %725 = vmatpush1.bf16.msra.mxu0 %v632
      %726 = vmatprep.subr.bf16.mxu0 0
      %727 = vmatpush1.bf16.msra.mxu0 %v633
      %728 = vmatprep.subr.bf16.mxu0 0
      %729 = vmatpush1.bf16.msra.mxu0 %v634
      %730 = vmatprep.subr.bf16.mxu0 0
      %731 = vmatpush1.bf16.msra.mxu0 %v635
      %732 = vmatprep.subr.bf16.mxu0 0
      %733 = vmatpush1.bf16.msra.mxu0 %v636
      %734 = vmatprep.subr.bf16.mxu0 0
      %735 = vmatpush1.bf16.msra.mxu0 %v637
      %736 = vmatprep.subr.bf16.mxu0 0
      %737 = vmatpush1.bf16.msra.mxu0 %v638
      %738 = vmatprep.subr.bf16.mxu0 0
      %739 = vmatpush1.bf16.msra.mxu0 %v639
      %740 = vmatprep.subr.bf16.mxu0 0
      %741 = vmatpush1.bf16.msra.mxu0 %v640
      %742 = vmatprep.mubr.bf16.mxu0 %v474
      %743 = vmatmul.mubr.bf16.gmra.mrb[0].mxu0 %v473
      %v744 = vpop.f32.mrb[0].mxu0
      %v745 = vadd.f32 0.0, %v744
      %v746 = vpop.f32.mrb[0].mxu0
      %v747 = vpop.f32.mrb[0].mxu0
      %v748 = vadd.f32 0.0, %v747
      %v749 = vpop.f32.mrb[0].mxu0
      %750 = vmatprep.mubr.bf16.mxu0 %v477
      %751 = vmatmul.mubr.bf16.gmra.mrb[0].mxu0 %v476
      %v752 = vpop.f32.mrb[0].mxu0
      %v753 = vadd.f32 0.0, %v752
      %v754 = vpop.f32.mrb[0].mxu0
      %v755 = vpop.f32.mrb[0].mxu0
      %v756 = vadd.f32 0.0, %v755
      %v757 = vpop.f32.mrb[0].mxu0
      %758 = vmatprep.mubr.bf16.mxu0 %v480
      %759 = vmatmul.mubr.bf16.gmra.mrb[0].mxu0 %v479
      %v760 = vpop.f32.mrb[0].mxu0
      %v761 = vadd.f32 0.0, %v760
      %v762 = vpop.f32.mrb[0].mxu0
      %v763 = vpop.f32.mrb[0].mxu0
      %v764 = vadd.f32 0.0, %v763
      %v765 = vpop.f32.mrb[0].mxu0
      %766 = vmatprep.mubr.bf16.mxu0 %v483
      %767 = vmatmul.mubr.bf16.gmra.mrb[0].mxu0 %v482
      %v768 = vpop.f32.mrb[0].mxu0
      %v769 = vadd.f32 0.0, %v768
      %v770 = vpop.f32.mrb[0].mxu0
      %v771 = vpop.f32.mrb[0].mxu0
      %v772 = vadd.f32 0.0, %v771
      %v773 = vpop.f32.mrb[0].mxu0
      %774 = vmatprep.mubr.bf16.mxu0 %v486
      %775 = vmatmul.mubr.bf16.gmra.mrb[0].mxu0 %v485
      %v776 = vpop.f32.mrb[0].mxu0
      %v777 = vadd.f32 0.0, %v776
      %v778 = vpop.f32.mrb[0].mxu0
      %v779 = vpop.f32.mrb[0].mxu0
      %v780 = vadd.f32 0.0, %v779
      %v781 = vpop.f32.mrb[0].mxu0
      %782 = vmatprep.mubr.bf16.mxu0 %v489
      %783 = vmatmul.mubr.bf16.gmra.mrb[0].mxu0 %v488
      %v784 = vpop.f32.mrb[0].mxu0
      %v785 = vadd.f32 0.0, %v784
      %v786 = vpop.f32.mrb[0].mxu0
      %v787 = vpop.f32.mrb[0].mxu0
      %v788 = vadd.f32 0.0, %v787
      %v789 = vpop.f32.mrb[0].mxu0
      %790 = vmatprep.mubr.bf16.mxu0 %v492
      %791 = vmatmul.mubr.bf16.gmra.mrb[0].mxu0 %v491
      %v792 = vpop.f32.mrb[0].mxu0
      %v793 = vadd.f32 0.0, %v792
      %v794 = vpop.f32.mrb[0].mxu0
      %v795 = vpop.f32.mrb[0].mxu0
      %v796 = vadd.f32 0.0, %v795
      %v797 = vpop.f32.mrb[0].mxu0
      %798 = vmatprep.mubr.bf16.mxu0 %v495
      %799 = vmatmul.mubr.bf16.gmra.mrb[0].mxu0 %v494
      %v800 = vpop.f32.mrb[0].mxu0
      %v801 = vadd.f32 0.0, %v800
      %v802 = vpop.f32.mrb[0].mxu0
      %v803 = vpop.f32.mrb[0].mxu0
      %v804 = vadd.f32 0.0, %v803
      %v805 = vpop.f32.mrb[0].mxu0
      %806 = vmatprep.mubr.bf16.mxu0 %v498
      %807 = vmatmul.mubr.bf16.gmra.mrb[0].mxu0 %v497
      %v808 = vpop.f32.mrb[0].mxu0
      %v809 = vadd.f32 0.0, %v808
      %v810 = vpop.f32.mrb[0].mxu0
      %v811 = vpop.f32.mrb[0].mxu0
      %v812 = vadd.f32 0.0, %v811
      %v813 = vpop.f32.mrb[0].mxu0
      %814 = vmatprep.mubr.bf16.mxu0 %v501
      %815 = vmatmul.mubr.bf16.gmra.mrb[0].mxu0 %v500
      %v816 = vpop.f32.mrb[0].mxu0
      %v817 = vadd.f32 0.0, %v816
      %v818 = vpop.f32.mrb[0].mxu0
      %v819 = vpop.f32.mrb[0].mxu0
      %v820 = vadd.f32 0.0, %v819
      %v821 = vpop.f32.mrb[0].mxu0
      %822 = vmatprep.mubr.bf16.mxu0 %v504
      %823 = vmatmul.mubr.bf16.gmra.mrb[0].mxu0 %v503
      %v824 = vpop.f32.mrb[0].mxu0
      %v825 = vadd.f32 0.0, %v824
      %v826 = vpop.f32.mrb[0].mxu0
      %v827 = vpop.f32.mrb[0].mxu0
      %v828 = vadd.f32 0.0, %v827
      %v829 = vpop.f32.mrb[0].mxu0
      %830 = vmatprep.mubr.bf16.mxu0 %v507
      %831 = vmatmul.mubr.bf16.gmra.mrb[0].mxu0 %v506
      %v832 = vpop.f32.mrb[0].mxu0
      %v833 = vadd.f32 0.0, %v832
      %v834 = vpop.f32.mrb[0].mxu0
      %v835 = vpop.f32.mrb[0].mxu0
      %v836 = vadd.f32 0.0, %v835
      %v837 = vpop.f32.mrb[0].mxu0
      %838 = vmatprep.mubr.bf16.mxu0 %v510
      %839 = vmatmul.mubr.bf16.gmra.mrb[0].mxu0 %v509
      %v840 = vpop.f32.mrb[0].mxu0
      %v841 = vadd.f32 0.0, %v840
      %v842 = vpop.f32.mrb[0].mxu0
      %v843 = vpop.f32.mrb[0].mxu0
      %v844 = vadd.f32 0.0, %v843
      %v845 = vpop.f32.mrb[0].mxu0
      %846 = vmatprep.mubr.bf16.mxu0 %v513
      %847 = vmatmul.mubr.bf16.gmra.mrb[0].mxu0 %v512
      %v848 = vpop.f32.mrb[0].mxu0
      %v849 = vadd.f32 0.0, %v848
      %v850 = vpop.f32.mrb[0].mxu0
      %v851 = vpop.f32.mrb[0].mxu0
      %v852 = vadd.f32 0.0, %v851
      %v853 = vpop.f32.mrb[0].mxu0
      %854 = vmatprep.mubr.bf16.mxu0 %v516
      %855 = vmatmul.mubr.bf16.gmra.mrb[0].mxu0 %v515
      %v856 = vpop.f32.mrb[0].mxu0
      %v857 = vadd.f32 0.0, %v856
      %v858 = vpop.f32.mrb[0].mxu0
      %v859 = vpop.f32.mrb[0].mxu0
      %v860 = vadd.f32 0.0, %v859
      %v861 = vpop.f32.mrb[0].mxu0
      %862 = vmatprep.mubr.bf16.mxu0 %v519
      %863 = vmatmul.mubr.bf16.gmra.mrb[0].mxu0 %v518
      %v864 = vpop.f32.mrb[0].mxu0
      %v865 = vadd.f32 0.0, %v864
      %v866 = vpop.f32.mrb[0].mxu0
      %v867 = vpop.f32.mrb[0].mxu0
      %v868 = vadd.f32 0.0, %v867
      %v869 = vpop.f32.mrb[0].mxu0
      %870 = vdwg.mxu0
      %871 = vmatprep.subr.bf16.mxu0 0
      %872 = vmatpush1.bf16.msra.mxu0 %v641
      %873 = vmatprep.subr.bf16.mxu0 0
      %874 = vmatpush1.bf16.msra.mxu0 %v642
      %875 = vmatprep.subr.bf16.mxu0 0
      %876 = vmatpush1.bf16.msra.mxu0 0
      %877 = vmatprep.subr.bf16.mxu0 0
      %878 = vmatpush1.bf16.msra.mxu0 0
      %879 = vmatprep.subr.bf16.mxu0 0
      %880 = vmatpush1.bf16.msra.mxu0 0
      %881 = vmatprep.subr.bf16.mxu0 0
      %882 = vmatpush1.bf16.msra.mxu0 0
      %883 = vmatprep.subr.bf16.mxu0 0
      %884 = vmatpush1.bf16.msra.mxu0 0
      %885 = vmatprep.subr.bf16.mxu0 0
      %886 = vmatpush1.bf16.msra.mxu0 0
      %887 = vmatprep.subr.bf16.mxu0 0
      %888 = vmatpush1.bf16.msra.mxu0 0
      %889 = vmatprep.subr.bf16.mxu0 0
      %890 = vmatpush1.bf16.msra.mxu0 0
      %891 = vmatprep.subr.bf16.mxu0 0
      %892 = vmatpush1.bf16.msra.mxu0 0
      %893 = vmatprep.subr.bf16.mxu0 0
      %894 = vmatpush1.bf16.msra.mxu0 0
      %895 = vmatprep.subr.bf16.mxu0 0
      %896 = vmatpush1.bf16.msra.mxu0 0
      %897 = vmatprep.subr.bf16.mxu0 0
      %898 = vmatpush1.bf16.msra.mxu0 0
      %899 = vmatprep.subr.bf16.mxu0 0
      %900 = vmatpush1.bf16.msra.mxu0 0
      %901 = vmatprep.subr.bf16.mxu0 0
      %902 = vmatpush1.bf16.msra.mxu0 0
      %903 = vmatprep.mubr.bf16.mxu0 0
      %904 = vmatmul.mubr.bf16.gmra.mrb[0].mxu0 %v663
      %v905 = vpop.f32.mrb[0].mxu0
      %v906 = vadd.f32 %v745, %v905
      %v907 = vpop.f32.mrb[0].mxu0
      %v908 = vpop.f32.mrb[0].mxu0
      %v909 = vadd.f32 %v748, %v908
      %v910 = vpop.f32.mrb[0].mxu0
      %911 = vmatprep.mubr.bf16.mxu0 0
      %912 = vmatmul.mubr.bf16.gmra.mrb[0].mxu0 %v666
      %v913 = vpop.f32.mrb[0].mxu0
      %v914 = vadd.f32 %v753, %v913
      %v915 = vpop.f32.mrb[0].mxu0
      %v916 = vpop.f32.mrb[0].mxu0
      %v917 = vadd.f32 %v756, %v916
      %v918 = vpop.f32.mrb[0].mxu0
      %919 = vmatprep.mubr.bf16.mxu0 0
      %920 = vmatmul.mubr.bf16.gmra.mrb[0].mxu0 %v669
      %v921 = vpop.f32.mrb[0].mxu0
      %v922 = vadd.f32 %v761, %v921
      %v923 = vpop.f32.mrb[0].mxu0
      %v924 = vpop.f32.mrb[0].mxu0
      %v925 = vadd.f32 %v764, %v924
      %v926 = vpop.f32.mrb[0].mxu0
      %927 = vmatprep.mubr.bf16.mxu0 0
      %928 = vmatmul.mubr.bf16.gmra.mrb[0].mxu0 %v672
      %v929 = vpop.f32.mrb[0].mxu0
      %v930 = vadd.f32 %v769, %v929
      %v931 = vpop.f32.mrb[0].mxu0
      %v932 = vpop.f32.mrb[0].mxu0
      %v933 = vadd.f32 %v772, %v932
      %v934 = vpop.f32.mrb[0].mxu0
      %935 = vmatprep.mubr.bf16.mxu0 0
      %936 = vmatmul.mubr.bf16.gmra.mrb[0].mxu0 %v675
      %v937 = vpop.f32.mrb[0].mxu0
      %v938 = vadd.f32 %v777, %v937
      %v939 = vpop.f32.mrb[0].mxu0
      %v940 = vpop.f32.mrb[0].mxu0
      %v941 = vadd.f32 %v780, %v940
      %v942 = vpop.f32.mrb[0].mxu0
      %943 = vmatprep.mubr.bf16.mxu0 0
      %944 = vmatmul.mubr.bf16.gmra.mrb[0].mxu0 %v678
      %v945 = vpop.f32.mrb[0].mxu0
      %v946 = vadd.f32 %v785, %v945
      %v947 = vpop.f32.mrb[0].mxu0
      %v948 = vpop.f32.mrb[0].mxu0
      %v949 = vadd.f32 %v788, %v948
      %v950 = vpop.f32.mrb[0].mxu0
      %951 = vmatprep.mubr.bf16.mxu0 0
      %952 = vmatmul.mubr.bf16.gmra.mrb[0].mxu0 %v681
      %v953 = vpop.f32.mrb[0].mxu0
      %v954 = vadd.f32 %v793, %v953
      %v955 = vpop.f32.mrb[0].mxu0
      %v956 = vpop.f32.mrb[0].mxu0
      %v957 = vadd.f32 %v796, %v956
      %v958 = vpop.f32.mrb[0].mxu0
      %959 = vmatprep.mubr.bf16.mxu0 0
      %960 = vmatmul.mubr.bf16.gmra.mrb[0].mxu0 %v684
      %v961 = vpop.f32.mrb[0].mxu0
      %v962 = vadd.f32 %v801, %v961
      %v963 = vpop.f32.mrb[0].mxu0
      %v964 = vpop.f32.mrb[0].mxu0
      %v965 = vadd.f32 %v804, %v964
      %v966 = vpop.f32.mrb[0].mxu0
      %967 = vmatprep.mubr.bf16.mxu0 0
      %968 = vmatmul.mubr.bf16.gmra.mrb[0].mxu0 %v687
      %v969 = vpop.f32.mrb[0].mxu0
      %v970 = vadd.f32 %v809, %v969
      %v971 = vpop.f32.mrb[0].mxu0
      %v972 = vpop.f32.mrb[0].mxu0
      %v973 = vadd.f32 %v812, %v972
      %v974 = vpop.f32.mrb[0].mxu0
      %975 = vmatprep.mubr.bf16.mxu0 0
      %976 = vmatmul.mubr.bf16.gmra.mrb[0].mxu0 %v690
      %v977 = vpop.f32.mrb[0].mxu0
      %v978 = vadd.f32 %v817, %v977
      %v979 = vpop.f32.mrb[0].mxu0
      %v980 = vpop.f32.mrb[0].mxu0
      %v981 = vadd.f32 %v820, %v980
      %v982 = vpop.f32.mrb[0].mxu0
      %983 = vmatprep.mubr.bf16.mxu0 0
      %984 = vmatmul.mubr.bf16.gmra.mrb[0].mxu0 %v693
      %v985 = vpop.f32.mrb[0].mxu0
      %v986 = vadd.f32 %v825, %v985
      %v987 = vpop.f32.mrb[0].mxu0
      %v988 = vpop.f32.mrb[0].mxu0
      %v989 = vadd.f32 %v828, %v988
      %v990 = vpop.f32.mrb[0].mxu0
      %991 = vmatprep.mubr.bf16.mxu0 0
      %992 = vmatmul.mubr.bf16.gmra.mrb[0].mxu0 %v696
      %v993 = vpop.f32.mrb[0].mxu0
      %v994 = vadd.f32 %v833, %v993
      %v995 = vpop.f32.mrb[0].mxu0
      %v996 = vpop.f32.mrb[0].mxu0
      %v997 = vadd.f32 %v836, %v996
      %v998 = vpop.f32.mrb[0].mxu0
      %999 = vmatprep.mubr.bf16.mxu0 0
      %1000 = vmatmul.mubr.bf16.gmra.mrb[0].mxu0 %v699
      %v1001 = vpop.f32.mrb[0].mxu0
      %v1002 = vadd.f32 %v841, %v1001
      %v1003 = vpop.f32.mrb[0].mxu0
      %v1004 = vpop.f32.mrb[0].mxu0
      %v1005 = vadd.f32 %v844, %v1004
      %v1006 = vpop.f32.mrb[0].mxu0
      %1007 = vmatprep.mubr.bf16.mxu0 0
      %1008 = vmatmul.mubr.bf16.gmra.mrb[0].mxu0 %v702
      %v1009 = vpop.f32.mrb[0].mxu0
      %v1010 = vadd.f32 %v849, %v1009
      %v1011 = vpop.f32.mrb[0].mxu0
      %v1012 = vpop.f32.mrb[0].mxu0
      %v1013 = vadd.f32 %v852, %v1012
      %v1014 = vpop.f32.mrb[0].mxu0
      %1015 = vmatprep.mubr.bf16.mxu0 0
      %1016 = vmatmul.mubr.bf16.gmra.mrb[0].mxu0 %v705
      %v1017 = vpop.f32.mrb[0].mxu0
      %v1018 = vadd.f32 %v857, %v1017
      %v1019 = vpop.f32.mrb[0].mxu0
      %v1020 = vpop.f32.mrb[0].mxu0
      %v1021 = vadd.f32 %v860, %v1020
      %v1022 = vpop.f32.mrb[0].mxu0
      %1023 = vmatprep.mubr.bf16.mxu0 0
      %1024 = vmatmul.mubr.bf16.gmra.mrb[0].mxu0 %v708
      %v1025 = vpop.f32.mrb[0].mxu0
      %v1026 = vadd.f32 %v865, %v1025
      %v1027 = vpop.f32.mrb[0].mxu0
      %v1028 = vpop.f32.mrb[0].mxu0
      %v1029 = vadd.f32 %v868, %v1028
      %v1030 = vpop.f32.mrb[0].mxu0
      %1031 = vdwg.mxu0
      %v1036 = vunpack.c.l.b16 %v172
      %v1037 = vunpack.c.h.b16 %v172
      %v1038 = vunpack.c.l.b16 %v173
      %v1039 = vunpack.c.l.b16 %v174
      %v1040 = vunpack.c.h.b16 %v174
      %v1041 = vunpack.c.l.b16 %v175
      %v1042 = vpack.c.b16 %v1039, %v1036
      %v1043 = vpack.c.b16 %v1040, %v1037
      %v1044 = vpack.c.b16 %v1041, %v1038
      %v1083 = vunpack.c.l.b16 %v236
      %v1084 = vunpack.c.l.b16 %v237
      %v1085 = vunpack.c.l.b16 %v238
      %v1086 = vunpack.c.l.b16 %v239
      %v1087 = vunpack.c.l.b16 %v240
      %v1088 = vunpack.c.l.b16 %v241
      %v1089 = vunpack.c.l.b16 %v242
      %v1090 = vunpack.c.l.b16 %v243
      %v1091 = vunpack.c.l.b16 %v244
      %v1092 = vunpack.c.l.b16 %v245
      %v1093 = vunpack.c.l.b16 %v246
      %v1094 = vunpack.c.l.b16 %v247
      %v1095 = vunpack.c.l.b16 %v248
      %v1096 = vunpack.c.l.b16 %v249
      %v1097 = vunpack.c.l.b16 %v250
      %v1098 = vunpack.c.l.b16 %v251
      %v1099 = vunpack.c.l.b16 %v252
      %v1100 = vunpack.c.l.b16 %v253
      %v1101 = vunpack.c.l.b16 %v254
      %v1102 = vunpack.c.l.b16 %v255
      %v1103 = vunpack.c.l.b16 %v256
      %v1104 = vunpack.c.l.b16 %v257
      %v1105 = vunpack.c.l.b16 %v258
      %v1106 = vunpack.c.l.b16 %v259
      %v1107 = vunpack.c.l.b16 %v260
      %v1108 = vunpack.c.l.b16 %v261
      %v1109 = vunpack.c.l.b16 %v262
      %v1110 = vunpack.c.l.b16 %v263
      %v1111 = vunpack.c.l.b16 %v264
      %v1112 = vunpack.c.l.b16 %v265
      %v1113 = vunpack.c.l.b16 %v266
      %v1114 = vunpack.c.l.b16 %v267
      %v1115 = vunpack.c.l.b16 %v268
      %v1116 = vunpack.c.l.b16 %v269
      %v1117 = vunpack.c.l.b16 %v270
      %v1118 = vunpack.c.l.b16 %v271
      %v1119 = vpack.c.b16 %v1084, %v1083
      %v1120 = vpack.c.b16 %v1086, %v1085
      %v1121 = vpack.c.b16 %v1088, %v1087
      %v1122 = vpack.c.b16 %v1090, %v1089
      %v1123 = vpack.c.b16 %v1092, %v1091
      %v1124 = vpack.c.b16 %v1094, %v1093
      %v1125 = vpack.c.b16 %v1096, %v1095
      %v1126 = vpack.c.b16 %v1098, %v1097
      %v1127 = vpack.c.b16 %v1100, %v1099
      %v1128 = vpack.c.b16 %v1102, %v1101
      %v1129 = vpack.c.b16 %v1104, %v1103
      %v1130 = vpack.c.b16 %v1106, %v1105
      %v1131 = vpack.c.b16 %v1108, %v1107
      %v1132 = vpack.c.b16 %v1110, %v1109
      %v1133 = vpack.c.b16 %v1112, %v1111
      %v1134 = vpack.c.b16 %v1114, %v1113
      %v1135 = vpack.c.b16 %v1116, %v1115
      %v1136 = vpack.c.b16 %v1118, %v1117
      %v1156 = vsel %vm661, %v1044, 0
      %1158 = vmatprep.subr.bf16.mxu0 0
      %1159 = vmatpush1.bf16.msra.mxu0 %v1119
      %1160 = vmatprep.subr.bf16.mxu0 0
      %1161 = vmatpush1.bf16.msra.mxu0 %v1120
      %1162 = vmatprep.subr.bf16.mxu0 0
      %1163 = vmatpush1.bf16.msra.mxu0 %v1121
      %1164 = vmatprep.subr.bf16.mxu0 0
      %1165 = vmatpush1.bf16.msra.mxu0 %v1122
      %1166 = vmatprep.subr.bf16.mxu0 0
      %1167 = vmatpush1.bf16.msra.mxu0 %v1123
      %1168 = vmatprep.subr.bf16.mxu0 0
      %1169 = vmatpush1.bf16.msra.mxu0 %v1124
      %1170 = vmatprep.subr.bf16.mxu0 0
      %1171 = vmatpush1.bf16.msra.mxu0 %v1125
      %1172 = vmatprep.subr.bf16.mxu0 0
      %1173 = vmatpush1.bf16.msra.mxu0 %v1126
      %1174 = vmatprep.subr.bf16.mxu0 0
      %1175 = vmatpush1.bf16.msra.mxu0 %v1127
      %1176 = vmatprep.subr.bf16.mxu0 0
      %1177 = vmatpush1.bf16.msra.mxu0 %v1128
      %1178 = vmatprep.subr.bf16.mxu0 0
      %1179 = vmatpush1.bf16.msra.mxu0 %v1129
      %1180 = vmatprep.subr.bf16.mxu0 0
      %1181 = vmatpush1.bf16.msra.mxu0 %v1130
      %1182 = vmatprep.subr.bf16.mxu0 0
      %1183 = vmatpush1.bf16.msra.mxu0 %v1131
      %1184 = vmatprep.subr.bf16.mxu0 0
      %1185 = vmatpush1.bf16.msra.mxu0 %v1132
      %1186 = vmatprep.subr.bf16.mxu0 0
      %1187 = vmatpush1.bf16.msra.mxu0 %v1133
      %1188 = vmatprep.subr.bf16.mxu0 0
      %1189 = vmatpush1.bf16.msra.mxu0 %v1134
      %1190 = vmatprep.mubr.bf16.mxu0 %v1043
      %1191 = vmatmul.mubr.bf16.gmra.mrb[0].mxu0 %v1042
      %v1192 = vpop.f32.mrb[0].mxu0
      %v1193 = vadd.f32 %v906, %v1192
      %v1194 = vpop.f32.mrb[0].mxu0
      %v1195 = vpop.f32.mrb[0].mxu0
      %v1196 = vadd.f32 %v909, %v1195
      %v1197 = vpop.f32.mrb[0].mxu0
      %1198 = vmatprep.mubr.bf16.mxu0 %v474
      %1199 = vmatmul.mubr.bf16.gmra.mrb[0].mxu0 %v473
      %v1200 = vpop.f32.mrb[0].mxu0
      %v1201 = vadd.f32 %v914, %v1200
      %v1202 = vpop.f32.mrb[0].mxu0
      %v1203 = vpop.f32.mrb[0].mxu0
      %v1204 = vadd.f32 %v917, %v1203
      %v1205 = vpop.f32.mrb[0].mxu0
      %1206 = vmatprep.mubr.bf16.mxu0 %v477
      %1207 = vmatmul.mubr.bf16.gmra.mrb[0].mxu0 %v476
      %v1208 = vpop.f32.mrb[0].mxu0
      %v1209 = vadd.f32 %v922, %v1208
      %v1210 = vpop.f32.mrb[0].mxu0
      %v1211 = vpop.f32.mrb[0].mxu0
      %v1212 = vadd.f32 %v925, %v1211
      %v1213 = vpop.f32.mrb[0].mxu0
      %1214 = vmatprep.mubr.bf16.mxu0 %v480
      %1215 = vmatmul.mubr.bf16.gmra.mrb[0].mxu0 %v479
      %v1216 = vpop.f32.mrb[0].mxu0
      %v1217 = vadd.f32 %v930, %v1216
      %v1218 = vpop.f32.mrb[0].mxu0
      %v1219 = vpop.f32.mrb[0].mxu0
      %v1220 = vadd.f32 %v933, %v1219
      %v1221 = vpop.f32.mrb[0].mxu0
      %1222 = vmatprep.mubr.bf16.mxu0 %v483
      %1223 = vmatmul.mubr.bf16.gmra.mrb[0].mxu0 %v482
      %v1224 = vpop.f32.mrb[0].mxu0
      %v1225 = vadd.f32 %v938, %v1224
      %v1226 = vpop.f32.mrb[0].mxu0
      %v1227 = vpop.f32.mrb[0].mxu0
      %v1228 = vadd.f32 %v941, %v1227
      %v1229 = vpop.f32.mrb[0].mxu0
      %1230 = vmatprep.mubr.bf16.mxu0 %v486
      %1231 = vmatmul.mubr.bf16.gmra.mrb[0].mxu0 %v485
      %v1232 = vpop.f32.mrb[0].mxu0
      %v1233 = vadd.f32 %v946, %v1232
      %v1234 = vpop.f32.mrb[0].mxu0
      %v1235 = vpop.f32.mrb[0].mxu0
      %v1236 = vadd.f32 %v949, %v1235
      %v1237 = vpop.f32.mrb[0].mxu0
      %1238 = vmatprep.mubr.bf16.mxu0 %v489
      %1239 = vmatmul.mubr.bf16.gmra.mrb[0].mxu0 %v488
      %v1240 = vpop.f32.mrb[0].mxu0
      %v1241 = vadd.f32 %v954, %v1240
      %v1242 = vpop.f32.mrb[0].mxu0
      %v1243 = vpop.f32.mrb[0].mxu0
      %v1244 = vadd.f32 %v957, %v1243
      %v1245 = vpop.f32.mrb[0].mxu0
      %1246 = vmatprep.mubr.bf16.mxu0 %v492
      %1247 = vmatmul.mubr.bf16.gmra.mrb[0].mxu0 %v491
      %v1248 = vpop.f32.mrb[0].mxu0
      %v1249 = vadd.f32 %v962, %v1248
      %v1250 = vpop.f32.mrb[0].mxu0
      %v1251 = vpop.f32.mrb[0].mxu0
      %v1252 = vadd.f32 %v965, %v1251
      %v1253 = vpop.f32.mrb[0].mxu0
      %1254 = vmatprep.mubr.bf16.mxu0 %v495
      %1255 = vmatmul.mubr.bf16.gmra.mrb[0].mxu0 %v494
      %v1256 = vpop.f32.mrb[0].mxu0
      %v1257 = vadd.f32 %v970, %v1256
      %v1258 = vpop.f32.mrb[0].mxu0
      %v1259 = vpop.f32.mrb[0].mxu0
      %v1260 = vadd.f32 %v973, %v1259
      %v1261 = vpop.f32.mrb[0].mxu0
      %1262 = vmatprep.mubr.bf16.mxu0 %v498
      %1263 = vmatmul.mubr.bf16.gmra.mrb[0].mxu0 %v497
      %v1264 = vpop.f32.mrb[0].mxu0
      %v1265 = vadd.f32 %v978, %v1264
      %v1266 = vpop.f32.mrb[0].mxu0
      %v1267 = vpop.f32.mrb[0].mxu0
      %v1268 = vadd.f32 %v981, %v1267
      %v1269 = vpop.f32.mrb[0].mxu0
      %1270 = vmatprep.mubr.bf16.mxu0 %v501
      %1271 = vmatmul.mubr.bf16.gmra.mrb[0].mxu0 %v500
      %v1272 = vpop.f32.mrb[0].mxu0
      %v1273 = vadd.f32 %v986, %v1272
      %v1274 = vpop.f32.mrb[0].mxu0
      %v1275 = vpop.f32.mrb[0].mxu0
      %v1276 = vadd.f32 %v989, %v1275
      %v1277 = vpop.f32.mrb[0].mxu0
      %1278 = vmatprep.mubr.bf16.mxu0 %v504
      %1279 = vmatmul.mubr.bf16.gmra.mrb[0].mxu0 %v503
      %v1280 = vpop.f32.mrb[0].mxu0
      %v1281 = vadd.f32 %v994, %v1280
      %v1282 = vpop.f32.mrb[0].mxu0
      %v1283 = vpop.f32.mrb[0].mxu0
      %v1284 = vadd.f32 %v997, %v1283
      %v1285 = vpop.f32.mrb[0].mxu0
      %1286 = vmatprep.mubr.bf16.mxu0 %v507
      %1287 = vmatmul.mubr.bf16.gmra.mrb[0].mxu0 %v506
      %v1288 = vpop.f32.mrb[0].mxu0
      %v1289 = vadd.f32 %v1002, %v1288
      %v1290 = vpop.f32.mrb[0].mxu0
      %v1291 = vpop.f32.mrb[0].mxu0
      %v1292 = vadd.f32 %v1005, %v1291
      %v1293 = vpop.f32.mrb[0].mxu0
      %1294 = vmatprep.mubr.bf16.mxu0 %v510
      %1295 = vmatmul.mubr.bf16.gmra.mrb[0].mxu0 %v509
      %v1296 = vpop.f32.mrb[0].mxu0
      %v1297 = vadd.f32 %v1010, %v1296
      %v1298 = vpop.f32.mrb[0].mxu0
      %v1299 = vpop.f32.mrb[0].mxu0
      %v1300 = vadd.f32 %v1013, %v1299
      %v1301 = vpop.f32.mrb[0].mxu0
      %1302 = vmatprep.mubr.bf16.mxu0 %v513
      %1303 = vmatmul.mubr.bf16.gmra.mrb[0].mxu0 %v512
      %v1304 = vpop.f32.mrb[0].mxu0
      %v1305 = vadd.f32 %v1018, %v1304
      %v1306 = vpop.f32.mrb[0].mxu0
      %v1307 = vpop.f32.mrb[0].mxu0
      %v1308 = vadd.f32 %v1021, %v1307
      %v1309 = vpop.f32.mrb[0].mxu0
      %1310 = vmatprep.mubr.bf16.mxu0 %v516
      %1311 = vmatmul.mubr.bf16.gmra.mrb[0].mxu0 %v515
      %v1312 = vpop.f32.mrb[0].mxu0
      %v1313 = vadd.f32 %v1026, %v1312
      %v1314 = vpop.f32.mrb[0].mxu0
      %v1315 = vpop.f32.mrb[0].mxu0
      %v1316 = vadd.f32 %v1029, %v1315
      %v1317 = vpop.f32.mrb[0].mxu0
      %1318 = vdwg.mxu0
      %1319 = vmatprep.subr.bf16.mxu0 0
      %1320 = vmatpush1.bf16.msra.mxu0 %v1135
      %1321 = vmatprep.subr.bf16.mxu0 0
      %1322 = vmatpush1.bf16.msra.mxu0 %v1136
      %1323 = vmatprep.subr.bf16.mxu0 0
      %1324 = vmatpush1.bf16.msra.mxu0 0
      %1325 = vmatprep.subr.bf16.mxu0 0
      %1326 = vmatpush1.bf16.msra.mxu0 0
      %1327 = vmatprep.subr.bf16.mxu0 0
      %1328 = vmatpush1.bf16.msra.mxu0 0
      %1329 = vmatprep.subr.bf16.mxu0 0
      %1330 = vmatpush1.bf16.msra.mxu0 0
      %1331 = vmatprep.subr.bf16.mxu0 0
      %1332 = vmatpush1.bf16.msra.mxu0 0
      %1333 = vmatprep.subr.bf16.mxu0 0
      %1334 = vmatpush1.bf16.msra.mxu0 0
      %1335 = vmatprep.subr.bf16.mxu0 0
      %1336 = vmatpush1.bf16.msra.mxu0 0
      %1337 = vmatprep.subr.bf16.mxu0 0
      %1338 = vmatpush1.bf16.msra.mxu0 0
      %1339 = vmatprep.subr.bf16.mxu0 0
      %1340 = vmatpush1.bf16.msra.mxu0 0
      %1341 = vmatprep.subr.bf16.mxu0 0
      %1342 = vmatpush1.bf16.msra.mxu0 0
      %1343 = vmatprep.subr.bf16.mxu0 0
      %1344 = vmatpush1.bf16.msra.mxu0 0
      %1345 = vmatprep.subr.bf16.mxu0 0
      %1346 = vmatpush1.bf16.msra.mxu0 0
      %1347 = vmatprep.subr.bf16.mxu0 0
      %1348 = vmatpush1.bf16.msra.mxu0 0
      %1349 = vmatprep.subr.bf16.mxu0 0
      %1350 = vmatpush1.bf16.msra.mxu0 0
      %1351 = vmatprep.mubr.bf16.mxu0 0
      %1352 = vmatmul.mubr.bf16.gmra.mrb[0].mxu0 %v1156
      %v1353 = vpop.f32.mrb[0].mxu0
      %v1354 = vadd.f32 %v1193, %v1353
      %v1355 = vpop.f32.mrb[0].mxu0
      %v1356 = vpop.f32.mrb[0].mxu0
      %v1357 = vadd.f32 %v1196, %v1356
      %v1358 = vpop.f32.mrb[0].mxu0
      %1359 = vmatprep.mubr.bf16.mxu0 0
      %1360 = vmatmul.mubr.bf16.gmra.mrb[0].mxu0 %v663
      %v1361 = vpop.f32.mrb[0].mxu0
      %v1362 = vadd.f32 %v1201, %v1361
      %v1363 = vpop.f32.mrb[0].mxu0
      %v1364 = vpop.f32.mrb[0].mxu0
      %v1365 = vadd.f32 %v1204, %v1364
      %v1366 = vpop.f32.mrb[0].mxu0
      %1367 = vmatprep.mubr.bf16.mxu0 0
      %1368 = vmatmul.mubr.bf16.gmra.mrb[0].mxu0 %v666
      %v1369 = vpop.f32.mrb[0].mxu0
      %v1370 = vadd.f32 %v1209, %v1369
      %v1371 = vpop.f32.mrb[0].mxu0
      %v1372 = vpop.f32.mrb[0].mxu0
      %v1373 = vadd.f32 %v1212, %v1372
      %v1374 = vpop.f32.mrb[0].mxu0
      %1375 = vmatprep.mubr.bf16.mxu0 0
      %1376 = vmatmul.mubr.bf16.gmra.mrb[0].mxu0 %v669
      %v1377 = vpop.f32.mrb[0].mxu0
      %v1378 = vadd.f32 %v1217, %v1377
      %v1379 = vpop.f32.mrb[0].mxu0
      %v1380 = vpop.f32.mrb[0].mxu0
      %v1381 = vadd.f32 %v1220, %v1380
      %v1382 = vpop.f32.mrb[0].mxu0
      %1383 = vmatprep.mubr.bf16.mxu0 0
      %1384 = vmatmul.mubr.bf16.gmra.mrb[0].mxu0 %v672
      %v1385 = vpop.f32.mrb[0].mxu0
      %v1386 = vadd.f32 %v1225, %v1385
      %v1387 = vpop.f32.mrb[0].mxu0
      %v1388 = vpop.f32.mrb[0].mxu0
      %v1389 = vadd.f32 %v1228, %v1388
      %v1390 = vpop.f32.mrb[0].mxu0
      %1391 = vmatprep.mubr.bf16.mxu0 0
      %1392 = vmatmul.mubr.bf16.gmra.mrb[0].mxu0 %v675
      %v1393 = vpop.f32.mrb[0].mxu0
      %v1394 = vadd.f32 %v1233, %v1393
      %v1395 = vpop.f32.mrb[0].mxu0
      %v1396 = vpop.f32.mrb[0].mxu0
      %v1397 = vadd.f32 %v1236, %v1396
      %v1398 = vpop.f32.mrb[0].mxu0
      %1399 = vmatprep.mubr.bf16.mxu0 0
      %1400 = vmatmul.mubr.bf16.gmra.mrb[0].mxu0 %v678
      %v1401 = vpop.f32.mrb[0].mxu0
      %v1402 = vadd.f32 %v1241, %v1401
      %v1403 = vpop.f32.mrb[0].mxu0
      %v1404 = vpop.f32.mrb[0].mxu0
      %v1405 = vadd.f32 %v1244, %v1404
      %v1406 = vpop.f32.mrb[0].mxu0
      %1407 = vmatprep.mubr.bf16.mxu0 0
      %1408 = vmatmul.mubr.bf16.gmra.mrb[0].mxu0 %v681
      %v1409 = vpop.f32.mrb[0].mxu0
      %v1410 = vadd.f32 %v1249, %v1409
      %v1411 = vpop.f32.mrb[0].mxu0
      %v1412 = vpop.f32.mrb[0].mxu0
      %v1413 = vadd.f32 %v1252, %v1412
      %v1414 = vpop.f32.mrb[0].mxu0
      %1415 = vmatprep.mubr.bf16.mxu0 0
      %1416 = vmatmul.mubr.bf16.gmra.mrb[0].mxu0 %v684
      %v1417 = vpop.f32.mrb[0].mxu0
      %v1418 = vadd.f32 %v1257, %v1417
      %v1419 = vpop.f32.mrb[0].mxu0
      %v1420 = vpop.f32.mrb[0].mxu0
      %v1421 = vadd.f32 %v1260, %v1420
      %v1422 = vpop.f32.mrb[0].mxu0
      %1423 = vmatprep.mubr.bf16.mxu0 0
      %1424 = vmatmul.mubr.bf16.gmra.mrb[0].mxu0 %v687
      %v1425 = vpop.f32.mrb[0].mxu0
      %v1426 = vadd.f32 %v1265, %v1425
      %v1427 = vpop.f32.mrb[0].mxu0
      %v1428 = vpop.f32.mrb[0].mxu0
      %v1429 = vadd.f32 %v1268, %v1428
      %v1430 = vpop.f32.mrb[0].mxu0
      %1431 = vmatprep.mubr.bf16.mxu0 0
      %1432 = vmatmul.mubr.bf16.gmra.mrb[0].mxu0 %v690
      %v1433 = vpop.f32.mrb[0].mxu0
      %v1434 = vadd.f32 %v1273, %v1433
      %v1435 = vpop.f32.mrb[0].mxu0
      %v1436 = vpop.f32.mrb[0].mxu0
      %v1437 = vadd.f32 %v1276, %v1436
      %v1438 = vpop.f32.mrb[0].mxu0
      %1439 = vmatprep.mubr.bf16.mxu0 0
      %1440 = vmatmul.mubr.bf16.gmra.mrb[0].mxu0 %v693
      %v1441 = vpop.f32.mrb[0].mxu0
      %v1442 = vadd.f32 %v1281, %v1441
      %v1443 = vpop.f32.mrb[0].mxu0
      %v1444 = vpop.f32.mrb[0].mxu0
      %v1445 = vadd.f32 %v1284, %v1444
      %v1446 = vpop.f32.mrb[0].mxu0
      %1447 = vmatprep.mubr.bf16.mxu0 0
      %1448 = vmatmul.mubr.bf16.gmra.mrb[0].mxu0 %v696
      %v1449 = vpop.f32.mrb[0].mxu0
      %v1450 = vadd.f32 %v1289, %v1449
      %v1451 = vpop.f32.mrb[0].mxu0
      %v1452 = vpop.f32.mrb[0].mxu0
      %v1453 = vadd.f32 %v1292, %v1452
      %v1454 = vpop.f32.mrb[0].mxu0
      %1455 = vmatprep.mubr.bf16.mxu0 0
      %1456 = vmatmul.mubr.bf16.gmra.mrb[0].mxu0 %v699
      %v1457 = vpop.f32.mrb[0].mxu0
      %v1458 = vadd.f32 %v1297, %v1457
      %v1459 = vpop.f32.mrb[0].mxu0
      %v1460 = vpop.f32.mrb[0].mxu0
      %v1461 = vadd.f32 %v1300, %v1460
      %v1462 = vpop.f32.mrb[0].mxu0
      %1463 = vmatprep.mubr.bf16.mxu0 0
      %1464 = vmatmul.mubr.bf16.gmra.mrb[0].mxu0 %v702
      %v1465 = vpop.f32.mrb[0].mxu0
      %v1466 = vadd.f32 %v1305, %v1465
      %v1467 = vpop.f32.mrb[0].mxu0
      %v1468 = vpop.f32.mrb[0].mxu0
      %v1469 = vadd.f32 %v1308, %v1468
      %v1470 = vpop.f32.mrb[0].mxu0
      %1471 = vmatprep.mubr.bf16.mxu0 0
      %1472 = vmatmul.mubr.bf16.gmra.mrb[0].mxu0 %v705
      %v1473 = vpop.f32.mrb[0].mxu0
      %v1474 = vadd.f32 %v1313, %v1473
      %v1475 = vpop.f32.mrb[0].mxu0
      %v1476 = vpop.f32.mrb[0].mxu0
      %v1477 = vadd.f32 %v1316, %v1476
      %v1478 = vpop.f32.mrb[0].mxu0
      %1479 = vdwg.mxu0
      %v1480 = vld [vmem:[%s165 + $0x30] sm:$0xff]
      %v1481 = vld [vmem:[%s165 + $0x38] sm:$0xf]
      %v1482 = vld [vmem:[%s165 + $0x3c] sm:$0xff]
      %v1483 = vld [vmem:[%s165 + $0x44] sm:$0xf]
      %v1484 = vld [vmem:[%s165 + $0x48] sm:$0xff]
      %v1485 = vld [vmem:[%s165 + $0x50] sm:$0xf]
      %v1486 = vld [vmem:[%s165 + $0x54] sm:$0xff]
      %v1487 = vld [vmem:[%s165 + $0x5c] sm:$0xf]
      %v1488 = vld [vmem:[%s165 + $0x60] sm:$0xff]
      %v1489 = vld [vmem:[%s165 + $0x68] sm:$0xf]
      %v1490 = vld [vmem:[%s165 + $0x6c] sm:$0xff]
      %v1491 = vld [vmem:[%s165 + $0x74] sm:$0xf]
      %v1492 = vld [vmem:[%s165 + $0x78] sm:$0xff]
      %v1493 = vld [vmem:[%s165 + $0x80] sm:$0xf]
      %v1494 = vld [vmem:[%s165 + $0x84] sm:$0xff]
      %v1495 = vld [vmem:[%s165 + $0x8c] sm:$0xf]
      %v1496 = vld [vmem:[%s165 + $0x90] sm:$0xff]
      %v1497 = vld [vmem:[%s165 + $0x98] sm:$0xf]
      %v1498 = vld [vmem:[%s165 + $0x9c] sm:$0xff]
      %v1499 = vld [vmem:[%s165 + $0xa4] sm:$0xf]
      %v1500 = vld [vmem:[%s165 + $0xa8] sm:$0xff]
      %v1501 = vld [vmem:[%s165 + $0xb0] sm:$0xf]
      %v1502 = vld [vmem:[%s165 + $0xb4] sm:$0xff]
      %v1503 = vld [vmem:[%s165 + $0xbc] sm:$0xf]
      %v1504 = vld [vmem:[%s165 + $0xc0] sm:$0xff]
      %v1505 = vld [vmem:[%s165 + $0xc8] sm:$0xf]
      %v1506 = vld [vmem:[%s165 + $0xcc] sm:$0xff]
      %v1507 = vld [vmem:[%s165 + $0xd4] sm:$0xf]
      %v1508 = vld [vmem:[%s165 + $0xd8] sm:$0xff]
      %v1509 = vld [vmem:[%s165 + $0xe0] sm:$0xf]
      %v1510 = vld [vmem:[%s165 + $0xe4] sm:$0xff]
      %v1511 = vld [vmem:[%s165 + $0xec] sm:$0xf]
      %v1512 = vld [vmem:[%s165 + $0xf0] sm:$0xff]
      %v1513 = vld [vmem:[%s165 + $0xf8] sm:$0xf]
      %v1514 = vld [vmem:[%s165 + $0xfc] sm:$0xff]
      %v1515 = vld [vmem:[%s165 + $0x104] sm:$0xf]
      %v1516 = vld [vmem:[%s165 + $0x108] sm:$0xff]
      %v1517 = vld [vmem:[%s165 + $0x110] sm:$0xf]
      %v1518 = vld [vmem:[%s165 + $0x114] sm:$0xff]
      %v1519 = vld [vmem:[%s165 + $0x11c] sm:$0xf]
      %v1520 = vld [vmem:[%s165 + $0x120] sm:$0xff]
      %v1521 = vld [vmem:[%s165 + $0x128] sm:$0xf]
      %v1522 = vld [vmem:[%s165 + $0x12c] sm:$0xff]
      %v1523 = vld [vmem:[%s165 + $0x134] sm:$0xf]
      %v1524 = vld [vmem:[%s165 + $0x138] sm:$0xff]
      %v1525 = vld [vmem:[%s165 + $0x140] sm:$0xf]
      %v1526 = vld [vmem:[%s165 + $0x144] sm:$0xff]
      %v1527 = vld [vmem:[%s165 + $0x14c] sm:$0xf]
      %v1528 = vld [vmem:[%s165 + $0x150] sm:$0xff]
      %v1529 = vld [vmem:[%s165 + $0x158] sm:$0xf]
      %v1530 = vld [vmem:[%s165 + $0x15c] sm:$0xff]
      %v1531 = vld [vmem:[%s165 + $0x164] sm:$0xf]
      %v1532 = vld [vmem:[%s165 + $0x168] sm:$0xff]
      %v1533 = vld [vmem:[%s165 + $0x170] sm:$0xf]
      %v1534 = vld [vmem:[%s165 + $0x174] sm:$0xff]
      %v1535 = vld [vmem:[%s165 + $0x17c] sm:$0xf]
      %v1536 = vld [vmem:[%s165 + $0x180] sm:$0xff]
      %v1537 = vld [vmem:[%s165 + $0x188] sm:$0xf]
      %v1538 = vld [vmem:[%s165 + $0x18c] sm:$0xff]
      %v1539 = vld [vmem:[%s165 + $0x194] sm:$0xf]
      %v1540 = vld [vmem:[%s165 + $0x198] sm:$0xff]
      %v1541 = vld [vmem:[%s165 + $0x1a0] sm:$0xf]
      %v1542 = vld [vmem:[%s165 + $0x1a4] sm:$0xff]
      %v1543 = vld [vmem:[%s165 + $0x1ac] sm:$0xf]
      %s1544 = scalar_lea.vmem %s1, 288
      %v1545 = vld [vmem:[%s1544] sm:$0xf]
      %v1546 = vld [vmem:[%s1544 + $0x4] sm:$0xf]
      %v1547 = vld [vmem:[%s1544 + $0x8] sm:$0xf]
      %v1548 = vld [vmem:[%s1544 + $0xc] sm:$0xf]
      %v1549 = vld [vmem:[%s1544 + $0x10] sm:$0xf]
      %v1550 = vld [vmem:[%s1544 + $0x14] sm:$0xf]
      %v1551 = vld [vmem:[%s1544 + $0x18] sm:$0xf]
      %v1552 = vld [vmem:[%s1544 + $0x1c] sm:$0xf]
      %v1553 = vld [vmem:[%s1544 + $0x20] sm:$0xf]
      %v1554 = vld [vmem:[%s1544 + $0x24] sm:$0xf]
      %v1555 = vld [vmem:[%s1544 + $0x28] sm:$0xf]
      %v1556 = vld [vmem:[%s1544 + $0x2c] sm:$0xf]
      %v1557 = vld [vmem:[%s1544 + $0x30] sm:$0xf]
      %v1558 = vld [vmem:[%s1544 + $0x34] sm:$0xf]
      %v1559 = vld [vmem:[%s1544 + $0x38] sm:$0xf]
      %v1560 = vld [vmem:[%s1544 + $0x3c] sm:$0xf]
      %v1561 = vld [vmem:[%s1544 + $0x40] sm:$0xf]
      %v1562 = vld [vmem:[%s1544 + $0x44] sm:$0xf]
      %v1563 = vld [vmem:[%s1544 + $0x48] sm:$0xf]
      %v1564 = vld [vmem:[%s1544 + $0x4c] sm:$0xf]
      %v1565 = vld [vmem:[%s1544 + $0x50] sm:$0xf]
      %v1566 = vld [vmem:[%s1544 + $0x54] sm:$0xf]
      %v1567 = vld [vmem:[%s1544 + $0x58] sm:$0xf]
      %v1568 = vld [vmem:[%s1544 + $0x5c] sm:$0xf]
      %v1569 = vld [vmem:[%s1544 + $0x60] sm:$0xf]
      %v1570 = vld [vmem:[%s1544 + $0x64] sm:$0xf]
      %v1571 = vld [vmem:[%s1544 + $0x68] sm:$0xf]
      %v1572 = vld [vmem:[%s1544 + $0x6c] sm:$0xf]
      %v1573 = vld [vmem:[%s1544 + $0x70] sm:$0xf]
      %v1574 = vld [vmem:[%s1544 + $0x74] sm:$0xf]
      %v1575 = vld [vmem:[%s1544 + $0x78] sm:$0xf]
      %v1576 = vld [vmem:[%s1544 + $0x7c] sm:$0xf]
      %v1577 = vld [vmem:[%s1544 + $0x80] sm:$0xf]
      %v1578 = vld [vmem:[%s1544 + $0x84] sm:$0xf]
      %v1579 = vld [vmem:[%s1544 + $0x88] sm:$0xf]
      %v1580 = vld [vmem:[%s1544 + $0x8c] sm:$0xf]
      %v1645 = vunpack.c.l.b16 %v1480
      %v1646 = vunpack.c.h.b16 %v1480
      %v1647 = vunpack.c.l.b16 %v1481
      %v1648 = vunpack.c.l.b16 %v1482
      %v1649 = vunpack.c.h.b16 %v1482
      %v1650 = vunpack.c.l.b16 %v1483
      %v1651 = vunpack.c.l.b16 %v1484
      %v1652 = vunpack.c.h.b16 %v1484
      %v1653 = vunpack.c.l.b16 %v1485
      %v1654 = vunpack.c.l.b16 %v1486
      %v1655 = vunpack.c.h.b16 %v1486
      %v1656 = vunpack.c.l.b16 %v1487
      %v1657 = vunpack.c.l.b16 %v1488
      %v1658 = vunpack.c.h.b16 %v1488
      %v1659 = vunpack.c.l.b16 %v1489
      %v1660 = vunpack.c.l.b16 %v1490
      %v1661 = vunpack.c.h.b16 %v1490
      %v1662 = vunpack.c.l.b16 %v1491
      %v1663 = vunpack.c.l.b16 %v1492
      %v1664 = vunpack.c.h.b16 %v1492
      %v1665 = vunpack.c.l.b16 %v1493
      %v1666 = vunpack.c.l.b16 %v1494
      %v1667 = vunpack.c.h.b16 %v1494
      %v1668 = vunpack.c.l.b16 %v1495
      %v1669 = vunpack.c.l.b16 %v1496
      %v1670 = vunpack.c.h.b16 %v1496
      %v1671 = vunpack.c.l.b16 %v1497
      %v1672 = vunpack.c.l.b16 %v1498
      %v1673 = vunpack.c.h.b16 %v1498
      %v1674 = vunpack.c.l.b16 %v1499
      %v1675 = vunpack.c.l.b16 %v1500
      %v1676 = vunpack.c.h.b16 %v1500
      %v1677 = vunpack.c.l.b16 %v1501
      %v1678 = vunpack.c.l.b16 %v1502
      %v1679 = vunpack.c.h.b16 %v1502
      %v1680 = vunpack.c.l.b16 %v1503
      %v1681 = vunpack.c.l.b16 %v1504
      %v1682 = vunpack.c.h.b16 %v1504
      %v1683 = vunpack.c.l.b16 %v1505
      %v1684 = vunpack.c.l.b16 %v1506
      %v1685 = vunpack.c.h.b16 %v1506
      %v1686 = vunpack.c.l.b16 %v1507
      %v1687 = vunpack.c.l.b16 %v1508
      %v1688 = vunpack.c.h.b16 %v1508
      %v1689 = vunpack.c.l.b16 %v1509
      %v1690 = vunpack.c.l.b16 %v1510
      %v1691 = vunpack.c.h.b16 %v1510
      %v1692 = vunpack.c.l.b16 %v1511
      %v1693 = vunpack.c.l.b16 %v1512
      %v1694 = vunpack.c.h.b16 %v1512
      %v1695 = vunpack.c.l.b16 %v1513
      %v1696 = vunpack.c.l.b16 %v1514
      %v1697 = vunpack.c.h.b16 %v1514
      %v1698 = vunpack.c.l.b16 %v1515
      %v1699 = vunpack.c.l.b16 %v1516
      %v1700 = vunpack.c.h.b16 %v1516
      %v1701 = vunpack.c.l.b16 %v1517
      %v1702 = vunpack.c.l.b16 %v1518
      %v1703 = vunpack.c.h.b16 %v1518
      %v1704 = vunpack.c.l.b16 %v1519
      %v1705 = vunpack.c.l.b16 %v1520
      %v1706 = vunpack.c.h.b16 %v1520
      %v1707 = vunpack.c.l.b16 %v1521
      %v1708 = vunpack.c.l.b16 %v1522
      %v1709 = vunpack.c.h.b16 %v1522
      %v1710 = vunpack.c.l.b16 %v1523
      %v1711 = vunpack.c.l.b16 %v1524
      %v1712 = vunpack.c.h.b16 %v1524
      %v1713 = vunpack.c.l.b16 %v1525
      %v1714 = vunpack.c.l.b16 %v1526
      %v1715 = vunpack.c.h.b16 %v1526
      %v1716 = vunpack.c.l.b16 %v1527
      %v1717 = vunpack.c.l.b16 %v1528
      %v1718 = vunpack.c.h.b16 %v1528
      %v1719 = vunpack.c.l.b16 %v1529
      %v1720 = vunpack.c.l.b16 %v1530
      %v1721 = vunpack.c.h.b16 %v1530
      %v1722 = vunpack.c.l.b16 %v1531
      %v1723 = vunpack.c.l.b16 %v1532
      %v1724 = vunpack.c.h.b16 %v1532
      %v1725 = vunpack.c.l.b16 %v1533
      %v1726 = vunpack.c.l.b16 %v1534
      %v1727 = vunpack.c.h.b16 %v1534
      %v1728 = vunpack.c.l.b16 %v1535
      %v1729 = vunpack.c.l.b16 %v1536
      %v1730 = vunpack.c.h.b16 %v1536
      %v1731 = vunpack.c.l.b16 %v1537
      %v1732 = vunpack.c.l.b16 %v1538
      %v1733 = vunpack.c.h.b16 %v1538
      %v1734 = vunpack.c.l.b16 %v1539
      %v1735 = vunpack.c.l.b16 %v1540
      %v1736 = vunpack.c.h.b16 %v1540
      %v1737 = vunpack.c.l.b16 %v1541
      %v1738 = vunpack.c.l.b16 %v1542
      %v1739 = vunpack.c.h.b16 %v1542
      %v1740 = vunpack.c.l.b16 %v1543
      %v1741 = vpack.c.b16 %v1648, %v1645
      %v1742 = vpack.c.b16 %v1649, %v1646
      %v1743 = vpack.c.b16 %v1650, %v1647
      %v1744 = vpack.c.b16 %v1654, %v1651
      %v1745 = vpack.c.b16 %v1655, %v1652
      %v1746 = vpack.c.b16 %v1656, %v1653
      %v1747 = vpack.c.b16 %v1660, %v1657
      %v1748 = vpack.c.b16 %v1661, %v1658
      %v1749 = vpack.c.b16 %v1662, %v1659
      %v1750 = vpack.c.b16 %v1666, %v1663
      %v1751 = vpack.c.b16 %v1667, %v1664
      %v1752 = vpack.c.b16 %v1668, %v1665
      %v1753 = vpack.c.b16 %v1672, %v1669
      %v1754 = vpack.c.b16 %v1673, %v1670
      %v1755 = vpack.c.b16 %v1674, %v1671
      %v1756 = vpack.c.b16 %v1678, %v1675
      %v1757 = vpack.c.b16 %v1679, %v1676
      %v1758 = vpack.c.b16 %v1680, %v1677
      %v1759 = vpack.c.b16 %v1684, %v1681
      %v1760 = vpack.c.b16 %v1685, %v1682
      %v1761 = vpack.c.b16 %v1686, %v1683
      %v1762 = vpack.c.b16 %v1690, %v1687
      %v1763 = vpack.c.b16 %v1691, %v1688
      %v1764 = vpack.c.b16 %v1692, %v1689
      %v1765 = vpack.c.b16 %v1696, %v1693
      %v1766 = vpack.c.b16 %v1697, %v1694
      %v1767 = vpack.c.b16 %v1698, %v1695
      %v1768 = vpack.c.b16 %v1702, %v1699
      %v1769 = vpack.c.b16 %v1703, %v1700
      %v1770 = vpack.c.b16 %v1704, %v1701
      %v1771 = vpack.c.b16 %v1708, %v1705
      %v1772 = vpack.c.b16 %v1709, %v1706
      %v1773 = vpack.c.b16 %v1710, %v1707
      %v1774 = vpack.c.b16 %v1714, %v1711
      %v1775 = vpack.c.b16 %v1715, %v1712
      %v1776 = vpack.c.b16 %v1716, %v1713
      %v1777 = vpack.c.b16 %v1720, %v1717
      %v1778 = vpack.c.b16 %v1721, %v1718
      %v1779 = vpack.c.b16 %v1722, %v1719
      %v1780 = vpack.c.b16 %v1726, %v1723
      %v1781 = vpack.c.b16 %v1727, %v1724
      %v1782 = vpack.c.b16 %v1728, %v1725
      %v1783 = vpack.c.b16 %v1732, %v1729
      %v1784 = vpack.c.b16 %v1733, %v1730
      %v1785 = vpack.c.b16 %v1734, %v1731
      %v1786 = vpack.c.b16 %v1738, %v1735
      %v1787 = vpack.c.b16 %v1739, %v1736
      %v1788 = vpack.c.b16 %v1740, %v1737
      %v1857 = vunpack.c.l.b16 %v1545
      %v1858 = vunpack.c.l.b16 %v1546
      %v1859 = vunpack.c.l.b16 %v1547
      %v1860 = vunpack.c.l.b16 %v1548
      %v1861 = vunpack.c.l.b16 %v1549
      %v1862 = vunpack.c.l.b16 %v1550
      %v1863 = vunpack.c.l.b16 %v1551
      %v1864 = vunpack.c.l.b16 %v1552
      %v1865 = vunpack.c.l.b16 %v1553
      %v1866 = vunpack.c.l.b16 %v1554
      %v1867 = vunpack.c.l.b16 %v1555
      %v1868 = vunpack.c.l.b16 %v1556
      %v1869 = vunpack.c.l.b16 %v1557
      %v1870 = vunpack.c.l.b16 %v1558
      %v1871 = vunpack.c.l.b16 %v1559
      %v1872 = vunpack.c.l.b16 %v1560
      %v1873 = vunpack.c.l.b16 %v1561
      %v1874 = vunpack.c.l.b16 %v1562
      %v1875 = vunpack.c.l.b16 %v1563
      %v1876 = vunpack.c.l.b16 %v1564
      %v1877 = vunpack.c.l.b16 %v1565
      %v1878 = vunpack.c.l.b16 %v1566
      %v1879 = vunpack.c.l.b16 %v1567
      %v1880 = vunpack.c.l.b16 %v1568
      %v1881 = vunpack.c.l.b16 %v1569
      %v1882 = vunpack.c.l.b16 %v1570
      %v1883 = vunpack.c.l.b16 %v1571
      %v1884 = vunpack.c.l.b16 %v1572
      %v1885 = vunpack.c.l.b16 %v1573
      %v1886 = vunpack.c.l.b16 %v1574
      %v1887 = vunpack.c.l.b16 %v1575
      %v1888 = vunpack.c.l.b16 %v1576
      %v1889 = vunpack.c.l.b16 %v1577
      %v1890 = vunpack.c.l.b16 %v1578
      %v1891 = vunpack.c.l.b16 %v1579
      %v1892 = vunpack.c.l.b16 %v1580
      %v1893 = vpack.c.b16 %v1858, %v1857
      %v1894 = vpack.c.b16 %v1860, %v1859
      %v1895 = vpack.c.b16 %v1862, %v1861
      %v1896 = vpack.c.b16 %v1864, %v1863
      %v1897 = vpack.c.b16 %v1866, %v1865
      %v1898 = vpack.c.b16 %v1868, %v1867
      %v1899 = vpack.c.b16 %v1870, %v1869
      %v1900 = vpack.c.b16 %v1872, %v1871
      %v1901 = vpack.c.b16 %v1874, %v1873
      %v1902 = vpack.c.b16 %v1876, %v1875
      %v1903 = vpack.c.b16 %v1878, %v1877
      %v1904 = vpack.c.b16 %v1880, %v1879
      %v1905 = vpack.c.b16 %v1882, %v1881
      %v1906 = vpack.c.b16 %v1884, %v1883
      %v1907 = vpack.c.b16 %v1886, %v1885
      %v1908 = vpack.c.b16 %v1888, %v1887
      %v1909 = vpack.c.b16 %v1890, %v1889
      %v1910 = vpack.c.b16 %v1892, %v1891
      %v1930 = vsel %vm661, %v1743, 0
      %v1933 = vsel %vm661, %v1746, 0
      %v1936 = vsel %vm661, %v1749, 0
      %v1939 = vsel %vm661, %v1752, 0
      %v1942 = vsel %vm661, %v1755, 0
      %v1945 = vsel %vm661, %v1758, 0
      %v1948 = vsel %vm661, %v1761, 0
      %v1951 = vsel %vm661, %v1764, 0
      %v1954 = vsel %vm661, %v1767, 0
      %v1957 = vsel %vm661, %v1770, 0
      %v1960 = vsel %vm661, %v1773, 0
      %v1963 = vsel %vm661, %v1776, 0
      %v1966 = vsel %vm661, %v1779, 0
      %v1969 = vsel %vm661, %v1782, 0
      %v1972 = vsel %vm661, %v1785, 0
      %v1975 = vsel %vm661, %v1788, 0
      %1977 = vmatprep.subr.bf16.mxu0 0
      %1978 = vmatpush1.bf16.msra.mxu0 %v1893
      %1979 = vmatprep.subr.bf16.mxu0 0
      %1980 = vmatpush1.bf16.msra.mxu0 %v1894
      %1981 = vmatprep.subr.bf16.mxu0 0
      %1982 = vmatpush1.bf16.msra.mxu0 %v1895
      %1983 = vmatprep.subr.bf16.mxu0 0
      %1984 = vmatpush1.bf16.msra.mxu0 %v1896
      %1985 = vmatprep.subr.bf16.mxu0 0
      %1986 = vmatpush1.bf16.msra.mxu0 %v1897
      %1987 = vmatprep.subr.bf16.mxu0 0
      %1988 = vmatpush1.bf16.msra.mxu0 %v1898
      %1989 = vmatprep.subr.bf16.mxu0 0
      %1990 = vmatpush1.bf16.msra.mxu0 %v1899
      %1991 = vmatprep.subr.bf16.mxu0 0
      %1992 = vmatpush1.bf16.msra.mxu0 %v1900
      %1993 = vmatprep.subr.bf16.mxu0 0
      %1994 = vmatpush1.bf16.msra.mxu0 %v1901
      %1995 = vmatprep.subr.bf16.mxu0 0
      %1996 = vmatpush1.bf16.msra.mxu0 %v1902
      %1997 = vmatprep.subr.bf16.mxu0 0
      %1998 = vmatpush1.bf16.msra.mxu0 %v1903
      %1999 = vmatprep.subr.bf16.mxu0 0
      %2000 = vmatpush1.bf16.msra.mxu0 %v1904
      %2001 = vmatprep.subr.bf16.mxu0 0
      %2002 = vmatpush1.bf16.msra.mxu0 %v1905
      %2003 = vmatprep.subr.bf16.mxu0 0
      %2004 = vmatpush1.bf16.msra.mxu0 %v1906
      %2005 = vmatprep.subr.bf16.mxu0 0
      %2006 = vmatpush1.bf16.msra.mxu0 %v1907
      %2007 = vmatprep.subr.bf16.mxu0 0
      %2008 = vmatpush1.bf16.msra.mxu0 %v1908
      %2009 = vmatprep.mubr.bf16.mxu0 %v1742
      %2010 = vmatmul.mubr.bf16.gmra.mrb[0].mxu0 %v1741
      %v2011 = vpop.f32.mrb[0].mxu0
      %v2012 = vadd.f32 0.0, %v2011
      %v2013 = vpop.f32.mrb[0].mxu0
      %v2014 = vpop.f32.mrb[0].mxu0
      %v2015 = vadd.f32 0.0, %v2014
      %v2016 = vpop.f32.mrb[0].mxu0
      %2017 = vmatprep.mubr.bf16.mxu0 %v1745
      %2018 = vmatmul.mubr.bf16.gmra.mrb[0].mxu0 %v1744
      %v2019 = vpop.f32.mrb[0].mxu0
      %v2020 = vadd.f32 0.0, %v2019
      %v2021 = vpop.f32.mrb[0].mxu0
      %v2022 = vpop.f32.mrb[0].mxu0
      %v2023 = vadd.f32 0.0, %v2022
      %v2024 = vpop.f32.mrb[0].mxu0
      %2025 = vmatprep.mubr.bf16.mxu0 %v1748
      %2026 = vmatmul.mubr.bf16.gmra.mrb[0].mxu0 %v1747
      %v2027 = vpop.f32.mrb[0].mxu0
      %v2028 = vadd.f32 0.0, %v2027
      %v2029 = vpop.f32.mrb[0].mxu0
      %v2030 = vpop.f32.mrb[0].mxu0
      %v2031 = vadd.f32 0.0, %v2030
      %v2032 = vpop.f32.mrb[0].mxu0
      %2033 = vmatprep.mubr.bf16.mxu0 %v1751
      %2034 = vmatmul.mubr.bf16.gmra.mrb[0].mxu0 %v1750
      %v2035 = vpop.f32.mrb[0].mxu0
      %v2036 = vadd.f32 0.0, %v2035
      %v2037 = vpop.f32.mrb[0].mxu0
      %v2038 = vpop.f32.mrb[0].mxu0
      %v2039 = vadd.f32 0.0, %v2038
      %v2040 = vpop.f32.mrb[0].mxu0
      %2041 = vmatprep.mubr.bf16.mxu0 %v1754
      %2042 = vmatmul.mubr.bf16.gmra.mrb[0].mxu0 %v1753
      %v2043 = vpop.f32.mrb[0].mxu0
      %v2044 = vadd.f32 0.0, %v2043
      %v2045 = vpop.f32.mrb[0].mxu0
      %v2046 = vpop.f32.mrb[0].mxu0
      %v2047 = vadd.f32 0.0, %v2046
      %v2048 = vpop.f32.mrb[0].mxu0
      %2049 = vmatprep.mubr.bf16.mxu0 %v1757
      %2050 = vmatmul.mubr.bf16.gmra.mrb[0].mxu0 %v1756
      %v2051 = vpop.f32.mrb[0].mxu0
      %v2052 = vadd.f32 0.0, %v2051
      %v2053 = vpop.f32.mrb[0].mxu0
      %v2054 = vpop.f32.mrb[0].mxu0
      %v2055 = vadd.f32 0.0, %v2054
      %v2056 = vpop.f32.mrb[0].mxu0
      %2057 = vmatprep.mubr.bf16.mxu0 %v1760
      %2058 = vmatmul.mubr.bf16.gmra.mrb[0].mxu0 %v1759
      %v2059 = vpop.f32.mrb[0].mxu0
      %v2060 = vadd.f32 0.0, %v2059
      %v2061 = vpop.f32.mrb[0].mxu0
      %v2062 = vpop.f32.mrb[0].mxu0
      %v2063 = vadd.f32 0.0, %v2062
      %v2064 = vpop.f32.mrb[0].mxu0
      %2065 = vmatprep.mubr.bf16.mxu0 %v1763
      %2066 = vmatmul.mubr.bf16.gmra.mrb[0].mxu0 %v1762
      %v2067 = vpop.f32.mrb[0].mxu0
      %v2068 = vadd.f32 0.0, %v2067
      %v2069 = vpop.f32.mrb[0].mxu0
      %v2070 = vpop.f32.mrb[0].mxu0
      %v2071 = vadd.f32 0.0, %v2070
      %v2072 = vpop.f32.mrb[0].mxu0
      %2073 = vmatprep.mubr.bf16.mxu0 %v1766
      %2074 = vmatmul.mubr.bf16.gmra.mrb[0].mxu0 %v1765
      %v2075 = vpop.f32.mrb[0].mxu0
      %v2076 = vadd.f32 0.0, %v2075
      %v2077 = vpop.f32.mrb[0].mxu0
      %v2078 = vpop.f32.mrb[0].mxu0
      %v2079 = vadd.f32 0.0, %v2078
      %v2080 = vpop.f32.mrb[0].mxu0
      %2081 = vmatprep.mubr.bf16.mxu0 %v1769
      %2082 = vmatmul.mubr.bf16.gmra.mrb[0].mxu0 %v1768
      %v2083 = vpop.f32.mrb[0].mxu0
      %v2084 = vadd.f32 0.0, %v2083
      %v2085 = vpop.f32.mrb[0].mxu0
      %v2086 = vpop.f32.mrb[0].mxu0
      %v2087 = vadd.f32 0.0, %v2086
      %v2088 = vpop.f32.mrb[0].mxu0
      %2089 = vmatprep.mubr.bf16.mxu0 %v1772
      %2090 = vmatmul.mubr.bf16.gmra.mrb[0].mxu0 %v1771
      %v2091 = vpop.f32.mrb[0].mxu0
      %v2092 = vadd.f32 0.0, %v2091
      %v2093 = vpop.f32.mrb[0].mxu0
      %v2094 = vpop.f32.mrb[0].mxu0
      %v2095 = vadd.f32 0.0, %v2094
      %v2096 = vpop.f32.mrb[0].mxu0
      %2097 = vmatprep.mubr.bf16.mxu0 %v1775
      %2098 = vmatmul.mubr.bf16.gmra.mrb[0].mxu0 %v1774
      %v2099 = vpop.f32.mrb[0].mxu0
      %v2100 = vadd.f32 0.0, %v2099
      %v2101 = vpop.f32.mrb[0].mxu0
      %v2102 = vpop.f32.mrb[0].mxu0
      %v2103 = vadd.f32 0.0, %v2102
      %v2104 = vpop.f32.mrb[0].mxu0
      %2105 = vmatprep.mubr.bf16.mxu0 %v1778
      %2106 = vmatmul.mubr.bf16.gmra.mrb[0].mxu0 %v1777
      %v2107 = vpop.f32.mrb[0].mxu0
      %v2108 = vadd.f32 0.0, %v2107
      %v2109 = vpop.f32.mrb[0].mxu0
      %v2110 = vpop.f32.mrb[0].mxu0
      %v2111 = vadd.f32 0.0, %v2110
      %v2112 = vpop.f32.mrb[0].mxu0
      %2113 = vmatprep.mubr.bf16.mxu0 %v1781
      %2114 = vmatmul.mubr.bf16.gmra.mrb[0].mxu0 %v1780
      %v2115 = vpop.f32.mrb[0].mxu0
      %v2116 = vadd.f32 0.0, %v2115
      %v2117 = vpop.f32.mrb[0].mxu0
      %v2118 = vpop.f32.mrb[0].mxu0
      %v2119 = vadd.f32 0.0, %v2118
      %v2120 = vpop.f32.mrb[0].mxu0
      %2121 = vmatprep.mubr.bf16.mxu0 %v1784
      %2122 = vmatmul.mubr.bf16.gmra.mrb[0].mxu0 %v1783
      %v2123 = vpop.f32.mrb[0].mxu0
      %v2124 = vadd.f32 0.0, %v2123
      %v2125 = vpop.f32.mrb[0].mxu0
      %v2126 = vpop.f32.mrb[0].mxu0
      %v2127 = vadd.f32 0.0, %v2126
      %v2128 = vpop.f32.mrb[0].mxu0
      %2129 = vmatprep.mubr.bf16.mxu0 %v1787
      %2130 = vmatmul.mubr.bf16.gmra.mrb[0].mxu0 %v1786
      %v2131 = vpop.f32.mrb[0].mxu0
      %v2132 = vadd.f32 0.0, %v2131
      %v2133 = vpop.f32.mrb[0].mxu0
      %v2134 = vpop.f32.mrb[0].mxu0
      %v2135 = vadd.f32 0.0, %v2134
      %v2136 = vpop.f32.mrb[0].mxu0
      %2137 = vdwg.mxu0
      %2138 = vmatprep.subr.bf16.mxu0 0
      %2139 = vmatpush1.bf16.msra.mxu0 %v1909
      %2140 = vmatprep.subr.bf16.mxu0 0
      %2141 = vmatpush1.bf16.msra.mxu0 %v1910
      %2142 = vmatprep.subr.bf16.mxu0 0
      %2143 = vmatpush1.bf16.msra.mxu0 0
      %2144 = vmatprep.subr.bf16.mxu0 0
      %2145 = vmatpush1.bf16.msra.mxu0 0
      %2146 = vmatprep.subr.bf16.mxu0 0
      %2147 = vmatpush1.bf16.msra.mxu0 0
      %2148 = vmatprep.subr.bf16.mxu0 0
      %2149 = vmatpush1.bf16.msra.mxu0 0
      %2150 = vmatprep.subr.bf16.mxu0 0
      %2151 = vmatpush1.bf16.msra.mxu0 0
      %2152 = vmatprep.subr.bf16.mxu0 0
      %2153 = vmatpush1.bf16.msra.mxu0 0
      %2154 = vmatprep.subr.bf16.mxu0 0
      %2155 = vmatpush1.bf16.msra.mxu0 0
      %2156 = vmatprep.subr.bf16.mxu0 0
      %2157 = vmatpush1.bf16.msra.mxu0 0
      %2158 = vmatprep.subr.bf16.mxu0 0
      %2159 = vmatpush1.bf16.msra.mxu0 0
      %2160 = vmatprep.subr.bf16.mxu0 0
      %2161 = vmatpush1.bf16.msra.mxu0 0
      %2162 = vmatprep.subr.bf16.mxu0 0
      %2163 = vmatpush1.bf16.msra.mxu0 0
      %2164 = vmatprep.subr.bf16.mxu0 0
      %2165 = vmatpush1.bf16.msra.mxu0 0
      %2166 = vmatprep.subr.bf16.mxu0 0
      %2167 = vmatpush1.bf16.msra.mxu0 0
      %2168 = vmatprep.subr.bf16.mxu0 0
      %2169 = vmatpush1.bf16.msra.mxu0 0
      %2170 = vmatprep.mubr.bf16.mxu0 0
      %2171 = vmatmul.mubr.bf16.gmra.mrb[0].mxu0 %v1930
      %v2172 = vpop.f32.mrb[0].mxu0
      %v2173 = vadd.f32 %v2012, %v2172
      %v2174 = vpop.f32.mrb[0].mxu0
      %v2175 = vpop.f32.mrb[0].mxu0
      %v2176 = vadd.f32 %v2015, %v2175
      %v2177 = vpop.f32.mrb[0].mxu0
      %2178 = vmatprep.mubr.bf16.mxu0 0
      %2179 = vmatmul.mubr.bf16.gmra.mrb[0].mxu0 %v1933
      %v2180 = vpop.f32.mrb[0].mxu0
      %v2181 = vadd.f32 %v2020, %v2180
      %v2182 = vpop.f32.mrb[0].mxu0
      %v2183 = vpop.f32.mrb[0].mxu0
      %v2184 = vadd.f32 %v2023, %v2183
      %v2185 = vpop.f32.mrb[0].mxu0
      %2186 = vmatprep.mubr.bf16.mxu0 0
      %2187 = vmatmul.mubr.bf16.gmra.mrb[0].mxu0 %v1936
      %v2188 = vpop.f32.mrb[0].mxu0
      %v2189 = vadd.f32 %v2028, %v2188
      %v2190 = vpop.f32.mrb[0].mxu0
      %v2191 = vpop.f32.mrb[0].mxu0
      %v2192 = vadd.f32 %v2031, %v2191
      %v2193 = vpop.f32.mrb[0].mxu0
      %2194 = vmatprep.mubr.bf16.mxu0 0
      %2195 = vmatmul.mubr.bf16.gmra.mrb[0].mxu0 %v1939
      %v2196 = vpop.f32.mrb[0].mxu0
      %v2197 = vadd.f32 %v2036, %v2196
      %v2198 = vpop.f32.mrb[0].mxu0
      %v2199 = vpop.f32.mrb[0].mxu0
      %v2200 = vadd.f32 %v2039, %v2199
      %v2201 = vpop.f32.mrb[0].mxu0
      %2202 = vmatprep.mubr.bf16.mxu0 0
      %2203 = vmatmul.mubr.bf16.gmra.mrb[0].mxu0 %v1942
      %v2204 = vpop.f32.mrb[0].mxu0
      %v2205 = vadd.f32 %v2044, %v2204
      %v2206 = vpop.f32.mrb[0].mxu0
      %v2207 = vpop.f32.mrb[0].mxu0
      %v2208 = vadd.f32 %v2047, %v2207
      %v2209 = vpop.f32.mrb[0].mxu0
      %2210 = vmatprep.mubr.bf16.mxu0 0
      %2211 = vmatmul.mubr.bf16.gmra.mrb[0].mxu0 %v1945
      %v2212 = vpop.f32.mrb[0].mxu0
      %v2213 = vadd.f32 %v2052, %v2212
      %v2214 = vpop.f32.mrb[0].mxu0
      %v2215 = vpop.f32.mrb[0].mxu0
      %v2216 = vadd.f32 %v2055, %v2215
      %v2217 = vpop.f32.mrb[0].mxu0
      %2218 = vmatprep.mubr.bf16.mxu0 0
      %2219 = vmatmul.mubr.bf16.gmra.mrb[0].mxu0 %v1948
      %v2220 = vpop.f32.mrb[0].mxu0
      %v2221 = vadd.f32 %v2060, %v2220
      %v2222 = vpop.f32.mrb[0].mxu0
      %v2223 = vpop.f32.mrb[0].mxu0
      %v2224 = vadd.f32 %v2063, %v2223
      %v2225 = vpop.f32.mrb[0].mxu0
      %2226 = vmatprep.mubr.bf16.mxu0 0
      %2227 = vmatmul.mubr.bf16.gmra.mrb[0].mxu0 %v1951
      %v2228 = vpop.f32.mrb[0].mxu0
      %v2229 = vadd.f32 %v2068, %v2228
      %v2230 = vpop.f32.mrb[0].mxu0
      %v2231 = vpop.f32.mrb[0].mxu0
      %v2232 = vadd.f32 %v2071, %v2231
      %v2233 = vpop.f32.mrb[0].mxu0
      %2234 = vmatprep.mubr.bf16.mxu0 0
      %2235 = vmatmul.mubr.bf16.gmra.mrb[0].mxu0 %v1954
      %v2236 = vpop.f32.mrb[0].mxu0
      %v2237 = vadd.f32 %v2076, %v2236
      %v2238 = vpop.f32.mrb[0].mxu0
      %v2239 = vpop.f32.mrb[0].mxu0
      %v2240 = vadd.f32 %v2079, %v2239
      %v2241 = vpop.f32.mrb[0].mxu0
      %2242 = vmatprep.mubr.bf16.mxu0 0
      %2243 = vmatmul.mubr.bf16.gmra.mrb[0].mxu0 %v1957
      %v2244 = vpop.f32.mrb[0].mxu0
      %v2245 = vadd.f32 %v2084, %v2244
      %v2246 = vpop.f32.mrb[0].mxu0
      %v2247 = vpop.f32.mrb[0].mxu0
      %v2248 = vadd.f32 %v2087, %v2247
      %v2249 = vpop.f32.mrb[0].mxu0
      %2250 = vmatprep.mubr.bf16.mxu0 0
      %2251 = vmatmul.mubr.bf16.gmra.mrb[0].mxu0 %v1960
      %v2252 = vpop.f32.mrb[0].mxu0
      %v2253 = vadd.f32 %v2092, %v2252
      %v2254 = vpop.f32.mrb[0].mxu0
      %v2255 = vpop.f32.mrb[0].mxu0
      %v2256 = vadd.f32 %v2095, %v2255
      %v2257 = vpop.f32.mrb[0].mxu0
      %2258 = vmatprep.mubr.bf16.mxu0 0
      %2259 = vmatmul.mubr.bf16.gmra.mrb[0].mxu0 %v1963
      %v2260 = vpop.f32.mrb[0].mxu0
      %v2261 = vadd.f32 %v2100, %v2260
      %v2262 = vpop.f32.mrb[0].mxu0
      %v2263 = vpop.f32.mrb[0].mxu0
      %v2264 = vadd.f32 %v2103, %v2263
      %v2265 = vpop.f32.mrb[0].mxu0
      %2266 = vmatprep.mubr.bf16.mxu0 0
      %2267 = vmatmul.mubr.bf16.gmra.mrb[0].mxu0 %v1966
      %v2268 = vpop.f32.mrb[0].mxu0
      %v2269 = vadd.f32 %v2108, %v2268
      %v2270 = vpop.f32.mrb[0].mxu0
      %v2271 = vpop.f32.mrb[0].mxu0
      %v2272 = vadd.f32 %v2111, %v2271
      %v2273 = vpop.f32.mrb[0].mxu0
      %2274 = vmatprep.mubr.bf16.mxu0 0
      %2275 = vmatmul.mubr.bf16.gmra.mrb[0].mxu0 %v1969
      %v2276 = vpop.f32.mrb[0].mxu0
      %v2277 = vadd.f32 %v2116, %v2276
      %v2278 = vpop.f32.mrb[0].mxu0
      %v2279 = vpop.f32.mrb[0].mxu0
      %v2280 = vadd.f32 %v2119, %v2279
      %v2281 = vpop.f32.mrb[0].mxu0
      %2282 = vmatprep.mubr.bf16.mxu0 0
      %2283 = vmatmul.mubr.bf16.gmra.mrb[0].mxu0 %v1972
      %v2284 = vpop.f32.mrb[0].mxu0
      %v2285 = vadd.f32 %v2124, %v2284
      %v2286 = vpop.f32.mrb[0].mxu0
      %v2287 = vpop.f32.mrb[0].mxu0
      %v2288 = vadd.f32 %v2127, %v2287
      %v2289 = vpop.f32.mrb[0].mxu0
      %2290 = vmatprep.mubr.bf16.mxu0 0
      %2291 = vmatmul.mubr.bf16.gmra.mrb[0].mxu0 %v1975
      %v2292 = vpop.f32.mrb[0].mxu0
      %v2293 = vadd.f32 %v2132, %v2292
      %v2294 = vpop.f32.mrb[0].mxu0
      %v2295 = vpop.f32.mrb[0].mxu0
      %v2296 = vadd.f32 %v2135, %v2295
      %v2297 = vpop.f32.mrb[0].mxu0
      %2298 = vdwg.mxu0
      %v2299 = vadd.f32 %v1354, %v2173
      %v2300 = vadd.f32 %v1357, %v2176
      %v2301 = vadd.f32 %v1362, %v2181
      %v2302 = vadd.f32 %v1365, %v2184
      %v2303 = vadd.f32 %v1370, %v2189
      %v2304 = vadd.f32 %v1373, %v2192
      %v2305 = vadd.f32 %v1378, %v2197
      %v2306 = vadd.f32 %v1381, %v2200
      %v2307 = vadd.f32 %v1386, %v2205
      %v2308 = vadd.f32 %v1389, %v2208
      %v2309 = vadd.f32 %v1394, %v2213
      %v2310 = vadd.f32 %v1397, %v2216
      %v2311 = vadd.f32 %v1402, %v2221
      %v2312 = vadd.f32 %v1405, %v2224
      %v2313 = vadd.f32 %v1410, %v2229
      %v2314 = vadd.f32 %v1413, %v2232
      %v2315 = vadd.f32 %v1418, %v2237
      %v2316 = vadd.f32 %v1421, %v2240
      %v2317 = vadd.f32 %v1426, %v2245
      %v2318 = vadd.f32 %v1429, %v2248
      %v2319 = vadd.f32 %v1434, %v2253
      %v2320 = vadd.f32 %v1437, %v2256
      %v2321 = vadd.f32 %v1442, %v2261
      %v2322 = vadd.f32 %v1445, %v2264
      %v2323 = vadd.f32 %v1450, %v2269
      %v2324 = vadd.f32 %v1453, %v2272
      %v2325 = vadd.f32 %v1458, %v2277
      %v2326 = vadd.f32 %v1461, %v2280
      %v2327 = vadd.f32 %v1466, %v2285
      %v2328 = vadd.f32 %v1469, %v2288
      %v2329 = vadd.f32 %v1474, %v2293
      %v2330 = vadd.f32 %v1477, %v2296
      %v2331 = vld [vmem:[%s2] sm:$0x1]
      %v2333 = vlaneseq
      %v2334 = vshrl.u32 %v2333, 7
      %v2335 = vsub.s32 0, %v2334
      %v2336 = vrot.slane %v2331, %v2335
      %v2338 = vadd.f32 %v2299, %v2336
      %v2339 = vadd.f32 %v2300, %v2336
      %v2340 = vadd.f32 %v2301, %v2336
      %v2341 = vadd.f32 %v2302, %v2336
      %v2342 = vadd.f32 %v2303, %v2336
      %v2343 = vadd.f32 %v2304, %v2336
      %v2344 = vadd.f32 %v2305, %v2336
      %v2345 = vadd.f32 %v2306, %v2336
      %v2346 = vadd.f32 %v2307, %v2336
      %v2347 = vadd.f32 %v2308, %v2336
      %v2348 = vadd.f32 %v2309, %v2336
      %v2349 = vadd.f32 %v2310, %v2336
      %v2350 = vadd.f32 %v2311, %v2336
      %v2351 = vadd.f32 %v2312, %v2336
      %v2352 = vadd.f32 %v2313, %v2336
      %v2353 = vadd.f32 %v2314, %v2336
      %v2354 = vadd.f32 %v2315, %v2336
      %v2355 = vadd.f32 %v2316, %v2336
      %v2356 = vadd.f32 %v2317, %v2336
      %v2357 = vadd.f32 %v2318, %v2336
      %v2358 = vadd.f32 %v2319, %v2336
      %v2359 = vadd.f32 %v2320, %v2336
      %v2360 = vadd.f32 %v2321, %v2336
      %v2361 = vadd.f32 %v2322, %v2336
      %v2362 = vadd.f32 %v2323, %v2336
      %v2363 = vadd.f32 %v2324, %v2336
      %v2364 = vadd.f32 %v2325, %v2336
      %v2365 = vadd.f32 %v2326, %v2336
      %v2366 = vadd.f32 %v2327, %v2336
      %v2367 = vadd.f32 %v2328, %v2336
      %v2368 = vadd.f32 %v2329, %v2336
      %v2369 = vadd.f32 %v2330, %v2336
      %v2370 = vmax.f32 %v2338, 0.0
      %v2371 = vmax.f32 %v2339, 0.0
      %v2372 = vmax.f32 %v2340, 0.0
      %v2373 = vmax.f32 %v2341, 0.0
      %v2374 = vmax.f32 %v2342, 0.0
      %v2375 = vmax.f32 %v2343, 0.0
      %v2376 = vmax.f32 %v2344, 0.0
      %v2377 = vmax.f32 %v2345, 0.0
      %v2378 = vmax.f32 %v2346, 0.0
      %v2379 = vmax.f32 %v2347, 0.0
      %v2380 = vmax.f32 %v2348, 0.0
      %v2381 = vmax.f32 %v2349, 0.0
      %v2382 = vmax.f32 %v2350, 0.0
      %v2383 = vmax.f32 %v2351, 0.0
      %v2384 = vmax.f32 %v2352, 0.0
      %v2385 = vmax.f32 %v2353, 0.0
      %v2386 = vmax.f32 %v2354, 0.0
      %v2387 = vmax.f32 %v2355, 0.0
      %v2388 = vmax.f32 %v2356, 0.0
      %v2389 = vmax.f32 %v2357, 0.0
      %v2390 = vmax.f32 %v2358, 0.0
      %v2391 = vmax.f32 %v2359, 0.0
      %v2392 = vmax.f32 %v2360, 0.0
      %v2393 = vmax.f32 %v2361, 0.0
      %v2394 = vmax.f32 %v2362, 0.0
      %v2395 = vmax.f32 %v2363, 0.0
      %v2396 = vmax.f32 %v2364, 0.0
      %v2397 = vmax.f32 %v2365, 0.0
      %v2398 = vmax.f32 %v2366, 0.0
      %v2399 = vmax.f32 %v2367, 0.0
      %v2400 = vmax.f32 %v2368, 0.0
      %v2401 = vmax.f32 %v2369, 0.0
      %2402 = vst.msk [vmem:[%s170] sm:$0xff] %vm661, %v2370
      %2403 = vst.msk [vmem:[%s170 + $0x8] sm:$0xff] %vm661, %v2371
      %2404 = vst.msk [vmem:[%s170 + $0x10] sm:$0xff] %vm661, %v2372
      %2405 = vst.msk [vmem:[%s170 + $0x18] sm:$0xff] %vm661, %v2373
      %2406 = vst.msk [vmem:[%s170 + $0x20] sm:$0xff] %vm661, %v2374
      %2407 = vst.msk [vmem:[%s170 + $0x28] sm:$0xff] %vm661, %v2375
      %2408 = vst.msk [vmem:[%s170 + $0x30] sm:$0xff] %vm661, %v2376
      %2409 = vst.msk [vmem:[%s170 + $0x38] sm:$0xff] %vm661, %v2377
      %2410 = vst.msk [vmem:[%s170 + $0x40] sm:$0xff] %vm661, %v2378
      %2411 = vst.msk [vmem:[%s170 + $0x48] sm:$0xff] %vm661, %v2379
      %2412 = vst.msk [vmem:[%s170 + $0x50] sm:$0xff] %vm661, %v2380
      %2413 = vst.msk [vmem:[%s170 + $0x58] sm:$0xff] %vm661, %v2381
      %2414 = vst.msk [vmem:[%s170 + $0x60] sm:$0xff] %vm661, %v2382
      %2415 = vst.msk [vmem:[%s170 + $0x68] sm:$0xff] %vm661, %v2383
      %2416 = vst.msk [vmem:[%s170 + $0x70] sm:$0xff] %vm661, %v2384
      %2417 = vst.msk [vmem:[%s170 + $0x78] sm:$0xff] %vm661, %v2385
      %2418 = vst.msk [vmem:[%s170 + $0x80] sm:$0xff] %vm661, %v2386
      %2419 = vst.msk [vmem:[%s170 + $0x88] sm:$0xff] %vm661, %v2387
      %2420 = vst.msk [vmem:[%s170 + $0x90] sm:$0xff] %vm661, %v2388
      %2421 = vst.msk [vmem:[%s170 + $0x98] sm:$0xff] %vm661, %v2389
      %2422 = vst.msk [vmem:[%s170 + $0xa0] sm:$0xff] %vm661, %v2390
      %2423 = vst.msk [vmem:[%s170 + $0xa8] sm:$0xff] %vm661, %v2391
      %2424 = vst.msk [vmem:[%s170 + $0xb0] sm:$0xff] %vm661, %v2392
      %2425 = vst.msk [vmem:[%s170 + $0xb8] sm:$0xff] %vm661, %v2393
      %2426 = vst.msk [vmem:[%s170 + $0xc0] sm:$0xff] %vm661, %v2394
      %2427 = vst.msk [vmem:[%s170 + $0xc8] sm:$0xff] %vm661, %v2395
      %2428 = vst.msk [vmem:[%s170 + $0xd0] sm:$0xff] %vm661, %v2396
      %2429 = vst.msk [vmem:[%s170 + $0xd8] sm:$0xff] %vm661, %v2397
      %2430 = vst.msk [vmem:[%s170 + $0xe0] sm:$0xff] %vm661, %v2398
      %2431 = vst.msk [vmem:[%s170 + $0xe8] sm:$0xff] %vm661, %v2399
      %2432 = vst.msk [vmem:[%s170 + $0xf0] sm:$0xff] %vm661, %v2400
      %2433 = vst.msk [vmem:[%s170 + $0xf8] sm:$0xff] %vm661, %v2401
      %p2434 = scmp.lt.s32.totalorder %s14, 1
      %s2435 = scalar_select %p2434, %s14, 1
      %s2436 = smul.addr %s2435, 32
      %s2437 = smul.addr %s2436, 8
      %s2438 = scalar_lea.vmem %s3, %s2437
      // Predicated region
      $region33: #{asi_forward.8} parent=31 // pred_check
        %p2439 = pneg %p100
      $region34: #{asi_forward.8} parent=31 // pred_check_branch
        %2441 = sbr.rel (%p2439) target = $region36
      $region35: #{asi_forward.8} parent=31 // pred_region
        _
      $region36: #{asi_forward.8} parent=31 // pred_fallthru
        _
    $region32: #{asi_forward.8} parent=5 // pred_fallthru
      _
    %p2442 = scmp.le.s32.totalorder 2, %s9
    // Predicated region
    $region37: #{asi_forward.8} parent=5 // pred_check
      %p2443 = pneg %p2442
    $region38: #{asi_forward.8} parent=5 // pred_check_branch
      %2445 = sbr.rel (%p2443) target = $region40
    $region39: #{asi_forward.8} parent=5 // pred_region
      %s2446 = ssub.s32 %s9, 2
      // Predicated region
      $region41: #{asi_forward.8} parent=39 // pred_check
        %p2447 = pneg %p106
      $region42: #{asi_forward.8} parent=39 // pred_check_branch
        %2449 = sbr.rel (%p2447) target = $region44
      $region43: #{asi_forward.8} parent=39 // pred_region
        %p2450 = scmp.lt.s32.totalorder %s15, 1
        %s2451 = scalar_select %p2450, %s15, 1
        %s2452 = smul.addr %s2451, 32
        %s2453 = smul.addr %s2452, 8
        %s2454 = scalar_lea.vmem %s3, %s2453
      $region44: #{asi_forward.8} parent=39 // pred_fallthru
        _
    $region40: #{asi_forward.8} parent=5 // pred_fallthru
      _
  $region6: #{asi_forward.8} parent=0 // loop_footer
    %s13 = sadd.s32 1, %s9
  $region7: #{asi_forward.8} parent=0 // loop_footer_branch
    %8 = sbr.rel target = $region3
  $region8: #{asi_forward.8} parent=0 // loop_exit
    _

// kernel: asi_forward.9
$region0: #{asi_forward.9}
  #allocation0 [shape = 'u32[]', space=smem, size = 0x4, offset = 0x4, fixed_abs, tag = 'smem constant byte address 0x4 - core index']
  #allocation1 [shape = 'u32[144,128]{1,0:T(1,128)}', space=vmem, size = 0x12000, scoped, tag = 'internal scratch']
  %s0 = inlined_call_operand.vmem [shape: bf16[4,288,96], index: 0, kind: input, shape index: {}]
  %s1 = inlined_call_operand.vmem [shape: bf16[3,96,32], index: 1, kind: input, shape index: {}]
  %s2 = inlined_call_operand.vmem [shape: f32[1,32], index: 2, kind: input, shape index: {}]
  %s3 = inlined_call_operand.vmem [shape: f32[4,256,32], index: 3, kind: output, shape index: {}]
  %s4 = sld [smem:[#allocation0]]
  $region45: #{asi_forward.9} parent=0
    _
  %s6 = ssub.s32 1, %s4
  %s7 = scalar_select 0, %s6, %s4
  loop: start=0, step=1, limit=6
  $region2: #{asi_forward.9} parent=0 // loop_pre_header
    _
  $region3: #{asi_forward.9} parent=0 // loop_header
    %s9 = sphi 0, %s13
    %p10 = scmp.ge.s32.totalorder %s9, 6
    %s19 = sphi 0, %s21
    %s22 = sphi 0, %s19
    %s23 = sphi 0, %s22
    %s39 = sphi 0, %s23
    %s43 = sphi 0, %s43
    %s45 = sphi 0, %s43
    %s46 = sphi 0, %s45
    %s60 = sphi 0, %s46
    %s64 = sphi 0, %s64
    %s66 = sphi 0, %s64
    %s67 = sphi 0, %s66
    %s81 = sphi 0, %s67
    %s87 = sphi 0, %s89
    %s90 = sphi 0, %s87
    %s91 = sphi 0, %s90
    %s107 = sphi 0, %s91
  $region4: #{asi_forward.9} parent=0 // loop_header_branch
    %12 = sbr.rel (%p10) target = $region8
  $region5: #{asi_forward.9} parent=0 // loop_body
    %s14 = ssub.s32 %s9, 1
    %s15 = ssub.s32 %s9, 2
    %s16 = sadd.s32 %s9, 1
    %s17 = ssub.s32 %s9, %s16
    %p18 = scmp.eq.s32.totalorder %s17, 0
    %s20 = sadd.s32 %s19, 1
    %s21 = scalar_select %p18, %s19, %s20
    %p24 = pneg %p18
    %p25 = scmp.eq.s32.totalorder %s9, 3
    %p26 = por %p24, %p25
    %p27 = scmp.ne.s32.totalorder %s19, %s22
    %p28 = scmp.eq.s32.totalorder %s9, 0
    %p29 = por %p27, %p28
    %p30 = scmp.ne.s32.totalorder %s19, %s22
    %p31 = scmp.eq.s32.totalorder %s14, 3
    %p32 = por %p30, %p31
    %p33 = scmp.ne.s32.totalorder %s22, %s23
    %p34 = scmp.eq.s32.totalorder %s14, 0
    %p35 = por %p33, %p34
    %p36 = scmp.ne.s32.totalorder %s22, %s23
    %p37 = scmp.eq.s32.totalorder %s15, 3
    %p38 = por %p36, %p37
    %p40 = scmp.ne.s32.totalorder %s23, %s39
    %p41 = scmp.eq.s32.totalorder %s15, 0
    %p42 = por %p40, %p41
    %s44 = sadd.s32 %s43, 1
    %p47 = scmp.eq.s32.totalorder %s9, 3
    %p48 = scmp.ne.s32.totalorder %s43, %s45
    %p49 = scmp.eq.s32.totalorder %s9, 0
    %p50 = por %p48, %p49
    %p51 = scmp.ne.s32.totalorder %s43, %s45
    %p52 = scmp.eq.s32.totalorder %s14, 3
    %p53 = por %p51, %p52
    %p54 = scmp.ne.s32.totalorder %s45, %s46
    %p55 = scmp.eq.s32.totalorder %s14, 0
    %p56 = por %p54, %p55
    %p57 = scmp.ne.s32.totalorder %s45, %s46
    %p58 = scmp.eq.s32.totalorder %s15, 3
    %p59 = por %p57, %p58
    %p61 = scmp.ne.s32.totalorder %s46, %s60
    %p62 = scmp.eq.s32.totalorder %s15, 0
    %p63 = por %p61, %p62
    %s65 = sadd.s32 %s64, 1
    %p68 = scmp.eq.s32.totalorder %s9, 3
    %p69 = scmp.ne.s32.totalorder %s64, %s66
    %p70 = scmp.eq.s32.totalorder %s9, 0
    %p71 = por %p69, %p70
    %p72 = scmp.ne.s32.totalorder %s64, %s66
    %p73 = scmp.eq.s32.totalorder %s14, 3
    %p74 = por %p72, %p73
    %p75 = scmp.ne.s32.totalorder %s66, %s67
    %p76 = scmp.eq.s32.totalorder %s14, 0
    %p77 = por %p75, %p76
    %p78 = scmp.ne.s32.totalorder %s66, %s67
    %p79 = scmp.eq.s32.totalorder %s15, 3
    %p80 = por %p78, %p79
    %p82 = scmp.ne.s32.totalorder %s67, %s81
    %p83 = scmp.eq.s32.totalorder %s15, 0
    %p84 = por %p82, %p83
    %s85 = ssub.s32 %s9, %s16
    %p86 = scmp.eq.s32.totalorder %s85, 0
    %s88 = sadd.s32 %s87, 1
    %s89 = scalar_select %p86, %s87, %s88
    %p92 = pneg %p86
    %p93 = scmp.eq.s32.totalorder %s9, 3
    %p94 = por %p92, %p93
    %p95 = scmp.ne.s32.totalorder %s87, %s90
    %p96 = scmp.eq.s32.totalorder %s9, 0
    %p97 = por %p95, %p96
    %p98 = scmp.ne.s32.totalorder %s87, %s90
    %p99 = scmp.eq.s32.totalorder %s14, 3
    %p100 = por %p98, %p99
    %p101 = scmp.ne.s32.totalorder %s90, %s91
    %p102 = scmp.eq.s32.totalorder %s14, 0
    %p103 = por %p101, %p102
    %p104 = scmp.ne.s32.totalorder %s90, %s91
    %p105 = scmp.eq.s32.totalorder %s15, 3
    %p106 = por %p104, %p105
    %p108 = scmp.ne.s32.totalorder %s91, %s107
    %p109 = scmp.eq.s32.totalorder %s15, 0
    %p110 = por %p108, %p109
    %p111 = scmp.le.s32.totalorder 1, %s9
    %p112 = scmp.lt.s32.totalorder %s9, 5
    %p113 = pnand %p111, %p112
    %p114 = pneg %p113
    // Predicated region
    $region9: #{asi_forward.9} parent=5 // pred_check
      _
    $region10: #{asi_forward.9} parent=5 // pred_check_branch
      %116 = sbr.rel (%p113) target = $region12
    $region11: #{asi_forward.9} parent=5 // pred_region
      %s117 = ssub.s32 %s9, 1
      // Predicated region
      $region13: #{asi_forward.9} parent=11 // pred_check
        %p118 = pneg %p56
      $region14: #{asi_forward.9} parent=11 // pred_check_branch
        %120 = sbr.rel (%p118) target = $region16
      $region15: #{asi_forward.9} parent=11 // pred_region
        _
      $region16: #{asi_forward.9} parent=11 // pred_fallthru
        _
      // Predicated region
      $region17: #{asi_forward.9} parent=11 // pred_check
        %p121 = pneg %p77
      $region18: #{asi_forward.9} parent=11 // pred_check_branch
        %123 = sbr.rel (%p121) target = $region20
      $region19: #{asi_forward.9} parent=11 // pred_region
        _
      $region20: #{asi_forward.9} parent=11 // pred_fallthru
        _
    $region12: #{asi_forward.9} parent=5 // pred_fallthru
      _
    %p124 = scmp.lt.s32.totalorder %s9, 4
    // Predicated region
    $region21: #{asi_forward.9} parent=5 // pred_check
      %p125 = pneg %p124
    $region22: #{asi_forward.9} parent=5 // pred_check_branch
      %127 = sbr.rel (%p125) target = $region24
    $region23: #{asi_forward.9} parent=5 // pred_region
      // Predicated region
      $region25: #{asi_forward.9} parent=23 // pred_check
        %p128 = pneg %p29
      $region26: #{asi_forward.9} parent=23 // pred_check_branch
        %130 = sbr.rel (%p128) target = $region28
      $region27: #{asi_forward.9} parent=23 // pred_region
        %p131 = scmp.lt.s32.totalorder %s9, 3
        %s132 = scalar_select %p131, %s9, 3
        %s133 = smul.addr %s132, 36
        %s134 = smul.addr %s133, 4
        %s135 = scalar_lea.vmem %s0, %s134
      $region28: #{asi_forward.9} parent=23 // pred_fallthru
        _
    $region24: #{asi_forward.9} parent=5 // pred_fallthru
      _
    %p136 = scmp.le.s32.totalorder 1, %s9
    %p137 = scmp.lt.s32.totalorder %s9, 5
    %p138 = pnand %p136, %p137
    %p139 = pneg %p138
    // Predicated region
    $region29: #{asi_forward.9} parent=5 // pred_check
      _
    $region30: #{asi_forward.9} parent=5 // pred_check_branch
      %141 = sbr.rel (%p138) target = $region32
    $region31: #{asi_forward.9} parent=5 // pred_region
      %s142 = ssub.s32 %s9, 1
      %p143 = scmp.lt.s32.totalorder %s14, 3
      %s144 = scalar_select %p143, %s14, 3
      %s145 = smul.addr %s144, 36
      %s146 = smul.addr %s145, 4
      %s147 = scalar_lea.vmem %s0, %s146
      %p148 = pneg %p35
      %p149 = pneg %p32
      %p150 = pneg %p56
      %p151 = pneg %p53
      %p152 = pneg %p77
      %p153 = pneg %p74
      %p154 = pneg %p103
      %p155 = pneg %p100
      %p156 = scmp.lt.s32.totalorder %s14, 3
      %s157 = scalar_select %p156, %s14, 3
      %s158 = smul.addr %s157, 32
      %s159 = smul.addr %s158, 8
      %s160 = scalar_lea.vmem %s3, %s159
      %p161 = scmp.lt.s32.totalorder %s14, 3
      %s162 = scalar_select %p161, %s14, 3
      %s163 = smul.addr %s162, 36
      %s164 = smul.addr %s163, 4
      %s165 = scalar_lea.vmem %s0, %s164
      %p166 = scmp.lt.s32.totalorder %s14, 3
      %s167 = scalar_select %p166, %s14, 3
      %s168 = smul.addr %s167, 32
      %s169 = smul.addr %s168, 8
      %s170 = scalar_lea.vmem %s3, %s169
      %v172 = vld [vmem:[%s165] sm:$0xf]
      %v173 = vld [vmem:[%s165 + $0x4] sm:$0xf]
      %v174 = vld [vmem:[%s165 + $0x8] sm:$0xf]
      %v175 = vld [vmem:[%s165 + $0xc] sm:$0xf]
      %v176 = vld [vmem:[%s165 + $0x10] sm:$0xf]
      %v177 = vld [vmem:[%s165 + $0x14] sm:$0xf]
      %v178 = vld [vmem:[%s165 + $0x18] sm:$0xf]
      %v179 = vld [vmem:[%s165 + $0x1c] sm:$0xf]
      %v180 = vld [vmem:[%s165 + $0x20] sm:$0xf]
      %v181 = vld [vmem:[%s165 + $0x24] sm:$0xf]
      %v182 = vld [vmem:[%s165 + $0x28] sm:$0xf]
      %v183 = vld [vmem:[%s165 + $0x2c] sm:$0xf]
      %v184 = vld [vmem:[%s165 + $0x30] sm:$0xf]
      %v185 = vld [vmem:[%s165 + $0x34] sm:$0xf]
      %v186 = vld [vmem:[%s165 + $0x38] sm:$0xf]
      %v187 = vld [vmem:[%s165 + $0x3c] sm:$0xf]
      %v188 = vld [vmem:[%s165 + $0x40] sm:$0xf]
      %v189 = vld [vmem:[%s165 + $0x44] sm:$0xf]
      %v190 = vld [vmem:[%s165 + $0x48] sm:$0xf]
      %v191 = vld [vmem:[%s165 + $0x4c] sm:$0xf]
      %v192 = vld [vmem:[%s165 + $0x50] sm:$0xf]
      %v193 = vld [vmem:[%s165 + $0x54] sm:$0xf]
      %v194 = vld [vmem:[%s165 + $0x58] sm:$0xf]
      %v195 = vld [vmem:[%s165 + $0x5c] sm:$0xf]
      %v196 = vld [vmem:[%s165 + $0x60] sm:$0xf]
      %v197 = vld [vmem:[%s165 + $0x64] sm:$0xf]
      %v198 = vld [vmem:[%s165 + $0x68] sm:$0xf]
      %v199 = vld [vmem:[%s165 + $0x6c] sm:$0xf]
      %v200 = vld [vmem:[%s165 + $0x70] sm:$0xf]
      %v201 = vld [vmem:[%s165 + $0x74] sm:$0xf]
      %v202 = vld [vmem:[%s165 + $0x78] sm:$0xf]
      %v203 = vld [vmem:[%s165 + $0x7c] sm:$0xf]
      %v204 = vld [vmem:[%s1] sm:$0xf]
      %v205 = vld [vmem:[%s1 + $0x4] sm:$0xf]
      %v206 = vld [vmem:[%s1 + $0x8] sm:$0xf]
      %v207 = vld [vmem:[%s1 + $0xc] sm:$0xf]
      %v208 = vld [vmem:[%s1 + $0x10] sm:$0xf]
      %v209 = vld [vmem:[%s1 + $0x14] sm:$0xf]
      %v210 = vld [vmem:[%s1 + $0x18] sm:$0xf]
      %v211 = vld [vmem:[%s1 + $0x1c] sm:$0xf]
      %v212 = vld [vmem:[%s1 + $0x20] sm:$0xf]
      %v213 = vld [vmem:[%s1 + $0x24] sm:$0xf]
      %v214 = vld [vmem:[%s1 + $0x28] sm:$0xf]
      %v215 = vld [vmem:[%s1 + $0x2c] sm:$0xf]
      %v216 = vld [vmem:[%s165 + $0x80] sm:$0xf]
      %v217 = vld [vmem:[%s165 + $0x84] sm:$0xf]
      %s218 = scalar_lea.vmem %s1, 48
      %v219 = vld [vmem:[%s218] sm:$0xf]
      %v220 = vld [vmem:[%s218 + $0x4] sm:$0xf]
      %v221 = vld [vmem:[%s218 + $0x8] sm:$0xf]
      %v222 = vld [vmem:[%s218 + $0xc] sm:$0xf]
      %v223 = vld [vmem:[%s218 + $0x10] sm:$0xf]
      %v224 = vld [vmem:[%s218 + $0x14] sm:$0xf]
      %v225 = vld [vmem:[%s218 + $0x18] sm:$0xf]
      %v226 = vld [vmem:[%s218 + $0x1c] sm:$0xf]
      %v227 = vld [vmem:[%s218 + $0x20] sm:$0xf]
      %v228 = vld [vmem:[%s218 + $0x24] sm:$0xf]
      %v229 = vld [vmem:[%s218 + $0x28] sm:$0xf]
      %v230 = vld [vmem:[%s218 + $0x2c] sm:$0xf]
      %v263 = vunpack.c.l.b16 %v174
      %v264 = vunpack.c.l.b16 %v175
      %v265 = vunpack.c.l.b16 %v176
      %v266 = vunpack.c.l.b16 %v177
      %v267 = vunpack.c.l.b16 %v178
      %v268 = vunpack.c.l.b16 %v179
      %v269 = vunpack.c.l.b16 %v180
      %v270 = vunpack.c.l.b16 %v181
      %v271 = vunpack.c.l.b16 %v182
      %v272 = vunpack.c.l.b16 %v183
      %v273 = vunpack.c.l.b16 %v184
      %v274 = vunpack.c.l.b16 %v185
      %v275 = vunpack.c.l.b16 %v186
      %v276 = vunpack.c.l.b16 %v187
      %v277 = vunpack.c.l.b16 %v188
      %v278 = vunpack.c.l.b16 %v189
      %v279 = vunpack.c.l.b16 %v190
      %v280 = vunpack.c.l.b16 %v191
      %v281 = vunpack.c.l.b16 %v192
      %v282 = vunpack.c.l.b16 %v193
      %v283 = vunpack.c.l.b16 %v194
      %v284 = vunpack.c.l.b16 %v195
      %v285 = vunpack.c.l.b16 %v196
      %v286 = vunpack.c.l.b16 %v197
      %v287 = vunpack.c.l.b16 %v198
      %v288 = vunpack.c.l.b16 %v199
      %v289 = vunpack.c.l.b16 %v200
      %v290 = vunpack.c.l.b16 %v201
      %v291 = vunpack.c.l.b16 %v202
      %v292 = vunpack.c.l.b16 %v203
      %v293 = vunpack.c.l.b16 %v216
      %v294 = vunpack.c.l.b16 %v217
      %v295 = vpack.c.b16 %v264, %v263
      %v296 = vpack.c.b16 %v266, %v265
      %v297 = vpack.c.b16 %v268, %v267
      %v298 = vpack.c.b16 %v270, %v269
      %v299 = vpack.c.b16 %v272, %v271
      %v300 = vpack.c.b16 %v274, %v273
      %v301 = vpack.c.b16 %v276, %v275
      %v302 = vpack.c.b16 %v278, %v277
      %v303 = vpack.c.b16 %v280, %v279
      %v304 = vpack.c.b16 %v282, %v281
      %v305 = vpack.c.b16 %v284, %v283
      %v306 = vpack.c.b16 %v286, %v285
      %v307 = vpack.c.b16 %v288, %v287
      %v308 = vpack.c.b16 %v290, %v289
      %v309 = vpack.c.b16 %v292, %v291
      %v310 = vpack.c.b16 %v294, %v293
      %v323 = vunpack.c.l.b16 %v219
      %v324 = vunpack.c.l.b16 %v220
      %v325 = vunpack.c.l.b16 %v221
      %v326 = vunpack.c.l.b16 %v222
      %v327 = vunpack.c.l.b16 %v223
      %v328 = vunpack.c.l.b16 %v224
      %v329 = vunpack.c.l.b16 %v225
      %v330 = vunpack.c.l.b16 %v226
      %v331 = vunpack.c.l.b16 %v227
      %v332 = vunpack.c.l.b16 %v228
      %v333 = vunpack.c.l.b16 %v229
      %v334 = vunpack.c.l.b16 %v230
      %v335 = vpack.c.b16 %v324, %v323
      %v336 = vpack.c.b16 %v326, %v325
      %v337 = vpack.c.b16 %v328, %v327
      %v338 = vpack.c.b16 %v330, %v329
      %v339 = vpack.c.b16 %v332, %v331
      %v340 = vpack.c.b16 %v334, %v333
      %vm347 = vcmask 785408
      %v349 = vsel %vm347, %v295, 0
      %v352 = vsel %vm347, %v296, 0
      %v355 = vsel %vm347, %v297, 0
      %v358 = vsel %vm347, %v298, 0
      %v361 = vsel %vm347, %v299, 0
      %v364 = vsel %vm347, %v300, 0
      %v367 = vsel %vm347, %v301, 0
      %v370 = vsel %vm347, %v302, 0
      %v373 = vsel %vm347, %v303, 0
      %v376 = vsel %vm347, %v304, 0
      %v379 = vsel %vm347, %v305, 0
      %v382 = vsel %vm347, %v306, 0
      %v385 = vsel %vm347, %v307, 0
      %v388 = vsel %vm347, %v308, 0
      %v391 = vsel %vm347, %v309, 0
      %v394 = vsel %vm347, %v310, 0
      %396 = vmatprep.subr.bf16.mxu0 0
      %397 = vmatpush1.bf16.msra.mxu0 %v335
      %398 = vmatprep.subr.bf16.mxu0 0
      %399 = vmatpush1.bf16.msra.mxu0 %v336
      %400 = vmatprep.subr.bf16.mxu0 0
      %401 = vmatpush1.bf16.msra.mxu0 %v337
      %402 = vmatprep.subr.bf16.mxu0 0
      %403 = vmatpush1.bf16.msra.mxu0 %v338
      %404 = vmatprep.subr.bf16.mxu0 0
      %405 = vmatpush1.bf16.msra.mxu0 %v339
      %406 = vmatprep.subr.bf16.mxu0 0
      %407 = vmatpush1.bf16.msra.mxu0 %v340
      %408 = vmatprep.subr.bf16.mxu0 0
      %409 = vmatpush1.bf16.msra.mxu0 0
      %410 = vmatprep.subr.bf16.mxu0 0
      %411 = vmatpush1.bf16.msra.mxu0 0
      %412 = vmatprep.subr.bf16.mxu0 0
      %413 = vmatpush1.bf16.msra.mxu0 0
      %414 = vmatprep.subr.bf16.mxu0 0
      %415 = vmatpush1.bf16.msra.mxu0 0
      %416 = vmatprep.subr.bf16.mxu0 0
      %417 = vmatpush1.bf16.msra.mxu0 0
      %418 = vmatprep.subr.bf16.mxu0 0
      %419 = vmatpush1.bf16.msra.mxu0 0
      %420 = vmatprep.subr.bf16.mxu0 0
      %421 = vmatpush1.bf16.msra.mxu0 0
      %422 = vmatprep.subr.bf16.mxu0 0
      %423 = vmatpush1.bf16.msra.mxu0 0
      %424 = vmatprep.subr.bf16.mxu0 0
      %425 = vmatpush1.bf16.msra.mxu0 0
      %426 = vmatprep.subr.bf16.mxu0 0
      %427 = vmatpush1.bf16.msra.mxu0 0
      %428 = vmatprep.mubr.bf16.mxu0 0
      %429 = vmatmul.mubr.bf16.gmra.mrb[0].mxu0 %v349
      %v430 = vpop.f32.mrb[0].mxu0
      %v431 = vadd.f32 0.0, %v430
      %v432 = vpop.f32.mrb[0].mxu0
      %v433 = vpop.f32.mrb[0].mxu0
      %v434 = vadd.f32 0.0, %v433
      %v435 = vpop.f32.mrb[0].mxu0
      %436 = vmatprep.mubr.bf16.mxu0 0
      %437 = vmatmul.mubr.bf16.gmra.mrb[0].mxu0 %v352
      %v438 = vpop.f32.mrb[0].mxu0
      %v439 = vadd.f32 0.0, %v438
      %v440 = vpop.f32.mrb[0].mxu0
      %v441 = vpop.f32.mrb[0].mxu0
      %v442 = vadd.f32 0.0, %v441
      %v443 = vpop.f32.mrb[0].mxu0
      %444 = vmatprep.mubr.bf16.mxu0 0
      %445 = vmatmul.mubr.bf16.gmra.mrb[0].mxu0 %v355
      %v446 = vpop.f32.mrb[0].mxu0
      %v447 = vadd.f32 0.0, %v446
      %v448 = vpop.f32.mrb[0].mxu0
      %v449 = vpop.f32.mrb[0].mxu0
      %v450 = vadd.f32 0.0, %v449
      %v451 = vpop.f32.mrb[0].mxu0
      %452 = vmatprep.mubr.bf16.mxu0 0
      %453 = vmatmul.mubr.bf16.gmra.mrb[0].mxu0 %v358
      %v454 = vpop.f32.mrb[0].mxu0
      %v455 = vadd.f32 0.0, %v454
      %v456 = vpop.f32.mrb[0].mxu0
      %v457 = vpop.f32.mrb[0].mxu0
      %v458 = vadd.f32 0.0, %v457
      %v459 = vpop.f32.mrb[0].mxu0
      %460 = vmatprep.mubr.bf16.mxu0 0
      %461 = vmatmul.mubr.bf16.gmra.mrb[0].mxu0 %v361
      %v462 = vpop.f32.mrb[0].mxu0
      %v463 = vadd.f32 0.0, %v462
      %v464 = vpop.f32.mrb[0].mxu0
      %v465 = vpop.f32.mrb[0].mxu0
      %v466 = vadd.f32 0.0, %v465
      %v467 = vpop.f32.mrb[0].mxu0
      %468 = vmatprep.mubr.bf16.mxu0 0
      %469 = vmatmul.mubr.bf16.gmra.mrb[0].mxu0 %v364
      %v470 = vpop.f32.mrb[0].mxu0
      %v471 = vadd.f32 0.0, %v470
      %v472 = vpop.f32.mrb[0].mxu0
      %v473 = vpop.f32.mrb[0].mxu0
      %v474 = vadd.f32 0.0, %v473
      %v475 = vpop.f32.mrb[0].mxu0
      %476 = vmatprep.mubr.bf16.mxu0 0
      %477 = vmatmul.mubr.bf16.gmra.mrb[0].mxu0 %v367
      %v478 = vpop.f32.mrb[0].mxu0
      %v479 = vadd.f32 0.0, %v478
      %v480 = vpop.f32.mrb[0].mxu0
      %v481 = vpop.f32.mrb[0].mxu0
      %v482 = vadd.f32 0.0, %v481
      %v483 = vpop.f32.mrb[0].mxu0
      %484 = vmatprep.mubr.bf16.mxu0 0
      %485 = vmatmul.mubr.bf16.gmra.mrb[0].mxu0 %v370
      %v486 = vpop.f32.mrb[0].mxu0
      %v487 = vadd.f32 0.0, %v486
      %v488 = vpop.f32.mrb[0].mxu0
      %v489 = vpop.f32.mrb[0].mxu0
      %v490 = vadd.f32 0.0, %v489
      %v491 = vpop.f32.mrb[0].mxu0
      %492 = vmatprep.mubr.bf16.mxu0 0
      %493 = vmatmul.mubr.bf16.gmra.mrb[0].mxu0 %v373
      %v494 = vpop.f32.mrb[0].mxu0
      %v495 = vadd.f32 0.0, %v494
      %v496 = vpop.f32.mrb[0].mxu0
      %v497 = vpop.f32.mrb[0].mxu0
      %v498 = vadd.f32 0.0, %v497
      %v499 = vpop.f32.mrb[0].mxu0
      %500 = vmatprep.mubr.bf16.mxu0 0
      %501 = vmatmul.mubr.bf16.gmra.mrb[0].mxu0 %v376
      %v502 = vpop.f32.mrb[0].mxu0
      %v503 = vadd.f32 0.0, %v502
      %v504 = vpop.f32.mrb[0].mxu0
      %v505 = vpop.f32.mrb[0].mxu0
      %v506 = vadd.f32 0.0, %v505
      %v507 = vpop.f32.mrb[0].mxu0
      %508 = vmatprep.mubr.bf16.mxu0 0
      %509 = vmatmul.mubr.bf16.gmra.mrb[0].mxu0 %v379
      %v510 = vpop.f32.mrb[0].mxu0
      %v511 = vadd.f32 0.0, %v510
      %v512 = vpop.f32.mrb[0].mxu0
      %v513 = vpop.f32.mrb[0].mxu0
      %v514 = vadd.f32 0.0, %v513
      %v515 = vpop.f32.mrb[0].mxu0
      %516 = vmatprep.mubr.bf16.mxu0 0
      %517 = vmatmul.mubr.bf16.gmra.mrb[0].mxu0 %v382
      %v518 = vpop.f32.mrb[0].mxu0
      %v519 = vadd.f32 0.0, %v518
      %v520 = vpop.f32.mrb[0].mxu0
      %v521 = vpop.f32.mrb[0].mxu0
      %v522 = vadd.f32 0.0, %v521
      %v523 = vpop.f32.mrb[0].mxu0
      %524 = vmatprep.mubr.bf16.mxu0 0
      %525 = vmatmul.mubr.bf16.gmra.mrb[0].mxu0 %v385
      %v526 = vpop.f32.mrb[0].mxu0
      %v527 = vadd.f32 0.0, %v526
      %v528 = vpop.f32.mrb[0].mxu0
      %v529 = vpop.f32.mrb[0].mxu0
      %v530 = vadd.f32 0.0, %v529
      %v531 = vpop.f32.mrb[0].mxu0
      %532 = vmatprep.mubr.bf16.mxu0 0
      %533 = vmatmul.mubr.bf16.gmra.mrb[0].mxu0 %v388
      %v534 = vpop.f32.mrb[0].mxu0
      %v535 = vadd.f32 0.0, %v534
      %v536 = vpop.f32.mrb[0].mxu0
      %v537 = vpop.f32.mrb[0].mxu0
      %v538 = vadd.f32 0.0, %v537
      %v539 = vpop.f32.mrb[0].mxu0
      %540 = vmatprep.mubr.bf16.mxu0 0
      %541 = vmatmul.mubr.bf16.gmra.mrb[0].mxu0 %v391
      %v542 = vpop.f32.mrb[0].mxu0
      %v543 = vadd.f32 0.0, %v542
      %v544 = vpop.f32.mrb[0].mxu0
      %v545 = vpop.f32.mrb[0].mxu0
      %v546 = vadd.f32 0.0, %v545
      %v547 = vpop.f32.mrb[0].mxu0
      %548 = vmatprep.mubr.bf16.mxu0 0
      %549 = vmatmul.mubr.bf16.gmra.mrb[0].mxu0 %v394
      %v550 = vpop.f32.mrb[0].mxu0
      %v551 = vadd.f32 0.0, %v550
      %v552 = vpop.f32.mrb[0].mxu0
      %v553 = vpop.f32.mrb[0].mxu0
      %v554 = vadd.f32 0.0, %v553
      %v555 = vpop.f32.mrb[0].mxu0
      %556 = vdwg.mxu0
      %v559 = vunpack.c.l.b16 %v172
      %v560 = vunpack.c.l.b16 %v173
      %v561 = vpack.c.b16 %v560, %v559
      %v574 = vunpack.c.l.b16 %v204
      %v575 = vunpack.c.l.b16 %v205
      %v576 = vunpack.c.l.b16 %v206
      %v577 = vunpack.c.l.b16 %v207
      %v578 = vunpack.c.l.b16 %v208
      %v579 = vunpack.c.l.b16 %v209
      %v580 = vunpack.c.l.b16 %v210
      %v581 = vunpack.c.l.b16 %v211
      %v582 = vunpack.c.l.b16 %v212
      %v583 = vunpack.c.l.b16 %v213
      %v584 = vunpack.c.l.b16 %v214
      %v585 = vunpack.c.l.b16 %v215
      %v586 = vpack.c.b16 %v575, %v574
      %v587 = vpack.c.b16 %v577, %v576
      %v588 = vpack.c.b16 %v579, %v578
      %v589 = vpack.c.b16 %v581, %v580
      %v590 = vpack.c.b16 %v583, %v582
      %v591 = vpack.c.b16 %v585, %v584
      %v599 = vsel %vm347, %v561, 0
      %601 = vmatprep.subr.bf16.mxu0 0
      %602 = vmatpush1.bf16.msra.mxu0 %v586
      %603 = vmatprep.subr.bf16.mxu0 0
      %604 = vmatpush1.bf16.msra.mxu0 %v587
      %605 = vmatprep.subr.bf16.mxu0 0
      %606 = vmatpush1.bf16.msra.mxu0 %v588
      %607 = vmatprep.subr.bf16.mxu0 0
      %608 = vmatpush1.bf16.msra.mxu0 %v589
      %609 = vmatprep.subr.bf16.mxu0 0
      %610 = vmatpush1.bf16.msra.mxu0 %v590
      %611 = vmatprep.subr.bf16.mxu0 0
      %612 = vmatpush1.bf16.msra.mxu0 %v591
      %613 = vmatprep.subr.bf16.mxu0 0
      %614 = vmatpush1.bf16.msra.mxu0 0
      %615 = vmatprep.subr.bf16.mxu0 0
      %616 = vmatpush1.bf16.msra.mxu0 0
      %617 = vmatprep.subr.bf16.mxu0 0
      %618 = vmatpush1.bf16.msra.mxu0 0
      %619 = vmatprep.subr.bf16.mxu0 0
      %620 = vmatpush1.bf16.msra.mxu0 0
      %621 = vmatprep.subr.bf16.mxu0 0
      %622 = vmatpush1.bf16.msra.mxu0 0
      %623 = vmatprep.subr.bf16.mxu0 0
      %624 = vmatpush1.bf16.msra.mxu0 0
      %625 = vmatprep.subr.bf16.mxu0 0
      %626 = vmatpush1.bf16.msra.mxu0 0
      %627 = vmatprep.subr.bf16.mxu0 0
      %628 = vmatpush1.bf16.msra.mxu0 0
      %629 = vmatprep.subr.bf16.mxu0 0
      %630 = vmatpush1.bf16.msra.mxu0 0
      %631 = vmatprep.subr.bf16.mxu0 0
      %632 = vmatpush1.bf16.msra.mxu0 0
      %633 = vmatprep.mubr.bf16.mxu0 0
      %634 = vmatmul.mubr.bf16.gmra.mrb[0].mxu0 %v599
      %v635 = vpop.f32.mrb[0].mxu0
      %v636 = vadd.f32 %v431, %v635
      %v637 = vpop.f32.mrb[0].mxu0
      %v638 = vpop.f32.mrb[0].mxu0
      %v639 = vadd.f32 %v434, %v638
      %v640 = vpop.f32.mrb[0].mxu0
      %641 = vmatprep.mubr.bf16.mxu0 0
      %642 = vmatmul.mubr.bf16.gmra.mrb[0].mxu0 %v349
      %v643 = vpop.f32.mrb[0].mxu0
      %v644 = vadd.f32 %v439, %v643
      %v645 = vpop.f32.mrb[0].mxu0
      %v646 = vpop.f32.mrb[0].mxu0
      %v647 = vadd.f32 %v442, %v646
      %v648 = vpop.f32.mrb[0].mxu0
      %649 = vmatprep.mubr.bf16.mxu0 0
      %650 = vmatmul.mubr.bf16.gmra.mrb[0].mxu0 %v352
      %v651 = vpop.f32.mrb[0].mxu0
      %v652 = vadd.f32 %v447, %v651
      %v653 = vpop.f32.mrb[0].mxu0
      %v654 = vpop.f32.mrb[0].mxu0
      %v655 = vadd.f32 %v450, %v654
      %v656 = vpop.f32.mrb[0].mxu0
      %657 = vmatprep.mubr.bf16.mxu0 0
      %658 = vmatmul.mubr.bf16.gmra.mrb[0].mxu0 %v355
      %v659 = vpop.f32.mrb[0].mxu0
      %v660 = vadd.f32 %v455, %v659
      %v661 = vpop.f32.mrb[0].mxu0
      %v662 = vpop.f32.mrb[0].mxu0
      %v663 = vadd.f32 %v458, %v662
      %v664 = vpop.f32.mrb[0].mxu0
      %665 = vmatprep.mubr.bf16.mxu0 0
      %666 = vmatmul.mubr.bf16.gmra.mrb[0].mxu0 %v358
      %v667 = vpop.f32.mrb[0].mxu0
      %v668 = vadd.f32 %v463, %v667
      %v669 = vpop.f32.mrb[0].mxu0
      %v670 = vpop.f32.mrb[0].mxu0
      %v671 = vadd.f32 %v466, %v670
      %v672 = vpop.f32.mrb[0].mxu0
      %673 = vmatprep.mubr.bf16.mxu0 0
      %674 = vmatmul.mubr.bf16.gmra.mrb[0].mxu0 %v361
      %v675 = vpop.f32.mrb[0].mxu0
      %v676 = vadd.f32 %v471, %v675
      %v677 = vpop.f32.mrb[0].mxu0
      %v678 = vpop.f32.mrb[0].mxu0
      %v679 = vadd.f32 %v474, %v678
      %v680 = vpop.f32.mrb[0].mxu0
      %681 = vmatprep.mubr.bf16.mxu0 0
      %682 = vmatmul.mubr.bf16.gmra.mrb[0].mxu0 %v364
      %v683 = vpop.f32.mrb[0].mxu0
      %v684 = vadd.f32 %v479, %v683
      %v685 = vpop.f32.mrb[0].mxu0
      %v686 = vpop.f32.mrb[0].mxu0
      %v687 = vadd.f32 %v482, %v686
      %v688 = vpop.f32.mrb[0].mxu0
      %689 = vmatprep.mubr.bf16.mxu0 0
      %690 = vmatmul.mubr.bf16.gmra.mrb[0].mxu0 %v367
      %v691 = vpop.f32.mrb[0].mxu0
      %v692 = vadd.f32 %v487, %v691
      %v693 = vpop.f32.mrb[0].mxu0
      %v694 = vpop.f32.mrb[0].mxu0
      %v695 = vadd.f32 %v490, %v694
      %v696 = vpop.f32.mrb[0].mxu0
      %697 = vmatprep.mubr.bf16.mxu0 0
      %698 = vmatmul.mubr.bf16.gmra.mrb[0].mxu0 %v370
      %v699 = vpop.f32.mrb[0].mxu0
      %v700 = vadd.f32 %v495, %v699
      %v701 = vpop.f32.mrb[0].mxu0
      %v702 = vpop.f32.mrb[0].mxu0
      %v703 = vadd.f32 %v498, %v702
      %v704 = vpop.f32.mrb[0].mxu0
      %705 = vmatprep.mubr.bf16.mxu0 0
      %706 = vmatmul.mubr.bf16.gmra.mrb[0].mxu0 %v373
      %v707 = vpop.f32.mrb[0].mxu0
      %v708 = vadd.f32 %v503, %v707
      %v709 = vpop.f32.mrb[0].mxu0
      %v710 = vpop.f32.mrb[0].mxu0
      %v711 = vadd.f32 %v506, %v710
      %v712 = vpop.f32.mrb[0].mxu0
      %713 = vmatprep.mubr.bf16.mxu0 0
      %714 = vmatmul.mubr.bf16.gmra.mrb[0].mxu0 %v376
      %v715 = vpop.f32.mrb[0].mxu0
      %v716 = vadd.f32 %v511, %v715
      %v717 = vpop.f32.mrb[0].mxu0
      %v718 = vpop.f32.mrb[0].mxu0
      %v719 = vadd.f32 %v514, %v718
      %v720 = vpop.f32.mrb[0].mxu0
      %721 = vmatprep.mubr.bf16.mxu0 0
      %722 = vmatmul.mubr.bf16.gmra.mrb[0].mxu0 %v379
      %v723 = vpop.f32.mrb[0].mxu0
      %v724 = vadd.f32 %v519, %v723
      %v725 = vpop.f32.mrb[0].mxu0
      %v726 = vpop.f32.mrb[0].mxu0
      %v727 = vadd.f32 %v522, %v726
      %v728 = vpop.f32.mrb[0].mxu0
      %729 = vmatprep.mubr.bf16.mxu0 0
      %730 = vmatmul.mubr.bf16.gmra.mrb[0].mxu0 %v382
      %v731 = vpop.f32.mrb[0].mxu0
      %v732 = vadd.f32 %v527, %v731
      %v733 = vpop.f32.mrb[0].mxu0
      %v734 = vpop.f32.mrb[0].mxu0
      %v735 = vadd.f32 %v530, %v734
      %v736 = vpop.f32.mrb[0].mxu0
      %737 = vmatprep.mubr.bf16.mxu0 0
      %738 = vmatmul.mubr.bf16.gmra.mrb[0].mxu0 %v385
      %v739 = vpop.f32.mrb[0].mxu0
      %v740 = vadd.f32 %v535, %v739
      %v741 = vpop.f32.mrb[0].mxu0
      %v742 = vpop.f32.mrb[0].mxu0
      %v743 = vadd.f32 %v538, %v742
      %v744 = vpop.f32.mrb[0].mxu0
      %745 = vmatprep.mubr.bf16.mxu0 0
      %746 = vmatmul.mubr.bf16.gmra.mrb[0].mxu0 %v388
      %v747 = vpop.f32.mrb[0].mxu0
      %v748 = vadd.f32 %v543, %v747
      %v749 = vpop.f32.mrb[0].mxu0
      %v750 = vpop.f32.mrb[0].mxu0
      %v751 = vadd.f32 %v546, %v750
      %v752 = vpop.f32.mrb[0].mxu0
      %753 = vmatprep.mubr.bf16.mxu0 0
      %754 = vmatmul.mubr.bf16.gmra.mrb[0].mxu0 %v391
      %v755 = vpop.f32.mrb[0].mxu0
      %v756 = vadd.f32 %v551, %v755
      %v757 = vpop.f32.mrb[0].mxu0
      %v758 = vpop.f32.mrb[0].mxu0
      %v759 = vadd.f32 %v554, %v758
      %v760 = vpop.f32.mrb[0].mxu0
      %761 = vdwg.mxu0
      %v762 = vld [vmem:[%s165 + $0x10] sm:$0xf]
      %v763 = vld [vmem:[%s165 + $0x14] sm:$0xf]
      %v764 = vld [vmem:[%s165 + $0x18] sm:$0xf]
      %v765 = vld [vmem:[%s165 + $0x1c] sm:$0xf]
      %v766 = vld [vmem:[%s165 + $0x20] sm:$0xf]
      %v767 = vld [vmem:[%s165 + $0x24] sm:$0xf]
      %v768 = vld [vmem:[%s165 + $0x28] sm:$0xf]
      %v769 = vld [vmem:[%s165 + $0x2c] sm:$0xf]
      %v770 = vld [vmem:[%s165 + $0x30] sm:$0xf]
      %v771 = vld [vmem:[%s165 + $0x34] sm:$0xf]
      %v772 = vld [vmem:[%s165 + $0x38] sm:$0xf]
      %v773 = vld [vmem:[%s165 + $0x3c] sm:$0xf]
      %v774 = vld [vmem:[%s165 + $0x40] sm:$0xf]
      %v775 = vld [vmem:[%s165 + $0x44] sm:$0xf]
      %v776 = vld [vmem:[%s165 + $0x48] sm:$0xf]
      %v777 = vld [vmem:[%s165 + $0x4c] sm:$0xf]
      %v778 = vld [vmem:[%s165 + $0x50] sm:$0xf]
      %v779 = vld [vmem:[%s165 + $0x54] sm:$0xf]
      %v780 = vld [vmem:[%s165 + $0x58] sm:$0xf]
      %v781 = vld [vmem:[%s165 + $0x5c] sm:$0xf]
      %v782 = vld [vmem:[%s165 + $0x60] sm:$0xf]
      %v783 = vld [vmem:[%s165 + $0x64] sm:$0xf]
      %v784 = vld [vmem:[%s165 + $0x68] sm:$0xf]
      %v785 = vld [vmem:[%s165 + $0x6c] sm:$0xf]
      %v786 = vld [vmem:[%s165 + $0x70] sm:$0xf]
      %v787 = vld [vmem:[%s165 + $0x74] sm:$0xf]
      %v788 = vld [vmem:[%s165 + $0x78] sm:$0xf]
      %v789 = vld [vmem:[%s165 + $0x7c] sm:$0xf]
      %v790 = vld [vmem:[%s165 + $0x80] sm:$0xf]
      %v791 = vld [vmem:[%s165 + $0x84] sm:$0xf]
      %v792 = vld [vmem:[%s165 + $0x88] sm:$0xf]
      %v793 = vld [vmem:[%s165 + $0x8c] sm:$0xf]
      %s794 = scalar_lea.vmem %s1, 96
      %v795 = vld [vmem:[%s794] sm:$0xf]
      %v796 = vld [vmem:[%s794 + $0x4] sm:$0xf]
      %v797 = vld [vmem:[%s794 + $0x8] sm:$0xf]
      %v798 = vld [vmem:[%s794 + $0xc] sm:$0xf]
      %v799 = vld [vmem:[%s794 + $0x10] sm:$0xf]
      %v800 = vld [vmem:[%s794 + $0x14] sm:$0xf]
      %v801 = vld [vmem:[%s794 + $0x18] sm:$0xf]
      %v802 = vld [vmem:[%s794 + $0x1c] sm:$0xf]
      %v803 = vld [vmem:[%s794 + $0x20] sm:$0xf]
      %v804 = vld [vmem:[%s794 + $0x24] sm:$0xf]
      %v805 = vld [vmem:[%s794 + $0x28] sm:$0xf]
      %v806 = vld [vmem:[%s794 + $0x2c] sm:$0xf]
      %v839 = vunpack.c.l.b16 %v762
      %v840 = vunpack.c.l.b16 %v763
      %v841 = vunpack.c.l.b16 %v764
      %v842 = vunpack.c.l.b16 %v765
      %v843 = vunpack.c.l.b16 %v766
      %v844 = vunpack.c.l.b16 %v767
      %v845 = vunpack.c.l.b16 %v768
      %v846 = vunpack.c.l.b16 %v769
      %v847 = vunpack.c.l.b16 %v770
      %v848 = vunpack.c.l.b16 %v771
      %v849 = vunpack.c.l.b16 %v772
      %v850 = vunpack.c.l.b16 %v773
      %v851 = vunpack.c.l.b16 %v774
      %v852 = vunpack.c.l.b16 %v775
      %v853 = vunpack.c.l.b16 %v776
      %v854 = vunpack.c.l.b16 %v777
      %v855 = vunpack.c.l.b16 %v778
      %v856 = vunpack.c.l.b16 %v779
      %v857 = vunpack.c.l.b16 %v780
      %v858 = vunpack.c.l.b16 %v781
      %v859 = vunpack.c.l.b16 %v782
      %v860 = vunpack.c.l.b16 %v783
      %v861 = vunpack.c.l.b16 %v784
      %v862 = vunpack.c.l.b16 %v785
      %v863 = vunpack.c.l.b16 %v786
      %v864 = vunpack.c.l.b16 %v787
      %v865 = vunpack.c.l.b16 %v788
      %v866 = vunpack.c.l.b16 %v789
      %v867 = vunpack.c.l.b16 %v790
      %v868 = vunpack.c.l.b16 %v791
      %v869 = vunpack.c.l.b16 %v792
      %v870 = vunpack.c.l.b16 %v793
      %v871 = vpack.c.b16 %v840, %v839
      %v872 = vpack.c.b16 %v842, %v841
      %v873 = vpack.c.b16 %v844, %v843
      %v874 = vpack.c.b16 %v846, %v845
      %v875 = vpack.c.b16 %v848, %v847
      %v876 = vpack.c.b16 %v850, %v849
      %v877 = vpack.c.b16 %v852, %v851
      %v878 = vpack.c.b16 %v854, %v853
      %v879 = vpack.c.b16 %v856, %v855
      %v880 = vpack.c.b16 %v858, %v857
      %v881 = vpack.c.b16 %v860, %v859
      %v882 = vpack.c.b16 %v862, %v861
      %v883 = vpack.c.b16 %v864, %v863
      %v884 = vpack.c.b16 %v866, %v865
      %v885 = vpack.c.b16 %v868, %v867
      %v886 = vpack.c.b16 %v870, %v869
      %v899 = vunpack.c.l.b16 %v795
      %v900 = vunpack.c.l.b16 %v796
      %v901 = vunpack.c.l.b16 %v797
      %v902 = vunpack.c.l.b16 %v798
      %v903 = vunpack.c.l.b16 %v799
      %v904 = vunpack.c.l.b16 %v800
      %v905 = vunpack.c.l.b16 %v801
      %v906 = vunpack.c.l.b16 %v802
      %v907 = vunpack.c.l.b16 %v803
      %v908 = vunpack.c.l.b16 %v804
      %v909 = vunpack.c.l.b16 %v805
      %v910 = vunpack.c.l.b16 %v806
      %v911 = vpack.c.b16 %v900, %v899
      %v912 = vpack.c.b16 %v902, %v901
      %v913 = vpack.c.b16 %v904, %v903
      %v914 = vpack.c.b16 %v906, %v905
      %v915 = vpack.c.b16 %v908, %v907
      %v916 = vpack.c.b16 %v910, %v909
      %v924 = vsel %vm347, %v871, 0
      %v927 = vsel %vm347, %v872, 0
      %v930 = vsel %vm347, %v873, 0
      %v933 = vsel %vm347, %v874, 0
      %v936 = vsel %vm347, %v875, 0
      %v939 = vsel %vm347, %v876, 0
      %v942 = vsel %vm347, %v877, 0
      %v945 = vsel %vm347, %v878, 0
      %v948 = vsel %vm347, %v879, 0
      %v951 = vsel %vm347, %v880, 0
      %v954 = vsel %vm347, %v881, 0
      %v957 = vsel %vm347, %v882, 0
      %v960 = vsel %vm347, %v883, 0
      %v963 = vsel %vm347, %v884, 0
      %v966 = vsel %vm347, %v885, 0
      %v969 = vsel %vm347, %v886, 0
      %971 = vmatprep.subr.bf16.mxu0 0
      %972 = vmatpush1.bf16.msra.mxu0 %v911
      %973 = vmatprep.subr.bf16.mxu0 0
      %974 = vmatpush1.bf16.msra.mxu0 %v912
      %975 = vmatprep.subr.bf16.mxu0 0
      %976 = vmatpush1.bf16.msra.mxu0 %v913
      %977 = vmatprep.subr.bf16.mxu0 0
      %978 = vmatpush1.bf16.msra.mxu0 %v914
      %979 = vmatprep.subr.bf16.mxu0 0
      %980 = vmatpush1.bf16.msra.mxu0 %v915
      %981 = vmatprep.subr.bf16.mxu0 0
      %982 = vmatpush1.bf16.msra.mxu0 %v916
      %983 = vmatprep.subr.bf16.mxu0 0
      %984 = vmatpush1.bf16.msra.mxu0 0
      %985 = vmatprep.subr.bf16.mxu0 0
      %986 = vmatpush1.bf16.msra.mxu0 0
      %987 = vmatprep.subr.bf16.mxu0 0
      %988 = vmatpush1.bf16.msra.mxu0 0
      %989 = vmatprep.subr.bf16.mxu0 0
      %990 = vmatpush1.bf16.msra.mxu0 0
      %991 = vmatprep.subr.bf16.mxu0 0
      %992 = vmatpush1.bf16.msra.mxu0 0
      %993 = vmatprep.subr.bf16.mxu0 0
      %994 = vmatpush1.bf16.msra.mxu0 0
      %995 = vmatprep.subr.bf16.mxu0 0
      %996 = vmatpush1.bf16.msra.mxu0 0
      %997 = vmatprep.subr.bf16.mxu0 0
      %998 = vmatpush1.bf16.msra.mxu0 0
      %999 = vmatprep.subr.bf16.mxu0 0
      %1000 = vmatpush1.bf16.msra.mxu0 0
      %1001 = vmatprep.subr.bf16.mxu0 0
      %1002 = vmatpush1.bf16.msra.mxu0 0
      %1003 = vmatprep.mubr.bf16.mxu0 0
      %1004 = vmatmul.mubr.bf16.gmra.mrb[0].mxu0 %v924
      %v1005 = vpop.f32.mrb[0].mxu0
      %v1006 = vadd.f32 0.0, %v1005
      %v1007 = vpop.f32.mrb[0].mxu0
      %v1008 = vpop.f32.mrb[0].mxu0
      %v1009 = vadd.f32 0.0, %v1008
      %v1010 = vpop.f32.mrb[0].mxu0
      %1011 = vmatprep.mubr.bf16.mxu0 0
      %1012 = vmatmul.mubr.bf16.gmra.mrb[0].mxu0 %v927
      %v1013 = vpop.f32.mrb[0].mxu0
      %v1014 = vadd.f32 0.0, %v1013
      %v1015 = vpop.f32.mrb[0].mxu0
      %v1016 = vpop.f32.mrb[0].mxu0
      %v1017 = vadd.f32 0.0, %v1016
      %v1018 = vpop.f32.mrb[0].mxu0
      %1019 = vmatprep.mubr.bf16.mxu0 0
      %1020 = vmatmul.mubr.bf16.gmra.mrb[0].mxu0 %v930
      %v1021 = vpop.f32.mrb[0].mxu0
      %v1022 = vadd.f32 0.0, %v1021
      %v1023 = vpop.f32.mrb[0].mxu0
      %v1024 = vpop.f32.mrb[0].mxu0
      %v1025 = vadd.f32 0.0, %v1024
      %v1026 = vpop.f32.mrb[0].mxu0
      %1027 = vmatprep.mubr.bf16.mxu0 0
      %1028 = vmatmul.mubr.bf16.gmra.mrb[0].mxu0 %v933
      %v1029 = vpop.f32.mrb[0].mxu0
      %v1030 = vadd.f32 0.0, %v1029
      %v1031 = vpop.f32.mrb[0].mxu0
      %v1032 = vpop.f32.mrb[0].mxu0
      %v1033 = vadd.f32 0.0, %v1032
      %v1034 = vpop.f32.mrb[0].mxu0
      %1035 = vmatprep.mubr.bf16.mxu0 0
      %1036 = vmatmul.mubr.bf16.gmra.mrb[0].mxu0 %v936
      %v1037 = vpop.f32.mrb[0].mxu0
      %v1038 = vadd.f32 0.0, %v1037
      %v1039 = vpop.f32.mrb[0].mxu0
      %v1040 = vpop.f32.mrb[0].mxu0
      %v1041 = vadd.f32 0.0, %v1040
      %v1042 = vpop.f32.mrb[0].mxu0
      %1043 = vmatprep.mubr.bf16.mxu0 0
      %1044 = vmatmul.mubr.bf16.gmra.mrb[0].mxu0 %v939
      %v1045 = vpop.f32.mrb[0].mxu0
      %v1046 = vadd.f32 0.0, %v1045
      %v1047 = vpop.f32.mrb[0].mxu0
      %v1048 = vpop.f32.mrb[0].mxu0
      %v1049 = vadd.f32 0.0, %v1048
      %v1050 = vpop.f32.mrb[0].mxu0
      %1051 = vmatprep.mubr.bf16.mxu0 0
      %1052 = vmatmul.mubr.bf16.gmra.mrb[0].mxu0 %v942
      %v1053 = vpop.f32.mrb[0].mxu0
      %v1054 = vadd.f32 0.0, %v1053
      %v1055 = vpop.f32.mrb[0].mxu0
      %v1056 = vpop.f32.mrb[0].mxu0
      %v1057 = vadd.f32 0.0, %v1056
      %v1058 = vpop.f32.mrb[0].mxu0
      %1059 = vmatprep.mubr.bf16.mxu0 0
      %1060 = vmatmul.mubr.bf16.gmra.mrb[0].mxu0 %v945
      %v1061 = vpop.f32.mrb[0].mxu0
      %v1062 = vadd.f32 0.0, %v1061
      %v1063 = vpop.f32.mrb[0].mxu0
      %v1064 = vpop.f32.mrb[0].mxu0
      %v1065 = vadd.f32 0.0, %v1064
      %v1066 = vpop.f32.mrb[0].mxu0
      %1067 = vmatprep.mubr.bf16.mxu0 0
      %1068 = vmatmul.mubr.bf16.gmra.mrb[0].mxu0 %v948
      %v1069 = vpop.f32.mrb[0].mxu0
      %v1070 = vadd.f32 0.0, %v1069
      %v1071 = vpop.f32.mrb[0].mxu0
      %v1072 = vpop.f32.mrb[0].mxu0
      %v1073 = vadd.f32 0.0, %v1072
      %v1074 = vpop.f32.mrb[0].mxu0
      %1075 = vmatprep.mubr.bf16.mxu0 0
      %1076 = vmatmul.mubr.bf16.gmra.mrb[0].mxu0 %v951
      %v1077 = vpop.f32.mrb[0].mxu0
      %v1078 = vadd.f32 0.0, %v1077
      %v1079 = vpop.f32.mrb[0].mxu0
      %v1080 = vpop.f32.mrb[0].mxu0
      %v1081 = vadd.f32 0.0, %v1080
      %v1082 = vpop.f32.mrb[0].mxu0
      %1083 = vmatprep.mubr.bf16.mxu0 0
      %1084 = vmatmul.mubr.bf16.gmra.mrb[0].mxu0 %v954
      %v1085 = vpop.f32.mrb[0].mxu0
      %v1086 = vadd.f32 0.0, %v1085
      %v1087 = vpop.f32.mrb[0].mxu0
      %v1088 = vpop.f32.mrb[0].mxu0
      %v1089 = vadd.f32 0.0, %v1088
      %v1090 = vpop.f32.mrb[0].mxu0
      %1091 = vmatprep.mubr.bf16.mxu0 0
      %1092 = vmatmul.mubr.bf16.gmra.mrb[0].mxu0 %v957
      %v1093 = vpop.f32.mrb[0].mxu0
      %v1094 = vadd.f32 0.0, %v1093
      %v1095 = vpop.f32.mrb[0].mxu0
      %v1096 = vpop.f32.mrb[0].mxu0
      %v1097 = vadd.f32 0.0, %v1096
      %v1098 = vpop.f32.mrb[0].mxu0
      %1099 = vmatprep.mubr.bf16.mxu0 0
      %1100 = vmatmul.mubr.bf16.gmra.mrb[0].mxu0 %v960
      %v1101 = vpop.f32.mrb[0].mxu0
      %v1102 = vadd.f32 0.0, %v1101
      %v1103 = vpop.f32.mrb[0].mxu0
      %v1104 = vpop.f32.mrb[0].mxu0
      %v1105 = vadd.f32 0.0, %v1104
      %v1106 = vpop.f32.mrb[0].mxu0
      %1107 = vmatprep.mubr.bf16.mxu0 0
      %1108 = vmatmul.mubr.bf16.gmra.mrb[0].mxu0 %v963
      %v1109 = vpop.f32.mrb[0].mxu0
      %v1110 = vadd.f32 0.0, %v1109
      %v1111 = vpop.f32.mrb[0].mxu0
      %v1112 = vpop.f32.mrb[0].mxu0
      %v1113 = vadd.f32 0.0, %v1112
      %v1114 = vpop.f32.mrb[0].mxu0
      %1115 = vmatprep.mubr.bf16.mxu0 0
      %1116 = vmatmul.mubr.bf16.gmra.mrb[0].mxu0 %v966
      %v1117 = vpop.f32.mrb[0].mxu0
      %v1118 = vadd.f32 0.0, %v1117
      %v1119 = vpop.f32.mrb[0].mxu0
      %v1120 = vpop.f32.mrb[0].mxu0
      %v1121 = vadd.f32 0.0, %v1120
      %v1122 = vpop.f32.mrb[0].mxu0
      %1123 = vmatprep.mubr.bf16.mxu0 0
      %1124 = vmatmul.mubr.bf16.gmra.mrb[0].mxu0 %v969
      %v1125 = vpop.f32.mrb[0].mxu0
      %v1126 = vadd.f32 0.0, %v1125
      %v1127 = vpop.f32.mrb[0].mxu0
      %v1128 = vpop.f32.mrb[0].mxu0
      %v1129 = vadd.f32 0.0, %v1128
      %v1130 = vpop.f32.mrb[0].mxu0
      %1131 = vdwg.mxu0
      %v1132 = vadd.f32 %v636, %v1006
      %v1133 = vadd.f32 %v639, %v1009
      %v1134 = vadd.f32 %v644, %v1014
      %v1135 = vadd.f32 %v647, %v1017
      %v1136 = vadd.f32 %v652, %v1022
      %v1137 = vadd.f32 %v655, %v1025
      %v1138 = vadd.f32 %v660, %v1030
      %v1139 = vadd.f32 %v663, %v1033
      %v1140 = vadd.f32 %v668, %v1038
      %v1141 = vadd.f32 %v671, %v1041
      %v1142 = vadd.f32 %v676, %v1046
      %v1143 = vadd.f32 %v679, %v1049
      %v1144 = vadd.f32 %v684, %v1054
      %v1145 = vadd.f32 %v687, %v1057
      %v1146 = vadd.f32 %v692, %v1062
      %v1147 = vadd.f32 %v695, %v1065
      %v1148 = vadd.f32 %v700, %v1070
      %v1149 = vadd.f32 %v703, %v1073
      %v1150 = vadd.f32 %v708, %v1078
      %v1151 = vadd.f32 %v711, %v1081
      %v1152 = vadd.f32 %v716, %v1086
      %v1153 = vadd.f32 %v719, %v1089
      %v1154 = vadd.f32 %v724, %v1094
      %v1155 = vadd.f32 %v727, %v1097
      %v1156 = vadd.f32 %v732, %v1102
      %v1157 = vadd.f32 %v735, %v1105
      %v1158 = vadd.f32 %v740, %v1110
      %v1159 = vadd.f32 %v743, %v1113
      %v1160 = vadd.f32 %v748, %v1118
      %v1161 = vadd.f32 %v751, %v1121
      %v1162 = vadd.f32 %v756, %v1126
      %v1163 = vadd.f32 %v759, %v1129
      %v1164 = vld [vmem:[%s2] sm:$0x1]
      %v1166 = vlaneseq
      %v1167 = vshrl.u32 %v1166, 7
      %v1168 = vsub.s32 0, %v1167
      %v1169 = vrot.slane %v1164, %v1168
      %v1171 = vadd.f32 %v1132, %v1169
      %v1172 = vadd.f32 %v1133, %v1169
      %v1173 = vadd.f32 %v1134, %v1169
      %v1174 = vadd.f32 %v1135, %v1169
      %v1175 = vadd.f32 %v1136, %v1169
      %v1176 = vadd.f32 %v1137, %v1169
      %v1177 = vadd.f32 %v1138, %v1169
      %v1178 = vadd.f32 %v1139, %v1169
      %v1179 = vadd.f32 %v1140, %v1169
      %v1180 = vadd.f32 %v1141, %v1169
      %v1181 = vadd.f32 %v1142, %v1169
      %v1182 = vadd.f32 %v1143, %v1169
      %v1183 = vadd.f32 %v1144, %v1169
      %v1184 = vadd.f32 %v1145, %v1169
      %v1185 = vadd.f32 %v1146, %v1169
      %v1186 = vadd.f32 %v1147, %v1169
      %v1187 = vadd.f32 %v1148, %v1169
      %v1188 = vadd.f32 %v1149, %v1169
      %v1189 = vadd.f32 %v1150, %v1169
      %v1190 = vadd.f32 %v1151, %v1169
      %v1191 = vadd.f32 %v1152, %v1169
      %v1192 = vadd.f32 %v1153, %v1169
      %v1193 = vadd.f32 %v1154, %v1169
      %v1194 = vadd.f32 %v1155, %v1169
      %v1195 = vadd.f32 %v1156, %v1169
      %v1196 = vadd.f32 %v1157, %v1169
      %v1197 = vadd.f32 %v1158, %v1169
      %v1198 = vadd.f32 %v1159, %v1169
      %v1199 = vadd.f32 %v1160, %v1169
      %v1200 = vadd.f32 %v1161, %v1169
      %v1201 = vadd.f32 %v1162, %v1169
      %v1202 = vadd.f32 %v1163, %v1169
      %vm1203 = vcmask 261120
      %1204 = vst.msk [vmem:[%s170] sm:$0xff] %vm1203, %v1171
      %1205 = vst.msk [vmem:[%s170 + $0x8] sm:$0xff] %vm1203, %v1172
      %1206 = vst.msk [vmem:[%s170 + $0x10] sm:$0xff] %vm1203, %v1173
      %1207 = vst.msk [vmem:[%s170 + $0x18] sm:$0xff] %vm1203, %v1174
      %1208 = vst.msk [vmem:[%s170 + $0x20] sm:$0xff] %vm1203, %v1175
      %1209 = vst.msk [vmem:[%s170 + $0x28] sm:$0xff] %vm1203, %v1176
      %1210 = vst.msk [vmem:[%s170 + $0x30] sm:$0xff] %vm1203, %v1177
      %1211 = vst.msk [vmem:[%s170 + $0x38] sm:$0xff] %vm1203, %v1178
      %1212 = vst.msk [vmem:[%s170 + $0x40] sm:$0xff] %vm1203, %v1179
      %1213 = vst.msk [vmem:[%s170 + $0x48] sm:$0xff] %vm1203, %v1180
      %1214 = vst.msk [vmem:[%s170 + $0x50] sm:$0xff] %vm1203, %v1181
      %1215 = vst.msk [vmem:[%s170 + $0x58] sm:$0xff] %vm1203, %v1182
      %1216 = vst.msk [vmem:[%s170 + $0x60] sm:$0xff] %vm1203, %v1183
      %1217 = vst.msk [vmem:[%s170 + $0x68] sm:$0xff] %vm1203, %v1184
      %1218 = vst.msk [vmem:[%s170 + $0x70] sm:$0xff] %vm1203, %v1185
      %1219 = vst.msk [vmem:[%s170 + $0x78] sm:$0xff] %vm1203, %v1186
      %1220 = vst.msk [vmem:[%s170 + $0x80] sm:$0xff] %vm1203, %v1187
      %1221 = vst.msk [vmem:[%s170 + $0x88] sm:$0xff] %vm1203, %v1188
      %1222 = vst.msk [vmem:[%s170 + $0x90] sm:$0xff] %vm1203, %v1189
      %1223 = vst.msk [vmem:[%s170 + $0x98] sm:$0xff] %vm1203, %v1190
      %1224 = vst.msk [vmem:[%s170 + $0xa0] sm:$0xff] %vm1203, %v1191
      %1225 = vst.msk [vmem:[%s170 + $0xa8] sm:$0xff] %vm1203, %v1192
      %1226 = vst.msk [vmem:[%s170 + $0xb0] sm:$0xff] %vm1203, %v1193
      %1227 = vst.msk [vmem:[%s170 + $0xb8] sm:$0xff] %vm1203, %v1194
      %1228 = vst.msk [vmem:[%s170 + $0xc0] sm:$0xff] %vm1203, %v1195
      %1229 = vst.msk [vmem:[%s170 + $0xc8] sm:$0xff] %vm1203, %v1196
      %1230 = vst.msk [vmem:[%s170 + $0xd0] sm:$0xff] %vm1203, %v1197
      %1231 = vst.msk [vmem:[%s170 + $0xd8] sm:$0xff] %vm1203, %v1198
      %1232 = vst.msk [vmem:[%s170 + $0xe0] sm:$0xff] %vm1203, %v1199
      %1233 = vst.msk [vmem:[%s170 + $0xe8] sm:$0xff] %vm1203, %v1200
      %1234 = vst.msk [vmem:[%s170 + $0xf0] sm:$0xff] %vm1203, %v1201
      %1235 = vst.msk [vmem:[%s170 + $0xf8] sm:$0xff] %vm1203, %v1202
      %p1236 = scmp.lt.s32.totalorder %s14, 3
      %s1237 = scalar_select %p1236, %s14, 3
      %s1238 = smul.addr %s1237, 32
      %s1239 = smul.addr %s1238, 8
      %s1240 = scalar_lea.vmem %s3, %s1239
      // Predicated region
      $region33: #{asi_forward.9} parent=31 // pred_check
        %p1241 = pneg %p100
      $region34: #{asi_forward.9} parent=31 // pred_check_branch
        %1243 = sbr.rel (%p1241) target = $region36
      $region35: #{asi_forward.9} parent=31 // pred_region
        _
      $region36: #{asi_forward.9} parent=31 // pred_fallthru
        _
    $region32: #{asi_forward.9} parent=5 // pred_fallthru
      _
    %p1244 = scmp.le.s32.totalorder 2, %s9
    // Predicated region
    $region37: #{asi_forward.9} parent=5 // pred_check
      %p1245 = pneg %p1244
    $region38: #{asi_forward.9} parent=5 // pred_check_branch
      %1247 = sbr.rel (%p1245) target = $region40
    $region39: #{asi_forward.9} parent=5 // pred_region
      %s1248 = ssub.s32 %s9, 2
      // Predicated region
      $region41: #{asi_forward.9} parent=39 // pred_check
        %p1249 = pneg %p106
      $region42: #{asi_forward.9} parent=39 // pred_check_branch
        %1251 = sbr.rel (%p1249) target = $region44
      $region43: #{asi_forward.9} parent=39 // pred_region
        %p1252 = scmp.lt.s32.totalorder %s15, 3
        %s1253 = scalar_select %p1252, %s15, 3
        %s1254 = smul.addr %s1253, 32
        %s1255 = smul.addr %s1254, 8
        %s1256 = scalar_lea.vmem %s3, %s1255
      $region44: #{asi_forward.9} parent=39 // pred_fallthru
        _
    $region40: #{asi_forward.9} parent=5 // pred_fallthru
      _
  $region6: #{asi_forward.9} parent=0 // loop_footer
    %s13 = sadd.s32 1, %s9
  $region7: #{asi_forward.9} parent=0 // loop_footer_branch
    %8 = sbr.rel target = $region3
  $region8: #{asi_forward.9} parent=0 // loop_exit
    _

</llo_original>
